<compile_context>
chip_gen: v6e
topology: v6e:2x2x1
jax: 0.10.0
libtpu: 0.0.40
codegen_flags: <defaults>
</compile_context>

<pallas_src>
import functools

import jax
import jax.numpy as jnp
from jax.experimental import pallas as pl
from jax.experimental.pallas import tpu as pltpu


def _round_up(x, m):
    return ((x + m - 1) // m) * m


def _num_tensorcores_per_chip():
    """Best-effort TensorCore count (v7x: 2 per chip; v5e/v6e: 1)."""
    try:
        kind = jax.devices()[0].device_kind.lower()
    except Exception:
        return 1
    return 2 if ("v7" in kind or "7x" in kind) else 1


def _conv_taps_kernel(x_ref, w_ref, shift_ref, o_ref, *, tap_offsets, n_rows):
    """out[i] = BN_shift + sum_p ReLU(x[i])[off_p : off_p + n_rows] @ W_p.

    x_ref     : (nb, R_pad, C_in)    flat padded NHWC image(s), row = h*W_p + w
    w_ref     : (KH*KW, C_in, C_pad) conv weights with BN scale pre-folded
    shift_ref : (1, C_pad)           BN shift
    o_ref     : (nb, n_rows, C_pad)  n_rows = H_f * W_p  (stride-1 output rows,
                                      lane-dense; garbage W columns sliced off
                                      in the wrapper)
    """
    nb = x_ref.shape[0]
    c_pad = o_ref.shape[-1]
    for i in range(nb):                        # static unroll over images in block
        a = jnp.maximum(x_ref[i], 0.0)         # ReLU once per input tile
        # Accumulator starts at the BN shift -> no epilogue broadcast-add.
        acc = jnp.broadcast_to(shift_ref[...], (n_rows, c_pad))
        for p, off in enumerate(tap_offsets):  # static unroll over KH*KW taps
            acc = acc + jnp.dot(a[off:off + n_rows, :], w_ref[p],
                                preferred_element_type=jnp.float32)
        o_ref[i] = acc.astype(o_ref.dtype)


def _run_pallas(x_flat, w_mat, shift, *, tap_offsets, n_rows, nb):
    """x_flat: (N_pad, R_pad, C_in), w_mat: (KH*KW, C_in, C_pad), shift: (1, C_pad)."""
    n_pad, r_pad, c_in = x_flat.shape
    taps, _, c_pad = w_mat.shape
    grid = (n_pad // nb,)

    kernel = functools.partial(_conv_taps_kernel,
                               tap_offsets=tap_offsets, n_rows=n_rows)

    return pl.pallas_call(
        kernel,
        out_shape=jax.ShapeDtypeStruct((n_pad, n_rows, c_pad), jnp.float32),
        grid_spec=pltpu.PrefetchScalarGridSpec(
            num_scalar_prefetch=0,
            grid=grid,
            in_specs=[
                # Full-extent last two dims are legal block dims (no 8/128 pad
                # of the activations in HBM).
                pl.BlockSpec((nb, r_pad, c_in), lambda i: (i, 0, 0)),
                pl.BlockSpec((taps, c_in, c_pad), lambda i: (0, 0, 0)),  # resident
                pl.BlockSpec((1, c_pad), lambda i: (0, 0)),              # resident
            ],
            out_specs=pl.BlockSpec((nb, n_rows, c_pad), lambda i: (i, 0, 0)),
        ),
        compiler_params=pltpu.CompilerParams(
            dimension_semantics=("parallel",),
        ),
    )(x_flat, w_mat, shift)


@functools.partial(jax.jit, static_argnames=("stride", "padding", "dilation"))
def relu_conv_bn(x_nchw, conv_w, bn_gamma, bn_beta, bn_mean, bn_var,
                 *, stride, padding, dilation, eps=1e-5):
    """ReLU -> Conv2d(bias=False) -> BatchNorm2d (eval), NCHW in / NCHW out."""
    N, C_in, H, W = x_nchw.shape
    C_out, _, KH, KW = conv_w.shape

    H_p, W_p = H + 2 * padding, W + 2 * padding
    H_f = H_p - dilation * (KH - 1)          # stride-1 output height
    W_f = W_p - dilation * (KW - 1)          # stride-1 output width
    H_out = (H_f - 1) // stride + 1
    W_out = (W_f - 1) // stride + 1
    C_pad = _round_up(C_out, 128)            # lane-dense output channels

    # ---- generation-aware batch blocking: grid length == #TensorCores ----
    num_tc = _num_tensorcores_per_chip()
    nb = max(1, -(-N // num_tc))             # images per grid step
    grid_n = -(-N // nb)
    N_pad = grid_n * nb

    # ---- glue: NHWC, spatial zero-pad, flatten (pad 0 commutes with ReLU) ----
    x_nhwc = jnp.transpose(x_nchw, (0, 2, 3, 1))
    xp = jnp.pad(x_nhwc, ((0, 0), (padding, padding), (padding, padding), (0, 0)))

    R = H_p * W_p
    n_rows = H_f * W_p                                   # stride-1 rows incl. garbage cols
    max_off = dilation * (KH - 1) * W_p + dilation * (KW - 1)
    R_pad = _round_up(max_off + n_rows, 8)               # guard rows (zeros, only feed
                                                         # garbage output columns)
    x_flat = xp.reshape(N, R, C_in)
    x_flat = jnp.pad(x_flat, ((0, N_pad - N), (0, R_pad - R), (0, 0)))

    # ---- weights: (C_out,C_in,KH,KW) -> (KH*KW, C_in, C_out); fold BN scale ----
    inv_std = jax.lax.rsqrt(bn_var + eps)
    scale = bn_gamma * inv_std                           # (C_out,)
    shift = bn_beta - bn_mean * scale                    # (C_out,)
    w_mat = jnp.transpose(conv_w, (2, 3, 1, 0)).reshape(KH * KW, C_in, C_out)
    w_mat = w_mat * scale[None, None, :]
    w_mat = jnp.pad(w_mat, ((0, 0), (0, 0), (0, C_pad - C_out)))
    shift_p = jnp.pad(shift[None, :], ((0, 0), (0, C_pad - C_out)))

    # static per-tap row offsets into the flat (h*W_p + w) layout
    tap_offsets = tuple(dilation * kh * W_p + dilation * kw
                        for kh in range(KH) for kw in range(KW))

    # ---- hot path in Pallas ----
    out_flat = _run_pallas(x_flat, w_mat, shift_p,
                           tap_offsets=tap_offsets, n_rows=n_rows, nb=nb)

    # slice off padded batch, garbage W columns, padded channels; apply stride
    out = out_flat[:N].reshape(N, H_f, W_p, C_pad)
    out = out[:, ::stride, 0:W_f:stride, :C_out]         # (N, H_out, W_out, C_out)
    return jnp.transpose(out, (0, 3, 1, 2))              # back to NCHW


def _reference(x_nchw, conv_w, bn_gamma, bn_beta, bn_mean, bn_var,
               *, stride, padding, dilation, eps=1e-5):
    """Pure-JAX reference for correctness checking."""
    xr = jnp.maximum(x_nchw, 0.0)
    y = jax.lax.conv_general_dilated(
        xr, conv_w,
        window_strides=(stride, stride),
        padding=((padding, padding), (padding, padding)),
        rhs_dilation=(dilation, dilation),
        dimension_numbers=("NCHW", "OIHW", "NCHW"),
    )
    inv_std = 1.0 / jnp.sqrt(bn_var + eps)
    scale = (bn_gamma * inv_std)[None, :, None, None]
    shift = (bn_beta - bn_mean * bn_gamma * inv_std)[None, :, None, None]
    return y * scale + shift


if __name__ == "__main__":
    # Module hyper-params: ReLUConvBN(C_in=4, C_out=8, kernel_size=3,
    #                                 stride=1, padding=1, dilation=1, affine=True)
    N, C_in, H, W = 2, 4, 16, 16
    C_out, KH, KW = 8, 3, 3
    stride, padding, dilation = 1, 1, 1

    key = jax.random.PRNGKey(0)
    k_x, k_w, k_g, k_b, k_m, k_v = jax.random.split(key, 6)

    x = jax.random.normal(k_x, (N, C_in, H, W), jnp.float32)
    conv_w = jax.random.normal(k_w, (C_out, C_in, KH, KW), jnp.float32) * 0.1
    bn_gamma = jax.random.normal(k_g, (C_out,), jnp.float32) * 0.1 + 1.0
    bn_beta = jax.random.normal(k_b, (C_out,), jnp.float32) * 0.1
    bn_mean = jax.random.normal(k_m, (C_out,), jnp.float32) * 0.1
    bn_var = jax.random.uniform(k_v, (C_out,), jnp.float32, 0.5, 1.5)

    out = relu_conv_bn(x, conv_w, bn_gamma, bn_beta, bn_mean, bn_var,
                       stride=stride, padding=padding, dilation=dilation)
    out = jax.block_until_ready(out)

    ref = _reference(x, conv_w, bn_gamma, bn_beta, bn_mean, bn_var,
                     stride=stride, padding=padding, dilation=dilation)
    assert out.shape == (N, C_out, H, W), out.shape
    assert jnp.allclose(out, ref, atol=1e-4, rtol=1e-4), "mismatch vs reference"

    print("KERNEL_OK")
</pallas_src>

<mosaic_0001>
module attributes {stable_mosaic.version = 11 : i64} {
  func.func @_conv_taps_kernel(%arg0: i32, %arg1: memref<2x328x4xf32, #tpu.memory_space<vmem>>, %arg2: memref<9x4x128xf32, #tpu.memory_space<vmem>>, %arg3: memref<1x128xf32, #tpu.memory_space<vmem>>, %arg4: memref<2x288x128xf32, #tpu.memory_space<vmem>>) attributes {dimension_semantics = [#tpu.dimension_semantics<parallel>], iteration_bounds = array<i64: 1>, scalar_prefetch = 0 : i64, scratch_operands = 0 : i64, tpu.core_type = #tpu.core_type<tc>, window_params = [{transform_indices = @transform_0, window_bounds = array<i64: 2, 328, 4>}, {pipeline_mode = #tpu.pipeline_mode<synchronous>, transform_indices = @transform_1, window_bounds = array<i64: 9, 4, 128>}, {pipeline_mode = #tpu.pipeline_mode<synchronous>, transform_indices = @transform_2, window_bounds = array<i64: 1, 128>}, {transform_indices = @transform_3, window_bounds = array<i64: 2, 288, 128>}]} {
    %c0 = arith.constant 0 : index
    %c0_0 = arith.constant 0 : index
    %c0_1 = arith.constant 0 : index
    %0 = vector.load %arg1[%c0, %c0_0, %c0_1] : memref<2x328x4xf32, #tpu.memory_space<vmem>>, vector<1x328x4xf32>
    %1 = vector.shape_cast %0 : vector<1x328x4xf32> to vector<328x4xf32>
    %cst = arith.constant 0.000000e+00 : f32
    %2 = vector.broadcast %cst : f32 to vector<328x4xf32>
    %3 = arith.maximumf %1, %2 : vector<328x4xf32>
    %c0_2 = arith.constant 0 : index
    %c0_3 = arith.constant 0 : index
    %4 = vector.load %arg3[%c0_2, %c0_3] : memref<1x128xf32, #tpu.memory_space<vmem>>, vector<1x128xf32>
    %5 = vector.shape_cast %4 : vector<1x128xf32> to vector<1x128xf32>
    %6 = vector.broadcast %5 : vector<1x128xf32> to vector<288x128xf32>
    %7 = vector.extract_strided_slice %3 {offsets = [0, 0], sizes = [288, 4], strides = [1, 1]} : vector<328x4xf32> to vector<288x4xf32>
    %c0_4 = arith.constant 0 : index
    %c0_5 = arith.constant 0 : index
    %c0_6 = arith.constant 0 : index
    %8 = vector.load %arg2[%c0_4, %c0_5, %c0_6] : memref<9x4x128xf32, #tpu.memory_space<vmem>>, vector<1x4x128xf32>
    %9 = vector.shape_cast %8 : vector<1x4x128xf32> to vector<4x128xf32>
    %cst_7 = arith.constant dense<0.000000e+00> : vector<288x128xf32>
    %10 = tpu.matmul %7, %9, %cst_7 {dimension_numbers = #tpu.dot_dimension_numbers<[1], [0], [0], [1], [0, 0, 1, 1], [], []>} : vector<288x4xf32>, vector<4x128xf32>, vector<288x128xf32> -> vector<288x128xf32>
    %11 = arith.addf %6, %10 : vector<288x128xf32>
    %12 = vector.extract_strided_slice %3 {offsets = [1, 0], sizes = [288, 4], strides = [1, 1]} : vector<328x4xf32> to vector<288x4xf32>
    %c1 = arith.constant 1 : index
    %c0_8 = arith.constant 0 : index
    %c0_9 = arith.constant 0 : index
    %13 = vector.load %arg2[%c1, %c0_8, %c0_9] : memref<9x4x128xf32, #tpu.memory_space<vmem>>, vector<1x4x128xf32>
    %14 = vector.shape_cast %13 : vector<1x4x128xf32> to vector<4x128xf32>
    %cst_10 = arith.constant dense<0.000000e+00> : vector<288x128xf32>
    %15 = tpu.matmul %12, %14, %cst_10 {dimension_numbers = #tpu.dot_dimension_numbers<[1], [0], [0], [1], [0, 0, 1, 1], [], []>} : vector<288x4xf32>, vector<4x128xf32>, vector<288x128xf32> -> vector<288x128xf32>
    %16 = arith.addf %11, %15 : vector<288x128xf32>
    %17 = vector.extract_strided_slice %3 {offsets = [2, 0], sizes = [288, 4], strides = [1, 1]} : vector<328x4xf32> to vector<288x4xf32>
    %c2 = arith.constant 2 : index
    %c0_11 = arith.constant 0 : index
    %c0_12 = arith.constant 0 : index
    %18 = vector.load %arg2[%c2, %c0_11, %c0_12] : memref<9x4x128xf32, #tpu.memory_space<vmem>>, vector<1x4x128xf32>
    %19 = vector.shape_cast %18 : vector<1x4x128xf32> to vector<4x128xf32>
    %cst_13 = arith.constant dense<0.000000e+00> : vector<288x128xf32>
    %20 = tpu.matmul %17, %19, %cst_13 {dimension_numbers = #tpu.dot_dimension_numbers<[1], [0], [0], [1], [0, 0, 1, 1], [], []>} : vector<288x4xf32>, vector<4x128xf32>, vector<288x128xf32> -> vector<288x128xf32>
    %21 = arith.addf %16, %20 : vector<288x128xf32>
    %22 = vector.extract_strided_slice %3 {offsets = [18, 0], sizes = [288, 4], strides = [1, 1]} : vector<328x4xf32> to vector<288x4xf32>
    %c3 = arith.constant 3 : index
    %c0_14 = arith.constant 0 : index
    %c0_15 = arith.constant 0 : index
    %23 = vector.load %arg2[%c3, %c0_14, %c0_15] : memref<9x4x128xf32, #tpu.memory_space<vmem>>, vector<1x4x128xf32>
    %24 = vector.shape_cast %23 : vector<1x4x128xf32> to vector<4x128xf32>
    %cst_16 = arith.constant dense<0.000000e+00> : vector<288x128xf32>
    %25 = tpu.matmul %22, %24, %cst_16 {dimension_numbers = #tpu.dot_dimension_numbers<[1], [0], [0], [1], [0, 0, 1, 1], [], []>} : vector<288x4xf32>, vector<4x128xf32>, vector<288x128xf32> -> vector<288x128xf32>
    %26 = arith.addf %21, %25 : vector<288x128xf32>
    %27 = vector.extract_strided_slice %3 {offsets = [19, 0], sizes = [288, 4], strides = [1, 1]} : vector<328x4xf32> to vector<288x4xf32>
    %c4 = arith.constant 4 : index
    %c0_17 = arith.constant 0 : index
    %c0_18 = arith.constant 0 : index
    %28 = vector.load %arg2[%c4, %c0_17, %c0_18] : memref<9x4x128xf32, #tpu.memory_space<vmem>>, vector<1x4x128xf32>
    %29 = vector.shape_cast %28 : vector<1x4x128xf32> to vector<4x128xf32>
    %cst_19 = arith.constant dense<0.000000e+00> : vector<288x128xf32>
    %30 = tpu.matmul %27, %29, %cst_19 {dimension_numbers = #tpu.dot_dimension_numbers<[1], [0], [0], [1], [0, 0, 1, 1], [], []>} : vector<288x4xf32>, vector<4x128xf32>, vector<288x128xf32> -> vector<288x128xf32>
    %31 = arith.addf %26, %30 : vector<288x128xf32>
    %32 = vector.extract_strided_slice %3 {offsets = [20, 0], sizes = [288, 4], strides = [1, 1]} : vector<328x4xf32> to vector<288x4xf32>
    %c5 = arith.constant 5 : index
    %c0_20 = arith.constant 0 : index
    %c0_21 = arith.constant 0 : index
    %33 = vector.load %arg2[%c5, %c0_20, %c0_21] : memref<9x4x128xf32, #tpu.memory_space<vmem>>, vector<1x4x128xf32>
    %34 = vector.shape_cast %33 : vector<1x4x128xf32> to vector<4x128xf32>
    %cst_22 = arith.constant dense<0.000000e+00> : vector<288x128xf32>
    %35 = tpu.matmul %32, %34, %cst_22 {dimension_numbers = #tpu.dot_dimension_numbers<[1], [0], [0], [1], [0, 0, 1, 1], [], []>} : vector<288x4xf32>, vector<4x128xf32>, vector<288x128xf32> -> vector<288x128xf32>
    %36 = arith.addf %31, %35 : vector<288x128xf32>
    %37 = vector.extract_strided_slice %3 {offsets = [36, 0], sizes = [288, 4], strides = [1, 1]} : vector<328x4xf32> to vector<288x4xf32>
    %c6 = arith.constant 6 : index
    %c0_23 = arith.constant 0 : index
    %c0_24 = arith.constant 0 : index
    %38 = vector.load %arg2[%c6, %c0_23, %c0_24] : memref<9x4x128xf32, #tpu.memory_space<vmem>>, vector<1x4x128xf32>
    %39 = vector.shape_cast %38 : vector<1x4x128xf32> to vector<4x128xf32>
    %cst_25 = arith.constant dense<0.000000e+00> : vector<288x128xf32>
    %40 = tpu.matmul %37, %39, %cst_25 {dimension_numbers = #tpu.dot_dimension_numbers<[1], [0], [0], [1], [0, 0, 1, 1], [], []>} : vector<288x4xf32>, vector<4x128xf32>, vector<288x128xf32> -> vector<288x128xf32>
    %41 = arith.addf %36, %40 : vector<288x128xf32>
    %42 = vector.extract_strided_slice %3 {offsets = [37, 0], sizes = [288, 4], strides = [1, 1]} : vector<328x4xf32> to vector<288x4xf32>
    %c7 = arith.constant 7 : index
    %c0_26 = arith.constant 0 : index
    %c0_27 = arith.constant 0 : index
    %43 = vector.load %arg2[%c7, %c0_26, %c0_27] : memref<9x4x128xf32, #tpu.memory_space<vmem>>, vector<1x4x128xf32>
    %44 = vector.shape_cast %43 : vector<1x4x128xf32> to vector<4x128xf32>
    %cst_28 = arith.constant dense<0.000000e+00> : vector<288x128xf32>
    %45 = tpu.matmul %42, %44, %cst_28 {dimension_numbers = #tpu.dot_dimension_numbers<[1], [0], [0], [1], [0, 0, 1, 1], [], []>} : vector<288x4xf32>, vector<4x128xf32>, vector<288x128xf32> -> vector<288x128xf32>
    %46 = arith.addf %41, %45 : vector<288x128xf32>
    %47 = vector.extract_strided_slice %3 {offsets = [38, 0], sizes = [288, 4], strides = [1, 1]} : vector<328x4xf32> to vector<288x4xf32>
    %c8 = arith.constant 8 : index
    %c0_29 = arith.constant 0 : index
    %c0_30 = arith.constant 0 : index
    %48 = vector.load %arg2[%c8, %c0_29, %c0_30] : memref<9x4x128xf32, #tpu.memory_space<vmem>>, vector<1x4x128xf32>
    %49 = vector.shape_cast %48 : vector<1x4x128xf32> to vector<4x128xf32>
    %cst_31 = arith.constant dense<0.000000e+00> : vector<288x128xf32>
    %50 = tpu.matmul %47, %49, %cst_31 {dimension_numbers = #tpu.dot_dimension_numbers<[1], [0], [0], [1], [0, 0, 1, 1], [], []>} : vector<288x4xf32>, vector<4x128xf32>, vector<288x128xf32> -> vector<288x128xf32>
    %51 = arith.addf %46, %50 : vector<288x128xf32>
    %c0_32 = arith.constant 0 : index
    %c0_33 = arith.constant 0 : index
    %c0_34 = arith.constant 0 : index
    %52 = vector.load %arg4[%c0_32, %c0_33, %c0_34] : memref<2x288x128xf32, #tpu.memory_space<vmem>>, vector<1x288x128xf32>
    %53 = vector.shape_cast %52 : vector<1x288x128xf32> to vector<288x128xf32>
    %54 = vector.shape_cast %51 : vector<288x128xf32> to vector<1x288x128xf32>
    tpu.vector_store %arg4[%c0_32, %c0_33, %c0_34], %54 {strides = array<i32>} : memref<2x288x128xf32, #tpu.memory_space<vmem>>, vector<1x288x128xf32>,
    %c1_35 = arith.constant 1 : index
    %c0_36 = arith.constant 0 : index
    %c0_37 = arith.constant 0 : index
    %55 = vector.load %arg1[%c1_35, %c0_36, %c0_37] : memref<2x328x4xf32, #tpu.memory_space<vmem>>, vector<1x328x4xf32>
    %56 = vector.shape_cast %55 : vector<1x328x4xf32> to vector<328x4xf32>
    %cst_38 = arith.constant 0.000000e+00 : f32
    %57 = vector.broadcast %cst_38 : f32 to vector<328x4xf32>
    %58 = arith.maximumf %56, %57 : vector<328x4xf32>
    %c0_39 = arith.constant 0 : index
    %c0_40 = arith.constant 0 : index
    %59 = vector.load %arg3[%c0_39, %c0_40] : memref<1x128xf32, #tpu.memory_space<vmem>>, vector<1x128xf32>
    %60 = vector.shape_cast %59 : vector<1x128xf32> to vector<1x128xf32>
    %61 = vector.broadcast %60 : vector<1x128xf32> to vector<288x128xf32>
    %62 = vector.extract_strided_slice %58 {offsets = [0, 0], sizes = [288, 4], strides = [1, 1]} : vector<328x4xf32> to vector<288x4xf32>
    %c0_41 = arith.constant 0 : index
    %c0_42 = arith.constant 0 : index
    %c0_43 = arith.constant 0 : index
    %63 = vector.load %arg2[%c0_41, %c0_42, %c0_43] : memref<9x4x128xf32, #tpu.memory_space<vmem>>, vector<1x4x128xf32>
    %64 = vector.shape_cast %63 : vector<1x4x128xf32> to vector<4x128xf32>
    %cst_44 = arith.constant dense<0.000000e+00> : vector<288x128xf32>
    %65 = tpu.matmul %62, %64, %cst_44 {dimension_numbers = #tpu.dot_dimension_numbers<[1], [0], [0], [1], [0, 0, 1, 1], [], []>} : vector<288x4xf32>, vector<4x128xf32>, vector<288x128xf32> -> vector<288x128xf32>
    %66 = arith.addf %61, %65 : vector<288x128xf32>
    %67 = vector.extract_strided_slice %58 {offsets = [1, 0], sizes = [288, 4], strides = [1, 1]} : vector<328x4xf32> to vector<288x4xf32>
    %c1_45 = arith.constant 1 : index
    %c0_46 = arith.constant 0 : index
    %c0_47 = arith.constant 0 : index
    %68 = vector.load %arg2[%c1_45, %c0_46, %c0_47] : memref<9x4x128xf32, #tpu.memory_space<vmem>>, vector<1x4x128xf32>
    %69 = vector.shape_cast %68 : vector<1x4x128xf32> to vector<4x128xf32>
    %cst_48 = arith.constant dense<0.000000e+00> : vector<288x128xf32>
    %70 = tpu.matmul %67, %69, %cst_48 {dimension_numbers = #tpu.dot_dimension_numbers<[1], [0], [0], [1], [0, 0, 1, 1], [], []>} : vector<288x4xf32>, vector<4x128xf32>, vector<288x128xf32> -> vector<288x128xf32>
    %71 = arith.addf %66, %70 : vector<288x128xf32>
    %72 = vector.extract_strided_slice %58 {offsets = [2, 0], sizes = [288, 4], strides = [1, 1]} : vector<328x4xf32> to vector<288x4xf32>
    %c2_49 = arith.constant 2 : index
    %c0_50 = arith.constant 0 : index
    %c0_51 = arith.constant 0 : index
    %73 = vector.load %arg2[%c2_49, %c0_50, %c0_51] : memref<9x4x128xf32, #tpu.memory_space<vmem>>, vector<1x4x128xf32>
    %74 = vector.shape_cast %73 : vector<1x4x128xf32> to vector<4x128xf32>
    %cst_52 = arith.constant dense<0.000000e+00> : vector<288x128xf32>
    %75 = tpu.matmul %72, %74, %cst_52 {dimension_numbers = #tpu.dot_dimension_numbers<[1], [0], [0], [1], [0, 0, 1, 1], [], []>} : vector<288x4xf32>, vector<4x128xf32>, vector<288x128xf32> -> vector<288x128xf32>
    %76 = arith.addf %71, %75 : vector<288x128xf32>
    %77 = vector.extract_strided_slice %58 {offsets = [18, 0], sizes = [288, 4], strides = [1, 1]} : vector<328x4xf32> to vector<288x4xf32>
    %c3_53 = arith.constant 3 : index
    %c0_54 = arith.constant 0 : index
    %c0_55 = arith.constant 0 : index
    %78 = vector.load %arg2[%c3_53, %c0_54, %c0_55] : memref<9x4x128xf32, #tpu.memory_space<vmem>>, vector<1x4x128xf32>
    %79 = vector.shape_cast %78 : vector<1x4x128xf32> to vector<4x128xf32>
    %cst_56 = arith.constant dense<0.000000e+00> : vector<288x128xf32>
    %80 = tpu.matmul %77, %79, %cst_56 {dimension_numbers = #tpu.dot_dimension_numbers<[1], [0], [0], [1], [0, 0, 1, 1], [], []>} : vector<288x4xf32>, vector<4x128xf32>, vector<288x128xf32> -> vector<288x128xf32>
    %81 = arith.addf %76, %80 : vector<288x128xf32>
    %82 = vector.extract_strided_slice %58 {offsets = [19, 0], sizes = [288, 4], strides = [1, 1]} : vector<328x4xf32> to vector<288x4xf32>
    %c4_57 = arith.constant 4 : index
    %c0_58 = arith.constant 0 : index
    %c0_59 = arith.constant 0 : index
    %83 = vector.load %arg2[%c4_57, %c0_58, %c0_59] : memref<9x4x128xf32, #tpu.memory_space<vmem>>, vector<1x4x128xf32>
    %84 = vector.shape_cast %83 : vector<1x4x128xf32> to vector<4x128xf32>
    %cst_60 = arith.constant dense<0.000000e+00> : vector<288x128xf32>
    %85 = tpu.matmul %82, %84, %cst_60 {dimension_numbers = #tpu.dot_dimension_numbers<[1], [0], [0], [1], [0, 0, 1, 1], [], []>} : vector<288x4xf32>, vector<4x128xf32>, vector<288x128xf32> -> vector<288x128xf32>
    %86 = arith.addf %81, %85 : vector<288x128xf32>
    %87 = vector.extract_strided_slice %58 {offsets = [20, 0], sizes = [288, 4], strides = [1, 1]} : vector<328x4xf32> to vector<288x4xf32>
    %c5_61 = arith.constant 5 : index
    %c0_62 = arith.constant 0 : index
    %c0_63 = arith.constant 0 : index
    %88 = vector.load %arg2[%c5_61, %c0_62, %c0_63] : memref<9x4x128xf32, #tpu.memory_space<vmem>>, vector<1x4x128xf32>
    %89 = vector.shape_cast %88 : vector<1x4x128xf32> to vector<4x128xf32>
    %cst_64 = arith.constant dense<0.000000e+00> : vector<288x128xf32>
    %90 = tpu.matmul %87, %89, %cst_64 {dimension_numbers = #tpu.dot_dimension_numbers<[1], [0], [0], [1], [0, 0, 1, 1], [], []>} : vector<288x4xf32>, vector<4x128xf32>, vector<288x128xf32> -> vector<288x128xf32>
    %91 = arith.addf %86, %90 : vector<288x128xf32>
    %92 = vector.extract_strided_slice %58 {offsets = [36, 0], sizes = [288, 4], strides = [1, 1]} : vector<328x4xf32> to vector<288x4xf32>
    %c6_65 = arith.constant 6 : index
    %c0_66 = arith.constant 0 : index
    %c0_67 = arith.constant 0 : index
    %93 = vector.load %arg2[%c6_65, %c0_66, %c0_67] : memref<9x4x128xf32, #tpu.memory_space<vmem>>, vector<1x4x128xf32>
    %94 = vector.shape_cast %93 : vector<1x4x128xf32> to vector<4x128xf32>
    %cst_68 = arith.constant dense<0.000000e+00> : vector<288x128xf32>
    %95 = tpu.matmul %92, %94, %cst_68 {dimension_numbers = #tpu.dot_dimension_numbers<[1], [0], [0], [1], [0, 0, 1, 1], [], []>} : vector<288x4xf32>, vector<4x128xf32>, vector<288x128xf32> -> vector<288x128xf32>
    %96 = arith.addf %91, %95 : vector<288x128xf32>
    %97 = vector.extract_strided_slice %58 {offsets = [37, 0], sizes = [288, 4], strides = [1, 1]} : vector<328x4xf32> to vector<288x4xf32>
    %c7_69 = arith.constant 7 : index
    %c0_70 = arith.constant 0 : index
    %c0_71 = arith.constant 0 : index
    %98 = vector.load %arg2[%c7_69, %c0_70, %c0_71] : memref<9x4x128xf32, #tpu.memory_space<vmem>>, vector<1x4x128xf32>
    %99 = vector.shape_cast %98 : vector<1x4x128xf32> to vector<4x128xf32>
    %cst_72 = arith.constant dense<0.000000e+00> : vector<288x128xf32>
    %100 = tpu.matmul %97, %99, %cst_72 {dimension_numbers = #tpu.dot_dimension_numbers<[1], [0], [0], [1], [0, 0, 1, 1], [], []>} : vector<288x4xf32>, vector<4x128xf32>, vector<288x128xf32> -> vector<288x128xf32>
    %101 = arith.addf %96, %100 : vector<288x128xf32>
    %102 = vector.extract_strided_slice %58 {offsets = [38, 0], sizes = [288, 4], strides = [1, 1]} : vector<328x4xf32> to vector<288x4xf32>
    %c8_73 = arith.constant 8 : index
    %c0_74 = arith.constant 0 : index
    %c0_75 = arith.constant 0 : index
    %103 = vector.load %arg2[%c8_73, %c0_74, %c0_75] : memref<9x4x128xf32, #tpu.memory_space<vmem>>, vector<1x4x128xf32>
    %104 = vector.shape_cast %103 : vector<1x4x128xf32> to vector<4x128xf32>
    %cst_76 = arith.constant dense<0.000000e+00> : vector<288x128xf32>
    %105 = tpu.matmul %102, %104, %cst_76 {dimension_numbers = #tpu.dot_dimension_numbers<[1], [0], [0], [1], [0, 0, 1, 1], [], []>} : vector<288x4xf32>, vector<4x128xf32>, vector<288x128xf32> -> vector<288x128xf32>
    %106 = arith.addf %101, %105 : vector<288x128xf32>
    %c1_77 = arith.constant 1 : index
    %c0_78 = arith.constant 0 : index
    %c0_79 = arith.constant 0 : index
    %107 = vector.load %arg4[%c1_77, %c0_78, %c0_79] : memref<2x288x128xf32, #tpu.memory_space<vmem>>, vector<1x288x128xf32>
    %108 = vector.shape_cast %107 : vector<1x288x128xf32> to vector<288x128xf32>
    %109 = vector.shape_cast %106 : vector<288x128xf32> to vector<1x288x128xf32>
    tpu.vector_store %arg4[%c1_77, %c0_78, %c0_79], %109 {strides = array<i32>} : memref<2x288x128xf32, #tpu.memory_space<vmem>>, vector<1x288x128xf32>,
    return
  }
  func.func @transform_0(%arg0: i32) -> (i32, i32, i32) {
    %c0_i32 = arith.constant 0 : i32
    %c0_i32_0 = arith.constant 0 : i32
    %c0_i32_1 = arith.constant 0 : i32
    return %arg0, %c0_i32, %c0_i32_0 : i32, i32, i32
  }
  func.func @transform_1(%arg0: i32) -> (i32, i32, i32) {
    %c0_i32 = arith.constant 0 : i32
    %c0_i32_0 = arith.constant 0 : i32
    %c0_i32_1 = arith.constant 0 : i32
    %c0_i32_2 = arith.constant 0 : i32
    return %c0_i32, %c0_i32_0, %c0_i32_1 : i32, i32, i32
  }
  func.func @transform_2(%arg0: i32) -> (i32, i32) {
    %c0_i32 = arith.constant 0 : i32
    %c0_i32_0 = arith.constant 0 : i32
    %c0_i32_1 = arith.constant 0 : i32
    return %c0_i32, %c0_i32_0 : i32, i32
  }
  func.func @transform_3(%arg0: i32) -> (i32, i32, i32) {
    %c0_i32 = arith.constant 0 : i32
    %c0_i32_0 = arith.constant 0 : i32
    %c0_i32_1 = arith.constant 0 : i32
    return %arg0, %c0_i32, %c0_i32_0 : i32, i32, i32
  }
}

</mosaic_0001>

<llo_original>
// kernel: relu_conv_bn.1
$region0: #{relu_conv_bn.1}
  #allocation0 [shape = 'u32[]', space=smem, size = 0x4, offset = 0x4, fixed_abs, tag = 'smem constant byte address 0x4 - core index']
  #allocation1 [shape = 'u32[144,128]{1,0:T(1,128)}', space=vmem, size = 0x12000, scoped, tag = 'internal scratch']
  %s0 = inlined_call_operand.vmem [shape: f32[2,328,4], index: 0, kind: input, shape index: {}]
  %s1 = inlined_call_operand.vmem [shape: f32[9,4,128], index: 1, kind: input, shape index: {}]
  %s2 = inlined_call_operand.vmem [shape: f32[1,128], index: 2, kind: input, shape index: {}]
  %s3 = inlined_call_operand.vmem [shape: f32[2,288,128], index: 3, kind: output, shape index: {}]
  %s4 = sld [smem:[#allocation0]]
  $region22: #{relu_conv_bn.1} parent=0
    _
  %s6 = ssub.s32 1, %s4
  %s7 = scalar_select 0, %s6, %s4
  // Predicated region
  $region2: #{relu_conv_bn.1} parent=0 // pred_check
    _
  $region3: #{relu_conv_bn.1} parent=0 // pred_check_branch
    %9 = sbr.rel (0) target = $region5
  $region4: #{relu_conv_bn.1} parent=0 // pred_region
    _
  $region5: #{relu_conv_bn.1} parent=0 // pred_fallthru
    _
  // Predicated region
  $region6: #{relu_conv_bn.1} parent=0 // pred_check
    _
  $region7: #{relu_conv_bn.1} parent=0 // pred_check_branch
    %11 = sbr.rel (0) target = $region9
  $region8: #{relu_conv_bn.1} parent=0 // pred_region
    _
  $region9: #{relu_conv_bn.1} parent=0 // pred_fallthru
    _
  // Predicated region
  $region10: #{relu_conv_bn.1} parent=0 // pred_check
    _
  $region11: #{relu_conv_bn.1} parent=0 // pred_check_branch
    %13 = sbr.rel (0) target = $region13
  $region12: #{relu_conv_bn.1} parent=0 // pred_region
    _
  $region13: #{relu_conv_bn.1} parent=0 // pred_fallthru
    _
  %v14 = vld [vmem:[%s0] sm:$0xff]
  %v15 = vld [vmem:[%s0 + $0x8] sm:$0xff]
  %v16 = vld [vmem:[%s0 + $0x10] sm:$0xff]
  %v17 = vld [vmem:[%s0 + $0x18] sm:$0xff]
  %v18 = vld [vmem:[%s0 + $0x20] sm:$0xff]
  %v19 = vld [vmem:[%s0 + $0x28] sm:$0xff]
  %v20 = vld [vmem:[%s0 + $0x30] sm:$0xff]
  %v21 = vld [vmem:[%s0 + $0x38] sm:$0xff]
  %v22 = vld [vmem:[%s0 + $0x40] sm:$0xff]
  %v23 = vld [vmem:[%s0 + $0x48] sm:$0xff]
  %v24 = vld [vmem:[%s0 + $0x50] sm:$0xff]
  %v25 = vld [vmem:[%s0 + $0x58] sm:$0xff]
  %v26 = vld [vmem:[%s0 + $0x60] sm:$0xff]
  %v27 = vld [vmem:[%s0 + $0x68] sm:$0xff]
  %v28 = vld [vmem:[%s0 + $0x70] sm:$0xff]
  %v29 = vld [vmem:[%s0 + $0x78] sm:$0xff]
  %v30 = vld [vmem:[%s0 + $0x80] sm:$0xff]
  %v31 = vld [vmem:[%s0 + $0x88] sm:$0xff]
  %v32 = vld [vmem:[%s0 + $0x90] sm:$0xff]
  %v33 = vld [vmem:[%s0 + $0x98] sm:$0xff]
  %v34 = vld [vmem:[%s0 + $0xa0] sm:$0xff]
  %v35 = vld [vmem:[%s0 + $0xa8] sm:$0xff]
  %v36 = vld [vmem:[%s0 + $0xb0] sm:$0xff]
  %v37 = vld [vmem:[%s0 + $0xb8] sm:$0xff]
  %v38 = vld [vmem:[%s0 + $0xc0] sm:$0xff]
  %v39 = vld [vmem:[%s0 + $0xc8] sm:$0xff]
  %v40 = vld [vmem:[%s0 + $0xd0] sm:$0xff]
  %v41 = vld [vmem:[%s0 + $0xd8] sm:$0xff]
  %v42 = vld [vmem:[%s0 + $0xe0] sm:$0xff]
  %v43 = vld [vmem:[%s0 + $0xe8] sm:$0xff]
  %v44 = vld [vmem:[%s0 + $0xf0] sm:$0xff]
  %v45 = vld [vmem:[%s0 + $0xf8] sm:$0xff]
  %v46 = vld [vmem:[%s0 + $0x100] sm:$0xff]
  %v47 = vld [vmem:[%s0 + $0x108] sm:$0xff]
  %v48 = vld [vmem:[%s0 + $0x110] sm:$0xff]
  %v49 = vld [vmem:[%s0 + $0x118] sm:$0xff]
  %v50 = vld [vmem:[%s0 + $0x120] sm:$0xff]
  %v51 = vld [vmem:[%s0 + $0x128] sm:$0xff]
  %v52 = vld [vmem:[%s0 + $0x130] sm:$0xff]
  %v53 = vld [vmem:[%s0 + $0x138] sm:$0xff]
  %v54 = vld [vmem:[%s0 + $0x140] sm:$0xff]
  %v55 = vmax.f32 %v14, 0.0
  %v56 = vmax.f32 %v15, 0.0
  %v57 = vmax.f32 %v16, 0.0
  %v58 = vmax.f32 %v17, 0.0
  %v59 = vmax.f32 %v18, 0.0
  %v60 = vmax.f32 %v19, 0.0
  %v61 = vmax.f32 %v20, 0.0
  %v62 = vmax.f32 %v21, 0.0
  %v63 = vmax.f32 %v22, 0.0
  %v64 = vmax.f32 %v23, 0.0
  %v65 = vmax.f32 %v24, 0.0
  %v66 = vmax.f32 %v25, 0.0
  %v67 = vmax.f32 %v26, 0.0
  %v68 = vmax.f32 %v27, 0.0
  %v69 = vmax.f32 %v28, 0.0
  %v70 = vmax.f32 %v29, 0.0
  %v71 = vmax.f32 %v30, 0.0
  %v72 = vmax.f32 %v31, 0.0
  %v73 = vmax.f32 %v32, 0.0
  %v74 = vmax.f32 %v33, 0.0
  %v75 = vmax.f32 %v34, 0.0
  %v76 = vmax.f32 %v35, 0.0
  %v77 = vmax.f32 %v36, 0.0
  %v78 = vmax.f32 %v37, 0.0
  %v79 = vmax.f32 %v38, 0.0
  %v80 = vmax.f32 %v39, 0.0
  %v81 = vmax.f32 %v40, 0.0
  %v82 = vmax.f32 %v41, 0.0
  %v83 = vmax.f32 %v42, 0.0
  %v84 = vmax.f32 %v43, 0.0
  %v85 = vmax.f32 %v44, 0.0
  %v86 = vmax.f32 %v45, 0.0
  %v87 = vmax.f32 %v46, 0.0
  %v88 = vmax.f32 %v47, 0.0
  %v89 = vmax.f32 %v48, 0.0
  %v90 = vmax.f32 %v49, 0.0
  %v91 = vmax.f32 %v50, 0.0
  %v92 = vmax.f32 %v51, 0.0
  %v93 = vmax.f32 %v52, 0.0
  %v94 = vmax.f32 %v53, 0.0
  %v95 = vmax.f32 %v54, 0.0
  %v96 = vld [vmem:[%s2] sm:$0x1]
  %v98 = vlaneseq
  %v99 = vshrl.u32 %v98, 7
  %v100 = vsub.s32 0, %v99
  %v101 = vrot.slane %v96, %v100
  %v103 = vld [vmem:[%s1] sm:$0xf]
  %vm104 = vcmask 31744
  %v106 = vsel %vm104, %v55, 0
  %v109 = vsel %vm104, %v56, 0
  %v112 = vsel %vm104, %v57, 0
  %v115 = vsel %vm104, %v58, 0
  %v118 = vsel %vm104, %v59, 0
  %v121 = vsel %vm104, %v60, 0
  %v124 = vsel %vm104, %v61, 0
  %v127 = vsel %vm104, %v62, 0
  %v130 = vsel %vm104, %v63, 0
  %v133 = vsel %vm104, %v64, 0
  %v136 = vsel %vm104, %v65, 0
  %v139 = vsel %vm104, %v66, 0
  %v142 = vsel %vm104, %v67, 0
  %v145 = vsel %vm104, %v68, 0
  %v148 = vsel %vm104, %v69, 0
  %v151 = vsel %vm104, %v70, 0
  %v154 = vsel %vm104, %v71, 0
  %v157 = vsel %vm104, %v72, 0
  %v160 = vsel %vm104, %v73, 0
  %v163 = vsel %vm104, %v74, 0
  %v166 = vsel %vm104, %v75, 0
  %v169 = vsel %vm104, %v76, 0
  %v172 = vsel %vm104, %v77, 0
  %v175 = vsel %vm104, %v78, 0
  %v178 = vsel %vm104, %v79, 0
  %v181 = vsel %vm104, %v80, 0
  %v184 = vsel %vm104, %v81, 0
  %v187 = vsel %vm104, %v82, 0
  %v190 = vsel %vm104, %v83, 0
  %v193 = vsel %vm104, %v84, 0
  %v196 = vsel %vm104, %v85, 0
  %v199 = vsel %vm104, %v86, 0
  %v202 = vsel %vm104, %v87, 0
  %v205 = vsel %vm104, %v88, 0
  %v208 = vsel %vm104, %v89, 0
  %v211 = vsel %vm104, %v90, 0
  %vm213 = vcmask 1043456
  %v215 = vsel %vm213, %v103, 0
  %217 = vmatprep.subr.mxu0 0.0
  %218 = vmatpush1.msra.mxu0 0.0
  %219 = vmatprep.subr.mxu0 0.0
  %220 = vmatpush1.msra.mxu0 0.0
  %221 = vmatprep.subr.mxu0 0.0
  %222 = vmatpush1.msra.mxu0 0.0
  %223 = vmatprep.subr.mxu0 0.0
  %224 = vmatpush1.msra.mxu0 0.0
  %225 = vmatprep.subr.mxu0 0.0
  %226 = vmatpush1.msra.mxu0 0.0
  %227 = vmatprep.subr.mxu0 0.0
  %228 = vmatpush1.msra.mxu0 0.0
  %229 = vmatprep.subr.mxu0 0.0
  %230 = vmatpush1.msra.mxu0 0.0
  %231 = vmatprep.subr.mxu0 0.0
  %232 = vmatpush1.msra.mxu0 0.0
  %233 = vmatprep.subr.mxu0 0.0
  %234 = vmatpush1.msra.mxu0 0.0
  %235 = vmatprep.subr.mxu0 0.0
  %236 = vmatpush1.msra.mxu0 0.0
  %237 = vmatprep.subr.mxu0 0.0
  %238 = vmatpush1.msra.mxu0 0.0
  %239 = vmatprep.subr.mxu0 0.0
  %240 = vmatpush1.msra.mxu0 0.0
  %241 = vmatprep.subr.mxu0 0.0
  %242 = vmatpush1.msra.mxu0 0.0
  %243 = vmatprep.subr.mxu0 0.0
  %244 = vmatpush1.msra.mxu0 0.0
  %245 = vmatprep.subr.mxu0 0.0
  %246 = vmatpush1.msra.mxu0 0.0
  %247 = vmatprep.subr.mxu0 0.0
  %248 = vmatpush1.msra.mxu0 %v215
  %249 = vmatprep.subr.mxu0 0.0
  %250 = vmatpush2.msra.mxu0 0.0
  %251 = vmatprep.subr.mxu0 0.0
  %252 = vmatpush2.msra.mxu0 0.0
  %253 = vmatprep.subr.mxu0 0.0
  %254 = vmatpush2.msra.mxu0 0.0
  %255 = vmatprep.subr.mxu0 0.0
  %256 = vmatpush2.msra.mxu0 0.0
  %257 = vmatprep.subr.mxu0 0.0
  %258 = vmatpush2.msra.mxu0 0.0
  %259 = vmatprep.subr.mxu0 0.0
  %260 = vmatpush2.msra.mxu0 0.0
  %261 = vmatprep.subr.mxu0 0.0
  %262 = vmatpush2.msra.mxu0 0.0
  %263 = vmatprep.subr.mxu0 0.0
  %264 = vmatpush2.msra.mxu0 0.0
  %265 = vmatprep.subr.mxu0 0.0
  %266 = vmatpush2.msra.mxu0 0.0
  %267 = vmatprep.subr.mxu0 0.0
  %268 = vmatpush2.msra.mxu0 0.0
  %269 = vmatprep.subr.mxu0 0.0
  %270 = vmatpush2.msra.mxu0 0.0
  %271 = vmatprep.subr.mxu0 0.0
  %272 = vmatpush2.msra.mxu0 0.0
  %273 = vmatprep.subr.mxu0 0.0
  %274 = vmatpush2.msra.mxu0 0.0
  %275 = vmatprep.subr.mxu0 0.0
  %276 = vmatpush2.msra.mxu0 0.0
  %277 = vmatprep.subr.mxu0 0.0
  %278 = vmatpush2.msra.mxu0 0.0
  %279 = vmatprep.subr.mxu0 0.0
  %280 = vmatpush2.msra.mxu0 0.0
  %281 = vmatprep.mubr.f32.mxu0 0.0
  %282 = vmatmul.mubr.f32.gmra.mxu0 %v106
  %v283 = vpop.f32.mrf.mxu0
  %v284 = vadd.f32 0.0, %v283
  %v285 = vpop.f32.mrf.mxu0
  %286 = vmatprep.mubr.f32.mxu0 0.0
  %287 = vmatmul.mubr.f32.gmra.mxu0 %v109
  %v288 = vpop.f32.mrf.mxu0
  %v289 = vadd.f32 0.0, %v288
  %v290 = vpop.f32.mrf.mxu0
  %291 = vmatprep.mubr.f32.mxu0 0.0
  %292 = vmatmul.mubr.f32.gmra.mxu0 %v112
  %v293 = vpop.f32.mrf.mxu0
  %v294 = vadd.f32 0.0, %v293
  %v295 = vpop.f32.mrf.mxu0
  %296 = vmatprep.mubr.f32.mxu0 0.0
  %297 = vmatmul.mubr.f32.gmra.mxu0 %v115
  %v298 = vpop.f32.mrf.mxu0
  %v299 = vadd.f32 0.0, %v298
  %v300 = vpop.f32.mrf.mxu0
  %301 = vmatprep.mubr.f32.mxu0 0.0
  %302 = vmatmul.mubr.f32.gmra.mxu0 %v118
  %v303 = vpop.f32.mrf.mxu0
  %v304 = vadd.f32 0.0, %v303
  %v305 = vpop.f32.mrf.mxu0
  %306 = vmatprep.mubr.f32.mxu0 0.0
  %307 = vmatmul.mubr.f32.gmra.mxu0 %v121
  %v308 = vpop.f32.mrf.mxu0
  %v309 = vadd.f32 0.0, %v308
  %v310 = vpop.f32.mrf.mxu0
  %311 = vmatprep.mubr.f32.mxu0 0.0
  %312 = vmatmul.mubr.f32.gmra.mxu0 %v124
  %v313 = vpop.f32.mrf.mxu0
  %v314 = vadd.f32 0.0, %v313
  %v315 = vpop.f32.mrf.mxu0
  %316 = vmatprep.mubr.f32.mxu0 0.0
  %317 = vmatmul.mubr.f32.gmra.mxu0 %v127
  %v318 = vpop.f32.mrf.mxu0
  %v319 = vadd.f32 0.0, %v318
  %v320 = vpop.f32.mrf.mxu0
  %321 = vmatprep.mubr.f32.mxu0 0.0
  %322 = vmatmul.mubr.f32.gmra.mxu0 %v130
  %v323 = vpop.f32.mrf.mxu0
  %v324 = vadd.f32 0.0, %v323
  %v325 = vpop.f32.mrf.mxu0
  %326 = vmatprep.mubr.f32.mxu0 0.0
  %327 = vmatmul.mubr.f32.gmra.mxu0 %v133
  %v328 = vpop.f32.mrf.mxu0
  %v329 = vadd.f32 0.0, %v328
  %v330 = vpop.f32.mrf.mxu0
  %331 = vmatprep.mubr.f32.mxu0 0.0
  %332 = vmatmul.mubr.f32.gmra.mxu0 %v136
  %v333 = vpop.f32.mrf.mxu0
  %v334 = vadd.f32 0.0, %v333
  %v335 = vpop.f32.mrf.mxu0
  %336 = vmatprep.mubr.f32.mxu0 0.0
  %337 = vmatmul.mubr.f32.gmra.mxu0 %v139
  %v338 = vpop.f32.mrf.mxu0
  %v339 = vadd.f32 0.0, %v338
  %v340 = vpop.f32.mrf.mxu0
  %341 = vmatprep.mubr.f32.mxu0 0.0
  %342 = vmatmul.mubr.f32.gmra.mxu0 %v142
  %v343 = vpop.f32.mrf.mxu0
  %v344 = vadd.f32 0.0, %v343
  %v345 = vpop.f32.mrf.mxu0
  %346 = vmatprep.mubr.f32.mxu0 0.0
  %347 = vmatmul.mubr.f32.gmra.mxu0 %v145
  %v348 = vpop.f32.mrf.mxu0
  %v349 = vadd.f32 0.0, %v348
  %v350 = vpop.f32.mrf.mxu0
  %351 = vmatprep.mubr.f32.mxu0 0.0
  %352 = vmatmul.mubr.f32.gmra.mxu0 %v148
  %v353 = vpop.f32.mrf.mxu0
  %v354 = vadd.f32 0.0, %v353
  %v355 = vpop.f32.mrf.mxu0
  %356 = vmatprep.mubr.f32.mxu0 0.0
  %357 = vmatmul.mubr.f32.gmra.mxu0 %v151
  %v358 = vpop.f32.mrf.mxu0
  %v359 = vadd.f32 0.0, %v358
  %v360 = vpop.f32.mrf.mxu0
  %361 = vmatprep.mubr.f32.mxu0 0.0
  %362 = vmatmul.mubr.f32.gmra.mxu0 %v154
  %v363 = vpop.f32.mrf.mxu0
  %v364 = vadd.f32 0.0, %v363
  %v365 = vpop.f32.mrf.mxu0
  %366 = vmatprep.mubr.f32.mxu0 0.0
  %367 = vmatmul.mubr.f32.gmra.mxu0 %v157
  %v368 = vpop.f32.mrf.mxu0
  %v369 = vadd.f32 0.0, %v368
  %v370 = vpop.f32.mrf.mxu0
  %371 = vmatprep.mubr.f32.mxu0 0.0
  %372 = vmatmul.mubr.f32.gmra.mxu0 %v160
  %v373 = vpop.f32.mrf.mxu0
  %v374 = vadd.f32 0.0, %v373
  %v375 = vpop.f32.mrf.mxu0
  %376 = vmatprep.mubr.f32.mxu0 0.0
  %377 = vmatmul.mubr.f32.gmra.mxu0 %v163
  %v378 = vpop.f32.mrf.mxu0
  %v379 = vadd.f32 0.0, %v378
  %v380 = vpop.f32.mrf.mxu0
  %381 = vmatprep.mubr.f32.mxu0 0.0
  %382 = vmatmul.mubr.f32.gmra.mxu0 %v166
  %v383 = vpop.f32.mrf.mxu0
  %v384 = vadd.f32 0.0, %v383
  %v385 = vpop.f32.mrf.mxu0
  %386 = vmatprep.mubr.f32.mxu0 0.0
  %387 = vmatmul.mubr.f32.gmra.mxu0 %v169
  %v388 = vpop.f32.mrf.mxu0
  %v389 = vadd.f32 0.0, %v388
  %v390 = vpop.f32.mrf.mxu0
  %391 = vmatprep.mubr.f32.mxu0 0.0
  %392 = vmatmul.mubr.f32.gmra.mxu0 %v172
  %v393 = vpop.f32.mrf.mxu0
  %v394 = vadd.f32 0.0, %v393
  %v395 = vpop.f32.mrf.mxu0
  %396 = vmatprep.mubr.f32.mxu0 0.0
  %397 = vmatmul.mubr.f32.gmra.mxu0 %v175
  %v398 = vpop.f32.mrf.mxu0
  %v399 = vadd.f32 0.0, %v398
  %v400 = vpop.f32.mrf.mxu0
  %401 = vmatprep.mubr.f32.mxu0 0.0
  %402 = vmatmul.mubr.f32.gmra.mxu0 %v178
  %v403 = vpop.f32.mrf.mxu0
  %v404 = vadd.f32 0.0, %v403
  %v405 = vpop.f32.mrf.mxu0
  %406 = vmatprep.mubr.f32.mxu0 0.0
  %407 = vmatmul.mubr.f32.gmra.mxu0 %v181
  %v408 = vpop.f32.mrf.mxu0
  %v409 = vadd.f32 0.0, %v408
  %v410 = vpop.f32.mrf.mxu0
  %411 = vmatprep.mubr.f32.mxu0 0.0
  %412 = vmatmul.mubr.f32.gmra.mxu0 %v184
  %v413 = vpop.f32.mrf.mxu0
  %v414 = vadd.f32 0.0, %v413
  %v415 = vpop.f32.mrf.mxu0
  %416 = vmatprep.mubr.f32.mxu0 0.0
  %417 = vmatmul.mubr.f32.gmra.mxu0 %v187
  %v418 = vpop.f32.mrf.mxu0
  %v419 = vadd.f32 0.0, %v418
  %v420 = vpop.f32.mrf.mxu0
  %421 = vmatprep.mubr.f32.mxu0 0.0
  %422 = vmatmul.mubr.f32.gmra.mxu0 %v190
  %v423 = vpop.f32.mrf.mxu0
  %v424 = vadd.f32 0.0, %v423
  %v425 = vpop.f32.mrf.mxu0
  %426 = vmatprep.mubr.f32.mxu0 0.0
  %427 = vmatmul.mubr.f32.gmra.mxu0 %v193
  %v428 = vpop.f32.mrf.mxu0
  %v429 = vadd.f32 0.0, %v428
  %v430 = vpop.f32.mrf.mxu0
  %431 = vmatprep.mubr.f32.mxu0 0.0
  %432 = vmatmul.mubr.f32.gmra.mxu0 %v196
  %v433 = vpop.f32.mrf.mxu0
  %v434 = vadd.f32 0.0, %v433
  %v435 = vpop.f32.mrf.mxu0
  %436 = vmatprep.mubr.f32.mxu0 0.0
  %437 = vmatmul.mubr.f32.gmra.mxu0 %v199
  %v438 = vpop.f32.mrf.mxu0
  %v439 = vadd.f32 0.0, %v438
  %v440 = vpop.f32.mrf.mxu0
  %441 = vmatprep.mubr.f32.mxu0 0.0
  %442 = vmatmul.mubr.f32.gmra.mxu0 %v202
  %v443 = vpop.f32.mrf.mxu0
  %v444 = vadd.f32 0.0, %v443
  %v445 = vpop.f32.mrf.mxu0
  %446 = vmatprep.mubr.f32.mxu0 0.0
  %447 = vmatmul.mubr.f32.gmra.mxu0 %v205
  %v448 = vpop.f32.mrf.mxu0
  %v449 = vadd.f32 0.0, %v448
  %v450 = vpop.f32.mrf.mxu0
  %451 = vmatprep.mubr.f32.mxu0 0.0
  %452 = vmatmul.mubr.f32.gmra.mxu0 %v208
  %v453 = vpop.f32.mrf.mxu0
  %v454 = vadd.f32 0.0, %v453
  %v455 = vpop.f32.mrf.mxu0
  %456 = vmatprep.mubr.f32.mxu0 0.0
  %457 = vmatmul.mubr.f32.gmra.mxu0 %v211
  %v458 = vpop.f32.mrf.mxu0
  %v459 = vadd.f32 0.0, %v458
  %v460 = vpop.f32.mrf.mxu0
  %461 = vdwg.mxu0
  %v462 = vadd.f32 %v101, %v284
  %v463 = vadd.f32 %v101, %v289
  %v464 = vadd.f32 %v101, %v294
  %v465 = vadd.f32 %v101, %v299
  %v466 = vadd.f32 %v101, %v304
  %v467 = vadd.f32 %v101, %v309
  %v468 = vadd.f32 %v101, %v314
  %v469 = vadd.f32 %v101, %v319
  %v470 = vadd.f32 %v101, %v324
  %v471 = vadd.f32 %v101, %v329
  %v472 = vadd.f32 %v101, %v334
  %v473 = vadd.f32 %v101, %v339
  %v474 = vadd.f32 %v101, %v344
  %v475 = vadd.f32 %v101, %v349
  %v476 = vadd.f32 %v101, %v354
  %v477 = vadd.f32 %v101, %v359
  %v478 = vadd.f32 %v101, %v364
  %v479 = vadd.f32 %v101, %v369
  %v480 = vadd.f32 %v101, %v374
  %v481 = vadd.f32 %v101, %v379
  %v482 = vadd.f32 %v101, %v384
  %v483 = vadd.f32 %v101, %v389
  %v484 = vadd.f32 %v101, %v394
  %v485 = vadd.f32 %v101, %v399
  %v486 = vadd.f32 %v101, %v404
  %v487 = vadd.f32 %v101, %v409
  %v488 = vadd.f32 %v101, %v414
  %v489 = vadd.f32 %v101, %v419
  %v490 = vadd.f32 %v101, %v424
  %v491 = vadd.f32 %v101, %v429
  %v492 = vadd.f32 %v101, %v434
  %v493 = vadd.f32 %v101, %v439
  %v494 = vadd.f32 %v101, %v444
  %v495 = vadd.f32 %v101, %v449
  %v496 = vadd.f32 %v101, %v454
  %v497 = vadd.f32 %v101, %v459
  %s498 = scalar_lea.vmem %s1, 4
  %v499 = vld [vmem:[%s498] sm:$0xf]
  %vm501 = vcmask 1046528
  %v502 = vrot.slane %v55, 1
  %v503 = vrot.slane %v56, 1
  %v504 = vsel %vm501, %v502, %v503
  %v505 = vrot.slane %v57, 1
  %v506 = vsel %vm501, %v503, %v505
  %v507 = vrot.slane %v58, 1
  %v508 = vsel %vm501, %v505, %v507
  %v509 = vrot.slane %v59, 1
  %v510 = vsel %vm501, %v507, %v509
  %v511 = vrot.slane %v60, 1
  %v512 = vsel %vm501, %v509, %v511
  %v513 = vrot.slane %v61, 1
  %v514 = vsel %vm501, %v511, %v513
  %v515 = vrot.slane %v62, 1
  %v516 = vsel %vm501, %v513, %v515
  %v517 = vrot.slane %v63, 1
  %v518 = vsel %vm501, %v515, %v517
  %v519 = vrot.slane %v64, 1
  %v520 = vsel %vm501, %v517, %v519
  %v521 = vrot.slane %v65, 1
  %v522 = vsel %vm501, %v519, %v521
  %v523 = vrot.slane %v66, 1
  %v524 = vsel %vm501, %v521, %v523
  %v525 = vrot.slane %v67, 1
  %v526 = vsel %vm501, %v523, %v525
  %v527 = vrot.slane %v68, 1
  %v528 = vsel %vm501, %v525, %v527
  %v529 = vrot.slane %v69, 1
  %v530 = vsel %vm501, %v527, %v529
  %v531 = vrot.slane %v70, 1
  %v532 = vsel %vm501, %v529, %v531
  %v533 = vrot.slane %v71, 1
  %v534 = vsel %vm501, %v531, %v533
  %v535 = vrot.slane %v72, 1
  %v536 = vsel %vm501, %v533, %v535
  %v537 = vrot.slane %v73, 1
  %v538 = vsel %vm501, %v535, %v537
  %v539 = vrot.slane %v74, 1
  %v540 = vsel %vm501, %v537, %v539
  %v541 = vrot.slane %v75, 1
  %v542 = vsel %vm501, %v539, %v541
  %v543 = vrot.slane %v76, 1
  %v544 = vsel %vm501, %v541, %v543
  %v545 = vrot.slane %v77, 1
  %v546 = vsel %vm501, %v543, %v545
  %v547 = vrot.slane %v78, 1
  %v548 = vsel %vm501, %v545, %v547
  %v549 = vrot.slane %v79, 1
  %v550 = vsel %vm501, %v547, %v549
  %v551 = vrot.slane %v80, 1
  %v552 = vsel %vm501, %v549, %v551
  %v553 = vrot.slane %v81, 1
  %v554 = vsel %vm501, %v551, %v553
  %v555 = vrot.slane %v82, 1
  %v556 = vsel %vm501, %v553, %v555
  %v557 = vrot.slane %v83, 1
  %v558 = vsel %vm501, %v555, %v557
  %v559 = vrot.slane %v84, 1
  %v560 = vsel %vm501, %v557, %v559
  %v561 = vrot.slane %v85, 1
  %v562 = vsel %vm501, %v559, %v561
  %v563 = vrot.slane %v86, 1
  %v564 = vsel %vm501, %v561, %v563
  %v565 = vrot.slane %v87, 1
  %v566 = vsel %vm501, %v563, %v565
  %v567 = vrot.slane %v88, 1
  %v568 = vsel %vm501, %v565, %v567
  %v569 = vrot.slane %v89, 1
  %v570 = vsel %vm501, %v567, %v569
  %v571 = vrot.slane %v90, 1
  %v572 = vsel %vm501, %v569, %v571
  %v573 = vrot.slane %v91, 1
  %v574 = vsel %vm501, %v571, %v573
  %v575 = vsel %vm104, %v504, 0
  %v577 = vsel %vm104, %v506, 0
  %v579 = vsel %vm104, %v508, 0
  %v581 = vsel %vm104, %v510, 0
  %v583 = vsel %vm104, %v512, 0
  %v585 = vsel %vm104, %v514, 0
  %v587 = vsel %vm104, %v516, 0
  %v589 = vsel %vm104, %v518, 0
  %v591 = vsel %vm104, %v520, 0
  %v593 = vsel %vm104, %v522, 0
  %v595 = vsel %vm104, %v524, 0
  %v597 = vsel %vm104, %v526, 0
  %v599 = vsel %vm104, %v528, 0
  %v601 = vsel %vm104, %v530, 0
  %v603 = vsel %vm104, %v532, 0
  %v605 = vsel %vm104, %v534, 0
  %v607 = vsel %vm104, %v536, 0
  %v609 = vsel %vm104, %v538, 0
  %v611 = vsel %vm104, %v540, 0
  %v613 = vsel %vm104, %v542, 0
  %v615 = vsel %vm104, %v544, 0
  %v617 = vsel %vm104, %v546, 0
  %v619 = vsel %vm104, %v548, 0
  %v621 = vsel %vm104, %v550, 0
  %v623 = vsel %vm104, %v552, 0
  %v625 = vsel %vm104, %v554, 0
  %v627 = vsel %vm104, %v556, 0
  %v629 = vsel %vm104, %v558, 0
  %v631 = vsel %vm104, %v560, 0
  %v633 = vsel %vm104, %v562, 0
  %v635 = vsel %vm104, %v564, 0
  %v637 = vsel %vm104, %v566, 0
  %v639 = vsel %vm104, %v568, 0
  %v641 = vsel %vm104, %v570, 0
  %v643 = vsel %vm104, %v572, 0
  %v645 = vsel %vm104, %v574, 0
  %v648 = vsel %vm213, %v499, 0
  %650 = vmatprep.subr.mxu0 0.0
  %651 = vmatpush1.msra.mxu0 0.0
  %652 = vmatprep.subr.mxu0 0.0
  %653 = vmatpush1.msra.mxu0 0.0
  %654 = vmatprep.subr.mxu0 0.0
  %655 = vmatpush1.msra.mxu0 0.0
  %656 = vmatprep.subr.mxu0 0.0
  %657 = vmatpush1.msra.mxu0 0.0
  %658 = vmatprep.subr.mxu0 0.0
  %659 = vmatpush1.msra.mxu0 0.0
  %660 = vmatprep.subr.mxu0 0.0
  %661 = vmatpush1.msra.mxu0 0.0
  %662 = vmatprep.subr.mxu0 0.0
  %663 = vmatpush1.msra.mxu0 0.0
  %664 = vmatprep.subr.mxu0 0.0
  %665 = vmatpush1.msra.mxu0 0.0
  %666 = vmatprep.subr.mxu0 0.0
  %667 = vmatpush1.msra.mxu0 0.0
  %668 = vmatprep.subr.mxu0 0.0
  %669 = vmatpush1.msra.mxu0 0.0
  %670 = vmatprep.subr.mxu0 0.0
  %671 = vmatpush1.msra.mxu0 0.0
  %672 = vmatprep.subr.mxu0 0.0
  %673 = vmatpush1.msra.mxu0 0.0
  %674 = vmatprep.subr.mxu0 0.0
  %675 = vmatpush1.msra.mxu0 0.0
  %676 = vmatprep.subr.mxu0 0.0
  %677 = vmatpush1.msra.mxu0 0.0
  %678 = vmatprep.subr.mxu0 0.0
  %679 = vmatpush1.msra.mxu0 0.0
  %680 = vmatprep.subr.mxu0 0.0
  %681 = vmatpush1.msra.mxu0 %v648
  %682 = vmatprep.subr.mxu0 0.0
  %683 = vmatpush2.msra.mxu0 0.0
  %684 = vmatprep.subr.mxu0 0.0
  %685 = vmatpush2.msra.mxu0 0.0
  %686 = vmatprep.subr.mxu0 0.0
  %687 = vmatpush2.msra.mxu0 0.0
  %688 = vmatprep.subr.mxu0 0.0
  %689 = vmatpush2.msra.mxu0 0.0
  %690 = vmatprep.subr.mxu0 0.0
  %691 = vmatpush2.msra.mxu0 0.0
  %692 = vmatprep.subr.mxu0 0.0
  %693 = vmatpush2.msra.mxu0 0.0
  %694 = vmatprep.subr.mxu0 0.0
  %695 = vmatpush2.msra.mxu0 0.0
  %696 = vmatprep.subr.mxu0 0.0
  %697 = vmatpush2.msra.mxu0 0.0
  %698 = vmatprep.subr.mxu0 0.0
  %699 = vmatpush2.msra.mxu0 0.0
  %700 = vmatprep.subr.mxu0 0.0
  %701 = vmatpush2.msra.mxu0 0.0
  %702 = vmatprep.subr.mxu0 0.0
  %703 = vmatpush2.msra.mxu0 0.0
  %704 = vmatprep.subr.mxu0 0.0
  %705 = vmatpush2.msra.mxu0 0.0
  %706 = vmatprep.subr.mxu0 0.0
  %707 = vmatpush2.msra.mxu0 0.0
  %708 = vmatprep.subr.mxu0 0.0
  %709 = vmatpush2.msra.mxu0 0.0
  %710 = vmatprep.subr.mxu0 0.0
  %711 = vmatpush2.msra.mxu0 0.0
  %712 = vmatprep.subr.mxu0 0.0
  %713 = vmatpush2.msra.mxu0 0.0
  %714 = vmatprep.mubr.f32.mxu0 0.0
  %715 = vmatmul.mubr.f32.gmra.mxu0 %v575
  %v716 = vpop.f32.mrf.mxu0
  %v717 = vadd.f32 0.0, %v716
  %v718 = vpop.f32.mrf.mxu0
  %719 = vmatprep.mubr.f32.mxu0 0.0
  %720 = vmatmul.mubr.f32.gmra.mxu0 %v577
  %v721 = vpop.f32.mrf.mxu0
  %v722 = vadd.f32 0.0, %v721
  %v723 = vpop.f32.mrf.mxu0
  %724 = vmatprep.mubr.f32.mxu0 0.0
  %725 = vmatmul.mubr.f32.gmra.mxu0 %v579
  %v726 = vpop.f32.mrf.mxu0
  %v727 = vadd.f32 0.0, %v726
  %v728 = vpop.f32.mrf.mxu0
  %729 = vmatprep.mubr.f32.mxu0 0.0
  %730 = vmatmul.mubr.f32.gmra.mxu0 %v581
  %v731 = vpop.f32.mrf.mxu0
  %v732 = vadd.f32 0.0, %v731
  %v733 = vpop.f32.mrf.mxu0
  %734 = vmatprep.mubr.f32.mxu0 0.0
  %735 = vmatmul.mubr.f32.gmra.mxu0 %v583
  %v736 = vpop.f32.mrf.mxu0
  %v737 = vadd.f32 0.0, %v736
  %v738 = vpop.f32.mrf.mxu0
  %739 = vmatprep.mubr.f32.mxu0 0.0
  %740 = vmatmul.mubr.f32.gmra.mxu0 %v585
  %v741 = vpop.f32.mrf.mxu0
  %v742 = vadd.f32 0.0, %v741
  %v743 = vpop.f32.mrf.mxu0
  %744 = vmatprep.mubr.f32.mxu0 0.0
  %745 = vmatmul.mubr.f32.gmra.mxu0 %v587
  %v746 = vpop.f32.mrf.mxu0
  %v747 = vadd.f32 0.0, %v746
  %v748 = vpop.f32.mrf.mxu0
  %749 = vmatprep.mubr.f32.mxu0 0.0
  %750 = vmatmul.mubr.f32.gmra.mxu0 %v589
  %v751 = vpop.f32.mrf.mxu0
  %v752 = vadd.f32 0.0, %v751
  %v753 = vpop.f32.mrf.mxu0
  %754 = vmatprep.mubr.f32.mxu0 0.0
  %755 = vmatmul.mubr.f32.gmra.mxu0 %v591
  %v756 = vpop.f32.mrf.mxu0
  %v757 = vadd.f32 0.0, %v756
  %v758 = vpop.f32.mrf.mxu0
  %759 = vmatprep.mubr.f32.mxu0 0.0
  %760 = vmatmul.mubr.f32.gmra.mxu0 %v593
  %v761 = vpop.f32.mrf.mxu0
  %v762 = vadd.f32 0.0, %v761
  %v763 = vpop.f32.mrf.mxu0
  %764 = vmatprep.mubr.f32.mxu0 0.0
  %765 = vmatmul.mubr.f32.gmra.mxu0 %v595
  %v766 = vpop.f32.mrf.mxu0
  %v767 = vadd.f32 0.0, %v766
  %v768 = vpop.f32.mrf.mxu0
  %769 = vmatprep.mubr.f32.mxu0 0.0
  %770 = vmatmul.mubr.f32.gmra.mxu0 %v597
  %v771 = vpop.f32.mrf.mxu0
  %v772 = vadd.f32 0.0, %v771
  %v773 = vpop.f32.mrf.mxu0
  %774 = vmatprep.mubr.f32.mxu0 0.0
  %775 = vmatmul.mubr.f32.gmra.mxu0 %v599
  %v776 = vpop.f32.mrf.mxu0
  %v777 = vadd.f32 0.0, %v776
  %v778 = vpop.f32.mrf.mxu0
  %779 = vmatprep.mubr.f32.mxu0 0.0
  %780 = vmatmul.mubr.f32.gmra.mxu0 %v601
  %v781 = vpop.f32.mrf.mxu0
  %v782 = vadd.f32 0.0, %v781
  %v783 = vpop.f32.mrf.mxu0
  %784 = vmatprep.mubr.f32.mxu0 0.0
  %785 = vmatmul.mubr.f32.gmra.mxu0 %v603
  %v786 = vpop.f32.mrf.mxu0
  %v787 = vadd.f32 0.0, %v786
  %v788 = vpop.f32.mrf.mxu0
  %789 = vmatprep.mubr.f32.mxu0 0.0
  %790 = vmatmul.mubr.f32.gmra.mxu0 %v605
  %v791 = vpop.f32.mrf.mxu0
  %v792 = vadd.f32 0.0, %v791
  %v793 = vpop.f32.mrf.mxu0
  %794 = vmatprep.mubr.f32.mxu0 0.0
  %795 = vmatmul.mubr.f32.gmra.mxu0 %v607
  %v796 = vpop.f32.mrf.mxu0
  %v797 = vadd.f32 0.0, %v796
  %v798 = vpop.f32.mrf.mxu0
  %799 = vmatprep.mubr.f32.mxu0 0.0
  %800 = vmatmul.mubr.f32.gmra.mxu0 %v609
  %v801 = vpop.f32.mrf.mxu0
  %v802 = vadd.f32 0.0, %v801
  %v803 = vpop.f32.mrf.mxu0
  %804 = vmatprep.mubr.f32.mxu0 0.0
  %805 = vmatmul.mubr.f32.gmra.mxu0 %v611
  %v806 = vpop.f32.mrf.mxu0
  %v807 = vadd.f32 0.0, %v806
  %v808 = vpop.f32.mrf.mxu0
  %809 = vmatprep.mubr.f32.mxu0 0.0
  %810 = vmatmul.mubr.f32.gmra.mxu0 %v613
  %v811 = vpop.f32.mrf.mxu0
  %v812 = vadd.f32 0.0, %v811
  %v813 = vpop.f32.mrf.mxu0
  %814 = vmatprep.mubr.f32.mxu0 0.0
  %815 = vmatmul.mubr.f32.gmra.mxu0 %v615
  %v816 = vpop.f32.mrf.mxu0
  %v817 = vadd.f32 0.0, %v816
  %v818 = vpop.f32.mrf.mxu0
  %819 = vmatprep.mubr.f32.mxu0 0.0
  %820 = vmatmul.mubr.f32.gmra.mxu0 %v617
  %v821 = vpop.f32.mrf.mxu0
  %v822 = vadd.f32 0.0, %v821
  %v823 = vpop.f32.mrf.mxu0
  %824 = vmatprep.mubr.f32.mxu0 0.0
  %825 = vmatmul.mubr.f32.gmra.mxu0 %v619
  %v826 = vpop.f32.mrf.mxu0
  %v827 = vadd.f32 0.0, %v826
  %v828 = vpop.f32.mrf.mxu0
  %829 = vmatprep.mubr.f32.mxu0 0.0
  %830 = vmatmul.mubr.f32.gmra.mxu0 %v621
  %v831 = vpop.f32.mrf.mxu0
  %v832 = vadd.f32 0.0, %v831
  %v833 = vpop.f32.mrf.mxu0
  %834 = vmatprep.mubr.f32.mxu0 0.0
  %835 = vmatmul.mubr.f32.gmra.mxu0 %v623
  %v836 = vpop.f32.mrf.mxu0
  %v837 = vadd.f32 0.0, %v836
  %v838 = vpop.f32.mrf.mxu0
  %839 = vmatprep.mubr.f32.mxu0 0.0
  %840 = vmatmul.mubr.f32.gmra.mxu0 %v625
  %v841 = vpop.f32.mrf.mxu0
  %v842 = vadd.f32 0.0, %v841
  %v843 = vpop.f32.mrf.mxu0
  %844 = vmatprep.mubr.f32.mxu0 0.0
  %845 = vmatmul.mubr.f32.gmra.mxu0 %v627
  %v846 = vpop.f32.mrf.mxu0
  %v847 = vadd.f32 0.0, %v846
  %v848 = vpop.f32.mrf.mxu0
  %849 = vmatprep.mubr.f32.mxu0 0.0
  %850 = vmatmul.mubr.f32.gmra.mxu0 %v629
  %v851 = vpop.f32.mrf.mxu0
  %v852 = vadd.f32 0.0, %v851
  %v853 = vpop.f32.mrf.mxu0
  %854 = vmatprep.mubr.f32.mxu0 0.0
  %855 = vmatmul.mubr.f32.gmra.mxu0 %v631
  %v856 = vpop.f32.mrf.mxu0
  %v857 = vadd.f32 0.0, %v856
  %v858 = vpop.f32.mrf.mxu0
  %859 = vmatprep.mubr.f32.mxu0 0.0
  %860 = vmatmul.mubr.f32.gmra.mxu0 %v633
  %v861 = vpop.f32.mrf.mxu0
  %v862 = vadd.f32 0.0, %v861
  %v863 = vpop.f32.mrf.mxu0
  %864 = vmatprep.mubr.f32.mxu0 0.0
  %865 = vmatmul.mubr.f32.gmra.mxu0 %v635
  %v866 = vpop.f32.mrf.mxu0
  %v867 = vadd.f32 0.0, %v866
  %v868 = vpop.f32.mrf.mxu0
  %869 = vmatprep.mubr.f32.mxu0 0.0
  %870 = vmatmul.mubr.f32.gmra.mxu0 %v637
  %v871 = vpop.f32.mrf.mxu0
  %v872 = vadd.f32 0.0, %v871
  %v873 = vpop.f32.mrf.mxu0
  %874 = vmatprep.mubr.f32.mxu0 0.0
  %875 = vmatmul.mubr.f32.gmra.mxu0 %v639
  %v876 = vpop.f32.mrf.mxu0
  %v877 = vadd.f32 0.0, %v876
  %v878 = vpop.f32.mrf.mxu0
  %879 = vmatprep.mubr.f32.mxu0 0.0
  %880 = vmatmul.mubr.f32.gmra.mxu0 %v641
  %v881 = vpop.f32.mrf.mxu0
  %v882 = vadd.f32 0.0, %v881
  %v883 = vpop.f32.mrf.mxu0
  %884 = vmatprep.mubr.f32.mxu0 0.0
  %885 = vmatmul.mubr.f32.gmra.mxu0 %v643
  %v886 = vpop.f32.mrf.mxu0
  %v887 = vadd.f32 0.0, %v886
  %v888 = vpop.f32.mrf.mxu0
  %889 = vmatprep.mubr.f32.mxu0 0.0
  %890 = vmatmul.mubr.f32.gmra.mxu0 %v645
  %v891 = vpop.f32.mrf.mxu0
  %v892 = vadd.f32 0.0, %v891
  %v893 = vpop.f32.mrf.mxu0
  %894 = vdwg.mxu0
  %v895 = vadd.f32 %v462, %v717
  %v896 = vadd.f32 %v463, %v722
  %v897 = vadd.f32 %v464, %v727
  %v898 = vadd.f32 %v465, %v732
  %v899 = vadd.f32 %v466, %v737
  %v900 = vadd.f32 %v467, %v742
  %v901 = vadd.f32 %v468, %v747
  %v902 = vadd.f32 %v469, %v752
  %v903 = vadd.f32 %v470, %v757
  %v904 = vadd.f32 %v471, %v762
  %v905 = vadd.f32 %v472, %v767
  %v906 = vadd.f32 %v473, %v772
  %v907 = vadd.f32 %v474, %v777
  %v908 = vadd.f32 %v475, %v782
  %v909 = vadd.f32 %v476, %v787
  %v910 = vadd.f32 %v477, %v792
  %v911 = vadd.f32 %v478, %v797
  %v912 = vadd.f32 %v479, %v802
  %v913 = vadd.f32 %v480, %v807
  %v914 = vadd.f32 %v481, %v812
  %v915 = vadd.f32 %v482, %v817
  %v916 = vadd.f32 %v483, %v822
  %v917 = vadd.f32 %v484, %v827
  %v918 = vadd.f32 %v485, %v832
  %v919 = vadd.f32 %v486, %v837
  %v920 = vadd.f32 %v487, %v842
  %v921 = vadd.f32 %v488, %v847
  %v922 = vadd.f32 %v489, %v852
  %v923 = vadd.f32 %v490, %v857
  %v924 = vadd.f32 %v491, %v862
  %v925 = vadd.f32 %v492, %v867
  %v926 = vadd.f32 %v493, %v872
  %v927 = vadd.f32 %v494, %v877
  %v928 = vadd.f32 %v495, %v882
  %v929 = vadd.f32 %v496, %v887
  %v930 = vadd.f32 %v497, %v892
  %s931 = scalar_lea.vmem %s1, 8
  %v932 = vld [vmem:[%s931] sm:$0xf]
  %vm933 = vcmask 1045504
  %v934 = vrot.slane %v55, 2
  %v935 = vrot.slane %v56, 2
  %v936 = vsel %vm933, %v934, %v935
  %v937 = vrot.slane %v57, 2
  %v938 = vsel %vm933, %v935, %v937
  %v939 = vrot.slane %v58, 2
  %v940 = vsel %vm933, %v937, %v939
  %v941 = vrot.slane %v59, 2
  %v942 = vsel %vm933, %v939, %v941
  %v943 = vrot.slane %v60, 2
  %v944 = vsel %vm933, %v941, %v943
  %v945 = vrot.slane %v61, 2
  %v946 = vsel %vm933, %v943, %v945
  %v947 = vrot.slane %v62, 2
  %v948 = vsel %vm933, %v945, %v947
  %v949 = vrot.slane %v63, 2
  %v950 = vsel %vm933, %v947, %v949
  %v951 = vrot.slane %v64, 2
  %v952 = vsel %vm933, %v949, %v951
  %v953 = vrot.slane %v65, 2
  %v954 = vsel %vm933, %v951, %v953
  %v955 = vrot.slane %v66, 2
  %v956 = vsel %vm933, %v953, %v955
  %v957 = vrot.slane %v67, 2
  %v958 = vsel %vm933, %v955, %v957
  %v959 = vrot.slane %v68, 2
  %v960 = vsel %vm933, %v957, %v959
  %v961 = vrot.slane %v69, 2
  %v962 = vsel %vm933, %v959, %v961
  %v963 = vrot.slane %v70, 2
  %v964 = vsel %vm933, %v961, %v963
  %v965 = vrot.slane %v71, 2
  %v966 = vsel %vm933, %v963, %v965
  %v967 = vrot.slane %v72, 2
  %v968 = vsel %vm933, %v965, %v967
  %v969 = vrot.slane %v73, 2
  %v970 = vsel %vm933, %v967, %v969
  %v971 = vrot.slane %v74, 2
  %v972 = vsel %vm933, %v969, %v971
  %v973 = vrot.slane %v75, 2
  %v974 = vsel %vm933, %v971, %v973
  %v975 = vrot.slane %v76, 2
  %v976 = vsel %vm933, %v973, %v975
  %v977 = vrot.slane %v77, 2
  %v978 = vsel %vm933, %v975, %v977
  %v979 = vrot.slane %v78, 2
  %v980 = vsel %vm933, %v977, %v979
  %v981 = vrot.slane %v79, 2
  %v982 = vsel %vm933, %v979, %v981
  %v983 = vrot.slane %v80, 2
  %v984 = vsel %vm933, %v981, %v983
  %v985 = vrot.slane %v81, 2
  %v986 = vsel %vm933, %v983, %v985
  %v987 = vrot.slane %v82, 2
  %v988 = vsel %vm933, %v985, %v987
  %v989 = vrot.slane %v83, 2
  %v990 = vsel %vm933, %v987, %v989
  %v991 = vrot.slane %v84, 2
  %v992 = vsel %vm933, %v989, %v991
  %v993 = vrot.slane %v85, 2
  %v994 = vsel %vm933, %v991, %v993
  %v995 = vrot.slane %v86, 2
  %v996 = vsel %vm933, %v993, %v995
  %v997 = vrot.slane %v87, 2
  %v998 = vsel %vm933, %v995, %v997
  %v999 = vrot.slane %v88, 2
  %v1000 = vsel %vm933, %v997, %v999
  %v1001 = vrot.slane %v89, 2
  %v1002 = vsel %vm933, %v999, %v1001
  %v1003 = vrot.slane %v90, 2
  %v1004 = vsel %vm933, %v1001, %v1003
  %v1005 = vrot.slane %v91, 2
  %v1006 = vsel %vm933, %v1003, %v1005
  %v1007 = vsel %vm104, %v936, 0
  %v1009 = vsel %vm104, %v938, 0
  %v1011 = vsel %vm104, %v940, 0
  %v1013 = vsel %vm104, %v942, 0
  %v1015 = vsel %vm104, %v944, 0
  %v1017 = vsel %vm104, %v946, 0
  %v1019 = vsel %vm104, %v948, 0
  %v1021 = vsel %vm104, %v950, 0
  %v1023 = vsel %vm104, %v952, 0
  %v1025 = vsel %vm104, %v954, 0
  %v1027 = vsel %vm104, %v956, 0
  %v1029 = vsel %vm104, %v958, 0
  %v1031 = vsel %vm104, %v960, 0
  %v1033 = vsel %vm104, %v962, 0
  %v1035 = vsel %vm104, %v964, 0
  %v1037 = vsel %vm104, %v966, 0
  %v1039 = vsel %vm104, %v968, 0
  %v1041 = vsel %vm104, %v970, 0
  %v1043 = vsel %vm104, %v972, 0
  %v1045 = vsel %vm104, %v974, 0
  %v1047 = vsel %vm104, %v976, 0
  %v1049 = vsel %vm104, %v978, 0
  %v1051 = vsel %vm104, %v980, 0
  %v1053 = vsel %vm104, %v982, 0
  %v1055 = vsel %vm104, %v984, 0
  %v1057 = vsel %vm104, %v986, 0
  %v1059 = vsel %vm104, %v988, 0
  %v1061 = vsel %vm104, %v990, 0
  %v1063 = vsel %vm104, %v992, 0
  %v1065 = vsel %vm104, %v994, 0
  %v1067 = vsel %vm104, %v996, 0
  %v1069 = vsel %vm104, %v998, 0
  %v1071 = vsel %vm104, %v1000, 0
  %v1073 = vsel %vm104, %v1002, 0
  %v1075 = vsel %vm104, %v1004, 0
  %v1077 = vsel %vm104, %v1006, 0
  %v1080 = vsel %vm213, %v932, 0
  %1082 = vmatprep.subr.mxu0 0.0
  %1083 = vmatpush1.msra.mxu0 0.0
  %1084 = vmatprep.subr.mxu0 0.0
  %1085 = vmatpush1.msra.mxu0 0.0
  %1086 = vmatprep.subr.mxu0 0.0
  %1087 = vmatpush1.msra.mxu0 0.0
  %1088 = vmatprep.subr.mxu0 0.0
  %1089 = vmatpush1.msra.mxu0 0.0
  %1090 = vmatprep.subr.mxu0 0.0
  %1091 = vmatpush1.msra.mxu0 0.0
  %1092 = vmatprep.subr.mxu0 0.0
  %1093 = vmatpush1.msra.mxu0 0.0
  %1094 = vmatprep.subr.mxu0 0.0
  %1095 = vmatpush1.msra.mxu0 0.0
  %1096 = vmatprep.subr.mxu0 0.0
  %1097 = vmatpush1.msra.mxu0 0.0
  %1098 = vmatprep.subr.mxu0 0.0
  %1099 = vmatpush1.msra.mxu0 0.0
  %1100 = vmatprep.subr.mxu0 0.0
  %1101 = vmatpush1.msra.mxu0 0.0
  %1102 = vmatprep.subr.mxu0 0.0
  %1103 = vmatpush1.msra.mxu0 0.0
  %1104 = vmatprep.subr.mxu0 0.0
  %1105 = vmatpush1.msra.mxu0 0.0
  %1106 = vmatprep.subr.mxu0 0.0
  %1107 = vmatpush1.msra.mxu0 0.0
  %1108 = vmatprep.subr.mxu0 0.0
  %1109 = vmatpush1.msra.mxu0 0.0
  %1110 = vmatprep.subr.mxu0 0.0
  %1111 = vmatpush1.msra.mxu0 0.0
  %1112 = vmatprep.subr.mxu0 0.0
  %1113 = vmatpush1.msra.mxu0 %v1080
  %1114 = vmatprep.subr.mxu0 0.0
  %1115 = vmatpush2.msra.mxu0 0.0
  %1116 = vmatprep.subr.mxu0 0.0
  %1117 = vmatpush2.msra.mxu0 0.0
  %1118 = vmatprep.subr.mxu0 0.0
  %1119 = vmatpush2.msra.mxu0 0.0
  %1120 = vmatprep.subr.mxu0 0.0
  %1121 = vmatpush2.msra.mxu0 0.0
  %1122 = vmatprep.subr.mxu0 0.0
  %1123 = vmatpush2.msra.mxu0 0.0
  %1124 = vmatprep.subr.mxu0 0.0
  %1125 = vmatpush2.msra.mxu0 0.0
  %1126 = vmatprep.subr.mxu0 0.0
  %1127 = vmatpush2.msra.mxu0 0.0
  %1128 = vmatprep.subr.mxu0 0.0
  %1129 = vmatpush2.msra.mxu0 0.0
  %1130 = vmatprep.subr.mxu0 0.0
  %1131 = vmatpush2.msra.mxu0 0.0
  %1132 = vmatprep.subr.mxu0 0.0
  %1133 = vmatpush2.msra.mxu0 0.0
  %1134 = vmatprep.subr.mxu0 0.0
  %1135 = vmatpush2.msra.mxu0 0.0
  %1136 = vmatprep.subr.mxu0 0.0
  %1137 = vmatpush2.msra.mxu0 0.0
  %1138 = vmatprep.subr.mxu0 0.0
  %1139 = vmatpush2.msra.mxu0 0.0
  %1140 = vmatprep.subr.mxu0 0.0
  %1141 = vmatpush2.msra.mxu0 0.0
  %1142 = vmatprep.subr.mxu0 0.0
  %1143 = vmatpush2.msra.mxu0 0.0
  %1144 = vmatprep.subr.mxu0 0.0
  %1145 = vmatpush2.msra.mxu0 0.0
  %1146 = vmatprep.mubr.f32.mxu0 0.0
  %1147 = vmatmul.mubr.f32.gmra.mxu0 %v1007
  %v1148 = vpop.f32.mrf.mxu0
  %v1149 = vadd.f32 0.0, %v1148
  %v1150 = vpop.f32.mrf.mxu0
  %1151 = vmatprep.mubr.f32.mxu0 0.0
  %1152 = vmatmul.mubr.f32.gmra.mxu0 %v1009
  %v1153 = vpop.f32.mrf.mxu0
  %v1154 = vadd.f32 0.0, %v1153
  %v1155 = vpop.f32.mrf.mxu0
  %1156 = vmatprep.mubr.f32.mxu0 0.0
  %1157 = vmatmul.mubr.f32.gmra.mxu0 %v1011
  %v1158 = vpop.f32.mrf.mxu0
  %v1159 = vadd.f32 0.0, %v1158
  %v1160 = vpop.f32.mrf.mxu0
  %1161 = vmatprep.mubr.f32.mxu0 0.0
  %1162 = vmatmul.mubr.f32.gmra.mxu0 %v1013
  %v1163 = vpop.f32.mrf.mxu0
  %v1164 = vadd.f32 0.0, %v1163
  %v1165 = vpop.f32.mrf.mxu0
  %1166 = vmatprep.mubr.f32.mxu0 0.0
  %1167 = vmatmul.mubr.f32.gmra.mxu0 %v1015
  %v1168 = vpop.f32.mrf.mxu0
  %v1169 = vadd.f32 0.0, %v1168
  %v1170 = vpop.f32.mrf.mxu0
  %1171 = vmatprep.mubr.f32.mxu0 0.0
  %1172 = vmatmul.mubr.f32.gmra.mxu0 %v1017
  %v1173 = vpop.f32.mrf.mxu0
  %v1174 = vadd.f32 0.0, %v1173
  %v1175 = vpop.f32.mrf.mxu0
  %1176 = vmatprep.mubr.f32.mxu0 0.0
  %1177 = vmatmul.mubr.f32.gmra.mxu0 %v1019
  %v1178 = vpop.f32.mrf.mxu0
  %v1179 = vadd.f32 0.0, %v1178
  %v1180 = vpop.f32.mrf.mxu0
  %1181 = vmatprep.mubr.f32.mxu0 0.0
  %1182 = vmatmul.mubr.f32.gmra.mxu0 %v1021
  %v1183 = vpop.f32.mrf.mxu0
  %v1184 = vadd.f32 0.0, %v1183
  %v1185 = vpop.f32.mrf.mxu0
  %1186 = vmatprep.mubr.f32.mxu0 0.0
  %1187 = vmatmul.mubr.f32.gmra.mxu0 %v1023
  %v1188 = vpop.f32.mrf.mxu0
  %v1189 = vadd.f32 0.0, %v1188
  %v1190 = vpop.f32.mrf.mxu0
  %1191 = vmatprep.mubr.f32.mxu0 0.0
  %1192 = vmatmul.mubr.f32.gmra.mxu0 %v1025
  %v1193 = vpop.f32.mrf.mxu0
  %v1194 = vadd.f32 0.0, %v1193
  %v1195 = vpop.f32.mrf.mxu0
  %1196 = vmatprep.mubr.f32.mxu0 0.0
  %1197 = vmatmul.mubr.f32.gmra.mxu0 %v1027
  %v1198 = vpop.f32.mrf.mxu0
  %v1199 = vadd.f32 0.0, %v1198
  %v1200 = vpop.f32.mrf.mxu0
  %1201 = vmatprep.mubr.f32.mxu0 0.0
  %1202 = vmatmul.mubr.f32.gmra.mxu0 %v1029
  %v1203 = vpop.f32.mrf.mxu0
  %v1204 = vadd.f32 0.0, %v1203
  %v1205 = vpop.f32.mrf.mxu0
  %1206 = vmatprep.mubr.f32.mxu0 0.0
  %1207 = vmatmul.mubr.f32.gmra.mxu0 %v1031
  %v1208 = vpop.f32.mrf.mxu0
  %v1209 = vadd.f32 0.0, %v1208
  %v1210 = vpop.f32.mrf.mxu0
  %1211 = vmatprep.mubr.f32.mxu0 0.0
  %1212 = vmatmul.mubr.f32.gmra.mxu0 %v1033
  %v1213 = vpop.f32.mrf.mxu0
  %v1214 = vadd.f32 0.0, %v1213
  %v1215 = vpop.f32.mrf.mxu0
  %1216 = vmatprep.mubr.f32.mxu0 0.0
  %1217 = vmatmul.mubr.f32.gmra.mxu0 %v1035
  %v1218 = vpop.f32.mrf.mxu0
  %v1219 = vadd.f32 0.0, %v1218
  %v1220 = vpop.f32.mrf.mxu0
  %1221 = vmatprep.mubr.f32.mxu0 0.0
  %1222 = vmatmul.mubr.f32.gmra.mxu0 %v1037
  %v1223 = vpop.f32.mrf.mxu0
  %v1224 = vadd.f32 0.0, %v1223
  %v1225 = vpop.f32.mrf.mxu0
  %1226 = vmatprep.mubr.f32.mxu0 0.0
  %1227 = vmatmul.mubr.f32.gmra.mxu0 %v1039
  %v1228 = vpop.f32.mrf.mxu0
  %v1229 = vadd.f32 0.0, %v1228
  %v1230 = vpop.f32.mrf.mxu0
  %1231 = vmatprep.mubr.f32.mxu0 0.0
  %1232 = vmatmul.mubr.f32.gmra.mxu0 %v1041
  %v1233 = vpop.f32.mrf.mxu0
  %v1234 = vadd.f32 0.0, %v1233
  %v1235 = vpop.f32.mrf.mxu0
  %1236 = vmatprep.mubr.f32.mxu0 0.0
  %1237 = vmatmul.mubr.f32.gmra.mxu0 %v1043
  %v1238 = vpop.f32.mrf.mxu0
  %v1239 = vadd.f32 0.0, %v1238
  %v1240 = vpop.f32.mrf.mxu0
  %1241 = vmatprep.mubr.f32.mxu0 0.0
  %1242 = vmatmul.mubr.f32.gmra.mxu0 %v1045
  %v1243 = vpop.f32.mrf.mxu0
  %v1244 = vadd.f32 0.0, %v1243
  %v1245 = vpop.f32.mrf.mxu0
  %1246 = vmatprep.mubr.f32.mxu0 0.0
  %1247 = vmatmul.mubr.f32.gmra.mxu0 %v1047
  %v1248 = vpop.f32.mrf.mxu0
  %v1249 = vadd.f32 0.0, %v1248
  %v1250 = vpop.f32.mrf.mxu0
  %1251 = vmatprep.mubr.f32.mxu0 0.0
  %1252 = vmatmul.mubr.f32.gmra.mxu0 %v1049
  %v1253 = vpop.f32.mrf.mxu0
  %v1254 = vadd.f32 0.0, %v1253
  %v1255 = vpop.f32.mrf.mxu0
  %1256 = vmatprep.mubr.f32.mxu0 0.0
  %1257 = vmatmul.mubr.f32.gmra.mxu0 %v1051
  %v1258 = vpop.f32.mrf.mxu0
  %v1259 = vadd.f32 0.0, %v1258
  %v1260 = vpop.f32.mrf.mxu0
  %1261 = vmatprep.mubr.f32.mxu0 0.0
  %1262 = vmatmul.mubr.f32.gmra.mxu0 %v1053
  %v1263 = vpop.f32.mrf.mxu0
  %v1264 = vadd.f32 0.0, %v1263
  %v1265 = vpop.f32.mrf.mxu0
  %1266 = vmatprep.mubr.f32.mxu0 0.0
  %1267 = vmatmul.mubr.f32.gmra.mxu0 %v1055
  %v1268 = vpop.f32.mrf.mxu0
  %v1269 = vadd.f32 0.0, %v1268
  %v1270 = vpop.f32.mrf.mxu0
  %1271 = vmatprep.mubr.f32.mxu0 0.0
  %1272 = vmatmul.mubr.f32.gmra.mxu0 %v1057
  %v1273 = vpop.f32.mrf.mxu0
  %v1274 = vadd.f32 0.0, %v1273
  %v1275 = vpop.f32.mrf.mxu0
  %1276 = vmatprep.mubr.f32.mxu0 0.0
  %1277 = vmatmul.mubr.f32.gmra.mxu0 %v1059
  %v1278 = vpop.f32.mrf.mxu0
  %v1279 = vadd.f32 0.0, %v1278
  %v1280 = vpop.f32.mrf.mxu0
  %1281 = vmatprep.mubr.f32.mxu0 0.0
  %1282 = vmatmul.mubr.f32.gmra.mxu0 %v1061
  %v1283 = vpop.f32.mrf.mxu0
  %v1284 = vadd.f32 0.0, %v1283
  %v1285 = vpop.f32.mrf.mxu0
  %1286 = vmatprep.mubr.f32.mxu0 0.0
  %1287 = vmatmul.mubr.f32.gmra.mxu0 %v1063
  %v1288 = vpop.f32.mrf.mxu0
  %v1289 = vadd.f32 0.0, %v1288
  %v1290 = vpop.f32.mrf.mxu0
  %1291 = vmatprep.mubr.f32.mxu0 0.0
  %1292 = vmatmul.mubr.f32.gmra.mxu0 %v1065
  %v1293 = vpop.f32.mrf.mxu0
  %v1294 = vadd.f32 0.0, %v1293
  %v1295 = vpop.f32.mrf.mxu0
  %1296 = vmatprep.mubr.f32.mxu0 0.0
  %1297 = vmatmul.mubr.f32.gmra.mxu0 %v1067
  %v1298 = vpop.f32.mrf.mxu0
  %v1299 = vadd.f32 0.0, %v1298
  %v1300 = vpop.f32.mrf.mxu0
  %1301 = vmatprep.mubr.f32.mxu0 0.0
  %1302 = vmatmul.mubr.f32.gmra.mxu0 %v1069
  %v1303 = vpop.f32.mrf.mxu0
  %v1304 = vadd.f32 0.0, %v1303
  %v1305 = vpop.f32.mrf.mxu0
  %1306 = vmatprep.mubr.f32.mxu0 0.0
  %1307 = vmatmul.mubr.f32.gmra.mxu0 %v1071
  %v1308 = vpop.f32.mrf.mxu0
  %v1309 = vadd.f32 0.0, %v1308
  %v1310 = vpop.f32.mrf.mxu0
  %1311 = vmatprep.mubr.f32.mxu0 0.0
  %1312 = vmatmul.mubr.f32.gmra.mxu0 %v1073
  %v1313 = vpop.f32.mrf.mxu0
  %v1314 = vadd.f32 0.0, %v1313
  %v1315 = vpop.f32.mrf.mxu0
  %1316 = vmatprep.mubr.f32.mxu0 0.0
  %1317 = vmatmul.mubr.f32.gmra.mxu0 %v1075
  %v1318 = vpop.f32.mrf.mxu0
  %v1319 = vadd.f32 0.0, %v1318
  %v1320 = vpop.f32.mrf.mxu0
  %1321 = vmatprep.mubr.f32.mxu0 0.0
  %1322 = vmatmul.mubr.f32.gmra.mxu0 %v1077
  %v1323 = vpop.f32.mrf.mxu0
  %v1324 = vadd.f32 0.0, %v1323
  %v1325 = vpop.f32.mrf.mxu0
  %1326 = vdwg.mxu0
  %v1327 = vadd.f32 %v895, %v1149
  %v1328 = vadd.f32 %v896, %v1154
  %v1329 = vadd.f32 %v897, %v1159
  %v1330 = vadd.f32 %v898, %v1164
  %v1331 = vadd.f32 %v899, %v1169
  %v1332 = vadd.f32 %v900, %v1174
  %v1333 = vadd.f32 %v901, %v1179
  %v1334 = vadd.f32 %v902, %v1184
  %v1335 = vadd.f32 %v903, %v1189
  %v1336 = vadd.f32 %v904, %v1194
  %v1337 = vadd.f32 %v905, %v1199
  %v1338 = vadd.f32 %v906, %v1204
  %v1339 = vadd.f32 %v907, %v1209
  %v1340 = vadd.f32 %v908, %v1214
  %v1341 = vadd.f32 %v909, %v1219
  %v1342 = vadd.f32 %v910, %v1224
  %v1343 = vadd.f32 %v911, %v1229
  %v1344 = vadd.f32 %v912, %v1234
  %v1345 = vadd.f32 %v913, %v1239
  %v1346 = vadd.f32 %v914, %v1244
  %v1347 = vadd.f32 %v915, %v1249
  %v1348 = vadd.f32 %v916, %v1254
  %v1349 = vadd.f32 %v917, %v1259
  %v1350 = vadd.f32 %v918, %v1264
  %v1351 = vadd.f32 %v919, %v1269
  %v1352 = vadd.f32 %v920, %v1274
  %v1353 = vadd.f32 %v921, %v1279
  %v1354 = vadd.f32 %v922, %v1284
  %v1355 = vadd.f32 %v923, %v1289
  %v1356 = vadd.f32 %v924, %v1294
  %v1357 = vadd.f32 %v925, %v1299
  %v1358 = vadd.f32 %v926, %v1304
  %v1359 = vadd.f32 %v927, %v1309
  %v1360 = vadd.f32 %v928, %v1314
  %v1361 = vadd.f32 %v929, %v1319
  %v1362 = vadd.f32 %v930, %v1324
  %s1363 = scalar_lea.vmem %s1, 12
  %v1364 = vld [vmem:[%s1363] sm:$0xf]
  %v1367 = vrot.slane %v92, 2
  %v1368 = vsel %vm933, %v1005, %v1367
  %v1369 = vrot.slane %v93, 2
  %v1370 = vsel %vm933, %v1367, %v1369
  %v1371 = vsel %vm104, %v1368, 0
  %v1373 = vsel %vm104, %v1370, 0
  %v1376 = vsel %vm213, %v1364, 0
  %1378 = vmatprep.subr.mxu0 0.0
  %1379 = vmatpush1.msra.mxu0 0.0
  %1380 = vmatprep.subr.mxu0 0.0
  %1381 = vmatpush1.msra.mxu0 0.0
  %1382 = vmatprep.subr.mxu0 0.0
  %1383 = vmatpush1.msra.mxu0 0.0
  %1384 = vmatprep.subr.mxu0 0.0
  %1385 = vmatpush1.msra.mxu0 0.0
  %1386 = vmatprep.subr.mxu0 0.0
  %1387 = vmatpush1.msra.mxu0 0.0
  %1388 = vmatprep.subr.mxu0 0.0
  %1389 = vmatpush1.msra.mxu0 0.0
  %1390 = vmatprep.subr.mxu0 0.0
  %1391 = vmatpush1.msra.mxu0 0.0
  %1392 = vmatprep.subr.mxu0 0.0
  %1393 = vmatpush1.msra.mxu0 0.0
  %1394 = vmatprep.subr.mxu0 0.0
  %1395 = vmatpush1.msra.mxu0 0.0
  %1396 = vmatprep.subr.mxu0 0.0
  %1397 = vmatpush1.msra.mxu0 0.0
  %1398 = vmatprep.subr.mxu0 0.0
  %1399 = vmatpush1.msra.mxu0 0.0
  %1400 = vmatprep.subr.mxu0 0.0
  %1401 = vmatpush1.msra.mxu0 0.0
  %1402 = vmatprep.subr.mxu0 0.0
  %1403 = vmatpush1.msra.mxu0 0.0
  %1404 = vmatprep.subr.mxu0 0.0
  %1405 = vmatpush1.msra.mxu0 0.0
  %1406 = vmatprep.subr.mxu0 0.0
  %1407 = vmatpush1.msra.mxu0 0.0
  %1408 = vmatprep.subr.mxu0 0.0
  %1409 = vmatpush1.msra.mxu0 %v1376
  %1410 = vmatprep.subr.mxu0 0.0
  %1411 = vmatpush2.msra.mxu0 0.0
  %1412 = vmatprep.subr.mxu0 0.0
  %1413 = vmatpush2.msra.mxu0 0.0
  %1414 = vmatprep.subr.mxu0 0.0
  %1415 = vmatpush2.msra.mxu0 0.0
  %1416 = vmatprep.subr.mxu0 0.0
  %1417 = vmatpush2.msra.mxu0 0.0
  %1418 = vmatprep.subr.mxu0 0.0
  %1419 = vmatpush2.msra.mxu0 0.0
  %1420 = vmatprep.subr.mxu0 0.0
  %1421 = vmatpush2.msra.mxu0 0.0
  %1422 = vmatprep.subr.mxu0 0.0
  %1423 = vmatpush2.msra.mxu0 0.0
  %1424 = vmatprep.subr.mxu0 0.0
  %1425 = vmatpush2.msra.mxu0 0.0
  %1426 = vmatprep.subr.mxu0 0.0
  %1427 = vmatpush2.msra.mxu0 0.0
  %1428 = vmatprep.subr.mxu0 0.0
  %1429 = vmatpush2.msra.mxu0 0.0
  %1430 = vmatprep.subr.mxu0 0.0
  %1431 = vmatpush2.msra.mxu0 0.0
  %1432 = vmatprep.subr.mxu0 0.0
  %1433 = vmatpush2.msra.mxu0 0.0
  %1434 = vmatprep.subr.mxu0 0.0
  %1435 = vmatpush2.msra.mxu0 0.0
  %1436 = vmatprep.subr.mxu0 0.0
  %1437 = vmatpush2.msra.mxu0 0.0
  %1438 = vmatprep.subr.mxu0 0.0
  %1439 = vmatpush2.msra.mxu0 0.0
  %1440 = vmatprep.subr.mxu0 0.0
  %1441 = vmatpush2.msra.mxu0 0.0
  %1442 = vmatprep.mubr.f32.mxu0 0.0
  %1443 = vmatmul.mubr.f32.gmra.mxu0 %v1011
  %v1444 = vpop.f32.mrf.mxu0
  %v1445 = vadd.f32 0.0, %v1444
  %v1446 = vpop.f32.mrf.mxu0
  %1447 = vmatprep.mubr.f32.mxu0 0.0
  %1448 = vmatmul.mubr.f32.gmra.mxu0 %v1013
  %v1449 = vpop.f32.mrf.mxu0
  %v1450 = vadd.f32 0.0, %v1449
  %v1451 = vpop.f32.mrf.mxu0
  %1452 = vmatprep.mubr.f32.mxu0 0.0
  %1453 = vmatmul.mubr.f32.gmra.mxu0 %v1015
  %v1454 = vpop.f32.mrf.mxu0
  %v1455 = vadd.f32 0.0, %v1454
  %v1456 = vpop.f32.mrf.mxu0
  %1457 = vmatprep.mubr.f32.mxu0 0.0
  %1458 = vmatmul.mubr.f32.gmra.mxu0 %v1017
  %v1459 = vpop.f32.mrf.mxu0
  %v1460 = vadd.f32 0.0, %v1459
  %v1461 = vpop.f32.mrf.mxu0
  %1462 = vmatprep.mubr.f32.mxu0 0.0
  %1463 = vmatmul.mubr.f32.gmra.mxu0 %v1019
  %v1464 = vpop.f32.mrf.mxu0
  %v1465 = vadd.f32 0.0, %v1464
  %v1466 = vpop.f32.mrf.mxu0
  %1467 = vmatprep.mubr.f32.mxu0 0.0
  %1468 = vmatmul.mubr.f32.gmra.mxu0 %v1021
  %v1469 = vpop.f32.mrf.mxu0
  %v1470 = vadd.f32 0.0, %v1469
  %v1471 = vpop.f32.mrf.mxu0
  %1472 = vmatprep.mubr.f32.mxu0 0.0
  %1473 = vmatmul.mubr.f32.gmra.mxu0 %v1023
  %v1474 = vpop.f32.mrf.mxu0
  %v1475 = vadd.f32 0.0, %v1474
  %v1476 = vpop.f32.mrf.mxu0
  %1477 = vmatprep.mubr.f32.mxu0 0.0
  %1478 = vmatmul.mubr.f32.gmra.mxu0 %v1025
  %v1479 = vpop.f32.mrf.mxu0
  %v1480 = vadd.f32 0.0, %v1479
  %v1481 = vpop.f32.mrf.mxu0
  %1482 = vmatprep.mubr.f32.mxu0 0.0
  %1483 = vmatmul.mubr.f32.gmra.mxu0 %v1027
  %v1484 = vpop.f32.mrf.mxu0
  %v1485 = vadd.f32 0.0, %v1484
  %v1486 = vpop.f32.mrf.mxu0
  %1487 = vmatprep.mubr.f32.mxu0 0.0
  %1488 = vmatmul.mubr.f32.gmra.mxu0 %v1029
  %v1489 = vpop.f32.mrf.mxu0
  %v1490 = vadd.f32 0.0, %v1489
  %v1491 = vpop.f32.mrf.mxu0
  %1492 = vmatprep.mubr.f32.mxu0 0.0
  %1493 = vmatmul.mubr.f32.gmra.mxu0 %v1031
  %v1494 = vpop.f32.mrf.mxu0
  %v1495 = vadd.f32 0.0, %v1494
  %v1496 = vpop.f32.mrf.mxu0
  %1497 = vmatprep.mubr.f32.mxu0 0.0
  %1498 = vmatmul.mubr.f32.gmra.mxu0 %v1033
  %v1499 = vpop.f32.mrf.mxu0
  %v1500 = vadd.f32 0.0, %v1499
  %v1501 = vpop.f32.mrf.mxu0
  %1502 = vmatprep.mubr.f32.mxu0 0.0
  %1503 = vmatmul.mubr.f32.gmra.mxu0 %v1035
  %v1504 = vpop.f32.mrf.mxu0
  %v1505 = vadd.f32 0.0, %v1504
  %v1506 = vpop.f32.mrf.mxu0
  %1507 = vmatprep.mubr.f32.mxu0 0.0
  %1508 = vmatmul.mubr.f32.gmra.mxu0 %v1037
  %v1509 = vpop.f32.mrf.mxu0
  %v1510 = vadd.f32 0.0, %v1509
  %v1511 = vpop.f32.mrf.mxu0
  %1512 = vmatprep.mubr.f32.mxu0 0.0
  %1513 = vmatmul.mubr.f32.gmra.mxu0 %v1039
  %v1514 = vpop.f32.mrf.mxu0
  %v1515 = vadd.f32 0.0, %v1514
  %v1516 = vpop.f32.mrf.mxu0
  %1517 = vmatprep.mubr.f32.mxu0 0.0
  %1518 = vmatmul.mubr.f32.gmra.mxu0 %v1041
  %v1519 = vpop.f32.mrf.mxu0
  %v1520 = vadd.f32 0.0, %v1519
  %v1521 = vpop.f32.mrf.mxu0
  %1522 = vmatprep.mubr.f32.mxu0 0.0
  %1523 = vmatmul.mubr.f32.gmra.mxu0 %v1043
  %v1524 = vpop.f32.mrf.mxu0
  %v1525 = vadd.f32 0.0, %v1524
  %v1526 = vpop.f32.mrf.mxu0
  %1527 = vmatprep.mubr.f32.mxu0 0.0
  %1528 = vmatmul.mubr.f32.gmra.mxu0 %v1045
  %v1529 = vpop.f32.mrf.mxu0
  %v1530 = vadd.f32 0.0, %v1529
  %v1531 = vpop.f32.mrf.mxu0
  %1532 = vmatprep.mubr.f32.mxu0 0.0
  %1533 = vmatmul.mubr.f32.gmra.mxu0 %v1047
  %v1534 = vpop.f32.mrf.mxu0
  %v1535 = vadd.f32 0.0, %v1534
  %v1536 = vpop.f32.mrf.mxu0
  %1537 = vmatprep.mubr.f32.mxu0 0.0
  %1538 = vmatmul.mubr.f32.gmra.mxu0 %v1049
  %v1539 = vpop.f32.mrf.mxu0
  %v1540 = vadd.f32 0.0, %v1539
  %v1541 = vpop.f32.mrf.mxu0
  %1542 = vmatprep.mubr.f32.mxu0 0.0
  %1543 = vmatmul.mubr.f32.gmra.mxu0 %v1051
  %v1544 = vpop.f32.mrf.mxu0
  %v1545 = vadd.f32 0.0, %v1544
  %v1546 = vpop.f32.mrf.mxu0
  %1547 = vmatprep.mubr.f32.mxu0 0.0
  %1548 = vmatmul.mubr.f32.gmra.mxu0 %v1053
  %v1549 = vpop.f32.mrf.mxu0
  %v1550 = vadd.f32 0.0, %v1549
  %v1551 = vpop.f32.mrf.mxu0
  %1552 = vmatprep.mubr.f32.mxu0 0.0
  %1553 = vmatmul.mubr.f32.gmra.mxu0 %v1055
  %v1554 = vpop.f32.mrf.mxu0
  %v1555 = vadd.f32 0.0, %v1554
  %v1556 = vpop.f32.mrf.mxu0
  %1557 = vmatprep.mubr.f32.mxu0 0.0
  %1558 = vmatmul.mubr.f32.gmra.mxu0 %v1057
  %v1559 = vpop.f32.mrf.mxu0
  %v1560 = vadd.f32 0.0, %v1559
  %v1561 = vpop.f32.mrf.mxu0
  %1562 = vmatprep.mubr.f32.mxu0 0.0
  %1563 = vmatmul.mubr.f32.gmra.mxu0 %v1059
  %v1564 = vpop.f32.mrf.mxu0
  %v1565 = vadd.f32 0.0, %v1564
  %v1566 = vpop.f32.mrf.mxu0
  %1567 = vmatprep.mubr.f32.mxu0 0.0
  %1568 = vmatmul.mubr.f32.gmra.mxu0 %v1061
  %v1569 = vpop.f32.mrf.mxu0
  %v1570 = vadd.f32 0.0, %v1569
  %v1571 = vpop.f32.mrf.mxu0
  %1572 = vmatprep.mubr.f32.mxu0 0.0
  %1573 = vmatmul.mubr.f32.gmra.mxu0 %v1063
  %v1574 = vpop.f32.mrf.mxu0
  %v1575 = vadd.f32 0.0, %v1574
  %v1576 = vpop.f32.mrf.mxu0
  %1577 = vmatprep.mubr.f32.mxu0 0.0
  %1578 = vmatmul.mubr.f32.gmra.mxu0 %v1065
  %v1579 = vpop.f32.mrf.mxu0
  %v1580 = vadd.f32 0.0, %v1579
  %v1581 = vpop.f32.mrf.mxu0
  %1582 = vmatprep.mubr.f32.mxu0 0.0
  %1583 = vmatmul.mubr.f32.gmra.mxu0 %v1067
  %v1584 = vpop.f32.mrf.mxu0
  %v1585 = vadd.f32 0.0, %v1584
  %v1586 = vpop.f32.mrf.mxu0
  %1587 = vmatprep.mubr.f32.mxu0 0.0
  %1588 = vmatmul.mubr.f32.gmra.mxu0 %v1069
  %v1589 = vpop.f32.mrf.mxu0
  %v1590 = vadd.f32 0.0, %v1589
  %v1591 = vpop.f32.mrf.mxu0
  %1592 = vmatprep.mubr.f32.mxu0 0.0
  %1593 = vmatmul.mubr.f32.gmra.mxu0 %v1071
  %v1594 = vpop.f32.mrf.mxu0
  %v1595 = vadd.f32 0.0, %v1594
  %v1596 = vpop.f32.mrf.mxu0
  %1597 = vmatprep.mubr.f32.mxu0 0.0
  %1598 = vmatmul.mubr.f32.gmra.mxu0 %v1073
  %v1599 = vpop.f32.mrf.mxu0
  %v1600 = vadd.f32 0.0, %v1599
  %v1601 = vpop.f32.mrf.mxu0
  %1602 = vmatprep.mubr.f32.mxu0 0.0
  %1603 = vmatmul.mubr.f32.gmra.mxu0 %v1075
  %v1604 = vpop.f32.mrf.mxu0
  %v1605 = vadd.f32 0.0, %v1604
  %v1606 = vpop.f32.mrf.mxu0
  %1607 = vmatprep.mubr.f32.mxu0 0.0
  %1608 = vmatmul.mubr.f32.gmra.mxu0 %v1077
  %v1609 = vpop.f32.mrf.mxu0
  %v1610 = vadd.f32 0.0, %v1609
  %v1611 = vpop.f32.mrf.mxu0
  %1612 = vmatprep.mubr.f32.mxu0 0.0
  %1613 = vmatmul.mubr.f32.gmra.mxu0 %v1371
  %v1614 = vpop.f32.mrf.mxu0
  %v1615 = vadd.f32 0.0, %v1614
  %v1616 = vpop.f32.mrf.mxu0
  %1617 = vmatprep.mubr.f32.mxu0 0.0
  %1618 = vmatmul.mubr.f32.gmra.mxu0 %v1373
  %v1619 = vpop.f32.mrf.mxu0
  %v1620 = vadd.f32 0.0, %v1619
  %v1621 = vpop.f32.mrf.mxu0
  %1622 = vdwg.mxu0
  %v1623 = vadd.f32 %v1327, %v1445
  %v1624 = vadd.f32 %v1328, %v1450
  %v1625 = vadd.f32 %v1329, %v1455
  %v1626 = vadd.f32 %v1330, %v1460
  %v1627 = vadd.f32 %v1331, %v1465
  %v1628 = vadd.f32 %v1332, %v1470
  %v1629 = vadd.f32 %v1333, %v1475
  %v1630 = vadd.f32 %v1334, %v1480
  %v1631 = vadd.f32 %v1335, %v1485
  %v1632 = vadd.f32 %v1336, %v1490
  %v1633 = vadd.f32 %v1337, %v1495
  %v1634 = vadd.f32 %v1338, %v1500
  %v1635 = vadd.f32 %v1339, %v1505
  %v1636 = vadd.f32 %v1340, %v1510
  %v1637 = vadd.f32 %v1341, %v1515
  %v1638 = vadd.f32 %v1342, %v1520
  %v1639 = vadd.f32 %v1343, %v1525
  %v1640 = vadd.f32 %v1344, %v1530
  %v1641 = vadd.f32 %v1345, %v1535
  %v1642 = vadd.f32 %v1346, %v1540
  %v1643 = vadd.f32 %v1347, %v1545
  %v1644 = vadd.f32 %v1348, %v1550
  %v1645 = vadd.f32 %v1349, %v1555
  %v1646 = vadd.f32 %v1350, %v1560
  %v1647 = vadd.f32 %v1351, %v1565
  %v1648 = vadd.f32 %v1352, %v1570
  %v1649 = vadd.f32 %v1353, %v1575
  %v1650 = vadd.f32 %v1354, %v1580
  %v1651 = vadd.f32 %v1355, %v1585
  %v1652 = vadd.f32 %v1356, %v1590
  %v1653 = vadd.f32 %v1357, %v1595
  %v1654 = vadd.f32 %v1358, %v1600
  %v1655 = vadd.f32 %v1359, %v1605
  %v1656 = vadd.f32 %v1360, %v1610
  %v1657 = vadd.f32 %v1361, %v1615
  %v1658 = vadd.f32 %v1362, %v1620
  %s1659 = scalar_lea.vmem %s1, 16
  %v1660 = vld [vmem:[%s1659] sm:$0xf]
  %vm1661 = vcmask 1044480
  %v1662 = vrot.slane %v57, 3
  %v1663 = vrot.slane %v58, 3
  %v1664 = vsel %vm1661, %v1662, %v1663
  %v1665 = vrot.slane %v59, 3
  %v1666 = vsel %vm1661, %v1663, %v1665
  %v1667 = vrot.slane %v60, 3
  %v1668 = vsel %vm1661, %v1665, %v1667
  %v1669 = vrot.slane %v61, 3
  %v1670 = vsel %vm1661, %v1667, %v1669
  %v1671 = vrot.slane %v62, 3
  %v1672 = vsel %vm1661, %v1669, %v1671
  %v1673 = vrot.slane %v63, 3
  %v1674 = vsel %vm1661, %v1671, %v1673
  %v1675 = vrot.slane %v64, 3
  %v1676 = vsel %vm1661, %v1673, %v1675
  %v1677 = vrot.slane %v65, 3
  %v1678 = vsel %vm1661, %v1675, %v1677
  %v1679 = vrot.slane %v66, 3
  %v1680 = vsel %vm1661, %v1677, %v1679
  %v1681 = vrot.slane %v67, 3
  %v1682 = vsel %vm1661, %v1679, %v1681
  %v1683 = vrot.slane %v68, 3
  %v1684 = vsel %vm1661, %v1681, %v1683
  %v1685 = vrot.slane %v69, 3
  %v1686 = vsel %vm1661, %v1683, %v1685
  %v1687 = vrot.slane %v70, 3
  %v1688 = vsel %vm1661, %v1685, %v1687
  %v1689 = vrot.slane %v71, 3
  %v1690 = vsel %vm1661, %v1687, %v1689
  %v1691 = vrot.slane %v72, 3
  %v1692 = vsel %vm1661, %v1689, %v1691
  %v1693 = vrot.slane %v73, 3
  %v1694 = vsel %vm1661, %v1691, %v1693
  %v1695 = vrot.slane %v74, 3
  %v1696 = vsel %vm1661, %v1693, %v1695
  %v1697 = vrot.slane %v75, 3
  %v1698 = vsel %vm1661, %v1695, %v1697
  %v1699 = vrot.slane %v76, 3
  %v1700 = vsel %vm1661, %v1697, %v1699
  %v1701 = vrot.slane %v77, 3
  %v1702 = vsel %vm1661, %v1699, %v1701
  %v1703 = vrot.slane %v78, 3
  %v1704 = vsel %vm1661, %v1701, %v1703
  %v1705 = vrot.slane %v79, 3
  %v1706 = vsel %vm1661, %v1703, %v1705
  %v1707 = vrot.slane %v80, 3
  %v1708 = vsel %vm1661, %v1705, %v1707
  %v1709 = vrot.slane %v81, 3
  %v1710 = vsel %vm1661, %v1707, %v1709
  %v1711 = vrot.slane %v82, 3
  %v1712 = vsel %vm1661, %v1709, %v1711
  %v1713 = vrot.slane %v83, 3
  %v1714 = vsel %vm1661, %v1711, %v1713
  %v1715 = vrot.slane %v84, 3
  %v1716 = vsel %vm1661, %v1713, %v1715
  %v1717 = vrot.slane %v85, 3
  %v1718 = vsel %vm1661, %v1715, %v1717
  %v1719 = vrot.slane %v86, 3
  %v1720 = vsel %vm1661, %v1717, %v1719
  %v1721 = vrot.slane %v87, 3
  %v1722 = vsel %vm1661, %v1719, %v1721
  %v1723 = vrot.slane %v88, 3
  %v1724 = vsel %vm1661, %v1721, %v1723
  %v1725 = vrot.slane %v89, 3
  %v1726 = vsel %vm1661, %v1723, %v1725
  %v1727 = vrot.slane %v90, 3
  %v1728 = vsel %vm1661, %v1725, %v1727
  %v1729 = vrot.slane %v91, 3
  %v1730 = vsel %vm1661, %v1727, %v1729
  %v1731 = vrot.slane %v92, 3
  %v1732 = vsel %vm1661, %v1729, %v1731
  %v1733 = vrot.slane %v93, 3
  %v1734 = vsel %vm1661, %v1731, %v1733
  %v1735 = vsel %vm104, %v1664, 0
  %v1737 = vsel %vm104, %v1666, 0
  %v1739 = vsel %vm104, %v1668, 0
  %v1741 = vsel %vm104, %v1670, 0
  %v1743 = vsel %vm104, %v1672, 0
  %v1745 = vsel %vm104, %v1674, 0
  %v1747 = vsel %vm104, %v1676, 0
  %v1749 = vsel %vm104, %v1678, 0
  %v1751 = vsel %vm104, %v1680, 0
  %v1753 = vsel %vm104, %v1682, 0
  %v1755 = vsel %vm104, %v1684, 0
  %v1757 = vsel %vm104, %v1686, 0
  %v1759 = vsel %vm104, %v1688, 0
  %v1761 = vsel %vm104, %v1690, 0
  %v1763 = vsel %vm104, %v1692, 0
  %v1765 = vsel %vm104, %v1694, 0
  %v1767 = vsel %vm104, %v1696, 0
  %v1769 = vsel %vm104, %v1698, 0
  %v1771 = vsel %vm104, %v1700, 0
  %v1773 = vsel %vm104, %v1702, 0
  %v1775 = vsel %vm104, %v1704, 0
  %v1777 = vsel %vm104, %v1706, 0
  %v1779 = vsel %vm104, %v1708, 0
  %v1781 = vsel %vm104, %v1710, 0
  %v1783 = vsel %vm104, %v1712, 0
  %v1785 = vsel %vm104, %v1714, 0
  %v1787 = vsel %vm104, %v1716, 0
  %v1789 = vsel %vm104, %v1718, 0
  %v1791 = vsel %vm104, %v1720, 0
  %v1793 = vsel %vm104, %v1722, 0
  %v1795 = vsel %vm104, %v1724, 0
  %v1797 = vsel %vm104, %v1726, 0
  %v1799 = vsel %vm104, %v1728, 0
  %v1801 = vsel %vm104, %v1730, 0
  %v1803 = vsel %vm104, %v1732, 0
  %v1805 = vsel %vm104, %v1734, 0
  %v1808 = vsel %vm213, %v1660, 0
  %1810 = vmatprep.subr.mxu0 0.0
  %1811 = vmatpush1.msra.mxu0 0.0
  %1812 = vmatprep.subr.mxu0 0.0
  %1813 = vmatpush1.msra.mxu0 0.0
  %1814 = vmatprep.subr.mxu0 0.0
  %1815 = vmatpush1.msra.mxu0 0.0
  %1816 = vmatprep.subr.mxu0 0.0
  %1817 = vmatpush1.msra.mxu0 0.0
  %1818 = vmatprep.subr.mxu0 0.0
  %1819 = vmatpush1.msra.mxu0 0.0
  %1820 = vmatprep.subr.mxu0 0.0
  %1821 = vmatpush1.msra.mxu0 0.0
  %1822 = vmatprep.subr.mxu0 0.0
  %1823 = vmatpush1.msra.mxu0 0.0
  %1824 = vmatprep.subr.mxu0 0.0
  %1825 = vmatpush1.msra.mxu0 0.0
  %1826 = vmatprep.subr.mxu0 0.0
  %1827 = vmatpush1.msra.mxu0 0.0
  %1828 = vmatprep.subr.mxu0 0.0
  %1829 = vmatpush1.msra.mxu0 0.0
  %1830 = vmatprep.subr.mxu0 0.0
  %1831 = vmatpush1.msra.mxu0 0.0
  %1832 = vmatprep.subr.mxu0 0.0
  %1833 = vmatpush1.msra.mxu0 0.0
  %1834 = vmatprep.subr.mxu0 0.0
  %1835 = vmatpush1.msra.mxu0 0.0
  %1836 = vmatprep.subr.mxu0 0.0
  %1837 = vmatpush1.msra.mxu0 0.0
  %1838 = vmatprep.subr.mxu0 0.0
  %1839 = vmatpush1.msra.mxu0 0.0
  %1840 = vmatprep.subr.mxu0 0.0
  %1841 = vmatpush1.msra.mxu0 %v1808
  %1842 = vmatprep.subr.mxu0 0.0
  %1843 = vmatpush2.msra.mxu0 0.0
  %1844 = vmatprep.subr.mxu0 0.0
  %1845 = vmatpush2.msra.mxu0 0.0
  %1846 = vmatprep.subr.mxu0 0.0
  %1847 = vmatpush2.msra.mxu0 0.0
  %1848 = vmatprep.subr.mxu0 0.0
  %1849 = vmatpush2.msra.mxu0 0.0
  %1850 = vmatprep.subr.mxu0 0.0
  %1851 = vmatpush2.msra.mxu0 0.0
  %1852 = vmatprep.subr.mxu0 0.0
  %1853 = vmatpush2.msra.mxu0 0.0
  %1854 = vmatprep.subr.mxu0 0.0
  %1855 = vmatpush2.msra.mxu0 0.0
  %1856 = vmatprep.subr.mxu0 0.0
  %1857 = vmatpush2.msra.mxu0 0.0
  %1858 = vmatprep.subr.mxu0 0.0
  %1859 = vmatpush2.msra.mxu0 0.0
  %1860 = vmatprep.subr.mxu0 0.0
  %1861 = vmatpush2.msra.mxu0 0.0
  %1862 = vmatprep.subr.mxu0 0.0
  %1863 = vmatpush2.msra.mxu0 0.0
  %1864 = vmatprep.subr.mxu0 0.0
  %1865 = vmatpush2.msra.mxu0 0.0
  %1866 = vmatprep.subr.mxu0 0.0
  %1867 = vmatpush2.msra.mxu0 0.0
  %1868 = vmatprep.subr.mxu0 0.0
  %1869 = vmatpush2.msra.mxu0 0.0
  %1870 = vmatprep.subr.mxu0 0.0
  %1871 = vmatpush2.msra.mxu0 0.0
  %1872 = vmatprep.subr.mxu0 0.0
  %1873 = vmatpush2.msra.mxu0 0.0
  %1874 = vmatprep.mubr.f32.mxu0 0.0
  %1875 = vmatmul.mubr.f32.gmra.mxu0 %v1735
  %v1876 = vpop.f32.mrf.mxu0
  %v1877 = vadd.f32 0.0, %v1876
  %v1878 = vpop.f32.mrf.mxu0
  %1879 = vmatprep.mubr.f32.mxu0 0.0
  %1880 = vmatmul.mubr.f32.gmra.mxu0 %v1737
  %v1881 = vpop.f32.mrf.mxu0
  %v1882 = vadd.f32 0.0, %v1881
  %v1883 = vpop.f32.mrf.mxu0
  %1884 = vmatprep.mubr.f32.mxu0 0.0
  %1885 = vmatmul.mubr.f32.gmra.mxu0 %v1739
  %v1886 = vpop.f32.mrf.mxu0
  %v1887 = vadd.f32 0.0, %v1886
  %v1888 = vpop.f32.mrf.mxu0
  %1889 = vmatprep.mubr.f32.mxu0 0.0
  %1890 = vmatmul.mubr.f32.gmra.mxu0 %v1741
  %v1891 = vpop.f32.mrf.mxu0
  %v1892 = vadd.f32 0.0, %v1891
  %v1893 = vpop.f32.mrf.mxu0
  %1894 = vmatprep.mubr.f32.mxu0 0.0
  %1895 = vmatmul.mubr.f32.gmra.mxu0 %v1743
  %v1896 = vpop.f32.mrf.mxu0
  %v1897 = vadd.f32 0.0, %v1896
  %v1898 = vpop.f32.mrf.mxu0
  %1899 = vmatprep.mubr.f32.mxu0 0.0
  %1900 = vmatmul.mubr.f32.gmra.mxu0 %v1745
  %v1901 = vpop.f32.mrf.mxu0
  %v1902 = vadd.f32 0.0, %v1901
  %v1903 = vpop.f32.mrf.mxu0
  %1904 = vmatprep.mubr.f32.mxu0 0.0
  %1905 = vmatmul.mubr.f32.gmra.mxu0 %v1747
  %v1906 = vpop.f32.mrf.mxu0
  %v1907 = vadd.f32 0.0, %v1906
  %v1908 = vpop.f32.mrf.mxu0
  %1909 = vmatprep.mubr.f32.mxu0 0.0
  %1910 = vmatmul.mubr.f32.gmra.mxu0 %v1749
  %v1911 = vpop.f32.mrf.mxu0
  %v1912 = vadd.f32 0.0, %v1911
  %v1913 = vpop.f32.mrf.mxu0
  %1914 = vmatprep.mubr.f32.mxu0 0.0
  %1915 = vmatmul.mubr.f32.gmra.mxu0 %v1751
  %v1916 = vpop.f32.mrf.mxu0
  %v1917 = vadd.f32 0.0, %v1916
  %v1918 = vpop.f32.mrf.mxu0
  %1919 = vmatprep.mubr.f32.mxu0 0.0
  %1920 = vmatmul.mubr.f32.gmra.mxu0 %v1753
  %v1921 = vpop.f32.mrf.mxu0
  %v1922 = vadd.f32 0.0, %v1921
  %v1923 = vpop.f32.mrf.mxu0
  %1924 = vmatprep.mubr.f32.mxu0 0.0
  %1925 = vmatmul.mubr.f32.gmra.mxu0 %v1755
  %v1926 = vpop.f32.mrf.mxu0
  %v1927 = vadd.f32 0.0, %v1926
  %v1928 = vpop.f32.mrf.mxu0
  %1929 = vmatprep.mubr.f32.mxu0 0.0
  %1930 = vmatmul.mubr.f32.gmra.mxu0 %v1757
  %v1931 = vpop.f32.mrf.mxu0
  %v1932 = vadd.f32 0.0, %v1931
  %v1933 = vpop.f32.mrf.mxu0
  %1934 = vmatprep.mubr.f32.mxu0 0.0
  %1935 = vmatmul.mubr.f32.gmra.mxu0 %v1759
  %v1936 = vpop.f32.mrf.mxu0
  %v1937 = vadd.f32 0.0, %v1936
  %v1938 = vpop.f32.mrf.mxu0
  %1939 = vmatprep.mubr.f32.mxu0 0.0
  %1940 = vmatmul.mubr.f32.gmra.mxu0 %v1761
  %v1941 = vpop.f32.mrf.mxu0
  %v1942 = vadd.f32 0.0, %v1941
  %v1943 = vpop.f32.mrf.mxu0
  %1944 = vmatprep.mubr.f32.mxu0 0.0
  %1945 = vmatmul.mubr.f32.gmra.mxu0 %v1763
  %v1946 = vpop.f32.mrf.mxu0
  %v1947 = vadd.f32 0.0, %v1946
  %v1948 = vpop.f32.mrf.mxu0
  %1949 = vmatprep.mubr.f32.mxu0 0.0
  %1950 = vmatmul.mubr.f32.gmra.mxu0 %v1765
  %v1951 = vpop.f32.mrf.mxu0
  %v1952 = vadd.f32 0.0, %v1951
  %v1953 = vpop.f32.mrf.mxu0
  %1954 = vmatprep.mubr.f32.mxu0 0.0
  %1955 = vmatmul.mubr.f32.gmra.mxu0 %v1767
  %v1956 = vpop.f32.mrf.mxu0
  %v1957 = vadd.f32 0.0, %v1956
  %v1958 = vpop.f32.mrf.mxu0
  %1959 = vmatprep.mubr.f32.mxu0 0.0
  %1960 = vmatmul.mubr.f32.gmra.mxu0 %v1769
  %v1961 = vpop.f32.mrf.mxu0
  %v1962 = vadd.f32 0.0, %v1961
  %v1963 = vpop.f32.mrf.mxu0
  %1964 = vmatprep.mubr.f32.mxu0 0.0
  %1965 = vmatmul.mubr.f32.gmra.mxu0 %v1771
  %v1966 = vpop.f32.mrf.mxu0
  %v1967 = vadd.f32 0.0, %v1966
  %v1968 = vpop.f32.mrf.mxu0
  %1969 = vmatprep.mubr.f32.mxu0 0.0
  %1970 = vmatmul.mubr.f32.gmra.mxu0 %v1773
  %v1971 = vpop.f32.mrf.mxu0
  %v1972 = vadd.f32 0.0, %v1971
  %v1973 = vpop.f32.mrf.mxu0
  %1974 = vmatprep.mubr.f32.mxu0 0.0
  %1975 = vmatmul.mubr.f32.gmra.mxu0 %v1775
  %v1976 = vpop.f32.mrf.mxu0
  %v1977 = vadd.f32 0.0, %v1976
  %v1978 = vpop.f32.mrf.mxu0
  %1979 = vmatprep.mubr.f32.mxu0 0.0
  %1980 = vmatmul.mubr.f32.gmra.mxu0 %v1777
  %v1981 = vpop.f32.mrf.mxu0
  %v1982 = vadd.f32 0.0, %v1981
  %v1983 = vpop.f32.mrf.mxu0
  %1984 = vmatprep.mubr.f32.mxu0 0.0
  %1985 = vmatmul.mubr.f32.gmra.mxu0 %v1779
  %v1986 = vpop.f32.mrf.mxu0
  %v1987 = vadd.f32 0.0, %v1986
  %v1988 = vpop.f32.mrf.mxu0
  %1989 = vmatprep.mubr.f32.mxu0 0.0
  %1990 = vmatmul.mubr.f32.gmra.mxu0 %v1781
  %v1991 = vpop.f32.mrf.mxu0
  %v1992 = vadd.f32 0.0, %v1991
  %v1993 = vpop.f32.mrf.mxu0
  %1994 = vmatprep.mubr.f32.mxu0 0.0
  %1995 = vmatmul.mubr.f32.gmra.mxu0 %v1783
  %v1996 = vpop.f32.mrf.mxu0
  %v1997 = vadd.f32 0.0, %v1996
  %v1998 = vpop.f32.mrf.mxu0
  %1999 = vmatprep.mubr.f32.mxu0 0.0
  %2000 = vmatmul.mubr.f32.gmra.mxu0 %v1785
  %v2001 = vpop.f32.mrf.mxu0
  %v2002 = vadd.f32 0.0, %v2001
  %v2003 = vpop.f32.mrf.mxu0
  %2004 = vmatprep.mubr.f32.mxu0 0.0
  %2005 = vmatmul.mubr.f32.gmra.mxu0 %v1787
  %v2006 = vpop.f32.mrf.mxu0
  %v2007 = vadd.f32 0.0, %v2006
  %v2008 = vpop.f32.mrf.mxu0
  %2009 = vmatprep.mubr.f32.mxu0 0.0
  %2010 = vmatmul.mubr.f32.gmra.mxu0 %v1789
  %v2011 = vpop.f32.mrf.mxu0
  %v2012 = vadd.f32 0.0, %v2011
  %v2013 = vpop.f32.mrf.mxu0
  %2014 = vmatprep.mubr.f32.mxu0 0.0
  %2015 = vmatmul.mubr.f32.gmra.mxu0 %v1791
  %v2016 = vpop.f32.mrf.mxu0
  %v2017 = vadd.f32 0.0, %v2016
  %v2018 = vpop.f32.mrf.mxu0
  %2019 = vmatprep.mubr.f32.mxu0 0.0
  %2020 = vmatmul.mubr.f32.gmra.mxu0 %v1793
  %v2021 = vpop.f32.mrf.mxu0
  %v2022 = vadd.f32 0.0, %v2021
  %v2023 = vpop.f32.mrf.mxu0
  %2024 = vmatprep.mubr.f32.mxu0 0.0
  %2025 = vmatmul.mubr.f32.gmra.mxu0 %v1795
  %v2026 = vpop.f32.mrf.mxu0
  %v2027 = vadd.f32 0.0, %v2026
  %v2028 = vpop.f32.mrf.mxu0
  %2029 = vmatprep.mubr.f32.mxu0 0.0
  %2030 = vmatmul.mubr.f32.gmra.mxu0 %v1797
  %v2031 = vpop.f32.mrf.mxu0
  %v2032 = vadd.f32 0.0, %v2031
  %v2033 = vpop.f32.mrf.mxu0
  %2034 = vmatprep.mubr.f32.mxu0 0.0
  %2035 = vmatmul.mubr.f32.gmra.mxu0 %v1799
  %v2036 = vpop.f32.mrf.mxu0
  %v2037 = vadd.f32 0.0, %v2036
  %v2038 = vpop.f32.mrf.mxu0
  %2039 = vmatprep.mubr.f32.mxu0 0.0
  %2040 = vmatmul.mubr.f32.gmra.mxu0 %v1801
  %v2041 = vpop.f32.mrf.mxu0
  %v2042 = vadd.f32 0.0, %v2041
  %v2043 = vpop.f32.mrf.mxu0
  %2044 = vmatprep.mubr.f32.mxu0 0.0
  %2045 = vmatmul.mubr.f32.gmra.mxu0 %v1803
  %v2046 = vpop.f32.mrf.mxu0
  %v2047 = vadd.f32 0.0, %v2046
  %v2048 = vpop.f32.mrf.mxu0
  %2049 = vmatprep.mubr.f32.mxu0 0.0
  %2050 = vmatmul.mubr.f32.gmra.mxu0 %v1805
  %v2051 = vpop.f32.mrf.mxu0
  %v2052 = vadd.f32 0.0, %v2051
  %v2053 = vpop.f32.mrf.mxu0
  %2054 = vdwg.mxu0
  %v2055 = vadd.f32 %v1623, %v1877
  %v2056 = vadd.f32 %v1624, %v1882
  %v2057 = vadd.f32 %v1625, %v1887
  %v2058 = vadd.f32 %v1626, %v1892
  %v2059 = vadd.f32 %v1627, %v1897
  %v2060 = vadd.f32 %v1628, %v1902
  %v2061 = vadd.f32 %v1629, %v1907
  %v2062 = vadd.f32 %v1630, %v1912
  %v2063 = vadd.f32 %v1631, %v1917
  %v2064 = vadd.f32 %v1632, %v1922
  %v2065 = vadd.f32 %v1633, %v1927
  %v2066 = vadd.f32 %v1634, %v1932
  %v2067 = vadd.f32 %v1635, %v1937
  %v2068 = vadd.f32 %v1636, %v1942
  %v2069 = vadd.f32 %v1637, %v1947
  %v2070 = vadd.f32 %v1638, %v1952
  %v2071 = vadd.f32 %v1639, %v1957
  %v2072 = vadd.f32 %v1640, %v1962
  %v2073 = vadd.f32 %v1641, %v1967
  %v2074 = vadd.f32 %v1642, %v1972
  %v2075 = vadd.f32 %v1643, %v1977
  %v2076 = vadd.f32 %v1644, %v1982
  %v2077 = vadd.f32 %v1645, %v1987
  %v2078 = vadd.f32 %v1646, %v1992
  %v2079 = vadd.f32 %v1647, %v1997
  %v2080 = vadd.f32 %v1648, %v2002
  %v2081 = vadd.f32 %v1649, %v2007
  %v2082 = vadd.f32 %v1650, %v2012
  %v2083 = vadd.f32 %v1651, %v2017
  %v2084 = vadd.f32 %v1652, %v2022
  %v2085 = vadd.f32 %v1653, %v2027
  %v2086 = vadd.f32 %v1654, %v2032
  %v2087 = vadd.f32 %v1655, %v2037
  %v2088 = vadd.f32 %v1656, %v2042
  %v2089 = vadd.f32 %v1657, %v2047
  %v2090 = vadd.f32 %v1658, %v2052
  %s2091 = scalar_lea.vmem %s1, 20
  %v2092 = vld [vmem:[%s2091] sm:$0xf]
  %v2093 = vrot.slane %v57, 4
  %v2094 = vrot.slane %v58, 4
  %v2095 = vsel %vm213, %v2093, %v2094
  %v2096 = vrot.slane %v59, 4
  %v2097 = vsel %vm213, %v2094, %v2096
  %v2098 = vrot.slane %v60, 4
  %v2099 = vsel %vm213, %v2096, %v2098
  %v2100 = vrot.slane %v61, 4
  %v2101 = vsel %vm213, %v2098, %v2100
  %v2102 = vrot.slane %v62, 4
  %v2103 = vsel %vm213, %v2100, %v2102
  %v2104 = vrot.slane %v63, 4
  %v2105 = vsel %vm213, %v2102, %v2104
  %v2106 = vrot.slane %v64, 4
  %v2107 = vsel %vm213, %v2104, %v2106
  %v2108 = vrot.slane %v65, 4
  %v2109 = vsel %vm213, %v2106, %v2108
  %v2110 = vrot.slane %v66, 4
  %v2111 = vsel %vm213, %v2108, %v2110
  %v2112 = vrot.slane %v67, 4
  %v2113 = vsel %vm213, %v2110, %v2112
  %v2114 = vrot.slane %v68, 4
  %v2115 = vsel %vm213, %v2112, %v2114
  %v2116 = vrot.slane %v69, 4
  %v2117 = vsel %vm213, %v2114, %v2116
  %v2118 = vrot.slane %v70, 4
  %v2119 = vsel %vm213, %v2116, %v2118
  %v2120 = vrot.slane %v71, 4
  %v2121 = vsel %vm213, %v2118, %v2120
  %v2122 = vrot.slane %v72, 4
  %v2123 = vsel %vm213, %v2120, %v2122
  %v2124 = vrot.slane %v73, 4
  %v2125 = vsel %vm213, %v2122, %v2124
  %v2126 = vrot.slane %v74, 4
  %v2127 = vsel %vm213, %v2124, %v2126
  %v2128 = vrot.slane %v75, 4
  %v2129 = vsel %vm213, %v2126, %v2128
  %v2130 = vrot.slane %v76, 4
  %v2131 = vsel %vm213, %v2128, %v2130
  %v2132 = vrot.slane %v77, 4
  %v2133 = vsel %vm213, %v2130, %v2132
  %v2134 = vrot.slane %v78, 4
  %v2135 = vsel %vm213, %v2132, %v2134
  %v2136 = vrot.slane %v79, 4
  %v2137 = vsel %vm213, %v2134, %v2136
  %v2138 = vrot.slane %v80, 4
  %v2139 = vsel %vm213, %v2136, %v2138
  %v2140 = vrot.slane %v81, 4
  %v2141 = vsel %vm213, %v2138, %v2140
  %v2142 = vrot.slane %v82, 4
  %v2143 = vsel %vm213, %v2140, %v2142
  %v2144 = vrot.slane %v83, 4
  %v2145 = vsel %vm213, %v2142, %v2144
  %v2146 = vrot.slane %v84, 4
  %v2147 = vsel %vm213, %v2144, %v2146
  %v2148 = vrot.slane %v85, 4
  %v2149 = vsel %vm213, %v2146, %v2148
  %v2150 = vrot.slane %v86, 4
  %v2151 = vsel %vm213, %v2148, %v2150
  %v2152 = vrot.slane %v87, 4
  %v2153 = vsel %vm213, %v2150, %v2152
  %v2154 = vrot.slane %v88, 4
  %v2155 = vsel %vm213, %v2152, %v2154
  %v2156 = vrot.slane %v89, 4
  %v2157 = vsel %vm213, %v2154, %v2156
  %v2158 = vrot.slane %v90, 4
  %v2159 = vsel %vm213, %v2156, %v2158
  %v2160 = vrot.slane %v91, 4
  %v2161 = vsel %vm213, %v2158, %v2160
  %v2162 = vrot.slane %v92, 4
  %v2163 = vsel %vm213, %v2160, %v2162
  %v2164 = vrot.slane %v93, 4
  %v2165 = vsel %vm213, %v2162, %v2164
  %v2166 = vsel %vm104, %v2095, 0
  %v2168 = vsel %vm104, %v2097, 0
  %v2170 = vsel %vm104, %v2099, 0
  %v2172 = vsel %vm104, %v2101, 0
  %v2174 = vsel %vm104, %v2103, 0
  %v2176 = vsel %vm104, %v2105, 0
  %v2178 = vsel %vm104, %v2107, 0
  %v2180 = vsel %vm104, %v2109, 0
  %v2182 = vsel %vm104, %v2111, 0
  %v2184 = vsel %vm104, %v2113, 0
  %v2186 = vsel %vm104, %v2115, 0
  %v2188 = vsel %vm104, %v2117, 0
  %v2190 = vsel %vm104, %v2119, 0
  %v2192 = vsel %vm104, %v2121, 0
  %v2194 = vsel %vm104, %v2123, 0
  %v2196 = vsel %vm104, %v2125, 0
  %v2198 = vsel %vm104, %v2127, 0
  %v2200 = vsel %vm104, %v2129, 0
  %v2202 = vsel %vm104, %v2131, 0
  %v2204 = vsel %vm104, %v2133, 0
  %v2206 = vsel %vm104, %v2135, 0
  %v2208 = vsel %vm104, %v2137, 0
  %v2210 = vsel %vm104, %v2139, 0
  %v2212 = vsel %vm104, %v2141, 0
  %v2214 = vsel %vm104, %v2143, 0
  %v2216 = vsel %vm104, %v2145, 0
  %v2218 = vsel %vm104, %v2147, 0
  %v2220 = vsel %vm104, %v2149, 0
  %v2222 = vsel %vm104, %v2151, 0
  %v2224 = vsel %vm104, %v2153, 0
  %v2226 = vsel %vm104, %v2155, 0
  %v2228 = vsel %vm104, %v2157, 0
  %v2230 = vsel %vm104, %v2159, 0
  %v2232 = vsel %vm104, %v2161, 0
  %v2234 = vsel %vm104, %v2163, 0
  %v2236 = vsel %vm104, %v2165, 0
  %v2239 = vsel %vm213, %v2092, 0
  %2241 = vmatprep.subr.mxu0 0.0
  %2242 = vmatpush1.msra.mxu0 0.0
  %2243 = vmatprep.subr.mxu0 0.0
  %2244 = vmatpush1.msra.mxu0 0.0
  %2245 = vmatprep.subr.mxu0 0.0
  %2246 = vmatpush1.msra.mxu0 0.0
  %2247 = vmatprep.subr.mxu0 0.0
  %2248 = vmatpush1.msra.mxu0 0.0
  %2249 = vmatprep.subr.mxu0 0.0
  %2250 = vmatpush1.msra.mxu0 0.0
  %2251 = vmatprep.subr.mxu0 0.0
  %2252 = vmatpush1.msra.mxu0 0.0
  %2253 = vmatprep.subr.mxu0 0.0
  %2254 = vmatpush1.msra.mxu0 0.0
  %2255 = vmatprep.subr.mxu0 0.0
  %2256 = vmatpush1.msra.mxu0 0.0
  %2257 = vmatprep.subr.mxu0 0.0
  %2258 = vmatpush1.msra.mxu0 0.0
  %2259 = vmatprep.subr.mxu0 0.0
  %2260 = vmatpush1.msra.mxu0 0.0
  %2261 = vmatprep.subr.mxu0 0.0
  %2262 = vmatpush1.msra.mxu0 0.0
  %2263 = vmatprep.subr.mxu0 0.0
  %2264 = vmatpush1.msra.mxu0 0.0
  %2265 = vmatprep.subr.mxu0 0.0
  %2266 = vmatpush1.msra.mxu0 0.0
  %2267 = vmatprep.subr.mxu0 0.0
  %2268 = vmatpush1.msra.mxu0 0.0
  %2269 = vmatprep.subr.mxu0 0.0
  %2270 = vmatpush1.msra.mxu0 0.0
  %2271 = vmatprep.subr.mxu0 0.0
  %2272 = vmatpush1.msra.mxu0 %v2239
  %2273 = vmatprep.subr.mxu0 0.0
  %2274 = vmatpush2.msra.mxu0 0.0
  %2275 = vmatprep.subr.mxu0 0.0
  %2276 = vmatpush2.msra.mxu0 0.0
  %2277 = vmatprep.subr.mxu0 0.0
  %2278 = vmatpush2.msra.mxu0 0.0
  %2279 = vmatprep.subr.mxu0 0.0
  %2280 = vmatpush2.msra.mxu0 0.0
  %2281 = vmatprep.subr.mxu0 0.0
  %2282 = vmatpush2.msra.mxu0 0.0
  %2283 = vmatprep.subr.mxu0 0.0
  %2284 = vmatpush2.msra.mxu0 0.0
  %2285 = vmatprep.subr.mxu0 0.0
  %2286 = vmatpush2.msra.mxu0 0.0
  %2287 = vmatprep.subr.mxu0 0.0
  %2288 = vmatpush2.msra.mxu0 0.0
  %2289 = vmatprep.subr.mxu0 0.0
  %2290 = vmatpush2.msra.mxu0 0.0
  %2291 = vmatprep.subr.mxu0 0.0
  %2292 = vmatpush2.msra.mxu0 0.0
  %2293 = vmatprep.subr.mxu0 0.0
  %2294 = vmatpush2.msra.mxu0 0.0
  %2295 = vmatprep.subr.mxu0 0.0
  %2296 = vmatpush2.msra.mxu0 0.0
  %2297 = vmatprep.subr.mxu0 0.0
  %2298 = vmatpush2.msra.mxu0 0.0
  %2299 = vmatprep.subr.mxu0 0.0
  %2300 = vmatpush2.msra.mxu0 0.0
  %2301 = vmatprep.subr.mxu0 0.0
  %2302 = vmatpush2.msra.mxu0 0.0
  %2303 = vmatprep.subr.mxu0 0.0
  %2304 = vmatpush2.msra.mxu0 0.0
  %2305 = vmatprep.mubr.f32.mxu0 0.0
  %2306 = vmatmul.mubr.f32.gmra.mxu0 %v2166
  %v2307 = vpop.f32.mrf.mxu0
  %v2308 = vadd.f32 0.0, %v2307
  %v2309 = vpop.f32.mrf.mxu0
  %2310 = vmatprep.mubr.f32.mxu0 0.0
  %2311 = vmatmul.mubr.f32.gmra.mxu0 %v2168
  %v2312 = vpop.f32.mrf.mxu0
  %v2313 = vadd.f32 0.0, %v2312
  %v2314 = vpop.f32.mrf.mxu0
  %2315 = vmatprep.mubr.f32.mxu0 0.0
  %2316 = vmatmul.mubr.f32.gmra.mxu0 %v2170
  %v2317 = vpop.f32.mrf.mxu0
  %v2318 = vadd.f32 0.0, %v2317
  %v2319 = vpop.f32.mrf.mxu0
  %2320 = vmatprep.mubr.f32.mxu0 0.0
  %2321 = vmatmul.mubr.f32.gmra.mxu0 %v2172
  %v2322 = vpop.f32.mrf.mxu0
  %v2323 = vadd.f32 0.0, %v2322
  %v2324 = vpop.f32.mrf.mxu0
  %2325 = vmatprep.mubr.f32.mxu0 0.0
  %2326 = vmatmul.mubr.f32.gmra.mxu0 %v2174
  %v2327 = vpop.f32.mrf.mxu0
  %v2328 = vadd.f32 0.0, %v2327
  %v2329 = vpop.f32.mrf.mxu0
  %2330 = vmatprep.mubr.f32.mxu0 0.0
  %2331 = vmatmul.mubr.f32.gmra.mxu0 %v2176
  %v2332 = vpop.f32.mrf.mxu0
  %v2333 = vadd.f32 0.0, %v2332
  %v2334 = vpop.f32.mrf.mxu0
  %2335 = vmatprep.mubr.f32.mxu0 0.0
  %2336 = vmatmul.mubr.f32.gmra.mxu0 %v2178
  %v2337 = vpop.f32.mrf.mxu0
  %v2338 = vadd.f32 0.0, %v2337
  %v2339 = vpop.f32.mrf.mxu0
  %2340 = vmatprep.mubr.f32.mxu0 0.0
  %2341 = vmatmul.mubr.f32.gmra.mxu0 %v2180
  %v2342 = vpop.f32.mrf.mxu0
  %v2343 = vadd.f32 0.0, %v2342
  %v2344 = vpop.f32.mrf.mxu0
  %2345 = vmatprep.mubr.f32.mxu0 0.0
  %2346 = vmatmul.mubr.f32.gmra.mxu0 %v2182
  %v2347 = vpop.f32.mrf.mxu0
  %v2348 = vadd.f32 0.0, %v2347
  %v2349 = vpop.f32.mrf.mxu0
  %2350 = vmatprep.mubr.f32.mxu0 0.0
  %2351 = vmatmul.mubr.f32.gmra.mxu0 %v2184
  %v2352 = vpop.f32.mrf.mxu0
  %v2353 = vadd.f32 0.0, %v2352
  %v2354 = vpop.f32.mrf.mxu0
  %2355 = vmatprep.mubr.f32.mxu0 0.0
  %2356 = vmatmul.mubr.f32.gmra.mxu0 %v2186
  %v2357 = vpop.f32.mrf.mxu0
  %v2358 = vadd.f32 0.0, %v2357
  %v2359 = vpop.f32.mrf.mxu0
  %2360 = vmatprep.mubr.f32.mxu0 0.0
  %2361 = vmatmul.mubr.f32.gmra.mxu0 %v2188
  %v2362 = vpop.f32.mrf.mxu0
  %v2363 = vadd.f32 0.0, %v2362
  %v2364 = vpop.f32.mrf.mxu0
  %2365 = vmatprep.mubr.f32.mxu0 0.0
  %2366 = vmatmul.mubr.f32.gmra.mxu0 %v2190
  %v2367 = vpop.f32.mrf.mxu0
  %v2368 = vadd.f32 0.0, %v2367
  %v2369 = vpop.f32.mrf.mxu0
  %2370 = vmatprep.mubr.f32.mxu0 0.0
  %2371 = vmatmul.mubr.f32.gmra.mxu0 %v2192
  %v2372 = vpop.f32.mrf.mxu0
  %v2373 = vadd.f32 0.0, %v2372
  %v2374 = vpop.f32.mrf.mxu0
  %2375 = vmatprep.mubr.f32.mxu0 0.0
  %2376 = vmatmul.mubr.f32.gmra.mxu0 %v2194
  %v2377 = vpop.f32.mrf.mxu0
  %v2378 = vadd.f32 0.0, %v2377
  %v2379 = vpop.f32.mrf.mxu0
  %2380 = vmatprep.mubr.f32.mxu0 0.0
  %2381 = vmatmul.mubr.f32.gmra.mxu0 %v2196
  %v2382 = vpop.f32.mrf.mxu0
  %v2383 = vadd.f32 0.0, %v2382
  %v2384 = vpop.f32.mrf.mxu0
  %2385 = vmatprep.mubr.f32.mxu0 0.0
  %2386 = vmatmul.mubr.f32.gmra.mxu0 %v2198
  %v2387 = vpop.f32.mrf.mxu0
  %v2388 = vadd.f32 0.0, %v2387
  %v2389 = vpop.f32.mrf.mxu0
  %2390 = vmatprep.mubr.f32.mxu0 0.0
  %2391 = vmatmul.mubr.f32.gmra.mxu0 %v2200
  %v2392 = vpop.f32.mrf.mxu0
  %v2393 = vadd.f32 0.0, %v2392
  %v2394 = vpop.f32.mrf.mxu0
  %2395 = vmatprep.mubr.f32.mxu0 0.0
  %2396 = vmatmul.mubr.f32.gmra.mxu0 %v2202
  %v2397 = vpop.f32.mrf.mxu0
  %v2398 = vadd.f32 0.0, %v2397
  %v2399 = vpop.f32.mrf.mxu0
  %2400 = vmatprep.mubr.f32.mxu0 0.0
  %2401 = vmatmul.mubr.f32.gmra.mxu0 %v2204
  %v2402 = vpop.f32.mrf.mxu0
  %v2403 = vadd.f32 0.0, %v2402
  %v2404 = vpop.f32.mrf.mxu0
  %2405 = vmatprep.mubr.f32.mxu0 0.0
  %2406 = vmatmul.mubr.f32.gmra.mxu0 %v2206
  %v2407 = vpop.f32.mrf.mxu0
  %v2408 = vadd.f32 0.0, %v2407
  %v2409 = vpop.f32.mrf.mxu0
  %2410 = vmatprep.mubr.f32.mxu0 0.0
  %2411 = vmatmul.mubr.f32.gmra.mxu0 %v2208
  %v2412 = vpop.f32.mrf.mxu0
  %v2413 = vadd.f32 0.0, %v2412
  %v2414 = vpop.f32.mrf.mxu0
  %2415 = vmatprep.mubr.f32.mxu0 0.0
  %2416 = vmatmul.mubr.f32.gmra.mxu0 %v2210
  %v2417 = vpop.f32.mrf.mxu0
  %v2418 = vadd.f32 0.0, %v2417
  %v2419 = vpop.f32.mrf.mxu0
  %2420 = vmatprep.mubr.f32.mxu0 0.0
  %2421 = vmatmul.mubr.f32.gmra.mxu0 %v2212
  %v2422 = vpop.f32.mrf.mxu0
  %v2423 = vadd.f32 0.0, %v2422
  %v2424 = vpop.f32.mrf.mxu0
  %2425 = vmatprep.mubr.f32.mxu0 0.0
  %2426 = vmatmul.mubr.f32.gmra.mxu0 %v2214
  %v2427 = vpop.f32.mrf.mxu0
  %v2428 = vadd.f32 0.0, %v2427
  %v2429 = vpop.f32.mrf.mxu0
  %2430 = vmatprep.mubr.f32.mxu0 0.0
  %2431 = vmatmul.mubr.f32.gmra.mxu0 %v2216
  %v2432 = vpop.f32.mrf.mxu0
  %v2433 = vadd.f32 0.0, %v2432
  %v2434 = vpop.f32.mrf.mxu0
  %2435 = vmatprep.mubr.f32.mxu0 0.0
  %2436 = vmatmul.mubr.f32.gmra.mxu0 %v2218
  %v2437 = vpop.f32.mrf.mxu0
  %v2438 = vadd.f32 0.0, %v2437
  %v2439 = vpop.f32.mrf.mxu0
  %2440 = vmatprep.mubr.f32.mxu0 0.0
  %2441 = vmatmul.mubr.f32.gmra.mxu0 %v2220
  %v2442 = vpop.f32.mrf.mxu0
  %v2443 = vadd.f32 0.0, %v2442
  %v2444 = vpop.f32.mrf.mxu0
  %2445 = vmatprep.mubr.f32.mxu0 0.0
  %2446 = vmatmul.mubr.f32.gmra.mxu0 %v2222
  %v2447 = vpop.f32.mrf.mxu0
  %v2448 = vadd.f32 0.0, %v2447
  %v2449 = vpop.f32.mrf.mxu0
  %2450 = vmatprep.mubr.f32.mxu0 0.0
  %2451 = vmatmul.mubr.f32.gmra.mxu0 %v2224
  %v2452 = vpop.f32.mrf.mxu0
  %v2453 = vadd.f32 0.0, %v2452
  %v2454 = vpop.f32.mrf.mxu0
  %2455 = vmatprep.mubr.f32.mxu0 0.0
  %2456 = vmatmul.mubr.f32.gmra.mxu0 %v2226
  %v2457 = vpop.f32.mrf.mxu0
  %v2458 = vadd.f32 0.0, %v2457
  %v2459 = vpop.f32.mrf.mxu0
  %2460 = vmatprep.mubr.f32.mxu0 0.0
  %2461 = vmatmul.mubr.f32.gmra.mxu0 %v2228
  %v2462 = vpop.f32.mrf.mxu0
  %v2463 = vadd.f32 0.0, %v2462
  %v2464 = vpop.f32.mrf.mxu0
  %2465 = vmatprep.mubr.f32.mxu0 0.0
  %2466 = vmatmul.mubr.f32.gmra.mxu0 %v2230
  %v2467 = vpop.f32.mrf.mxu0
  %v2468 = vadd.f32 0.0, %v2467
  %v2469 = vpop.f32.mrf.mxu0
  %2470 = vmatprep.mubr.f32.mxu0 0.0
  %2471 = vmatmul.mubr.f32.gmra.mxu0 %v2232
  %v2472 = vpop.f32.mrf.mxu0
  %v2473 = vadd.f32 0.0, %v2472
  %v2474 = vpop.f32.mrf.mxu0
  %2475 = vmatprep.mubr.f32.mxu0 0.0
  %2476 = vmatmul.mubr.f32.gmra.mxu0 %v2234
  %v2477 = vpop.f32.mrf.mxu0
  %v2478 = vadd.f32 0.0, %v2477
  %v2479 = vpop.f32.mrf.mxu0
  %2480 = vmatprep.mubr.f32.mxu0 0.0
  %2481 = vmatmul.mubr.f32.gmra.mxu0 %v2236
  %v2482 = vpop.f32.mrf.mxu0
  %v2483 = vadd.f32 0.0, %v2482
  %v2484 = vpop.f32.mrf.mxu0
  %2485 = vdwg.mxu0
  %v2486 = vadd.f32 %v2055, %v2308
  %v2487 = vadd.f32 %v2056, %v2313
  %v2488 = vadd.f32 %v2057, %v2318
  %v2489 = vadd.f32 %v2058, %v2323
  %v2490 = vadd.f32 %v2059, %v2328
  %v2491 = vadd.f32 %v2060, %v2333
  %v2492 = vadd.f32 %v2061, %v2338
  %v2493 = vadd.f32 %v2062, %v2343
  %v2494 = vadd.f32 %v2063, %v2348
  %v2495 = vadd.f32 %v2064, %v2353
  %v2496 = vadd.f32 %v2065, %v2358
  %v2497 = vadd.f32 %v2066, %v2363
  %v2498 = vadd.f32 %v2067, %v2368
  %v2499 = vadd.f32 %v2068, %v2373
  %v2500 = vadd.f32 %v2069, %v2378
  %v2501 = vadd.f32 %v2070, %v2383
  %v2502 = vadd.f32 %v2071, %v2388
  %v2503 = vadd.f32 %v2072, %v2393
  %v2504 = vadd.f32 %v2073, %v2398
  %v2505 = vadd.f32 %v2074, %v2403
  %v2506 = vadd.f32 %v2075, %v2408
  %v2507 = vadd.f32 %v2076, %v2413
  %v2508 = vadd.f32 %v2077, %v2418
  %v2509 = vadd.f32 %v2078, %v2423
  %v2510 = vadd.f32 %v2079, %v2428
  %v2511 = vadd.f32 %v2080, %v2433
  %v2512 = vadd.f32 %v2081, %v2438
  %v2513 = vadd.f32 %v2082, %v2443
  %v2514 = vadd.f32 %v2083, %v2448
  %v2515 = vadd.f32 %v2084, %v2453
  %v2516 = vadd.f32 %v2085, %v2458
  %v2517 = vadd.f32 %v2086, %v2463
  %v2518 = vadd.f32 %v2087, %v2468
  %v2519 = vadd.f32 %v2088, %v2473
  %v2520 = vadd.f32 %v2089, %v2478
  %v2521 = vadd.f32 %v2090, %v2483
  %s2522 = scalar_lea.vmem %s1, 24
  %v2523 = vld [vmem:[%s2522] sm:$0xf]
  %v2526 = vrot.slane %v94, 4
  %v2527 = vsel %vm213, %v2164, %v2526
  %v2528 = vrot.slane %v95, 4
  %v2529 = vsel %vm213, %v2526, %v2528
  %v2530 = vsel %vm104, %v2527, 0
  %v2532 = vsel %vm104, %v2529, 0
  %v2535 = vsel %vm213, %v2523, 0
  %2537 = vmatprep.subr.mxu0 0.0
  %2538 = vmatpush1.msra.mxu0 0.0
  %2539 = vmatprep.subr.mxu0 0.0
  %2540 = vmatpush1.msra.mxu0 0.0
  %2541 = vmatprep.subr.mxu0 0.0
  %2542 = vmatpush1.msra.mxu0 0.0
  %2543 = vmatprep.subr.mxu0 0.0
  %2544 = vmatpush1.msra.mxu0 0.0
  %2545 = vmatprep.subr.mxu0 0.0
  %2546 = vmatpush1.msra.mxu0 0.0
  %2547 = vmatprep.subr.mxu0 0.0
  %2548 = vmatpush1.msra.mxu0 0.0
  %2549 = vmatprep.subr.mxu0 0.0
  %2550 = vmatpush1.msra.mxu0 0.0
  %2551 = vmatprep.subr.mxu0 0.0
  %2552 = vmatpush1.msra.mxu0 0.0
  %2553 = vmatprep.subr.mxu0 0.0
  %2554 = vmatpush1.msra.mxu0 0.0
  %2555 = vmatprep.subr.mxu0 0.0
  %2556 = vmatpush1.msra.mxu0 0.0
  %2557 = vmatprep.subr.mxu0 0.0
  %2558 = vmatpush1.msra.mxu0 0.0
  %2559 = vmatprep.subr.mxu0 0.0
  %2560 = vmatpush1.msra.mxu0 0.0
  %2561 = vmatprep.subr.mxu0 0.0
  %2562 = vmatpush1.msra.mxu0 0.0
  %2563 = vmatprep.subr.mxu0 0.0
  %2564 = vmatpush1.msra.mxu0 0.0
  %2565 = vmatprep.subr.mxu0 0.0
  %2566 = vmatpush1.msra.mxu0 0.0
  %2567 = vmatprep.subr.mxu0 0.0
  %2568 = vmatpush1.msra.mxu0 %v2535
  %2569 = vmatprep.subr.mxu0 0.0
  %2570 = vmatpush2.msra.mxu0 0.0
  %2571 = vmatprep.subr.mxu0 0.0
  %2572 = vmatpush2.msra.mxu0 0.0
  %2573 = vmatprep.subr.mxu0 0.0
  %2574 = vmatpush2.msra.mxu0 0.0
  %2575 = vmatprep.subr.mxu0 0.0
  %2576 = vmatpush2.msra.mxu0 0.0
  %2577 = vmatprep.subr.mxu0 0.0
  %2578 = vmatpush2.msra.mxu0 0.0
  %2579 = vmatprep.subr.mxu0 0.0
  %2580 = vmatpush2.msra.mxu0 0.0
  %2581 = vmatprep.subr.mxu0 0.0
  %2582 = vmatpush2.msra.mxu0 0.0
  %2583 = vmatprep.subr.mxu0 0.0
  %2584 = vmatpush2.msra.mxu0 0.0
  %2585 = vmatprep.subr.mxu0 0.0
  %2586 = vmatpush2.msra.mxu0 0.0
  %2587 = vmatprep.subr.mxu0 0.0
  %2588 = vmatpush2.msra.mxu0 0.0
  %2589 = vmatprep.subr.mxu0 0.0
  %2590 = vmatpush2.msra.mxu0 0.0
  %2591 = vmatprep.subr.mxu0 0.0
  %2592 = vmatpush2.msra.mxu0 0.0
  %2593 = vmatprep.subr.mxu0 0.0
  %2594 = vmatpush2.msra.mxu0 0.0
  %2595 = vmatprep.subr.mxu0 0.0
  %2596 = vmatpush2.msra.mxu0 0.0
  %2597 = vmatprep.subr.mxu0 0.0
  %2598 = vmatpush2.msra.mxu0 0.0
  %2599 = vmatprep.subr.mxu0 0.0
  %2600 = vmatpush2.msra.mxu0 0.0
  %2601 = vmatprep.mubr.f32.mxu0 0.0
  %2602 = vmatmul.mubr.f32.gmra.mxu0 %v2170
  %v2603 = vpop.f32.mrf.mxu0
  %v2604 = vadd.f32 0.0, %v2603
  %v2605 = vpop.f32.mrf.mxu0
  %2606 = vmatprep.mubr.f32.mxu0 0.0
  %2607 = vmatmul.mubr.f32.gmra.mxu0 %v2172
  %v2608 = vpop.f32.mrf.mxu0
  %v2609 = vadd.f32 0.0, %v2608
  %v2610 = vpop.f32.mrf.mxu0
  %2611 = vmatprep.mubr.f32.mxu0 0.0
  %2612 = vmatmul.mubr.f32.gmra.mxu0 %v2174
  %v2613 = vpop.f32.mrf.mxu0
  %v2614 = vadd.f32 0.0, %v2613
  %v2615 = vpop.f32.mrf.mxu0
  %2616 = vmatprep.mubr.f32.mxu0 0.0
  %2617 = vmatmul.mubr.f32.gmra.mxu0 %v2176
  %v2618 = vpop.f32.mrf.mxu0
  %v2619 = vadd.f32 0.0, %v2618
  %v2620 = vpop.f32.mrf.mxu0
  %2621 = vmatprep.mubr.f32.mxu0 0.0
  %2622 = vmatmul.mubr.f32.gmra.mxu0 %v2178
  %v2623 = vpop.f32.mrf.mxu0
  %v2624 = vadd.f32 0.0, %v2623
  %v2625 = vpop.f32.mrf.mxu0
  %2626 = vmatprep.mubr.f32.mxu0 0.0
  %2627 = vmatmul.mubr.f32.gmra.mxu0 %v2180
  %v2628 = vpop.f32.mrf.mxu0
  %v2629 = vadd.f32 0.0, %v2628
  %v2630 = vpop.f32.mrf.mxu0
  %2631 = vmatprep.mubr.f32.mxu0 0.0
  %2632 = vmatmul.mubr.f32.gmra.mxu0 %v2182
  %v2633 = vpop.f32.mrf.mxu0
  %v2634 = vadd.f32 0.0, %v2633
  %v2635 = vpop.f32.mrf.mxu0
  %2636 = vmatprep.mubr.f32.mxu0 0.0
  %2637 = vmatmul.mubr.f32.gmra.mxu0 %v2184
  %v2638 = vpop.f32.mrf.mxu0
  %v2639 = vadd.f32 0.0, %v2638
  %v2640 = vpop.f32.mrf.mxu0
  %2641 = vmatprep.mubr.f32.mxu0 0.0
  %2642 = vmatmul.mubr.f32.gmra.mxu0 %v2186
  %v2643 = vpop.f32.mrf.mxu0
  %v2644 = vadd.f32 0.0, %v2643
  %v2645 = vpop.f32.mrf.mxu0
  %2646 = vmatprep.mubr.f32.mxu0 0.0
  %2647 = vmatmul.mubr.f32.gmra.mxu0 %v2188
  %v2648 = vpop.f32.mrf.mxu0
  %v2649 = vadd.f32 0.0, %v2648
  %v2650 = vpop.f32.mrf.mxu0
  %2651 = vmatprep.mubr.f32.mxu0 0.0
  %2652 = vmatmul.mubr.f32.gmra.mxu0 %v2190
  %v2653 = vpop.f32.mrf.mxu0
  %v2654 = vadd.f32 0.0, %v2653
  %v2655 = vpop.f32.mrf.mxu0
  %2656 = vmatprep.mubr.f32.mxu0 0.0
  %2657 = vmatmul.mubr.f32.gmra.mxu0 %v2192
  %v2658 = vpop.f32.mrf.mxu0
  %v2659 = vadd.f32 0.0, %v2658
  %v2660 = vpop.f32.mrf.mxu0
  %2661 = vmatprep.mubr.f32.mxu0 0.0
  %2662 = vmatmul.mubr.f32.gmra.mxu0 %v2194
  %v2663 = vpop.f32.mrf.mxu0
  %v2664 = vadd.f32 0.0, %v2663
  %v2665 = vpop.f32.mrf.mxu0
  %2666 = vmatprep.mubr.f32.mxu0 0.0
  %2667 = vmatmul.mubr.f32.gmra.mxu0 %v2196
  %v2668 = vpop.f32.mrf.mxu0
  %v2669 = vadd.f32 0.0, %v2668
  %v2670 = vpop.f32.mrf.mxu0
  %2671 = vmatprep.mubr.f32.mxu0 0.0
  %2672 = vmatmul.mubr.f32.gmra.mxu0 %v2198
  %v2673 = vpop.f32.mrf.mxu0
  %v2674 = vadd.f32 0.0, %v2673
  %v2675 = vpop.f32.mrf.mxu0
  %2676 = vmatprep.mubr.f32.mxu0 0.0
  %2677 = vmatmul.mubr.f32.gmra.mxu0 %v2200
  %v2678 = vpop.f32.mrf.mxu0
  %v2679 = vadd.f32 0.0, %v2678
  %v2680 = vpop.f32.mrf.mxu0
  %2681 = vmatprep.mubr.f32.mxu0 0.0
  %2682 = vmatmul.mubr.f32.gmra.mxu0 %v2202
  %v2683 = vpop.f32.mrf.mxu0
  %v2684 = vadd.f32 0.0, %v2683
  %v2685 = vpop.f32.mrf.mxu0
  %2686 = vmatprep.mubr.f32.mxu0 0.0
  %2687 = vmatmul.mubr.f32.gmra.mxu0 %v2204
  %v2688 = vpop.f32.mrf.mxu0
  %v2689 = vadd.f32 0.0, %v2688
  %v2690 = vpop.f32.mrf.mxu0
  %2691 = vmatprep.mubr.f32.mxu0 0.0
  %2692 = vmatmul.mubr.f32.gmra.mxu0 %v2206
  %v2693 = vpop.f32.mrf.mxu0
  %v2694 = vadd.f32 0.0, %v2693
  %v2695 = vpop.f32.mrf.mxu0
  %2696 = vmatprep.mubr.f32.mxu0 0.0
  %2697 = vmatmul.mubr.f32.gmra.mxu0 %v2208
  %v2698 = vpop.f32.mrf.mxu0
  %v2699 = vadd.f32 0.0, %v2698
  %v2700 = vpop.f32.mrf.mxu0
  %2701 = vmatprep.mubr.f32.mxu0 0.0
  %2702 = vmatmul.mubr.f32.gmra.mxu0 %v2210
  %v2703 = vpop.f32.mrf.mxu0
  %v2704 = vadd.f32 0.0, %v2703
  %v2705 = vpop.f32.mrf.mxu0
  %2706 = vmatprep.mubr.f32.mxu0 0.0
  %2707 = vmatmul.mubr.f32.gmra.mxu0 %v2212
  %v2708 = vpop.f32.mrf.mxu0
  %v2709 = vadd.f32 0.0, %v2708
  %v2710 = vpop.f32.mrf.mxu0
  %2711 = vmatprep.mubr.f32.mxu0 0.0
  %2712 = vmatmul.mubr.f32.gmra.mxu0 %v2214
  %v2713 = vpop.f32.mrf.mxu0
  %v2714 = vadd.f32 0.0, %v2713
  %v2715 = vpop.f32.mrf.mxu0
  %2716 = vmatprep.mubr.f32.mxu0 0.0
  %2717 = vmatmul.mubr.f32.gmra.mxu0 %v2216
  %v2718 = vpop.f32.mrf.mxu0
  %v2719 = vadd.f32 0.0, %v2718
  %v2720 = vpop.f32.mrf.mxu0
  %2721 = vmatprep.mubr.f32.mxu0 0.0
  %2722 = vmatmul.mubr.f32.gmra.mxu0 %v2218
  %v2723 = vpop.f32.mrf.mxu0
  %v2724 = vadd.f32 0.0, %v2723
  %v2725 = vpop.f32.mrf.mxu0
  %2726 = vmatprep.mubr.f32.mxu0 0.0
  %2727 = vmatmul.mubr.f32.gmra.mxu0 %v2220
  %v2728 = vpop.f32.mrf.mxu0
  %v2729 = vadd.f32 0.0, %v2728
  %v2730 = vpop.f32.mrf.mxu0
  %2731 = vmatprep.mubr.f32.mxu0 0.0
  %2732 = vmatmul.mubr.f32.gmra.mxu0 %v2222
  %v2733 = vpop.f32.mrf.mxu0
  %v2734 = vadd.f32 0.0, %v2733
  %v2735 = vpop.f32.mrf.mxu0
  %2736 = vmatprep.mubr.f32.mxu0 0.0
  %2737 = vmatmul.mubr.f32.gmra.mxu0 %v2224
  %v2738 = vpop.f32.mrf.mxu0
  %v2739 = vadd.f32 0.0, %v2738
  %v2740 = vpop.f32.mrf.mxu0
  %2741 = vmatprep.mubr.f32.mxu0 0.0
  %2742 = vmatmul.mubr.f32.gmra.mxu0 %v2226
  %v2743 = vpop.f32.mrf.mxu0
  %v2744 = vadd.f32 0.0, %v2743
  %v2745 = vpop.f32.mrf.mxu0
  %2746 = vmatprep.mubr.f32.mxu0 0.0
  %2747 = vmatmul.mubr.f32.gmra.mxu0 %v2228
  %v2748 = vpop.f32.mrf.mxu0
  %v2749 = vadd.f32 0.0, %v2748
  %v2750 = vpop.f32.mrf.mxu0
  %2751 = vmatprep.mubr.f32.mxu0 0.0
  %2752 = vmatmul.mubr.f32.gmra.mxu0 %v2230
  %v2753 = vpop.f32.mrf.mxu0
  %v2754 = vadd.f32 0.0, %v2753
  %v2755 = vpop.f32.mrf.mxu0
  %2756 = vmatprep.mubr.f32.mxu0 0.0
  %2757 = vmatmul.mubr.f32.gmra.mxu0 %v2232
  %v2758 = vpop.f32.mrf.mxu0
  %v2759 = vadd.f32 0.0, %v2758
  %v2760 = vpop.f32.mrf.mxu0
  %2761 = vmatprep.mubr.f32.mxu0 0.0
  %2762 = vmatmul.mubr.f32.gmra.mxu0 %v2234
  %v2763 = vpop.f32.mrf.mxu0
  %v2764 = vadd.f32 0.0, %v2763
  %v2765 = vpop.f32.mrf.mxu0
  %2766 = vmatprep.mubr.f32.mxu0 0.0
  %2767 = vmatmul.mubr.f32.gmra.mxu0 %v2236
  %v2768 = vpop.f32.mrf.mxu0
  %v2769 = vadd.f32 0.0, %v2768
  %v2770 = vpop.f32.mrf.mxu0
  %2771 = vmatprep.mubr.f32.mxu0 0.0
  %2772 = vmatmul.mubr.f32.gmra.mxu0 %v2530
  %v2773 = vpop.f32.mrf.mxu0
  %v2774 = vadd.f32 0.0, %v2773
  %v2775 = vpop.f32.mrf.mxu0
  %2776 = vmatprep.mubr.f32.mxu0 0.0
  %2777 = vmatmul.mubr.f32.gmra.mxu0 %v2532
  %v2778 = vpop.f32.mrf.mxu0
  %v2779 = vadd.f32 0.0, %v2778
  %v2780 = vpop.f32.mrf.mxu0
  %2781 = vdwg.mxu0
  %v2782 = vadd.f32 %v2486, %v2604
  %v2783 = vadd.f32 %v2487, %v2609
  %v2784 = vadd.f32 %v2488, %v2614
  %v2785 = vadd.f32 %v2489, %v2619
  %v2786 = vadd.f32 %v2490, %v2624
  %v2787 = vadd.f32 %v2491, %v2629
  %v2788 = vadd.f32 %v2492, %v2634
  %v2789 = vadd.f32 %v2493, %v2639
  %v2790 = vadd.f32 %v2494, %v2644
  %v2791 = vadd.f32 %v2495, %v2649
  %v2792 = vadd.f32 %v2496, %v2654
  %v2793 = vadd.f32 %v2497, %v2659
  %v2794 = vadd.f32 %v2498, %v2664
  %v2795 = vadd.f32 %v2499, %v2669
  %v2796 = vadd.f32 %v2500, %v2674
  %v2797 = vadd.f32 %v2501, %v2679
  %v2798 = vadd.f32 %v2502, %v2684
  %v2799 = vadd.f32 %v2503, %v2689
  %v2800 = vadd.f32 %v2504, %v2694
  %v2801 = vadd.f32 %v2505, %v2699
  %v2802 = vadd.f32 %v2506, %v2704
  %v2803 = vadd.f32 %v2507, %v2709
  %v2804 = vadd.f32 %v2508, %v2714
  %v2805 = vadd.f32 %v2509, %v2719
  %v2806 = vadd.f32 %v2510, %v2724
  %v2807 = vadd.f32 %v2511, %v2729
  %v2808 = vadd.f32 %v2512, %v2734
  %v2809 = vadd.f32 %v2513, %v2739
  %v2810 = vadd.f32 %v2514, %v2744
  %v2811 = vadd.f32 %v2515, %v2749
  %v2812 = vadd.f32 %v2516, %v2754
  %v2813 = vadd.f32 %v2517, %v2759
  %v2814 = vadd.f32 %v2518, %v2764
  %v2815 = vadd.f32 %v2519, %v2769
  %v2816 = vadd.f32 %v2520, %v2774
  %v2817 = vadd.f32 %v2521, %v2779
  %s2818 = scalar_lea.vmem %s1, 28
  %v2819 = vld [vmem:[%s2818] sm:$0xf]
  %vm2820 = vcmask 1042432
  %v2821 = vrot.slane %v59, 5
  %v2822 = vrot.slane %v60, 5
  %v2823 = vsel %vm2820, %v2821, %v2822
  %v2824 = vrot.slane %v61, 5
  %v2825 = vsel %vm2820, %v2822, %v2824
  %v2826 = vrot.slane %v62, 5
  %v2827 = vsel %vm2820, %v2824, %v2826
  %v2828 = vrot.slane %v63, 5
  %v2829 = vsel %vm2820, %v2826, %v2828
  %v2830 = vrot.slane %v64, 5
  %v2831 = vsel %vm2820, %v2828, %v2830
  %v2832 = vrot.slane %v65, 5
  %v2833 = vsel %vm2820, %v2830, %v2832
  %v2834 = vrot.slane %v66, 5
  %v2835 = vsel %vm2820, %v2832, %v2834
  %v2836 = vrot.slane %v67, 5
  %v2837 = vsel %vm2820, %v2834, %v2836
  %v2838 = vrot.slane %v68, 5
  %v2839 = vsel %vm2820, %v2836, %v2838
  %v2840 = vrot.slane %v69, 5
  %v2841 = vsel %vm2820, %v2838, %v2840
  %v2842 = vrot.slane %v70, 5
  %v2843 = vsel %vm2820, %v2840, %v2842
  %v2844 = vrot.slane %v71, 5
  %v2845 = vsel %vm2820, %v2842, %v2844
  %v2846 = vrot.slane %v72, 5
  %v2847 = vsel %vm2820, %v2844, %v2846
  %v2848 = vrot.slane %v73, 5
  %v2849 = vsel %vm2820, %v2846, %v2848
  %v2850 = vrot.slane %v74, 5
  %v2851 = vsel %vm2820, %v2848, %v2850
  %v2852 = vrot.slane %v75, 5
  %v2853 = vsel %vm2820, %v2850, %v2852
  %v2854 = vrot.slane %v76, 5
  %v2855 = vsel %vm2820, %v2852, %v2854
  %v2856 = vrot.slane %v77, 5
  %v2857 = vsel %vm2820, %v2854, %v2856
  %v2858 = vrot.slane %v78, 5
  %v2859 = vsel %vm2820, %v2856, %v2858
  %v2860 = vrot.slane %v79, 5
  %v2861 = vsel %vm2820, %v2858, %v2860
  %v2862 = vrot.slane %v80, 5
  %v2863 = vsel %vm2820, %v2860, %v2862
  %v2864 = vrot.slane %v81, 5
  %v2865 = vsel %vm2820, %v2862, %v2864
  %v2866 = vrot.slane %v82, 5
  %v2867 = vsel %vm2820, %v2864, %v2866
  %v2868 = vrot.slane %v83, 5
  %v2869 = vsel %vm2820, %v2866, %v2868
  %v2870 = vrot.slane %v84, 5
  %v2871 = vsel %vm2820, %v2868, %v2870
  %v2872 = vrot.slane %v85, 5
  %v2873 = vsel %vm2820, %v2870, %v2872
  %v2874 = vrot.slane %v86, 5
  %v2875 = vsel %vm2820, %v2872, %v2874
  %v2876 = vrot.slane %v87, 5
  %v2877 = vsel %vm2820, %v2874, %v2876
  %v2878 = vrot.slane %v88, 5
  %v2879 = vsel %vm2820, %v2876, %v2878
  %v2880 = vrot.slane %v89, 5
  %v2881 = vsel %vm2820, %v2878, %v2880
  %v2882 = vrot.slane %v90, 5
  %v2883 = vsel %vm2820, %v2880, %v2882
  %v2884 = vrot.slane %v91, 5
  %v2885 = vsel %vm2820, %v2882, %v2884
  %v2886 = vrot.slane %v92, 5
  %v2887 = vsel %vm2820, %v2884, %v2886
  %v2888 = vrot.slane %v93, 5
  %v2889 = vsel %vm2820, %v2886, %v2888
  %v2890 = vrot.slane %v94, 5
  %v2891 = vsel %vm2820, %v2888, %v2890
  %v2892 = vrot.slane %v95, 5
  %v2893 = vsel %vm2820, %v2890, %v2892
  %v2894 = vsel %vm104, %v2823, 0
  %v2896 = vsel %vm104, %v2825, 0
  %v2898 = vsel %vm104, %v2827, 0
  %v2900 = vsel %vm104, %v2829, 0
  %v2902 = vsel %vm104, %v2831, 0
  %v2904 = vsel %vm104, %v2833, 0
  %v2906 = vsel %vm104, %v2835, 0
  %v2908 = vsel %vm104, %v2837, 0
  %v2910 = vsel %vm104, %v2839, 0
  %v2912 = vsel %vm104, %v2841, 0
  %v2914 = vsel %vm104, %v2843, 0
  %v2916 = vsel %vm104, %v2845, 0
  %v2918 = vsel %vm104, %v2847, 0
  %v2920 = vsel %vm104, %v2849, 0
  %v2922 = vsel %vm104, %v2851, 0
  %v2924 = vsel %vm104, %v2853, 0
  %v2926 = vsel %vm104, %v2855, 0
  %v2928 = vsel %vm104, %v2857, 0
  %v2930 = vsel %vm104, %v2859, 0
  %v2932 = vsel %vm104, %v2861, 0
  %v2934 = vsel %vm104, %v2863, 0
  %v2936 = vsel %vm104, %v2865, 0
  %v2938 = vsel %vm104, %v2867, 0
  %v2940 = vsel %vm104, %v2869, 0
  %v2942 = vsel %vm104, %v2871, 0
  %v2944 = vsel %vm104, %v2873, 0
  %v2946 = vsel %vm104, %v2875, 0
  %v2948 = vsel %vm104, %v2877, 0
  %v2950 = vsel %vm104, %v2879, 0
  %v2952 = vsel %vm104, %v2881, 0
  %v2954 = vsel %vm104, %v2883, 0
  %v2956 = vsel %vm104, %v2885, 0
  %v2958 = vsel %vm104, %v2887, 0
  %v2960 = vsel %vm104, %v2889, 0
  %v2962 = vsel %vm104, %v2891, 0
  %v2964 = vsel %vm104, %v2893, 0
  %v2967 = vsel %vm213, %v2819, 0
  %2969 = vmatprep.subr.mxu0 0.0
  %2970 = vmatpush1.msra.mxu0 0.0
  %2971 = vmatprep.subr.mxu0 0.0
  %2972 = vmatpush1.msra.mxu0 0.0
  %2973 = vmatprep.subr.mxu0 0.0
  %2974 = vmatpush1.msra.mxu0 0.0
  %2975 = vmatprep.subr.mxu0 0.0
  %2976 = vmatpush1.msra.mxu0 0.0
  %2977 = vmatprep.subr.mxu0 0.0
  %2978 = vmatpush1.msra.mxu0 0.0
  %2979 = vmatprep.subr.mxu0 0.0
  %2980 = vmatpush1.msra.mxu0 0.0
  %2981 = vmatprep.subr.mxu0 0.0
  %2982 = vmatpush1.msra.mxu0 0.0
  %2983 = vmatprep.subr.mxu0 0.0
  %2984 = vmatpush1.msra.mxu0 0.0
  %2985 = vmatprep.subr.mxu0 0.0
  %2986 = vmatpush1.msra.mxu0 0.0
  %2987 = vmatprep.subr.mxu0 0.0
  %2988 = vmatpush1.msra.mxu0 0.0
  %2989 = vmatprep.subr.mxu0 0.0
  %2990 = vmatpush1.msra.mxu0 0.0
  %2991 = vmatprep.subr.mxu0 0.0
  %2992 = vmatpush1.msra.mxu0 0.0
  %2993 = vmatprep.subr.mxu0 0.0
  %2994 = vmatpush1.msra.mxu0 0.0
  %2995 = vmatprep.subr.mxu0 0.0
  %2996 = vmatpush1.msra.mxu0 0.0
  %2997 = vmatprep.subr.mxu0 0.0
  %2998 = vmatpush1.msra.mxu0 0.0
  %2999 = vmatprep.subr.mxu0 0.0
  %3000 = vmatpush1.msra.mxu0 %v2967
  %3001 = vmatprep.subr.mxu0 0.0
  %3002 = vmatpush2.msra.mxu0 0.0
  %3003 = vmatprep.subr.mxu0 0.0
  %3004 = vmatpush2.msra.mxu0 0.0
  %3005 = vmatprep.subr.mxu0 0.0
  %3006 = vmatpush2.msra.mxu0 0.0
  %3007 = vmatprep.subr.mxu0 0.0
  %3008 = vmatpush2.msra.mxu0 0.0
  %3009 = vmatprep.subr.mxu0 0.0
  %3010 = vmatpush2.msra.mxu0 0.0
  %3011 = vmatprep.subr.mxu0 0.0
  %3012 = vmatpush2.msra.mxu0 0.0
  %3013 = vmatprep.subr.mxu0 0.0
  %3014 = vmatpush2.msra.mxu0 0.0
  %3015 = vmatprep.subr.mxu0 0.0
  %3016 = vmatpush2.msra.mxu0 0.0
  %3017 = vmatprep.subr.mxu0 0.0
  %3018 = vmatpush2.msra.mxu0 0.0
  %3019 = vmatprep.subr.mxu0 0.0
  %3020 = vmatpush2.msra.mxu0 0.0
  %3021 = vmatprep.subr.mxu0 0.0
  %3022 = vmatpush2.msra.mxu0 0.0
  %3023 = vmatprep.subr.mxu0 0.0
  %3024 = vmatpush2.msra.mxu0 0.0
  %3025 = vmatprep.subr.mxu0 0.0
  %3026 = vmatpush2.msra.mxu0 0.0
  %3027 = vmatprep.subr.mxu0 0.0
  %3028 = vmatpush2.msra.mxu0 0.0
  %3029 = vmatprep.subr.mxu0 0.0
  %3030 = vmatpush2.msra.mxu0 0.0
  %3031 = vmatprep.subr.mxu0 0.0
  %3032 = vmatpush2.msra.mxu0 0.0
  %3033 = vmatprep.mubr.f32.mxu0 0.0
  %3034 = vmatmul.mubr.f32.gmra.mxu0 %v2894
  %v3035 = vpop.f32.mrf.mxu0
  %v3036 = vadd.f32 0.0, %v3035
  %v3037 = vpop.f32.mrf.mxu0
  %3038 = vmatprep.mubr.f32.mxu0 0.0
  %3039 = vmatmul.mubr.f32.gmra.mxu0 %v2896
  %v3040 = vpop.f32.mrf.mxu0
  %v3041 = vadd.f32 0.0, %v3040
  %v3042 = vpop.f32.mrf.mxu0
  %3043 = vmatprep.mubr.f32.mxu0 0.0
  %3044 = vmatmul.mubr.f32.gmra.mxu0 %v2898
  %v3045 = vpop.f32.mrf.mxu0
  %v3046 = vadd.f32 0.0, %v3045
  %v3047 = vpop.f32.mrf.mxu0
  %3048 = vmatprep.mubr.f32.mxu0 0.0
  %3049 = vmatmul.mubr.f32.gmra.mxu0 %v2900
  %v3050 = vpop.f32.mrf.mxu0
  %v3051 = vadd.f32 0.0, %v3050
  %v3052 = vpop.f32.mrf.mxu0
  %3053 = vmatprep.mubr.f32.mxu0 0.0
  %3054 = vmatmul.mubr.f32.gmra.mxu0 %v2902
  %v3055 = vpop.f32.mrf.mxu0
  %v3056 = vadd.f32 0.0, %v3055
  %v3057 = vpop.f32.mrf.mxu0
  %3058 = vmatprep.mubr.f32.mxu0 0.0
  %3059 = vmatmul.mubr.f32.gmra.mxu0 %v2904
  %v3060 = vpop.f32.mrf.mxu0
  %v3061 = vadd.f32 0.0, %v3060
  %v3062 = vpop.f32.mrf.mxu0
  %3063 = vmatprep.mubr.f32.mxu0 0.0
  %3064 = vmatmul.mubr.f32.gmra.mxu0 %v2906
  %v3065 = vpop.f32.mrf.mxu0
  %v3066 = vadd.f32 0.0, %v3065
  %v3067 = vpop.f32.mrf.mxu0
  %3068 = vmatprep.mubr.f32.mxu0 0.0
  %3069 = vmatmul.mubr.f32.gmra.mxu0 %v2908
  %v3070 = vpop.f32.mrf.mxu0
  %v3071 = vadd.f32 0.0, %v3070
  %v3072 = vpop.f32.mrf.mxu0
  %3073 = vmatprep.mubr.f32.mxu0 0.0
  %3074 = vmatmul.mubr.f32.gmra.mxu0 %v2910
  %v3075 = vpop.f32.mrf.mxu0
  %v3076 = vadd.f32 0.0, %v3075
  %v3077 = vpop.f32.mrf.mxu0
  %3078 = vmatprep.mubr.f32.mxu0 0.0
  %3079 = vmatmul.mubr.f32.gmra.mxu0 %v2912
  %v3080 = vpop.f32.mrf.mxu0
  %v3081 = vadd.f32 0.0, %v3080
  %v3082 = vpop.f32.mrf.mxu0
  %3083 = vmatprep.mubr.f32.mxu0 0.0
  %3084 = vmatmul.mubr.f32.gmra.mxu0 %v2914
  %v3085 = vpop.f32.mrf.mxu0
  %v3086 = vadd.f32 0.0, %v3085
  %v3087 = vpop.f32.mrf.mxu0
  %3088 = vmatprep.mubr.f32.mxu0 0.0
  %3089 = vmatmul.mubr.f32.gmra.mxu0 %v2916
  %v3090 = vpop.f32.mrf.mxu0
  %v3091 = vadd.f32 0.0, %v3090
  %v3092 = vpop.f32.mrf.mxu0
  %3093 = vmatprep.mubr.f32.mxu0 0.0
  %3094 = vmatmul.mubr.f32.gmra.mxu0 %v2918
  %v3095 = vpop.f32.mrf.mxu0
  %v3096 = vadd.f32 0.0, %v3095
  %v3097 = vpop.f32.mrf.mxu0
  %3098 = vmatprep.mubr.f32.mxu0 0.0
  %3099 = vmatmul.mubr.f32.gmra.mxu0 %v2920
  %v3100 = vpop.f32.mrf.mxu0
  %v3101 = vadd.f32 0.0, %v3100
  %v3102 = vpop.f32.mrf.mxu0
  %3103 = vmatprep.mubr.f32.mxu0 0.0
  %3104 = vmatmul.mubr.f32.gmra.mxu0 %v2922
  %v3105 = vpop.f32.mrf.mxu0
  %v3106 = vadd.f32 0.0, %v3105
  %v3107 = vpop.f32.mrf.mxu0
  %3108 = vmatprep.mubr.f32.mxu0 0.0
  %3109 = vmatmul.mubr.f32.gmra.mxu0 %v2924
  %v3110 = vpop.f32.mrf.mxu0
  %v3111 = vadd.f32 0.0, %v3110
  %v3112 = vpop.f32.mrf.mxu0
  %3113 = vmatprep.mubr.f32.mxu0 0.0
  %3114 = vmatmul.mubr.f32.gmra.mxu0 %v2926
  %v3115 = vpop.f32.mrf.mxu0
  %v3116 = vadd.f32 0.0, %v3115
  %v3117 = vpop.f32.mrf.mxu0
  %3118 = vmatprep.mubr.f32.mxu0 0.0
  %3119 = vmatmul.mubr.f32.gmra.mxu0 %v2928
  %v3120 = vpop.f32.mrf.mxu0
  %v3121 = vadd.f32 0.0, %v3120
  %v3122 = vpop.f32.mrf.mxu0
  %3123 = vmatprep.mubr.f32.mxu0 0.0
  %3124 = vmatmul.mubr.f32.gmra.mxu0 %v2930
  %v3125 = vpop.f32.mrf.mxu0
  %v3126 = vadd.f32 0.0, %v3125
  %v3127 = vpop.f32.mrf.mxu0
  %3128 = vmatprep.mubr.f32.mxu0 0.0
  %3129 = vmatmul.mubr.f32.gmra.mxu0 %v2932
  %v3130 = vpop.f32.mrf.mxu0
  %v3131 = vadd.f32 0.0, %v3130
  %v3132 = vpop.f32.mrf.mxu0
  %3133 = vmatprep.mubr.f32.mxu0 0.0
  %3134 = vmatmul.mubr.f32.gmra.mxu0 %v2934
  %v3135 = vpop.f32.mrf.mxu0
  %v3136 = vadd.f32 0.0, %v3135
  %v3137 = vpop.f32.mrf.mxu0
  %3138 = vmatprep.mubr.f32.mxu0 0.0
  %3139 = vmatmul.mubr.f32.gmra.mxu0 %v2936
  %v3140 = vpop.f32.mrf.mxu0
  %v3141 = vadd.f32 0.0, %v3140
  %v3142 = vpop.f32.mrf.mxu0
  %3143 = vmatprep.mubr.f32.mxu0 0.0
  %3144 = vmatmul.mubr.f32.gmra.mxu0 %v2938
  %v3145 = vpop.f32.mrf.mxu0
  %v3146 = vadd.f32 0.0, %v3145
  %v3147 = vpop.f32.mrf.mxu0
  %3148 = vmatprep.mubr.f32.mxu0 0.0
  %3149 = vmatmul.mubr.f32.gmra.mxu0 %v2940
  %v3150 = vpop.f32.mrf.mxu0
  %v3151 = vadd.f32 0.0, %v3150
  %v3152 = vpop.f32.mrf.mxu0
  %3153 = vmatprep.mubr.f32.mxu0 0.0
  %3154 = vmatmul.mubr.f32.gmra.mxu0 %v2942
  %v3155 = vpop.f32.mrf.mxu0
  %v3156 = vadd.f32 0.0, %v3155
  %v3157 = vpop.f32.mrf.mxu0
  %3158 = vmatprep.mubr.f32.mxu0 0.0
  %3159 = vmatmul.mubr.f32.gmra.mxu0 %v2944
  %v3160 = vpop.f32.mrf.mxu0
  %v3161 = vadd.f32 0.0, %v3160
  %v3162 = vpop.f32.mrf.mxu0
  %3163 = vmatprep.mubr.f32.mxu0 0.0
  %3164 = vmatmul.mubr.f32.gmra.mxu0 %v2946
  %v3165 = vpop.f32.mrf.mxu0
  %v3166 = vadd.f32 0.0, %v3165
  %v3167 = vpop.f32.mrf.mxu0
  %3168 = vmatprep.mubr.f32.mxu0 0.0
  %3169 = vmatmul.mubr.f32.gmra.mxu0 %v2948
  %v3170 = vpop.f32.mrf.mxu0
  %v3171 = vadd.f32 0.0, %v3170
  %v3172 = vpop.f32.mrf.mxu0
  %3173 = vmatprep.mubr.f32.mxu0 0.0
  %3174 = vmatmul.mubr.f32.gmra.mxu0 %v2950
  %v3175 = vpop.f32.mrf.mxu0
  %v3176 = vadd.f32 0.0, %v3175
  %v3177 = vpop.f32.mrf.mxu0
  %3178 = vmatprep.mubr.f32.mxu0 0.0
  %3179 = vmatmul.mubr.f32.gmra.mxu0 %v2952
  %v3180 = vpop.f32.mrf.mxu0
  %v3181 = vadd.f32 0.0, %v3180
  %v3182 = vpop.f32.mrf.mxu0
  %3183 = vmatprep.mubr.f32.mxu0 0.0
  %3184 = vmatmul.mubr.f32.gmra.mxu0 %v2954
  %v3185 = vpop.f32.mrf.mxu0
  %v3186 = vadd.f32 0.0, %v3185
  %v3187 = vpop.f32.mrf.mxu0
  %3188 = vmatprep.mubr.f32.mxu0 0.0
  %3189 = vmatmul.mubr.f32.gmra.mxu0 %v2956
  %v3190 = vpop.f32.mrf.mxu0
  %v3191 = vadd.f32 0.0, %v3190
  %v3192 = vpop.f32.mrf.mxu0
  %3193 = vmatprep.mubr.f32.mxu0 0.0
  %3194 = vmatmul.mubr.f32.gmra.mxu0 %v2958
  %v3195 = vpop.f32.mrf.mxu0
  %v3196 = vadd.f32 0.0, %v3195
  %v3197 = vpop.f32.mrf.mxu0
  %3198 = vmatprep.mubr.f32.mxu0 0.0
  %3199 = vmatmul.mubr.f32.gmra.mxu0 %v2960
  %v3200 = vpop.f32.mrf.mxu0
  %v3201 = vadd.f32 0.0, %v3200
  %v3202 = vpop.f32.mrf.mxu0
  %3203 = vmatprep.mubr.f32.mxu0 0.0
  %3204 = vmatmul.mubr.f32.gmra.mxu0 %v2962
  %v3205 = vpop.f32.mrf.mxu0
  %v3206 = vadd.f32 0.0, %v3205
  %v3207 = vpop.f32.mrf.mxu0
  %3208 = vmatprep.mubr.f32.mxu0 0.0
  %3209 = vmatmul.mubr.f32.gmra.mxu0 %v2964
  %v3210 = vpop.f32.mrf.mxu0
  %v3211 = vadd.f32 0.0, %v3210
  %v3212 = vpop.f32.mrf.mxu0
  %3213 = vdwg.mxu0
  %v3214 = vadd.f32 %v2782, %v3036
  %v3215 = vadd.f32 %v2783, %v3041
  %v3216 = vadd.f32 %v2784, %v3046
  %v3217 = vadd.f32 %v2785, %v3051
  %v3218 = vadd.f32 %v2786, %v3056
  %v3219 = vadd.f32 %v2787, %v3061
  %v3220 = vadd.f32 %v2788, %v3066
  %v3221 = vadd.f32 %v2789, %v3071
  %v3222 = vadd.f32 %v2790, %v3076
  %v3223 = vadd.f32 %v2791, %v3081
  %v3224 = vadd.f32 %v2792, %v3086
  %v3225 = vadd.f32 %v2793, %v3091
  %v3226 = vadd.f32 %v2794, %v3096
  %v3227 = vadd.f32 %v2795, %v3101
  %v3228 = vadd.f32 %v2796, %v3106
  %v3229 = vadd.f32 %v2797, %v3111
  %v3230 = vadd.f32 %v2798, %v3116
  %v3231 = vadd.f32 %v2799, %v3121
  %v3232 = vadd.f32 %v2800, %v3126
  %v3233 = vadd.f32 %v2801, %v3131
  %v3234 = vadd.f32 %v2802, %v3136
  %v3235 = vadd.f32 %v2803, %v3141
  %v3236 = vadd.f32 %v2804, %v3146
  %v3237 = vadd.f32 %v2805, %v3151
  %v3238 = vadd.f32 %v2806, %v3156
  %v3239 = vadd.f32 %v2807, %v3161
  %v3240 = vadd.f32 %v2808, %v3166
  %v3241 = vadd.f32 %v2809, %v3171
  %v3242 = vadd.f32 %v2810, %v3176
  %v3243 = vadd.f32 %v2811, %v3181
  %v3244 = vadd.f32 %v2812, %v3186
  %v3245 = vadd.f32 %v2813, %v3191
  %v3246 = vadd.f32 %v2814, %v3196
  %v3247 = vadd.f32 %v2815, %v3201
  %v3248 = vadd.f32 %v2816, %v3206
  %v3249 = vadd.f32 %v2817, %v3211
  %s3250 = scalar_lea.vmem %s1, 32
  %v3251 = vld [vmem:[%s3250] sm:$0xf]
  %vm3252 = vcmask 1041408
  %v3253 = vrot.slane %v59, 6
  %v3254 = vrot.slane %v60, 6
  %v3255 = vsel %vm3252, %v3253, %v3254
  %v3256 = vrot.slane %v61, 6
  %v3257 = vsel %vm3252, %v3254, %v3256
  %v3258 = vrot.slane %v62, 6
  %v3259 = vsel %vm3252, %v3256, %v3258
  %v3260 = vrot.slane %v63, 6
  %v3261 = vsel %vm3252, %v3258, %v3260
  %v3262 = vrot.slane %v64, 6
  %v3263 = vsel %vm3252, %v3260, %v3262
  %v3264 = vrot.slane %v65, 6
  %v3265 = vsel %vm3252, %v3262, %v3264
  %v3266 = vrot.slane %v66, 6
  %v3267 = vsel %vm3252, %v3264, %v3266
  %v3268 = vrot.slane %v67, 6
  %v3269 = vsel %vm3252, %v3266, %v3268
  %v3270 = vrot.slane %v68, 6
  %v3271 = vsel %vm3252, %v3268, %v3270
  %v3272 = vrot.slane %v69, 6
  %v3273 = vsel %vm3252, %v3270, %v3272
  %v3274 = vrot.slane %v70, 6
  %v3275 = vsel %vm3252, %v3272, %v3274
  %v3276 = vrot.slane %v71, 6
  %v3277 = vsel %vm3252, %v3274, %v3276
  %v3278 = vrot.slane %v72, 6
  %v3279 = vsel %vm3252, %v3276, %v3278
  %v3280 = vrot.slane %v73, 6
  %v3281 = vsel %vm3252, %v3278, %v3280
  %v3282 = vrot.slane %v74, 6
  %v3283 = vsel %vm3252, %v3280, %v3282
  %v3284 = vrot.slane %v75, 6
  %v3285 = vsel %vm3252, %v3282, %v3284
  %v3286 = vrot.slane %v76, 6
  %v3287 = vsel %vm3252, %v3284, %v3286
  %v3288 = vrot.slane %v77, 6
  %v3289 = vsel %vm3252, %v3286, %v3288
  %v3290 = vrot.slane %v78, 6
  %v3291 = vsel %vm3252, %v3288, %v3290
  %v3292 = vrot.slane %v79, 6
  %v3293 = vsel %vm3252, %v3290, %v3292
  %v3294 = vrot.slane %v80, 6
  %v3295 = vsel %vm3252, %v3292, %v3294
  %v3296 = vrot.slane %v81, 6
  %v3297 = vsel %vm3252, %v3294, %v3296
  %v3298 = vrot.slane %v82, 6
  %v3299 = vsel %vm3252, %v3296, %v3298
  %v3300 = vrot.slane %v83, 6
  %v3301 = vsel %vm3252, %v3298, %v3300
  %v3302 = vrot.slane %v84, 6
  %v3303 = vsel %vm3252, %v3300, %v3302
  %v3304 = vrot.slane %v85, 6
  %v3305 = vsel %vm3252, %v3302, %v3304
  %v3306 = vrot.slane %v86, 6
  %v3307 = vsel %vm3252, %v3304, %v3306
  %v3308 = vrot.slane %v87, 6
  %v3309 = vsel %vm3252, %v3306, %v3308
  %v3310 = vrot.slane %v88, 6
  %v3311 = vsel %vm3252, %v3308, %v3310
  %v3312 = vrot.slane %v89, 6
  %v3313 = vsel %vm3252, %v3310, %v3312
  %v3314 = vrot.slane %v90, 6
  %v3315 = vsel %vm3252, %v3312, %v3314
  %v3316 = vrot.slane %v91, 6
  %v3317 = vsel %vm3252, %v3314, %v3316
  %v3318 = vrot.slane %v92, 6
  %v3319 = vsel %vm3252, %v3316, %v3318
  %v3320 = vrot.slane %v93, 6
  %v3321 = vsel %vm3252, %v3318, %v3320
  %v3322 = vrot.slane %v94, 6
  %v3323 = vsel %vm3252, %v3320, %v3322
  %v3324 = vrot.slane %v95, 6
  %v3325 = vsel %vm3252, %v3322, %v3324
  %v3326 = vsel %vm104, %v3255, 0
  %v3328 = vsel %vm104, %v3257, 0
  %v3330 = vsel %vm104, %v3259, 0
  %v3332 = vsel %vm104, %v3261, 0
  %v3334 = vsel %vm104, %v3263, 0
  %v3336 = vsel %vm104, %v3265, 0
  %v3338 = vsel %vm104, %v3267, 0
  %v3340 = vsel %vm104, %v3269, 0
  %v3342 = vsel %vm104, %v3271, 0
  %v3344 = vsel %vm104, %v3273, 0
  %v3346 = vsel %vm104, %v3275, 0
  %v3348 = vsel %vm104, %v3277, 0
  %v3350 = vsel %vm104, %v3279, 0
  %v3352 = vsel %vm104, %v3281, 0
  %v3354 = vsel %vm104, %v3283, 0
  %v3356 = vsel %vm104, %v3285, 0
  %v3358 = vsel %vm104, %v3287, 0
  %v3360 = vsel %vm104, %v3289, 0
  %v3362 = vsel %vm104, %v3291, 0
  %v3364 = vsel %vm104, %v3293, 0
  %v3366 = vsel %vm104, %v3295, 0
  %v3368 = vsel %vm104, %v3297, 0
  %v3370 = vsel %vm104, %v3299, 0
  %v3372 = vsel %vm104, %v3301, 0
  %v3374 = vsel %vm104, %v3303, 0
  %v3376 = vsel %vm104, %v3305, 0
  %v3378 = vsel %vm104, %v3307, 0
  %v3380 = vsel %vm104, %v3309, 0
  %v3382 = vsel %vm104, %v3311, 0
  %v3384 = vsel %vm104, %v3313, 0
  %v3386 = vsel %vm104, %v3315, 0
  %v3388 = vsel %vm104, %v3317, 0
  %v3390 = vsel %vm104, %v3319, 0
  %v3392 = vsel %vm104, %v3321, 0
  %v3394 = vsel %vm104, %v3323, 0
  %v3396 = vsel %vm104, %v3325, 0
  %v3399 = vsel %vm213, %v3251, 0
  %3401 = vmatprep.subr.mxu0 0.0
  %3402 = vmatpush1.msra.mxu0 0.0
  %3403 = vmatprep.subr.mxu0 0.0
  %3404 = vmatpush1.msra.mxu0 0.0
  %3405 = vmatprep.subr.mxu0 0.0
  %3406 = vmatpush1.msra.mxu0 0.0
  %3407 = vmatprep.subr.mxu0 0.0
  %3408 = vmatpush1.msra.mxu0 0.0
  %3409 = vmatprep.subr.mxu0 0.0
  %3410 = vmatpush1.msra.mxu0 0.0
  %3411 = vmatprep.subr.mxu0 0.0
  %3412 = vmatpush1.msra.mxu0 0.0
  %3413 = vmatprep.subr.mxu0 0.0
  %3414 = vmatpush1.msra.mxu0 0.0
  %3415 = vmatprep.subr.mxu0 0.0
  %3416 = vmatpush1.msra.mxu0 0.0
  %3417 = vmatprep.subr.mxu0 0.0
  %3418 = vmatpush1.msra.mxu0 0.0
  %3419 = vmatprep.subr.mxu0 0.0
  %3420 = vmatpush1.msra.mxu0 0.0
  %3421 = vmatprep.subr.mxu0 0.0
  %3422 = vmatpush1.msra.mxu0 0.0
  %3423 = vmatprep.subr.mxu0 0.0
  %3424 = vmatpush1.msra.mxu0 0.0
  %3425 = vmatprep.subr.mxu0 0.0
  %3426 = vmatpush1.msra.mxu0 0.0
  %3427 = vmatprep.subr.mxu0 0.0
  %3428 = vmatpush1.msra.mxu0 0.0
  %3429 = vmatprep.subr.mxu0 0.0
  %3430 = vmatpush1.msra.mxu0 0.0
  %3431 = vmatprep.subr.mxu0 0.0
  %3432 = vmatpush1.msra.mxu0 %v3399
  %3433 = vmatprep.subr.mxu0 0.0
  %3434 = vmatpush2.msra.mxu0 0.0
  %3435 = vmatprep.subr.mxu0 0.0
  %3436 = vmatpush2.msra.mxu0 0.0
  %3437 = vmatprep.subr.mxu0 0.0
  %3438 = vmatpush2.msra.mxu0 0.0
  %3439 = vmatprep.subr.mxu0 0.0
  %3440 = vmatpush2.msra.mxu0 0.0
  %3441 = vmatprep.subr.mxu0 0.0
  %3442 = vmatpush2.msra.mxu0 0.0
  %3443 = vmatprep.subr.mxu0 0.0
  %3444 = vmatpush2.msra.mxu0 0.0
  %3445 = vmatprep.subr.mxu0 0.0
  %3446 = vmatpush2.msra.mxu0 0.0
  %3447 = vmatprep.subr.mxu0 0.0
  %3448 = vmatpush2.msra.mxu0 0.0
  %3449 = vmatprep.subr.mxu0 0.0
  %3450 = vmatpush2.msra.mxu0 0.0
  %3451 = vmatprep.subr.mxu0 0.0
  %3452 = vmatpush2.msra.mxu0 0.0
  %3453 = vmatprep.subr.mxu0 0.0
  %3454 = vmatpush2.msra.mxu0 0.0
  %3455 = vmatprep.subr.mxu0 0.0
  %3456 = vmatpush2.msra.mxu0 0.0
  %3457 = vmatprep.subr.mxu0 0.0
  %3458 = vmatpush2.msra.mxu0 0.0
  %3459 = vmatprep.subr.mxu0 0.0
  %3460 = vmatpush2.msra.mxu0 0.0
  %3461 = vmatprep.subr.mxu0 0.0
  %3462 = vmatpush2.msra.mxu0 0.0
  %3463 = vmatprep.subr.mxu0 0.0
  %3464 = vmatpush2.msra.mxu0 0.0
  %3465 = vmatprep.mubr.f32.mxu0 0.0
  %3466 = vmatmul.mubr.f32.gmra.mxu0 %v3326
  %v3467 = vpop.f32.mrf.mxu0
  %v3468 = vadd.f32 0.0, %v3467
  %v3469 = vpop.f32.mrf.mxu0
  %3470 = vmatprep.mubr.f32.mxu0 0.0
  %3471 = vmatmul.mubr.f32.gmra.mxu0 %v3328
  %v3472 = vpop.f32.mrf.mxu0
  %v3473 = vadd.f32 0.0, %v3472
  %v3474 = vpop.f32.mrf.mxu0
  %3475 = vmatprep.mubr.f32.mxu0 0.0
  %3476 = vmatmul.mubr.f32.gmra.mxu0 %v3330
  %v3477 = vpop.f32.mrf.mxu0
  %v3478 = vadd.f32 0.0, %v3477
  %v3479 = vpop.f32.mrf.mxu0
  %3480 = vmatprep.mubr.f32.mxu0 0.0
  %3481 = vmatmul.mubr.f32.gmra.mxu0 %v3332
  %v3482 = vpop.f32.mrf.mxu0
  %v3483 = vadd.f32 0.0, %v3482
  %v3484 = vpop.f32.mrf.mxu0
  %3485 = vmatprep.mubr.f32.mxu0 0.0
  %3486 = vmatmul.mubr.f32.gmra.mxu0 %v3334
  %v3487 = vpop.f32.mrf.mxu0
  %v3488 = vadd.f32 0.0, %v3487
  %v3489 = vpop.f32.mrf.mxu0
  %3490 = vmatprep.mubr.f32.mxu0 0.0
  %3491 = vmatmul.mubr.f32.gmra.mxu0 %v3336
  %v3492 = vpop.f32.mrf.mxu0
  %v3493 = vadd.f32 0.0, %v3492
  %v3494 = vpop.f32.mrf.mxu0
  %3495 = vmatprep.mubr.f32.mxu0 0.0
  %3496 = vmatmul.mubr.f32.gmra.mxu0 %v3338
  %v3497 = vpop.f32.mrf.mxu0
  %v3498 = vadd.f32 0.0, %v3497
  %v3499 = vpop.f32.mrf.mxu0
  %3500 = vmatprep.mubr.f32.mxu0 0.0
  %3501 = vmatmul.mubr.f32.gmra.mxu0 %v3340
  %v3502 = vpop.f32.mrf.mxu0
  %v3503 = vadd.f32 0.0, %v3502
  %v3504 = vpop.f32.mrf.mxu0
  %3505 = vmatprep.mubr.f32.mxu0 0.0
  %3506 = vmatmul.mubr.f32.gmra.mxu0 %v3342
  %v3507 = vpop.f32.mrf.mxu0
  %v3508 = vadd.f32 0.0, %v3507
  %v3509 = vpop.f32.mrf.mxu0
  %3510 = vmatprep.mubr.f32.mxu0 0.0
  %3511 = vmatmul.mubr.f32.gmra.mxu0 %v3344
  %v3512 = vpop.f32.mrf.mxu0
  %v3513 = vadd.f32 0.0, %v3512
  %v3514 = vpop.f32.mrf.mxu0
  %3515 = vmatprep.mubr.f32.mxu0 0.0
  %3516 = vmatmul.mubr.f32.gmra.mxu0 %v3346
  %v3517 = vpop.f32.mrf.mxu0
  %v3518 = vadd.f32 0.0, %v3517
  %v3519 = vpop.f32.mrf.mxu0
  %3520 = vmatprep.mubr.f32.mxu0 0.0
  %3521 = vmatmul.mubr.f32.gmra.mxu0 %v3348
  %v3522 = vpop.f32.mrf.mxu0
  %v3523 = vadd.f32 0.0, %v3522
  %v3524 = vpop.f32.mrf.mxu0
  %3525 = vmatprep.mubr.f32.mxu0 0.0
  %3526 = vmatmul.mubr.f32.gmra.mxu0 %v3350
  %v3527 = vpop.f32.mrf.mxu0
  %v3528 = vadd.f32 0.0, %v3527
  %v3529 = vpop.f32.mrf.mxu0
  %3530 = vmatprep.mubr.f32.mxu0 0.0
  %3531 = vmatmul.mubr.f32.gmra.mxu0 %v3352
  %v3532 = vpop.f32.mrf.mxu0
  %v3533 = vadd.f32 0.0, %v3532
  %v3534 = vpop.f32.mrf.mxu0
  %3535 = vmatprep.mubr.f32.mxu0 0.0
  %3536 = vmatmul.mubr.f32.gmra.mxu0 %v3354
  %v3537 = vpop.f32.mrf.mxu0
  %v3538 = vadd.f32 0.0, %v3537
  %v3539 = vpop.f32.mrf.mxu0
  %3540 = vmatprep.mubr.f32.mxu0 0.0
  %3541 = vmatmul.mubr.f32.gmra.mxu0 %v3356
  %v3542 = vpop.f32.mrf.mxu0
  %v3543 = vadd.f32 0.0, %v3542
  %v3544 = vpop.f32.mrf.mxu0
  %3545 = vmatprep.mubr.f32.mxu0 0.0
  %3546 = vmatmul.mubr.f32.gmra.mxu0 %v3358
  %v3547 = vpop.f32.mrf.mxu0
  %v3548 = vadd.f32 0.0, %v3547
  %v3549 = vpop.f32.mrf.mxu0
  %3550 = vmatprep.mubr.f32.mxu0 0.0
  %3551 = vmatmul.mubr.f32.gmra.mxu0 %v3360
  %v3552 = vpop.f32.mrf.mxu0
  %v3553 = vadd.f32 0.0, %v3552
  %v3554 = vpop.f32.mrf.mxu0
  %3555 = vmatprep.mubr.f32.mxu0 0.0
  %3556 = vmatmul.mubr.f32.gmra.mxu0 %v3362
  %v3557 = vpop.f32.mrf.mxu0
  %v3558 = vadd.f32 0.0, %v3557
  %v3559 = vpop.f32.mrf.mxu0
  %3560 = vmatprep.mubr.f32.mxu0 0.0
  %3561 = vmatmul.mubr.f32.gmra.mxu0 %v3364
  %v3562 = vpop.f32.mrf.mxu0
  %v3563 = vadd.f32 0.0, %v3562
  %v3564 = vpop.f32.mrf.mxu0
  %3565 = vmatprep.mubr.f32.mxu0 0.0
  %3566 = vmatmul.mubr.f32.gmra.mxu0 %v3366
  %v3567 = vpop.f32.mrf.mxu0
  %v3568 = vadd.f32 0.0, %v3567
  %v3569 = vpop.f32.mrf.mxu0
  %3570 = vmatprep.mubr.f32.mxu0 0.0
  %3571 = vmatmul.mubr.f32.gmra.mxu0 %v3368
  %v3572 = vpop.f32.mrf.mxu0
  %v3573 = vadd.f32 0.0, %v3572
  %v3574 = vpop.f32.mrf.mxu0
  %3575 = vmatprep.mubr.f32.mxu0 0.0
  %3576 = vmatmul.mubr.f32.gmra.mxu0 %v3370
  %v3577 = vpop.f32.mrf.mxu0
  %v3578 = vadd.f32 0.0, %v3577
  %v3579 = vpop.f32.mrf.mxu0
  %3580 = vmatprep.mubr.f32.mxu0 0.0
  %3581 = vmatmul.mubr.f32.gmra.mxu0 %v3372
  %v3582 = vpop.f32.mrf.mxu0
  %v3583 = vadd.f32 0.0, %v3582
  %v3584 = vpop.f32.mrf.mxu0
  %3585 = vmatprep.mubr.f32.mxu0 0.0
  %3586 = vmatmul.mubr.f32.gmra.mxu0 %v3374
  %v3587 = vpop.f32.mrf.mxu0
  %v3588 = vadd.f32 0.0, %v3587
  %v3589 = vpop.f32.mrf.mxu0
  %3590 = vmatprep.mubr.f32.mxu0 0.0
  %3591 = vmatmul.mubr.f32.gmra.mxu0 %v3376
  %v3592 = vpop.f32.mrf.mxu0
  %v3593 = vadd.f32 0.0, %v3592
  %v3594 = vpop.f32.mrf.mxu0
  %3595 = vmatprep.mubr.f32.mxu0 0.0
  %3596 = vmatmul.mubr.f32.gmra.mxu0 %v3378
  %v3597 = vpop.f32.mrf.mxu0
  %v3598 = vadd.f32 0.0, %v3597
  %v3599 = vpop.f32.mrf.mxu0
  %3600 = vmatprep.mubr.f32.mxu0 0.0
  %3601 = vmatmul.mubr.f32.gmra.mxu0 %v3380
  %v3602 = vpop.f32.mrf.mxu0
  %v3603 = vadd.f32 0.0, %v3602
  %v3604 = vpop.f32.mrf.mxu0
  %3605 = vmatprep.mubr.f32.mxu0 0.0
  %3606 = vmatmul.mubr.f32.gmra.mxu0 %v3382
  %v3607 = vpop.f32.mrf.mxu0
  %v3608 = vadd.f32 0.0, %v3607
  %v3609 = vpop.f32.mrf.mxu0
  %3610 = vmatprep.mubr.f32.mxu0 0.0
  %3611 = vmatmul.mubr.f32.gmra.mxu0 %v3384
  %v3612 = vpop.f32.mrf.mxu0
  %v3613 = vadd.f32 0.0, %v3612
  %v3614 = vpop.f32.mrf.mxu0
  %3615 = vmatprep.mubr.f32.mxu0 0.0
  %3616 = vmatmul.mubr.f32.gmra.mxu0 %v3386
  %v3617 = vpop.f32.mrf.mxu0
  %v3618 = vadd.f32 0.0, %v3617
  %v3619 = vpop.f32.mrf.mxu0
  %3620 = vmatprep.mubr.f32.mxu0 0.0
  %3621 = vmatmul.mubr.f32.gmra.mxu0 %v3388
  %v3622 = vpop.f32.mrf.mxu0
  %v3623 = vadd.f32 0.0, %v3622
  %v3624 = vpop.f32.mrf.mxu0
  %3625 = vmatprep.mubr.f32.mxu0 0.0
  %3626 = vmatmul.mubr.f32.gmra.mxu0 %v3390
  %v3627 = vpop.f32.mrf.mxu0
  %v3628 = vadd.f32 0.0, %v3627
  %v3629 = vpop.f32.mrf.mxu0
  %3630 = vmatprep.mubr.f32.mxu0 0.0
  %3631 = vmatmul.mubr.f32.gmra.mxu0 %v3392
  %v3632 = vpop.f32.mrf.mxu0
  %v3633 = vadd.f32 0.0, %v3632
  %v3634 = vpop.f32.mrf.mxu0
  %3635 = vmatprep.mubr.f32.mxu0 0.0
  %3636 = vmatmul.mubr.f32.gmra.mxu0 %v3394
  %v3637 = vpop.f32.mrf.mxu0
  %v3638 = vadd.f32 0.0, %v3637
  %v3639 = vpop.f32.mrf.mxu0
  %3640 = vmatprep.mubr.f32.mxu0 0.0
  %3641 = vmatmul.mubr.f32.gmra.mxu0 %v3396
  %v3642 = vpop.f32.mrf.mxu0
  %v3643 = vadd.f32 0.0, %v3642
  %v3644 = vpop.f32.mrf.mxu0
  %3645 = vdwg.mxu0
  %v3646 = vadd.f32 %v3214, %v3468
  %v3647 = vadd.f32 %v3215, %v3473
  %v3648 = vadd.f32 %v3216, %v3478
  %v3649 = vadd.f32 %v3217, %v3483
  %v3650 = vadd.f32 %v3218, %v3488
  %v3651 = vadd.f32 %v3219, %v3493
  %v3652 = vadd.f32 %v3220, %v3498
  %v3653 = vadd.f32 %v3221, %v3503
  %v3654 = vadd.f32 %v3222, %v3508
  %v3655 = vadd.f32 %v3223, %v3513
  %v3656 = vadd.f32 %v3224, %v3518
  %v3657 = vadd.f32 %v3225, %v3523
  %v3658 = vadd.f32 %v3226, %v3528
  %v3659 = vadd.f32 %v3227, %v3533
  %v3660 = vadd.f32 %v3228, %v3538
  %v3661 = vadd.f32 %v3229, %v3543
  %v3662 = vadd.f32 %v3230, %v3548
  %v3663 = vadd.f32 %v3231, %v3553
  %v3664 = vadd.f32 %v3232, %v3558
  %v3665 = vadd.f32 %v3233, %v3563
  %v3666 = vadd.f32 %v3234, %v3568
  %v3667 = vadd.f32 %v3235, %v3573
  %v3668 = vadd.f32 %v3236, %v3578
  %v3669 = vadd.f32 %v3237, %v3583
  %v3670 = vadd.f32 %v3238, %v3588
  %v3671 = vadd.f32 %v3239, %v3593
  %v3672 = vadd.f32 %v3240, %v3598
  %v3673 = vadd.f32 %v3241, %v3603
  %v3674 = vadd.f32 %v3242, %v3608
  %v3675 = vadd.f32 %v3243, %v3613
  %v3676 = vadd.f32 %v3244, %v3618
  %v3677 = vadd.f32 %v3245, %v3623
  %v3678 = vadd.f32 %v3246, %v3628
  %v3679 = vadd.f32 %v3247, %v3633
  %v3680 = vadd.f32 %v3248, %v3638
  %v3681 = vadd.f32 %v3249, %v3643
  %3682 = vst [vmem:[%s3] sm:$0xff] %v3646
  %3683 = vst [vmem:[%s3 + $0x8] sm:$0xff] %v3647
  %3684 = vst [vmem:[%s3 + $0x10] sm:$0xff] %v3648
  %3685 = vst [vmem:[%s3 + $0x18] sm:$0xff] %v3649
  %3686 = vst [vmem:[%s3 + $0x20] sm:$0xff] %v3650
  %3687 = vst [vmem:[%s3 + $0x28] sm:$0xff] %v3651
  %3688 = vst [vmem:[%s3 + $0x30] sm:$0xff] %v3652
  %3689 = vst [vmem:[%s3 + $0x38] sm:$0xff] %v3653
  %3690 = vst [vmem:[%s3 + $0x40] sm:$0xff] %v3654
  %3691 = vst [vmem:[%s3 + $0x48] sm:$0xff] %v3655
  %3692 = vst [vmem:[%s3 + $0x50] sm:$0xff] %v3656
  %3693 = vst [vmem:[%s3 + $0x58] sm:$0xff] %v3657
  %3694 = vst [vmem:[%s3 + $0x60] sm:$0xff] %v3658
  %3695 = vst [vmem:[%s3 + $0x68] sm:$0xff] %v3659
  %3696 = vst [vmem:[%s3 + $0x70] sm:$0xff] %v3660
  %3697 = vst [vmem:[%s3 + $0x78] sm:$0xff] %v3661
  %3698 = vst [vmem:[%s3 + $0x80] sm:$0xff] %v3662
  %3699 = vst [vmem:[%s3 + $0x88] sm:$0xff] %v3663
  %3700 = vst [vmem:[%s3 + $0x90] sm:$0xff] %v3664
  %3701 = vst [vmem:[%s3 + $0x98] sm:$0xff] %v3665
  %3702 = vst [vmem:[%s3 + $0xa0] sm:$0xff] %v3666
  %3703 = vst [vmem:[%s3 + $0xa8] sm:$0xff] %v3667
  %3704 = vst [vmem:[%s3 + $0xb0] sm:$0xff] %v3668
  %3705 = vst [vmem:[%s3 + $0xb8] sm:$0xff] %v3669
  %3706 = vst [vmem:[%s3 + $0xc0] sm:$0xff] %v3670
  %3707 = vst [vmem:[%s3 + $0xc8] sm:$0xff] %v3671
  %3708 = vst [vmem:[%s3 + $0xd0] sm:$0xff] %v3672
  %3709 = vst [vmem:[%s3 + $0xd8] sm:$0xff] %v3673
  %3710 = vst [vmem:[%s3 + $0xe0] sm:$0xff] %v3674
  %3711 = vst [vmem:[%s3 + $0xe8] sm:$0xff] %v3675
  %3712 = vst [vmem:[%s3 + $0xf0] sm:$0xff] %v3676
  %3713 = vst [vmem:[%s3 + $0xf8] sm:$0xff] %v3677
  %3714 = vst [vmem:[%s3 + $0x100] sm:$0xff] %v3678
  %3715 = vst [vmem:[%s3 + $0x108] sm:$0xff] %v3679
  %3716 = vst [vmem:[%s3 + $0x110] sm:$0xff] %v3680
  %3717 = vst [vmem:[%s3 + $0x118] sm:$0xff] %v3681
  %s3718 = scalar_lea.vmem %s0, 328
  %v3719 = vld [vmem:[%s3718] sm:$0xff]
  %v3720 = vld [vmem:[%s3718 + $0x8] sm:$0xff]
  %v3721 = vld [vmem:[%s3718 + $0x10] sm:$0xff]
  %v3722 = vld [vmem:[%s3718 + $0x18] sm:$0xff]
  %v3723 = vld [vmem:[%s3718 + $0x20] sm:$0xff]
  %v3724 = vld [vmem:[%s3718 + $0x28] sm:$0xff]
  %v3725 = vld [vmem:[%s3718 + $0x30] sm:$0xff]
  %v3726 = vld [vmem:[%s3718 + $0x38] sm:$0xff]
  %v3727 = vld [vmem:[%s3718 + $0x40] sm:$0xff]
  %v3728 = vld [vmem:[%s3718 + $0x48] sm:$0xff]
  %v3729 = vld [vmem:[%s3718 + $0x50] sm:$0xff]
  %v3730 = vld [vmem:[%s3718 + $0x58] sm:$0xff]
  %v3731 = vld [vmem:[%s3718 + $0x60] sm:$0xff]
  %v3732 = vld [vmem:[%s3718 + $0x68] sm:$0xff]
  %v3733 = vld [vmem:[%s3718 + $0x70] sm:$0xff]
  %v3734 = vld [vmem:[%s3718 + $0x78] sm:$0xff]
  %v3735 = vld [vmem:[%s3718 + $0x80] sm:$0xff]
  %v3736 = vld [vmem:[%s3718 + $0x88] sm:$0xff]
  %v3737 = vld [vmem:[%s3718 + $0x90] sm:$0xff]
  %v3738 = vld [vmem:[%s3718 + $0x98] sm:$0xff]
  %v3739 = vld [vmem:[%s3718 + $0xa0] sm:$0xff]
  %v3740 = vld [vmem:[%s3718 + $0xa8] sm:$0xff]
  %v3741 = vld [vmem:[%s3718 + $0xb0] sm:$0xff]
  %v3742 = vld [vmem:[%s3718 + $0xb8] sm:$0xff]
  %v3743 = vld [vmem:[%s3718 + $0xc0] sm:$0xff]
  %v3744 = vld [vmem:[%s3718 + $0xc8] sm:$0xff]
  %v3745 = vld [vmem:[%s3718 + $0xd0] sm:$0xff]
  %v3746 = vld [vmem:[%s3718 + $0xd8] sm:$0xff]
  %v3747 = vld [vmem:[%s3718 + $0xe0] sm:$0xff]
  %v3748 = vld [vmem:[%s3718 + $0xe8] sm:$0xff]
  %v3749 = vld [vmem:[%s3718 + $0xf0] sm:$0xff]
  %v3750 = vld [vmem:[%s3718 + $0xf8] sm:$0xff]
  %v3751 = vld [vmem:[%s3718 + $0x100] sm:$0xff]
  %v3752 = vld [vmem:[%s3718 + $0x108] sm:$0xff]
  %v3753 = vld [vmem:[%s3718 + $0x110] sm:$0xff]
  %v3754 = vld [vmem:[%s3718 + $0x118] sm:$0xff]
  %v3755 = vld [vmem:[%s3718 + $0x120] sm:$0xff]
  %v3756 = vld [vmem:[%s3718 + $0x128] sm:$0xff]
  %v3757 = vld [vmem:[%s3718 + $0x130] sm:$0xff]
  %v3758 = vld [vmem:[%s3718 + $0x138] sm:$0xff]
  %v3759 = vld [vmem:[%s3718 + $0x140] sm:$0xff]
  %v3760 = vmax.f32 %v3719, 0.0
  %v3761 = vmax.f32 %v3720, 0.0
  %v3762 = vmax.f32 %v3721, 0.0
  %v3763 = vmax.f32 %v3722, 0.0
  %v3764 = vmax.f32 %v3723, 0.0
  %v3765 = vmax.f32 %v3724, 0.0
  %v3766 = vmax.f32 %v3725, 0.0
  %v3767 = vmax.f32 %v3726, 0.0
  %v3768 = vmax.f32 %v3727, 0.0
  %v3769 = vmax.f32 %v3728, 0.0
  %v3770 = vmax.f32 %v3729, 0.0
  %v3771 = vmax.f32 %v3730, 0.0
  %v3772 = vmax.f32 %v3731, 0.0
  %v3773 = vmax.f32 %v3732, 0.0
  %v3774 = vmax.f32 %v3733, 0.0
  %v3775 = vmax.f32 %v3734, 0.0
  %v3776 = vmax.f32 %v3735, 0.0
  %v3777 = vmax.f32 %v3736, 0.0
  %v3778 = vmax.f32 %v3737, 0.0
  %v3779 = vmax.f32 %v3738, 0.0
  %v3780 = vmax.f32 %v3739, 0.0
  %v3781 = vmax.f32 %v3740, 0.0
  %v3782 = vmax.f32 %v3741, 0.0
  %v3783 = vmax.f32 %v3742, 0.0
  %v3784 = vmax.f32 %v3743, 0.0
  %v3785 = vmax.f32 %v3744, 0.0
  %v3786 = vmax.f32 %v3745, 0.0
  %v3787 = vmax.f32 %v3746, 0.0
  %v3788 = vmax.f32 %v3747, 0.0
  %v3789 = vmax.f32 %v3748, 0.0
  %v3790 = vmax.f32 %v3749, 0.0
  %v3791 = vmax.f32 %v3750, 0.0
  %v3792 = vmax.f32 %v3751, 0.0
  %v3793 = vmax.f32 %v3752, 0.0
  %v3794 = vmax.f32 %v3753, 0.0
  %v3795 = vmax.f32 %v3754, 0.0
  %v3796 = vmax.f32 %v3755, 0.0
  %v3797 = vmax.f32 %v3756, 0.0
  %v3798 = vmax.f32 %v3757, 0.0
  %v3799 = vmax.f32 %v3758, 0.0
  %v3800 = vmax.f32 %v3759, 0.0
  %v3801 = vld [vmem:[%s2] sm:$0x1]
  %v3803 = vlaneseq
  %v3804 = vshrl.u32 %v3803, 7
  %v3805 = vsub.s32 0, %v3804
  %v3806 = vrot.slane %v3801, %v3805
  %v3808 = vld [vmem:[%s1] sm:$0xf]
  %v3810 = vsel %vm104, %v3760, 0
  %v3813 = vsel %vm104, %v3761, 0
  %v3816 = vsel %vm104, %v3762, 0
  %v3819 = vsel %vm104, %v3763, 0
  %v3822 = vsel %vm104, %v3764, 0
  %v3825 = vsel %vm104, %v3765, 0
  %v3828 = vsel %vm104, %v3766, 0
  %v3831 = vsel %vm104, %v3767, 0
  %v3834 = vsel %vm104, %v3768, 0
  %v3837 = vsel %vm104, %v3769, 0
  %v3840 = vsel %vm104, %v3770, 0
  %v3843 = vsel %vm104, %v3771, 0
  %v3846 = vsel %vm104, %v3772, 0
  %v3849 = vsel %vm104, %v3773, 0
  %v3852 = vsel %vm104, %v3774, 0
  %v3855 = vsel %vm104, %v3775, 0
  %v3858 = vsel %vm104, %v3776, 0
  %v3861 = vsel %vm104, %v3777, 0
  %v3864 = vsel %vm104, %v3778, 0
  %v3867 = vsel %vm104, %v3779, 0
  %v3870 = vsel %vm104, %v3780, 0
  %v3873 = vsel %vm104, %v3781, 0
  %v3876 = vsel %vm104, %v3782, 0
  %v3879 = vsel %vm104, %v3783, 0
  %v3882 = vsel %vm104, %v3784, 0
  %v3885 = vsel %vm104, %v3785, 0
  %v3888 = vsel %vm104, %v3786, 0
  %v3891 = vsel %vm104, %v3787, 0
  %v3894 = vsel %vm104, %v3788, 0
  %v3897 = vsel %vm104, %v3789, 0
  %v3900 = vsel %vm104, %v3790, 0
  %v3903 = vsel %vm104, %v3791, 0
  %v3906 = vsel %vm104, %v3792, 0
  %v3909 = vsel %vm104, %v3793, 0
  %v3912 = vsel %vm104, %v3794, 0
  %v3915 = vsel %vm104, %v3795, 0
  %v3918 = vsel %vm213, %v3808, 0
  %3920 = vmatprep.subr.mxu0 0.0
  %3921 = vmatpush1.msra.mxu0 0.0
  %3922 = vmatprep.subr.mxu0 0.0
  %3923 = vmatpush1.msra.mxu0 0.0
  %3924 = vmatprep.subr.mxu0 0.0
  %3925 = vmatpush1.msra.mxu0 0.0
  %3926 = vmatprep.subr.mxu0 0.0
  %3927 = vmatpush1.msra.mxu0 0.0
  %3928 = vmatprep.subr.mxu0 0.0
  %3929 = vmatpush1.msra.mxu0 0.0
  %3930 = vmatprep.subr.mxu0 0.0
  %3931 = vmatpush1.msra.mxu0 0.0
  %3932 = vmatprep.subr.mxu0 0.0
  %3933 = vmatpush1.msra.mxu0 0.0
  %3934 = vmatprep.subr.mxu0 0.0
  %3935 = vmatpush1.msra.mxu0 0.0
  %3936 = vmatprep.subr.mxu0 0.0
  %3937 = vmatpush1.msra.mxu0 0.0
  %3938 = vmatprep.subr.mxu0 0.0
  %3939 = vmatpush1.msra.mxu0 0.0
  %3940 = vmatprep.subr.mxu0 0.0
  %3941 = vmatpush1.msra.mxu0 0.0
  %3942 = vmatprep.subr.mxu0 0.0
  %3943 = vmatpush1.msra.mxu0 0.0
  %3944 = vmatprep.subr.mxu0 0.0
  %3945 = vmatpush1.msra.mxu0 0.0
  %3946 = vmatprep.subr.mxu0 0.0
  %3947 = vmatpush1.msra.mxu0 0.0
  %3948 = vmatprep.subr.mxu0 0.0
  %3949 = vmatpush1.msra.mxu0 0.0
  %3950 = vmatprep.subr.mxu0 0.0
  %3951 = vmatpush1.msra.mxu0 %v3918
  %3952 = vmatprep.subr.mxu0 0.0
  %3953 = vmatpush2.msra.mxu0 0.0
  %3954 = vmatprep.subr.mxu0 0.0
  %3955 = vmatpush2.msra.mxu0 0.0
  %3956 = vmatprep.subr.mxu0 0.0
  %3957 = vmatpush2.msra.mxu0 0.0
  %3958 = vmatprep.subr.mxu0 0.0
  %3959 = vmatpush2.msra.mxu0 0.0
  %3960 = vmatprep.subr.mxu0 0.0
  %3961 = vmatpush2.msra.mxu0 0.0
  %3962 = vmatprep.subr.mxu0 0.0
  %3963 = vmatpush2.msra.mxu0 0.0
  %3964 = vmatprep.subr.mxu0 0.0
  %3965 = vmatpush2.msra.mxu0 0.0
  %3966 = vmatprep.subr.mxu0 0.0
  %3967 = vmatpush2.msra.mxu0 0.0
  %3968 = vmatprep.subr.mxu0 0.0
  %3969 = vmatpush2.msra.mxu0 0.0
  %3970 = vmatprep.subr.mxu0 0.0
  %3971 = vmatpush2.msra.mxu0 0.0
  %3972 = vmatprep.subr.mxu0 0.0
  %3973 = vmatpush2.msra.mxu0 0.0
  %3974 = vmatprep.subr.mxu0 0.0
  %3975 = vmatpush2.msra.mxu0 0.0
  %3976 = vmatprep.subr.mxu0 0.0
  %3977 = vmatpush2.msra.mxu0 0.0
  %3978 = vmatprep.subr.mxu0 0.0
  %3979 = vmatpush2.msra.mxu0 0.0
  %3980 = vmatprep.subr.mxu0 0.0
  %3981 = vmatpush2.msra.mxu0 0.0
  %3982 = vmatprep.subr.mxu0 0.0
  %3983 = vmatpush2.msra.mxu0 0.0
  %3984 = vmatprep.mubr.f32.mxu0 0.0
  %3985 = vmatmul.mubr.f32.gmra.mxu0 %v3810
  %v3986 = vpop.f32.mrf.mxu0
  %v3987 = vadd.f32 0.0, %v3986
  %v3988 = vpop.f32.mrf.mxu0
  %3989 = vmatprep.mubr.f32.mxu0 0.0
  %3990 = vmatmul.mubr.f32.gmra.mxu0 %v3813
  %v3991 = vpop.f32.mrf.mxu0
  %v3992 = vadd.f32 0.0, %v3991
  %v3993 = vpop.f32.mrf.mxu0
  %3994 = vmatprep.mubr.f32.mxu0 0.0
  %3995 = vmatmul.mubr.f32.gmra.mxu0 %v3816
  %v3996 = vpop.f32.mrf.mxu0
  %v3997 = vadd.f32 0.0, %v3996
  %v3998 = vpop.f32.mrf.mxu0
  %3999 = vmatprep.mubr.f32.mxu0 0.0
  %4000 = vmatmul.mubr.f32.gmra.mxu0 %v3819
  %v4001 = vpop.f32.mrf.mxu0
  %v4002 = vadd.f32 0.0, %v4001
  %v4003 = vpop.f32.mrf.mxu0
  %4004 = vmatprep.mubr.f32.mxu0 0.0
  %4005 = vmatmul.mubr.f32.gmra.mxu0 %v3822
  %v4006 = vpop.f32.mrf.mxu0
  %v4007 = vadd.f32 0.0, %v4006
  %v4008 = vpop.f32.mrf.mxu0
  %4009 = vmatprep.mubr.f32.mxu0 0.0
  %4010 = vmatmul.mubr.f32.gmra.mxu0 %v3825
  %v4011 = vpop.f32.mrf.mxu0
  %v4012 = vadd.f32 0.0, %v4011
  %v4013 = vpop.f32.mrf.mxu0
  %4014 = vmatprep.mubr.f32.mxu0 0.0
  %4015 = vmatmul.mubr.f32.gmra.mxu0 %v3828
  %v4016 = vpop.f32.mrf.mxu0
  %v4017 = vadd.f32 0.0, %v4016
  %v4018 = vpop.f32.mrf.mxu0
  %4019 = vmatprep.mubr.f32.mxu0 0.0
  %4020 = vmatmul.mubr.f32.gmra.mxu0 %v3831
  %v4021 = vpop.f32.mrf.mxu0
  %v4022 = vadd.f32 0.0, %v4021
  %v4023 = vpop.f32.mrf.mxu0
  %4024 = vmatprep.mubr.f32.mxu0 0.0
  %4025 = vmatmul.mubr.f32.gmra.mxu0 %v3834
  %v4026 = vpop.f32.mrf.mxu0
  %v4027 = vadd.f32 0.0, %v4026
  %v4028 = vpop.f32.mrf.mxu0
  %4029 = vmatprep.mubr.f32.mxu0 0.0
  %4030 = vmatmul.mubr.f32.gmra.mxu0 %v3837
  %v4031 = vpop.f32.mrf.mxu0
  %v4032 = vadd.f32 0.0, %v4031
  %v4033 = vpop.f32.mrf.mxu0
  %4034 = vmatprep.mubr.f32.mxu0 0.0
  %4035 = vmatmul.mubr.f32.gmra.mxu0 %v3840
  %v4036 = vpop.f32.mrf.mxu0
  %v4037 = vadd.f32 0.0, %v4036
  %v4038 = vpop.f32.mrf.mxu0
  %4039 = vmatprep.mubr.f32.mxu0 0.0
  %4040 = vmatmul.mubr.f32.gmra.mxu0 %v3843
  %v4041 = vpop.f32.mrf.mxu0
  %v4042 = vadd.f32 0.0, %v4041
  %v4043 = vpop.f32.mrf.mxu0
  %4044 = vmatprep.mubr.f32.mxu0 0.0
  %4045 = vmatmul.mubr.f32.gmra.mxu0 %v3846
  %v4046 = vpop.f32.mrf.mxu0
  %v4047 = vadd.f32 0.0, %v4046
  %v4048 = vpop.f32.mrf.mxu0
  %4049 = vmatprep.mubr.f32.mxu0 0.0
  %4050 = vmatmul.mubr.f32.gmra.mxu0 %v3849
  %v4051 = vpop.f32.mrf.mxu0
  %v4052 = vadd.f32 0.0, %v4051
  %v4053 = vpop.f32.mrf.mxu0
  %4054 = vmatprep.mubr.f32.mxu0 0.0
  %4055 = vmatmul.mubr.f32.gmra.mxu0 %v3852
  %v4056 = vpop.f32.mrf.mxu0
  %v4057 = vadd.f32 0.0, %v4056
  %v4058 = vpop.f32.mrf.mxu0
  %4059 = vmatprep.mubr.f32.mxu0 0.0
  %4060 = vmatmul.mubr.f32.gmra.mxu0 %v3855
  %v4061 = vpop.f32.mrf.mxu0
  %v4062 = vadd.f32 0.0, %v4061
  %v4063 = vpop.f32.mrf.mxu0
  %4064 = vmatprep.mubr.f32.mxu0 0.0
  %4065 = vmatmul.mubr.f32.gmra.mxu0 %v3858
  %v4066 = vpop.f32.mrf.mxu0
  %v4067 = vadd.f32 0.0, %v4066
  %v4068 = vpop.f32.mrf.mxu0
  %4069 = vmatprep.mubr.f32.mxu0 0.0
  %4070 = vmatmul.mubr.f32.gmra.mxu0 %v3861
  %v4071 = vpop.f32.mrf.mxu0
  %v4072 = vadd.f32 0.0, %v4071
  %v4073 = vpop.f32.mrf.mxu0
  %4074 = vmatprep.mubr.f32.mxu0 0.0
  %4075 = vmatmul.mubr.f32.gmra.mxu0 %v3864
  %v4076 = vpop.f32.mrf.mxu0
  %v4077 = vadd.f32 0.0, %v4076
  %v4078 = vpop.f32.mrf.mxu0
  %4079 = vmatprep.mubr.f32.mxu0 0.0
  %4080 = vmatmul.mubr.f32.gmra.mxu0 %v3867
  %v4081 = vpop.f32.mrf.mxu0
  %v4082 = vadd.f32 0.0, %v4081
  %v4083 = vpop.f32.mrf.mxu0
  %4084 = vmatprep.mubr.f32.mxu0 0.0
  %4085 = vmatmul.mubr.f32.gmra.mxu0 %v3870
  %v4086 = vpop.f32.mrf.mxu0
  %v4087 = vadd.f32 0.0, %v4086
  %v4088 = vpop.f32.mrf.mxu0
  %4089 = vmatprep.mubr.f32.mxu0 0.0
  %4090 = vmatmul.mubr.f32.gmra.mxu0 %v3873
  %v4091 = vpop.f32.mrf.mxu0
  %v4092 = vadd.f32 0.0, %v4091
  %v4093 = vpop.f32.mrf.mxu0
  %4094 = vmatprep.mubr.f32.mxu0 0.0
  %4095 = vmatmul.mubr.f32.gmra.mxu0 %v3876
  %v4096 = vpop.f32.mrf.mxu0
  %v4097 = vadd.f32 0.0, %v4096
  %v4098 = vpop.f32.mrf.mxu0
  %4099 = vmatprep.mubr.f32.mxu0 0.0
  %4100 = vmatmul.mubr.f32.gmra.mxu0 %v3879
  %v4101 = vpop.f32.mrf.mxu0
  %v4102 = vadd.f32 0.0, %v4101
  %v4103 = vpop.f32.mrf.mxu0
  %4104 = vmatprep.mubr.f32.mxu0 0.0
  %4105 = vmatmul.mubr.f32.gmra.mxu0 %v3882
  %v4106 = vpop.f32.mrf.mxu0
  %v4107 = vadd.f32 0.0, %v4106
  %v4108 = vpop.f32.mrf.mxu0
  %4109 = vmatprep.mubr.f32.mxu0 0.0
  %4110 = vmatmul.mubr.f32.gmra.mxu0 %v3885
  %v4111 = vpop.f32.mrf.mxu0
  %v4112 = vadd.f32 0.0, %v4111
  %v4113 = vpop.f32.mrf.mxu0
  %4114 = vmatprep.mubr.f32.mxu0 0.0
  %4115 = vmatmul.mubr.f32.gmra.mxu0 %v3888
  %v4116 = vpop.f32.mrf.mxu0
  %v4117 = vadd.f32 0.0, %v4116
  %v4118 = vpop.f32.mrf.mxu0
  %4119 = vmatprep.mubr.f32.mxu0 0.0
  %4120 = vmatmul.mubr.f32.gmra.mxu0 %v3891
  %v4121 = vpop.f32.mrf.mxu0
  %v4122 = vadd.f32 0.0, %v4121
  %v4123 = vpop.f32.mrf.mxu0
  %4124 = vmatprep.mubr.f32.mxu0 0.0
  %4125 = vmatmul.mubr.f32.gmra.mxu0 %v3894
  %v4126 = vpop.f32.mrf.mxu0
  %v4127 = vadd.f32 0.0, %v4126
  %v4128 = vpop.f32.mrf.mxu0
  %4129 = vmatprep.mubr.f32.mxu0 0.0
  %4130 = vmatmul.mubr.f32.gmra.mxu0 %v3897
  %v4131 = vpop.f32.mrf.mxu0
  %v4132 = vadd.f32 0.0, %v4131
  %v4133 = vpop.f32.mrf.mxu0
  %4134 = vmatprep.mubr.f32.mxu0 0.0
  %4135 = vmatmul.mubr.f32.gmra.mxu0 %v3900
  %v4136 = vpop.f32.mrf.mxu0
  %v4137 = vadd.f32 0.0, %v4136
  %v4138 = vpop.f32.mrf.mxu0
  %4139 = vmatprep.mubr.f32.mxu0 0.0
  %4140 = vmatmul.mubr.f32.gmra.mxu0 %v3903
  %v4141 = vpop.f32.mrf.mxu0
  %v4142 = vadd.f32 0.0, %v4141
  %v4143 = vpop.f32.mrf.mxu0
  %4144 = vmatprep.mubr.f32.mxu0 0.0
  %4145 = vmatmul.mubr.f32.gmra.mxu0 %v3906
  %v4146 = vpop.f32.mrf.mxu0
  %v4147 = vadd.f32 0.0, %v4146
  %v4148 = vpop.f32.mrf.mxu0
  %4149 = vmatprep.mubr.f32.mxu0 0.0
  %4150 = vmatmul.mubr.f32.gmra.mxu0 %v3909
  %v4151 = vpop.f32.mrf.mxu0
  %v4152 = vadd.f32 0.0, %v4151
  %v4153 = vpop.f32.mrf.mxu0
  %4154 = vmatprep.mubr.f32.mxu0 0.0
  %4155 = vmatmul.mubr.f32.gmra.mxu0 %v3912
  %v4156 = vpop.f32.mrf.mxu0
  %v4157 = vadd.f32 0.0, %v4156
  %v4158 = vpop.f32.mrf.mxu0
  %4159 = vmatprep.mubr.f32.mxu0 0.0
  %4160 = vmatmul.mubr.f32.gmra.mxu0 %v3915
  %v4161 = vpop.f32.mrf.mxu0
  %v4162 = vadd.f32 0.0, %v4161
  %v4163 = vpop.f32.mrf.mxu0
  %4164 = vdwg.mxu0
  %v4165 = vadd.f32 %v3806, %v3987
  %v4166 = vadd.f32 %v3806, %v3992
  %v4167 = vadd.f32 %v3806, %v3997
  %v4168 = vadd.f32 %v3806, %v4002
  %v4169 = vadd.f32 %v3806, %v4007
  %v4170 = vadd.f32 %v3806, %v4012
  %v4171 = vadd.f32 %v3806, %v4017
  %v4172 = vadd.f32 %v3806, %v4022
  %v4173 = vadd.f32 %v3806, %v4027
  %v4174 = vadd.f32 %v3806, %v4032
  %v4175 = vadd.f32 %v3806, %v4037
  %v4176 = vadd.f32 %v3806, %v4042
  %v4177 = vadd.f32 %v3806, %v4047
  %v4178 = vadd.f32 %v3806, %v4052
  %v4179 = vadd.f32 %v3806, %v4057
  %v4180 = vadd.f32 %v3806, %v4062
  %v4181 = vadd.f32 %v3806, %v4067
  %v4182 = vadd.f32 %v3806, %v4072
  %v4183 = vadd.f32 %v3806, %v4077
  %v4184 = vadd.f32 %v3806, %v4082
  %v4185 = vadd.f32 %v3806, %v4087
  %v4186 = vadd.f32 %v3806, %v4092
  %v4187 = vadd.f32 %v3806, %v4097
  %v4188 = vadd.f32 %v3806, %v4102
  %v4189 = vadd.f32 %v3806, %v4107
  %v4190 = vadd.f32 %v3806, %v4112
  %v4191 = vadd.f32 %v3806, %v4117
  %v4192 = vadd.f32 %v3806, %v4122
  %v4193 = vadd.f32 %v3806, %v4127
  %v4194 = vadd.f32 %v3806, %v4132
  %v4195 = vadd.f32 %v3806, %v4137
  %v4196 = vadd.f32 %v3806, %v4142
  %v4197 = vadd.f32 %v3806, %v4147
  %v4198 = vadd.f32 %v3806, %v4152
  %v4199 = vadd.f32 %v3806, %v4157
  %v4200 = vadd.f32 %v3806, %v4162
  %v4201 = vld [vmem:[%s498] sm:$0xf]
  %v4203 = vrot.slane %v3760, 1
  %v4204 = vrot.slane %v3761, 1
  %v4205 = vsel %vm501, %v4203, %v4204
  %v4206 = vrot.slane %v3762, 1
  %v4207 = vsel %vm501, %v4204, %v4206
  %v4208 = vrot.slane %v3763, 1
  %v4209 = vsel %vm501, %v4206, %v4208
  %v4210 = vrot.slane %v3764, 1
  %v4211 = vsel %vm501, %v4208, %v4210
  %v4212 = vrot.slane %v3765, 1
  %v4213 = vsel %vm501, %v4210, %v4212
  %v4214 = vrot.slane %v3766, 1
  %v4215 = vsel %vm501, %v4212, %v4214
  %v4216 = vrot.slane %v3767, 1
  %v4217 = vsel %vm501, %v4214, %v4216
  %v4218 = vrot.slane %v3768, 1
  %v4219 = vsel %vm501, %v4216, %v4218
  %v4220 = vrot.slane %v3769, 1
  %v4221 = vsel %vm501, %v4218, %v4220
  %v4222 = vrot.slane %v3770, 1
  %v4223 = vsel %vm501, %v4220, %v4222
  %v4224 = vrot.slane %v3771, 1
  %v4225 = vsel %vm501, %v4222, %v4224
  %v4226 = vrot.slane %v3772, 1
  %v4227 = vsel %vm501, %v4224, %v4226
  %v4228 = vrot.slane %v3773, 1
  %v4229 = vsel %vm501, %v4226, %v4228
  %v4230 = vrot.slane %v3774, 1
  %v4231 = vsel %vm501, %v4228, %v4230
  %v4232 = vrot.slane %v3775, 1
  %v4233 = vsel %vm501, %v4230, %v4232
  %v4234 = vrot.slane %v3776, 1
  %v4235 = vsel %vm501, %v4232, %v4234
  %v4236 = vrot.slane %v3777, 1
  %v4237 = vsel %vm501, %v4234, %v4236
  %v4238 = vrot.slane %v3778, 1
  %v4239 = vsel %vm501, %v4236, %v4238
  %v4240 = vrot.slane %v3779, 1
  %v4241 = vsel %vm501, %v4238, %v4240
  %v4242 = vrot.slane %v3780, 1
  %v4243 = vsel %vm501, %v4240, %v4242
  %v4244 = vrot.slane %v3781, 1
  %v4245 = vsel %vm501, %v4242, %v4244
  %v4246 = vrot.slane %v3782, 1
  %v4247 = vsel %vm501, %v4244, %v4246
  %v4248 = vrot.slane %v3783, 1
  %v4249 = vsel %vm501, %v4246, %v4248
  %v4250 = vrot.slane %v3784, 1
  %v4251 = vsel %vm501, %v4248, %v4250
  %v4252 = vrot.slane %v3785, 1
  %v4253 = vsel %vm501, %v4250, %v4252
  %v4254 = vrot.slane %v3786, 1
  %v4255 = vsel %vm501, %v4252, %v4254
  %v4256 = vrot.slane %v3787, 1
  %v4257 = vsel %vm501, %v4254, %v4256
  %v4258 = vrot.slane %v3788, 1
  %v4259 = vsel %vm501, %v4256, %v4258
  %v4260 = vrot.slane %v3789, 1
  %v4261 = vsel %vm501, %v4258, %v4260
  %v4262 = vrot.slane %v3790, 1
  %v4263 = vsel %vm501, %v4260, %v4262
  %v4264 = vrot.slane %v3791, 1
  %v4265 = vsel %vm501, %v4262, %v4264
  %v4266 = vrot.slane %v3792, 1
  %v4267 = vsel %vm501, %v4264, %v4266
  %v4268 = vrot.slane %v3793, 1
  %v4269 = vsel %vm501, %v4266, %v4268
  %v4270 = vrot.slane %v3794, 1
  %v4271 = vsel %vm501, %v4268, %v4270
  %v4272 = vrot.slane %v3795, 1
  %v4273 = vsel %vm501, %v4270, %v4272
  %v4274 = vrot.slane %v3796, 1
  %v4275 = vsel %vm501, %v4272, %v4274
  %v4276 = vsel %vm104, %v4205, 0
  %v4278 = vsel %vm104, %v4207, 0
  %v4280 = vsel %vm104, %v4209, 0
  %v4282 = vsel %vm104, %v4211, 0
  %v4284 = vsel %vm104, %v4213, 0
  %v4286 = vsel %vm104, %v4215, 0
  %v4288 = vsel %vm104, %v4217, 0
  %v4290 = vsel %vm104, %v4219, 0
  %v4292 = vsel %vm104, %v4221, 0
  %v4294 = vsel %vm104, %v4223, 0
  %v4296 = vsel %vm104, %v4225, 0
  %v4298 = vsel %vm104, %v4227, 0
  %v4300 = vsel %vm104, %v4229, 0
  %v4302 = vsel %vm104, %v4231, 0
  %v4304 = vsel %vm104, %v4233, 0
  %v4306 = vsel %vm104, %v4235, 0
  %v4308 = vsel %vm104, %v4237, 0
  %v4310 = vsel %vm104, %v4239, 0
  %v4312 = vsel %vm104, %v4241, 0
  %v4314 = vsel %vm104, %v4243, 0
  %v4316 = vsel %vm104, %v4245, 0
  %v4318 = vsel %vm104, %v4247, 0
  %v4320 = vsel %vm104, %v4249, 0
  %v4322 = vsel %vm104, %v4251, 0
  %v4324 = vsel %vm104, %v4253, 0
  %v4326 = vsel %vm104, %v4255, 0
  %v4328 = vsel %vm104, %v4257, 0
  %v4330 = vsel %vm104, %v4259, 0
  %v4332 = vsel %vm104, %v4261, 0
  %v4334 = vsel %vm104, %v4263, 0
  %v4336 = vsel %vm104, %v4265, 0
  %v4338 = vsel %vm104, %v4267, 0
  %v4340 = vsel %vm104, %v4269, 0
  %v4342 = vsel %vm104, %v4271, 0
  %v4344 = vsel %vm104, %v4273, 0
  %v4346 = vsel %vm104, %v4275, 0
  %v4349 = vsel %vm213, %v4201, 0
  %4351 = vmatprep.subr.mxu0 0.0
  %4352 = vmatpush1.msra.mxu0 0.0
  %4353 = vmatprep.subr.mxu0 0.0
  %4354 = vmatpush1.msra.mxu0 0.0
  %4355 = vmatprep.subr.mxu0 0.0
  %4356 = vmatpush1.msra.mxu0 0.0
  %4357 = vmatprep.subr.mxu0 0.0
  %4358 = vmatpush1.msra.mxu0 0.0
  %4359 = vmatprep.subr.mxu0 0.0
  %4360 = vmatpush1.msra.mxu0 0.0
  %4361 = vmatprep.subr.mxu0 0.0
  %4362 = vmatpush1.msra.mxu0 0.0
  %4363 = vmatprep.subr.mxu0 0.0
  %4364 = vmatpush1.msra.mxu0 0.0
  %4365 = vmatprep.subr.mxu0 0.0
  %4366 = vmatpush1.msra.mxu0 0.0
  %4367 = vmatprep.subr.mxu0 0.0
  %4368 = vmatpush1.msra.mxu0 0.0
  %4369 = vmatprep.subr.mxu0 0.0
  %4370 = vmatpush1.msra.mxu0 0.0
  %4371 = vmatprep.subr.mxu0 0.0
  %4372 = vmatpush1.msra.mxu0 0.0
  %4373 = vmatprep.subr.mxu0 0.0
  %4374 = vmatpush1.msra.mxu0 0.0
  %4375 = vmatprep.subr.mxu0 0.0
  %4376 = vmatpush1.msra.mxu0 0.0
  %4377 = vmatprep.subr.mxu0 0.0
  %4378 = vmatpush1.msra.mxu0 0.0
  %4379 = vmatprep.subr.mxu0 0.0
  %4380 = vmatpush1.msra.mxu0 0.0
  %4381 = vmatprep.subr.mxu0 0.0
  %4382 = vmatpush1.msra.mxu0 %v4349
  %4383 = vmatprep.subr.mxu0 0.0
  %4384 = vmatpush2.msra.mxu0 0.0
  %4385 = vmatprep.subr.mxu0 0.0
  %4386 = vmatpush2.msra.mxu0 0.0
  %4387 = vmatprep.subr.mxu0 0.0
  %4388 = vmatpush2.msra.mxu0 0.0
  %4389 = vmatprep.subr.mxu0 0.0
  %4390 = vmatpush2.msra.mxu0 0.0
  %4391 = vmatprep.subr.mxu0 0.0
  %4392 = vmatpush2.msra.mxu0 0.0
  %4393 = vmatprep.subr.mxu0 0.0
  %4394 = vmatpush2.msra.mxu0 0.0
  %4395 = vmatprep.subr.mxu0 0.0
  %4396 = vmatpush2.msra.mxu0 0.0
  %4397 = vmatprep.subr.mxu0 0.0
  %4398 = vmatpush2.msra.mxu0 0.0
  %4399 = vmatprep.subr.mxu0 0.0
  %4400 = vmatpush2.msra.mxu0 0.0
  %4401 = vmatprep.subr.mxu0 0.0
  %4402 = vmatpush2.msra.mxu0 0.0
  %4403 = vmatprep.subr.mxu0 0.0
  %4404 = vmatpush2.msra.mxu0 0.0
  %4405 = vmatprep.subr.mxu0 0.0
  %4406 = vmatpush2.msra.mxu0 0.0
  %4407 = vmatprep.subr.mxu0 0.0
  %4408 = vmatpush2.msra.mxu0 0.0
  %4409 = vmatprep.subr.mxu0 0.0
  %4410 = vmatpush2.msra.mxu0 0.0
  %4411 = vmatprep.subr.mxu0 0.0
  %4412 = vmatpush2.msra.mxu0 0.0
  %4413 = vmatprep.subr.mxu0 0.0
  %4414 = vmatpush2.msra.mxu0 0.0
  %4415 = vmatprep.mubr.f32.mxu0 0.0
  %4416 = vmatmul.mubr.f32.gmra.mxu0 %v4276
  %v4417 = vpop.f32.mrf.mxu0
  %v4418 = vadd.f32 0.0, %v4417
  %v4419 = vpop.f32.mrf.mxu0
  %4420 = vmatprep.mubr.f32.mxu0 0.0
  %4421 = vmatmul.mubr.f32.gmra.mxu0 %v4278
  %v4422 = vpop.f32.mrf.mxu0
  %v4423 = vadd.f32 0.0, %v4422
  %v4424 = vpop.f32.mrf.mxu0
  %4425 = vmatprep.mubr.f32.mxu0 0.0
  %4426 = vmatmul.mubr.f32.gmra.mxu0 %v4280
  %v4427 = vpop.f32.mrf.mxu0
  %v4428 = vadd.f32 0.0, %v4427
  %v4429 = vpop.f32.mrf.mxu0
  %4430 = vmatprep.mubr.f32.mxu0 0.0
  %4431 = vmatmul.mubr.f32.gmra.mxu0 %v4282
  %v4432 = vpop.f32.mrf.mxu0
  %v4433 = vadd.f32 0.0, %v4432
  %v4434 = vpop.f32.mrf.mxu0
  %4435 = vmatprep.mubr.f32.mxu0 0.0
  %4436 = vmatmul.mubr.f32.gmra.mxu0 %v4284
  %v4437 = vpop.f32.mrf.mxu0
  %v4438 = vadd.f32 0.0, %v4437
  %v4439 = vpop.f32.mrf.mxu0
  %4440 = vmatprep.mubr.f32.mxu0 0.0
  %4441 = vmatmul.mubr.f32.gmra.mxu0 %v4286
  %v4442 = vpop.f32.mrf.mxu0
  %v4443 = vadd.f32 0.0, %v4442
  %v4444 = vpop.f32.mrf.mxu0
  %4445 = vmatprep.mubr.f32.mxu0 0.0
  %4446 = vmatmul.mubr.f32.gmra.mxu0 %v4288
  %v4447 = vpop.f32.mrf.mxu0
  %v4448 = vadd.f32 0.0, %v4447
  %v4449 = vpop.f32.mrf.mxu0
  %4450 = vmatprep.mubr.f32.mxu0 0.0
  %4451 = vmatmul.mubr.f32.gmra.mxu0 %v4290
  %v4452 = vpop.f32.mrf.mxu0
  %v4453 = vadd.f32 0.0, %v4452
  %v4454 = vpop.f32.mrf.mxu0
  %4455 = vmatprep.mubr.f32.mxu0 0.0
  %4456 = vmatmul.mubr.f32.gmra.mxu0 %v4292
  %v4457 = vpop.f32.mrf.mxu0
  %v4458 = vadd.f32 0.0, %v4457
  %v4459 = vpop.f32.mrf.mxu0
  %4460 = vmatprep.mubr.f32.mxu0 0.0
  %4461 = vmatmul.mubr.f32.gmra.mxu0 %v4294
  %v4462 = vpop.f32.mrf.mxu0
  %v4463 = vadd.f32 0.0, %v4462
  %v4464 = vpop.f32.mrf.mxu0
  %4465 = vmatprep.mubr.f32.mxu0 0.0
  %4466 = vmatmul.mubr.f32.gmra.mxu0 %v4296
  %v4467 = vpop.f32.mrf.mxu0
  %v4468 = vadd.f32 0.0, %v4467
  %v4469 = vpop.f32.mrf.mxu0
  %4470 = vmatprep.mubr.f32.mxu0 0.0
  %4471 = vmatmul.mubr.f32.gmra.mxu0 %v4298
  %v4472 = vpop.f32.mrf.mxu0
  %v4473 = vadd.f32 0.0, %v4472
  %v4474 = vpop.f32.mrf.mxu0
  %4475 = vmatprep.mubr.f32.mxu0 0.0
  %4476 = vmatmul.mubr.f32.gmra.mxu0 %v4300
  %v4477 = vpop.f32.mrf.mxu0
  %v4478 = vadd.f32 0.0, %v4477
  %v4479 = vpop.f32.mrf.mxu0
  %4480 = vmatprep.mubr.f32.mxu0 0.0
  %4481 = vmatmul.mubr.f32.gmra.mxu0 %v4302
  %v4482 = vpop.f32.mrf.mxu0
  %v4483 = vadd.f32 0.0, %v4482
  %v4484 = vpop.f32.mrf.mxu0
  %4485 = vmatprep.mubr.f32.mxu0 0.0
  %4486 = vmatmul.mubr.f32.gmra.mxu0 %v4304
  %v4487 = vpop.f32.mrf.mxu0
  %v4488 = vadd.f32 0.0, %v4487
  %v4489 = vpop.f32.mrf.mxu0
  %4490 = vmatprep.mubr.f32.mxu0 0.0
  %4491 = vmatmul.mubr.f32.gmra.mxu0 %v4306
  %v4492 = vpop.f32.mrf.mxu0
  %v4493 = vadd.f32 0.0, %v4492
  %v4494 = vpop.f32.mrf.mxu0
  %4495 = vmatprep.mubr.f32.mxu0 0.0
  %4496 = vmatmul.mubr.f32.gmra.mxu0 %v4308
  %v4497 = vpop.f32.mrf.mxu0
  %v4498 = vadd.f32 0.0, %v4497
  %v4499 = vpop.f32.mrf.mxu0
  %4500 = vmatprep.mubr.f32.mxu0 0.0
  %4501 = vmatmul.mubr.f32.gmra.mxu0 %v4310
  %v4502 = vpop.f32.mrf.mxu0
  %v4503 = vadd.f32 0.0, %v4502
  %v4504 = vpop.f32.mrf.mxu0
  %4505 = vmatprep.mubr.f32.mxu0 0.0
  %4506 = vmatmul.mubr.f32.gmra.mxu0 %v4312
  %v4507 = vpop.f32.mrf.mxu0
  %v4508 = vadd.f32 0.0, %v4507
  %v4509 = vpop.f32.mrf.mxu0
  %4510 = vmatprep.mubr.f32.mxu0 0.0
  %4511 = vmatmul.mubr.f32.gmra.mxu0 %v4314
  %v4512 = vpop.f32.mrf.mxu0
  %v4513 = vadd.f32 0.0, %v4512
  %v4514 = vpop.f32.mrf.mxu0
  %4515 = vmatprep.mubr.f32.mxu0 0.0
  %4516 = vmatmul.mubr.f32.gmra.mxu0 %v4316
  %v4517 = vpop.f32.mrf.mxu0
  %v4518 = vadd.f32 0.0, %v4517
  %v4519 = vpop.f32.mrf.mxu0
  %4520 = vmatprep.mubr.f32.mxu0 0.0
  %4521 = vmatmul.mubr.f32.gmra.mxu0 %v4318
  %v4522 = vpop.f32.mrf.mxu0
  %v4523 = vadd.f32 0.0, %v4522
  %v4524 = vpop.f32.mrf.mxu0
  %4525 = vmatprep.mubr.f32.mxu0 0.0
  %4526 = vmatmul.mubr.f32.gmra.mxu0 %v4320
  %v4527 = vpop.f32.mrf.mxu0
  %v4528 = vadd.f32 0.0, %v4527
  %v4529 = vpop.f32.mrf.mxu0
  %4530 = vmatprep.mubr.f32.mxu0 0.0
  %4531 = vmatmul.mubr.f32.gmra.mxu0 %v4322
  %v4532 = vpop.f32.mrf.mxu0
  %v4533 = vadd.f32 0.0, %v4532
  %v4534 = vpop.f32.mrf.mxu0
  %4535 = vmatprep.mubr.f32.mxu0 0.0
  %4536 = vmatmul.mubr.f32.gmra.mxu0 %v4324
  %v4537 = vpop.f32.mrf.mxu0
  %v4538 = vadd.f32 0.0, %v4537
  %v4539 = vpop.f32.mrf.mxu0
  %4540 = vmatprep.mubr.f32.mxu0 0.0
  %4541 = vmatmul.mubr.f32.gmra.mxu0 %v4326
  %v4542 = vpop.f32.mrf.mxu0
  %v4543 = vadd.f32 0.0, %v4542
  %v4544 = vpop.f32.mrf.mxu0
  %4545 = vmatprep.mubr.f32.mxu0 0.0
  %4546 = vmatmul.mubr.f32.gmra.mxu0 %v4328
  %v4547 = vpop.f32.mrf.mxu0
  %v4548 = vadd.f32 0.0, %v4547
  %v4549 = vpop.f32.mrf.mxu0
  %4550 = vmatprep.mubr.f32.mxu0 0.0
  %4551 = vmatmul.mubr.f32.gmra.mxu0 %v4330
  %v4552 = vpop.f32.mrf.mxu0
  %v4553 = vadd.f32 0.0, %v4552
  %v4554 = vpop.f32.mrf.mxu0
  %4555 = vmatprep.mubr.f32.mxu0 0.0
  %4556 = vmatmul.mubr.f32.gmra.mxu0 %v4332
  %v4557 = vpop.f32.mrf.mxu0
  %v4558 = vadd.f32 0.0, %v4557
  %v4559 = vpop.f32.mrf.mxu0
  %4560 = vmatprep.mubr.f32.mxu0 0.0
  %4561 = vmatmul.mubr.f32.gmra.mxu0 %v4334
  %v4562 = vpop.f32.mrf.mxu0
  %v4563 = vadd.f32 0.0, %v4562
  %v4564 = vpop.f32.mrf.mxu0
  %4565 = vmatprep.mubr.f32.mxu0 0.0
  %4566 = vmatmul.mubr.f32.gmra.mxu0 %v4336
  %v4567 = vpop.f32.mrf.mxu0
  %v4568 = vadd.f32 0.0, %v4567
  %v4569 = vpop.f32.mrf.mxu0
  %4570 = vmatprep.mubr.f32.mxu0 0.0
  %4571 = vmatmul.mubr.f32.gmra.mxu0 %v4338
  %v4572 = vpop.f32.mrf.mxu0
  %v4573 = vadd.f32 0.0, %v4572
  %v4574 = vpop.f32.mrf.mxu0
  %4575 = vmatprep.mubr.f32.mxu0 0.0
  %4576 = vmatmul.mubr.f32.gmra.mxu0 %v4340
  %v4577 = vpop.f32.mrf.mxu0
  %v4578 = vadd.f32 0.0, %v4577
  %v4579 = vpop.f32.mrf.mxu0
  %4580 = vmatprep.mubr.f32.mxu0 0.0
  %4581 = vmatmul.mubr.f32.gmra.mxu0 %v4342
  %v4582 = vpop.f32.mrf.mxu0
  %v4583 = vadd.f32 0.0, %v4582
  %v4584 = vpop.f32.mrf.mxu0
  %4585 = vmatprep.mubr.f32.mxu0 0.0
  %4586 = vmatmul.mubr.f32.gmra.mxu0 %v4344
  %v4587 = vpop.f32.mrf.mxu0
  %v4588 = vadd.f32 0.0, %v4587
  %v4589 = vpop.f32.mrf.mxu0
  %4590 = vmatprep.mubr.f32.mxu0 0.0
  %4591 = vmatmul.mubr.f32.gmra.mxu0 %v4346
  %v4592 = vpop.f32.mrf.mxu0
  %v4593 = vadd.f32 0.0, %v4592
  %v4594 = vpop.f32.mrf.mxu0
  %4595 = vdwg.mxu0
  %v4596 = vadd.f32 %v4165, %v4418
  %v4597 = vadd.f32 %v4166, %v4423
  %v4598 = vadd.f32 %v4167, %v4428
  %v4599 = vadd.f32 %v4168, %v4433
  %v4600 = vadd.f32 %v4169, %v4438
  %v4601 = vadd.f32 %v4170, %v4443
  %v4602 = vadd.f32 %v4171, %v4448
  %v4603 = vadd.f32 %v4172, %v4453
  %v4604 = vadd.f32 %v4173, %v4458
  %v4605 = vadd.f32 %v4174, %v4463
  %v4606 = vadd.f32 %v4175, %v4468
  %v4607 = vadd.f32 %v4176, %v4473
  %v4608 = vadd.f32 %v4177, %v4478
  %v4609 = vadd.f32 %v4178, %v4483
  %v4610 = vadd.f32 %v4179, %v4488
  %v4611 = vadd.f32 %v4180, %v4493
  %v4612 = vadd.f32 %v4181, %v4498
  %v4613 = vadd.f32 %v4182, %v4503
  %v4614 = vadd.f32 %v4183, %v4508
  %v4615 = vadd.f32 %v4184, %v4513
  %v4616 = vadd.f32 %v4185, %v4518
  %v4617 = vadd.f32 %v4186, %v4523
  %v4618 = vadd.f32 %v4187, %v4528
  %v4619 = vadd.f32 %v4188, %v4533
  %v4620 = vadd.f32 %v4189, %v4538
  %v4621 = vadd.f32 %v4190, %v4543
  %v4622 = vadd.f32 %v4191, %v4548
  %v4623 = vadd.f32 %v4192, %v4553
  %v4624 = vadd.f32 %v4193, %v4558
  %v4625 = vadd.f32 %v4194, %v4563
  %v4626 = vadd.f32 %v4195, %v4568
  %v4627 = vadd.f32 %v4196, %v4573
  %v4628 = vadd.f32 %v4197, %v4578
  %v4629 = vadd.f32 %v4198, %v4583
  %v4630 = vadd.f32 %v4199, %v4588
  %v4631 = vadd.f32 %v4200, %v4593
  %v4632 = vld [vmem:[%s931] sm:$0xf]
  %v4633 = vrot.slane %v3760, 2
  %v4634 = vrot.slane %v3761, 2
  %v4635 = vsel %vm933, %v4633, %v4634
  %v4636 = vrot.slane %v3762, 2
  %v4637 = vsel %vm933, %v4634, %v4636
  %v4638 = vrot.slane %v3763, 2
  %v4639 = vsel %vm933, %v4636, %v4638
  %v4640 = vrot.slane %v3764, 2
  %v4641 = vsel %vm933, %v4638, %v4640
  %v4642 = vrot.slane %v3765, 2
  %v4643 = vsel %vm933, %v4640, %v4642
  %v4644 = vrot.slane %v3766, 2
  %v4645 = vsel %vm933, %v4642, %v4644
  %v4646 = vrot.slane %v3767, 2
  %v4647 = vsel %vm933, %v4644, %v4646
  %v4648 = vrot.slane %v3768, 2
  %v4649 = vsel %vm933, %v4646, %v4648
  %v4650 = vrot.slane %v3769, 2
  %v4651 = vsel %vm933, %v4648, %v4650
  %v4652 = vrot.slane %v3770, 2
  %v4653 = vsel %vm933, %v4650, %v4652
  %v4654 = vrot.slane %v3771, 2
  %v4655 = vsel %vm933, %v4652, %v4654
  %v4656 = vrot.slane %v3772, 2
  %v4657 = vsel %vm933, %v4654, %v4656
  %v4658 = vrot.slane %v3773, 2
  %v4659 = vsel %vm933, %v4656, %v4658
  %v4660 = vrot.slane %v3774, 2
  %v4661 = vsel %vm933, %v4658, %v4660
  %v4662 = vrot.slane %v3775, 2
  %v4663 = vsel %vm933, %v4660, %v4662
  %v4664 = vrot.slane %v3776, 2
  %v4665 = vsel %vm933, %v4662, %v4664
  %v4666 = vrot.slane %v3777, 2
  %v4667 = vsel %vm933, %v4664, %v4666
  %v4668 = vrot.slane %v3778, 2
  %v4669 = vsel %vm933, %v4666, %v4668
  %v4670 = vrot.slane %v3779, 2
  %v4671 = vsel %vm933, %v4668, %v4670
  %v4672 = vrot.slane %v3780, 2
  %v4673 = vsel %vm933, %v4670, %v4672
  %v4674 = vrot.slane %v3781, 2
  %v4675 = vsel %vm933, %v4672, %v4674
  %v4676 = vrot.slane %v3782, 2
  %v4677 = vsel %vm933, %v4674, %v4676
  %v4678 = vrot.slane %v3783, 2
  %v4679 = vsel %vm933, %v4676, %v4678
  %v4680 = vrot.slane %v3784, 2
  %v4681 = vsel %vm933, %v4678, %v4680
  %v4682 = vrot.slane %v3785, 2
  %v4683 = vsel %vm933, %v4680, %v4682
  %v4684 = vrot.slane %v3786, 2
  %v4685 = vsel %vm933, %v4682, %v4684
  %v4686 = vrot.slane %v3787, 2
  %v4687 = vsel %vm933, %v4684, %v4686
  %v4688 = vrot.slane %v3788, 2
  %v4689 = vsel %vm933, %v4686, %v4688
  %v4690 = vrot.slane %v3789, 2
  %v4691 = vsel %vm933, %v4688, %v4690
  %v4692 = vrot.slane %v3790, 2
  %v4693 = vsel %vm933, %v4690, %v4692
  %v4694 = vrot.slane %v3791, 2
  %v4695 = vsel %vm933, %v4692, %v4694
  %v4696 = vrot.slane %v3792, 2
  %v4697 = vsel %vm933, %v4694, %v4696
  %v4698 = vrot.slane %v3793, 2
  %v4699 = vsel %vm933, %v4696, %v4698
  %v4700 = vrot.slane %v3794, 2
  %v4701 = vsel %vm933, %v4698, %v4700
  %v4702 = vrot.slane %v3795, 2
  %v4703 = vsel %vm933, %v4700, %v4702
  %v4704 = vrot.slane %v3796, 2
  %v4705 = vsel %vm933, %v4702, %v4704
  %v4706 = vsel %vm104, %v4635, 0
  %v4708 = vsel %vm104, %v4637, 0
  %v4710 = vsel %vm104, %v4639, 0
  %v4712 = vsel %vm104, %v4641, 0
  %v4714 = vsel %vm104, %v4643, 0
  %v4716 = vsel %vm104, %v4645, 0
  %v4718 = vsel %vm104, %v4647, 0
  %v4720 = vsel %vm104, %v4649, 0
  %v4722 = vsel %vm104, %v4651, 0
  %v4724 = vsel %vm104, %v4653, 0
  %v4726 = vsel %vm104, %v4655, 0
  %v4728 = vsel %vm104, %v4657, 0
  %v4730 = vsel %vm104, %v4659, 0
  %v4732 = vsel %vm104, %v4661, 0
  %v4734 = vsel %vm104, %v4663, 0
  %v4736 = vsel %vm104, %v4665, 0
  %v4738 = vsel %vm104, %v4667, 0
  %v4740 = vsel %vm104, %v4669, 0
  %v4742 = vsel %vm104, %v4671, 0
  %v4744 = vsel %vm104, %v4673, 0
  %v4746 = vsel %vm104, %v4675, 0
  %v4748 = vsel %vm104, %v4677, 0
  %v4750 = vsel %vm104, %v4679, 0
  %v4752 = vsel %vm104, %v4681, 0
  %v4754 = vsel %vm104, %v4683, 0
  %v4756 = vsel %vm104, %v4685, 0
  %v4758 = vsel %vm104, %v4687, 0
  %v4760 = vsel %vm104, %v4689, 0
  %v4762 = vsel %vm104, %v4691, 0
  %v4764 = vsel %vm104, %v4693, 0
  %v4766 = vsel %vm104, %v4695, 0
  %v4768 = vsel %vm104, %v4697, 0
  %v4770 = vsel %vm104, %v4699, 0
  %v4772 = vsel %vm104, %v4701, 0
  %v4774 = vsel %vm104, %v4703, 0
  %v4776 = vsel %vm104, %v4705, 0
  %v4779 = vsel %vm213, %v4632, 0
  %4781 = vmatprep.subr.mxu0 0.0
  %4782 = vmatpush1.msra.mxu0 0.0
  %4783 = vmatprep.subr.mxu0 0.0
  %4784 = vmatpush1.msra.mxu0 0.0
  %4785 = vmatprep.subr.mxu0 0.0
  %4786 = vmatpush1.msra.mxu0 0.0
  %4787 = vmatprep.subr.mxu0 0.0
  %4788 = vmatpush1.msra.mxu0 0.0
  %4789 = vmatprep.subr.mxu0 0.0
  %4790 = vmatpush1.msra.mxu0 0.0
  %4791 = vmatprep.subr.mxu0 0.0
  %4792 = vmatpush1.msra.mxu0 0.0
  %4793 = vmatprep.subr.mxu0 0.0
  %4794 = vmatpush1.msra.mxu0 0.0
  %4795 = vmatprep.subr.mxu0 0.0
  %4796 = vmatpush1.msra.mxu0 0.0
  %4797 = vmatprep.subr.mxu0 0.0
  %4798 = vmatpush1.msra.mxu0 0.0
  %4799 = vmatprep.subr.mxu0 0.0
  %4800 = vmatpush1.msra.mxu0 0.0
  %4801 = vmatprep.subr.mxu0 0.0
  %4802 = vmatpush1.msra.mxu0 0.0
  %4803 = vmatprep.subr.mxu0 0.0
  %4804 = vmatpush1.msra.mxu0 0.0
  %4805 = vmatprep.subr.mxu0 0.0
  %4806 = vmatpush1.msra.mxu0 0.0
  %4807 = vmatprep.subr.mxu0 0.0
  %4808 = vmatpush1.msra.mxu0 0.0
  %4809 = vmatprep.subr.mxu0 0.0
  %4810 = vmatpush1.msra.mxu0 0.0
  %4811 = vmatprep.subr.mxu0 0.0
  %4812 = vmatpush1.msra.mxu0 %v4779
  %4813 = vmatprep.subr.mxu0 0.0
  %4814 = vmatpush2.msra.mxu0 0.0
  %4815 = vmatprep.subr.mxu0 0.0
  %4816 = vmatpush2.msra.mxu0 0.0
  %4817 = vmatprep.subr.mxu0 0.0
  %4818 = vmatpush2.msra.mxu0 0.0
  %4819 = vmatprep.subr.mxu0 0.0
  %4820 = vmatpush2.msra.mxu0 0.0
  %4821 = vmatprep.subr.mxu0 0.0
  %4822 = vmatpush2.msra.mxu0 0.0
  %4823 = vmatprep.subr.mxu0 0.0
  %4824 = vmatpush2.msra.mxu0 0.0
  %4825 = vmatprep.subr.mxu0 0.0
  %4826 = vmatpush2.msra.mxu0 0.0
  %4827 = vmatprep.subr.mxu0 0.0
  %4828 = vmatpush2.msra.mxu0 0.0
  %4829 = vmatprep.subr.mxu0 0.0
  %4830 = vmatpush2.msra.mxu0 0.0
  %4831 = vmatprep.subr.mxu0 0.0
  %4832 = vmatpush2.msra.mxu0 0.0
  %4833 = vmatprep.subr.mxu0 0.0
  %4834 = vmatpush2.msra.mxu0 0.0
  %4835 = vmatprep.subr.mxu0 0.0
  %4836 = vmatpush2.msra.mxu0 0.0
  %4837 = vmatprep.subr.mxu0 0.0
  %4838 = vmatpush2.msra.mxu0 0.0
  %4839 = vmatprep.subr.mxu0 0.0
  %4840 = vmatpush2.msra.mxu0 0.0
  %4841 = vmatprep.subr.mxu0 0.0
  %4842 = vmatpush2.msra.mxu0 0.0
  %4843 = vmatprep.subr.mxu0 0.0
  %4844 = vmatpush2.msra.mxu0 0.0
  %4845 = vmatprep.mubr.f32.mxu0 0.0
  %4846 = vmatmul.mubr.f32.gmra.mxu0 %v4706
  %v4847 = vpop.f32.mrf.mxu0
  %v4848 = vadd.f32 0.0, %v4847
  %v4849 = vpop.f32.mrf.mxu0
  %4850 = vmatprep.mubr.f32.mxu0 0.0
  %4851 = vmatmul.mubr.f32.gmra.mxu0 %v4708
  %v4852 = vpop.f32.mrf.mxu0
  %v4853 = vadd.f32 0.0, %v4852
  %v4854 = vpop.f32.mrf.mxu0
  %4855 = vmatprep.mubr.f32.mxu0 0.0
  %4856 = vmatmul.mubr.f32.gmra.mxu0 %v4710
  %v4857 = vpop.f32.mrf.mxu0
  %v4858 = vadd.f32 0.0, %v4857
  %v4859 = vpop.f32.mrf.mxu0
  %4860 = vmatprep.mubr.f32.mxu0 0.0
  %4861 = vmatmul.mubr.f32.gmra.mxu0 %v4712
  %v4862 = vpop.f32.mrf.mxu0
  %v4863 = vadd.f32 0.0, %v4862
  %v4864 = vpop.f32.mrf.mxu0
  %4865 = vmatprep.mubr.f32.mxu0 0.0
  %4866 = vmatmul.mubr.f32.gmra.mxu0 %v4714
  %v4867 = vpop.f32.mrf.mxu0
  %v4868 = vadd.f32 0.0, %v4867
  %v4869 = vpop.f32.mrf.mxu0
  %4870 = vmatprep.mubr.f32.mxu0 0.0
  %4871 = vmatmul.mubr.f32.gmra.mxu0 %v4716
  %v4872 = vpop.f32.mrf.mxu0
  %v4873 = vadd.f32 0.0, %v4872
  %v4874 = vpop.f32.mrf.mxu0
  %4875 = vmatprep.mubr.f32.mxu0 0.0
  %4876 = vmatmul.mubr.f32.gmra.mxu0 %v4718
  %v4877 = vpop.f32.mrf.mxu0
  %v4878 = vadd.f32 0.0, %v4877
  %v4879 = vpop.f32.mrf.mxu0
  %4880 = vmatprep.mubr.f32.mxu0 0.0
  %4881 = vmatmul.mubr.f32.gmra.mxu0 %v4720
  %v4882 = vpop.f32.mrf.mxu0
  %v4883 = vadd.f32 0.0, %v4882
  %v4884 = vpop.f32.mrf.mxu0
  %4885 = vmatprep.mubr.f32.mxu0 0.0
  %4886 = vmatmul.mubr.f32.gmra.mxu0 %v4722
  %v4887 = vpop.f32.mrf.mxu0
  %v4888 = vadd.f32 0.0, %v4887
  %v4889 = vpop.f32.mrf.mxu0
  %4890 = vmatprep.mubr.f32.mxu0 0.0
  %4891 = vmatmul.mubr.f32.gmra.mxu0 %v4724
  %v4892 = vpop.f32.mrf.mxu0
  %v4893 = vadd.f32 0.0, %v4892
  %v4894 = vpop.f32.mrf.mxu0
  %4895 = vmatprep.mubr.f32.mxu0 0.0
  %4896 = vmatmul.mubr.f32.gmra.mxu0 %v4726
  %v4897 = vpop.f32.mrf.mxu0
  %v4898 = vadd.f32 0.0, %v4897
  %v4899 = vpop.f32.mrf.mxu0
  %4900 = vmatprep.mubr.f32.mxu0 0.0
  %4901 = vmatmul.mubr.f32.gmra.mxu0 %v4728
  %v4902 = vpop.f32.mrf.mxu0
  %v4903 = vadd.f32 0.0, %v4902
  %v4904 = vpop.f32.mrf.mxu0
  %4905 = vmatprep.mubr.f32.mxu0 0.0
  %4906 = vmatmul.mubr.f32.gmra.mxu0 %v4730
  %v4907 = vpop.f32.mrf.mxu0
  %v4908 = vadd.f32 0.0, %v4907
  %v4909 = vpop.f32.mrf.mxu0
  %4910 = vmatprep.mubr.f32.mxu0 0.0
  %4911 = vmatmul.mubr.f32.gmra.mxu0 %v4732
  %v4912 = vpop.f32.mrf.mxu0
  %v4913 = vadd.f32 0.0, %v4912
  %v4914 = vpop.f32.mrf.mxu0
  %4915 = vmatprep.mubr.f32.mxu0 0.0
  %4916 = vmatmul.mubr.f32.gmra.mxu0 %v4734
  %v4917 = vpop.f32.mrf.mxu0
  %v4918 = vadd.f32 0.0, %v4917
  %v4919 = vpop.f32.mrf.mxu0
  %4920 = vmatprep.mubr.f32.mxu0 0.0
  %4921 = vmatmul.mubr.f32.gmra.mxu0 %v4736
  %v4922 = vpop.f32.mrf.mxu0
  %v4923 = vadd.f32 0.0, %v4922
  %v4924 = vpop.f32.mrf.mxu0
  %4925 = vmatprep.mubr.f32.mxu0 0.0
  %4926 = vmatmul.mubr.f32.gmra.mxu0 %v4738
  %v4927 = vpop.f32.mrf.mxu0
  %v4928 = vadd.f32 0.0, %v4927
  %v4929 = vpop.f32.mrf.mxu0
  %4930 = vmatprep.mubr.f32.mxu0 0.0
  %4931 = vmatmul.mubr.f32.gmra.mxu0 %v4740
  %v4932 = vpop.f32.mrf.mxu0
  %v4933 = vadd.f32 0.0, %v4932
  %v4934 = vpop.f32.mrf.mxu0
  %4935 = vmatprep.mubr.f32.mxu0 0.0
  %4936 = vmatmul.mubr.f32.gmra.mxu0 %v4742
  %v4937 = vpop.f32.mrf.mxu0
  %v4938 = vadd.f32 0.0, %v4937
  %v4939 = vpop.f32.mrf.mxu0
  %4940 = vmatprep.mubr.f32.mxu0 0.0
  %4941 = vmatmul.mubr.f32.gmra.mxu0 %v4744
  %v4942 = vpop.f32.mrf.mxu0
  %v4943 = vadd.f32 0.0, %v4942
  %v4944 = vpop.f32.mrf.mxu0
  %4945 = vmatprep.mubr.f32.mxu0 0.0
  %4946 = vmatmul.mubr.f32.gmra.mxu0 %v4746
  %v4947 = vpop.f32.mrf.mxu0
  %v4948 = vadd.f32 0.0, %v4947
  %v4949 = vpop.f32.mrf.mxu0
  %4950 = vmatprep.mubr.f32.mxu0 0.0
  %4951 = vmatmul.mubr.f32.gmra.mxu0 %v4748
  %v4952 = vpop.f32.mrf.mxu0
  %v4953 = vadd.f32 0.0, %v4952
  %v4954 = vpop.f32.mrf.mxu0
  %4955 = vmatprep.mubr.f32.mxu0 0.0
  %4956 = vmatmul.mubr.f32.gmra.mxu0 %v4750
  %v4957 = vpop.f32.mrf.mxu0
  %v4958 = vadd.f32 0.0, %v4957
  %v4959 = vpop.f32.mrf.mxu0
  %4960 = vmatprep.mubr.f32.mxu0 0.0
  %4961 = vmatmul.mubr.f32.gmra.mxu0 %v4752
  %v4962 = vpop.f32.mrf.mxu0
  %v4963 = vadd.f32 0.0, %v4962
  %v4964 = vpop.f32.mrf.mxu0
  %4965 = vmatprep.mubr.f32.mxu0 0.0
  %4966 = vmatmul.mubr.f32.gmra.mxu0 %v4754
  %v4967 = vpop.f32.mrf.mxu0
  %v4968 = vadd.f32 0.0, %v4967
  %v4969 = vpop.f32.mrf.mxu0
  %4970 = vmatprep.mubr.f32.mxu0 0.0
  %4971 = vmatmul.mubr.f32.gmra.mxu0 %v4756
  %v4972 = vpop.f32.mrf.mxu0
  %v4973 = vadd.f32 0.0, %v4972
  %v4974 = vpop.f32.mrf.mxu0
  %4975 = vmatprep.mubr.f32.mxu0 0.0
  %4976 = vmatmul.mubr.f32.gmra.mxu0 %v4758
  %v4977 = vpop.f32.mrf.mxu0
  %v4978 = vadd.f32 0.0, %v4977
  %v4979 = vpop.f32.mrf.mxu0
  %4980 = vmatprep.mubr.f32.mxu0 0.0
  %4981 = vmatmul.mubr.f32.gmra.mxu0 %v4760
  %v4982 = vpop.f32.mrf.mxu0
  %v4983 = vadd.f32 0.0, %v4982
  %v4984 = vpop.f32.mrf.mxu0
  %4985 = vmatprep.mubr.f32.mxu0 0.0
  %4986 = vmatmul.mubr.f32.gmra.mxu0 %v4762
  %v4987 = vpop.f32.mrf.mxu0
  %v4988 = vadd.f32 0.0, %v4987
  %v4989 = vpop.f32.mrf.mxu0
  %4990 = vmatprep.mubr.f32.mxu0 0.0
  %4991 = vmatmul.mubr.f32.gmra.mxu0 %v4764
  %v4992 = vpop.f32.mrf.mxu0
  %v4993 = vadd.f32 0.0, %v4992
  %v4994 = vpop.f32.mrf.mxu0
  %4995 = vmatprep.mubr.f32.mxu0 0.0
  %4996 = vmatmul.mubr.f32.gmra.mxu0 %v4766
  %v4997 = vpop.f32.mrf.mxu0
  %v4998 = vadd.f32 0.0, %v4997
  %v4999 = vpop.f32.mrf.mxu0
  %5000 = vmatprep.mubr.f32.mxu0 0.0
  %5001 = vmatmul.mubr.f32.gmra.mxu0 %v4768
  %v5002 = vpop.f32.mrf.mxu0
  %v5003 = vadd.f32 0.0, %v5002
  %v5004 = vpop.f32.mrf.mxu0
  %5005 = vmatprep.mubr.f32.mxu0 0.0
  %5006 = vmatmul.mubr.f32.gmra.mxu0 %v4770
  %v5007 = vpop.f32.mrf.mxu0
  %v5008 = vadd.f32 0.0, %v5007
  %v5009 = vpop.f32.mrf.mxu0
  %5010 = vmatprep.mubr.f32.mxu0 0.0
  %5011 = vmatmul.mubr.f32.gmra.mxu0 %v4772
  %v5012 = vpop.f32.mrf.mxu0
  %v5013 = vadd.f32 0.0, %v5012
  %v5014 = vpop.f32.mrf.mxu0
  %5015 = vmatprep.mubr.f32.mxu0 0.0
  %5016 = vmatmul.mubr.f32.gmra.mxu0 %v4774
  %v5017 = vpop.f32.mrf.mxu0
  %v5018 = vadd.f32 0.0, %v5017
  %v5019 = vpop.f32.mrf.mxu0
  %5020 = vmatprep.mubr.f32.mxu0 0.0
  %5021 = vmatmul.mubr.f32.gmra.mxu0 %v4776
  %v5022 = vpop.f32.mrf.mxu0
  %v5023 = vadd.f32 0.0, %v5022
  %v5024 = vpop.f32.mrf.mxu0
  %5025 = vdwg.mxu0
  %v5026 = vadd.f32 %v4596, %v4848
  %v5027 = vadd.f32 %v4597, %v4853
  %v5028 = vadd.f32 %v4598, %v4858
  %v5029 = vadd.f32 %v4599, %v4863
  %v5030 = vadd.f32 %v4600, %v4868
  %v5031 = vadd.f32 %v4601, %v4873
  %v5032 = vadd.f32 %v4602, %v4878
  %v5033 = vadd.f32 %v4603, %v4883
  %v5034 = vadd.f32 %v4604, %v4888
  %v5035 = vadd.f32 %v4605, %v4893
  %v5036 = vadd.f32 %v4606, %v4898
  %v5037 = vadd.f32 %v4607, %v4903
  %v5038 = vadd.f32 %v4608, %v4908
  %v5039 = vadd.f32 %v4609, %v4913
  %v5040 = vadd.f32 %v4610, %v4918
  %v5041 = vadd.f32 %v4611, %v4923
  %v5042 = vadd.f32 %v4612, %v4928
  %v5043 = vadd.f32 %v4613, %v4933
  %v5044 = vadd.f32 %v4614, %v4938
  %v5045 = vadd.f32 %v4615, %v4943
  %v5046 = vadd.f32 %v4616, %v4948
  %v5047 = vadd.f32 %v4617, %v4953
  %v5048 = vadd.f32 %v4618, %v4958
  %v5049 = vadd.f32 %v4619, %v4963
  %v5050 = vadd.f32 %v4620, %v4968
  %v5051 = vadd.f32 %v4621, %v4973
  %v5052 = vadd.f32 %v4622, %v4978
  %v5053 = vadd.f32 %v4623, %v4983
  %v5054 = vadd.f32 %v4624, %v4988
  %v5055 = vadd.f32 %v4625, %v4993
  %v5056 = vadd.f32 %v4626, %v4998
  %v5057 = vadd.f32 %v4627, %v5003
  %v5058 = vadd.f32 %v4628, %v5008
  %v5059 = vadd.f32 %v4629, %v5013
  %v5060 = vadd.f32 %v4630, %v5018
  %v5061 = vadd.f32 %v4631, %v5023
  %v5062 = vld [vmem:[%s1363] sm:$0xf]
  %v5065 = vrot.slane %v3797, 2
  %v5066 = vsel %vm933, %v4704, %v5065
  %v5067 = vrot.slane %v3798, 2
  %v5068 = vsel %vm933, %v5065, %v5067
  %v5069 = vsel %vm104, %v5066, 0
  %v5071 = vsel %vm104, %v5068, 0
  %v5074 = vsel %vm213, %v5062, 0
  %5076 = vmatprep.subr.mxu0 0.0
  %5077 = vmatpush1.msra.mxu0 0.0
  %5078 = vmatprep.subr.mxu0 0.0
  %5079 = vmatpush1.msra.mxu0 0.0
  %5080 = vmatprep.subr.mxu0 0.0
  %5081 = vmatpush1.msra.mxu0 0.0
  %5082 = vmatprep.subr.mxu0 0.0
  %5083 = vmatpush1.msra.mxu0 0.0
  %5084 = vmatprep.subr.mxu0 0.0
  %5085 = vmatpush1.msra.mxu0 0.0
  %5086 = vmatprep.subr.mxu0 0.0
  %5087 = vmatpush1.msra.mxu0 0.0
  %5088 = vmatprep.subr.mxu0 0.0
  %5089 = vmatpush1.msra.mxu0 0.0
  %5090 = vmatprep.subr.mxu0 0.0
  %5091 = vmatpush1.msra.mxu0 0.0
  %5092 = vmatprep.subr.mxu0 0.0
  %5093 = vmatpush1.msra.mxu0 0.0
  %5094 = vmatprep.subr.mxu0 0.0
  %5095 = vmatpush1.msra.mxu0 0.0
  %5096 = vmatprep.subr.mxu0 0.0
  %5097 = vmatpush1.msra.mxu0 0.0
  %5098 = vmatprep.subr.mxu0 0.0
  %5099 = vmatpush1.msra.mxu0 0.0
  %5100 = vmatprep.subr.mxu0 0.0
  %5101 = vmatpush1.msra.mxu0 0.0
  %5102 = vmatprep.subr.mxu0 0.0
  %5103 = vmatpush1.msra.mxu0 0.0
  %5104 = vmatprep.subr.mxu0 0.0
  %5105 = vmatpush1.msra.mxu0 0.0
  %5106 = vmatprep.subr.mxu0 0.0
  %5107 = vmatpush1.msra.mxu0 %v5074
  %5108 = vmatprep.subr.mxu0 0.0
  %5109 = vmatpush2.msra.mxu0 0.0
  %5110 = vmatprep.subr.mxu0 0.0
  %5111 = vmatpush2.msra.mxu0 0.0
  %5112 = vmatprep.subr.mxu0 0.0
  %5113 = vmatpush2.msra.mxu0 0.0
  %5114 = vmatprep.subr.mxu0 0.0
  %5115 = vmatpush2.msra.mxu0 0.0
  %5116 = vmatprep.subr.mxu0 0.0
  %5117 = vmatpush2.msra.mxu0 0.0
  %5118 = vmatprep.subr.mxu0 0.0
  %5119 = vmatpush2.msra.mxu0 0.0
  %5120 = vmatprep.subr.mxu0 0.0
  %5121 = vmatpush2.msra.mxu0 0.0
  %5122 = vmatprep.subr.mxu0 0.0
  %5123 = vmatpush2.msra.mxu0 0.0
  %5124 = vmatprep.subr.mxu0 0.0
  %5125 = vmatpush2.msra.mxu0 0.0
  %5126 = vmatprep.subr.mxu0 0.0
  %5127 = vmatpush2.msra.mxu0 0.0
  %5128 = vmatprep.subr.mxu0 0.0
  %5129 = vmatpush2.msra.mxu0 0.0
  %5130 = vmatprep.subr.mxu0 0.0
  %5131 = vmatpush2.msra.mxu0 0.0
  %5132 = vmatprep.subr.mxu0 0.0
  %5133 = vmatpush2.msra.mxu0 0.0
  %5134 = vmatprep.subr.mxu0 0.0
  %5135 = vmatpush2.msra.mxu0 0.0
  %5136 = vmatprep.subr.mxu0 0.0
  %5137 = vmatpush2.msra.mxu0 0.0
  %5138 = vmatprep.subr.mxu0 0.0
  %5139 = vmatpush2.msra.mxu0 0.0
  %5140 = vmatprep.mubr.f32.mxu0 0.0
  %5141 = vmatmul.mubr.f32.gmra.mxu0 %v4710
  %v5142 = vpop.f32.mrf.mxu0
  %v5143 = vadd.f32 0.0, %v5142
  %v5144 = vpop.f32.mrf.mxu0
  %5145 = vmatprep.mubr.f32.mxu0 0.0
  %5146 = vmatmul.mubr.f32.gmra.mxu0 %v4712
  %v5147 = vpop.f32.mrf.mxu0
  %v5148 = vadd.f32 0.0, %v5147
  %v5149 = vpop.f32.mrf.mxu0
  %5150 = vmatprep.mubr.f32.mxu0 0.0
  %5151 = vmatmul.mubr.f32.gmra.mxu0 %v4714
  %v5152 = vpop.f32.mrf.mxu0
  %v5153 = vadd.f32 0.0, %v5152
  %v5154 = vpop.f32.mrf.mxu0
  %5155 = vmatprep.mubr.f32.mxu0 0.0
  %5156 = vmatmul.mubr.f32.gmra.mxu0 %v4716
  %v5157 = vpop.f32.mrf.mxu0
  %v5158 = vadd.f32 0.0, %v5157
  %v5159 = vpop.f32.mrf.mxu0
  %5160 = vmatprep.mubr.f32.mxu0 0.0
  %5161 = vmatmul.mubr.f32.gmra.mxu0 %v4718
  %v5162 = vpop.f32.mrf.mxu0
  %v5163 = vadd.f32 0.0, %v5162
  %v5164 = vpop.f32.mrf.mxu0
  %5165 = vmatprep.mubr.f32.mxu0 0.0
  %5166 = vmatmul.mubr.f32.gmra.mxu0 %v4720
  %v5167 = vpop.f32.mrf.mxu0
  %v5168 = vadd.f32 0.0, %v5167
  %v5169 = vpop.f32.mrf.mxu0
  %5170 = vmatprep.mubr.f32.mxu0 0.0
  %5171 = vmatmul.mubr.f32.gmra.mxu0 %v4722
  %v5172 = vpop.f32.mrf.mxu0
  %v5173 = vadd.f32 0.0, %v5172
  %v5174 = vpop.f32.mrf.mxu0
  %5175 = vmatprep.mubr.f32.mxu0 0.0
  %5176 = vmatmul.mubr.f32.gmra.mxu0 %v4724
  %v5177 = vpop.f32.mrf.mxu0
  %v5178 = vadd.f32 0.0, %v5177
  %v5179 = vpop.f32.mrf.mxu0
  %5180 = vmatprep.mubr.f32.mxu0 0.0
  %5181 = vmatmul.mubr.f32.gmra.mxu0 %v4726
  %v5182 = vpop.f32.mrf.mxu0
  %v5183 = vadd.f32 0.0, %v5182
  %v5184 = vpop.f32.mrf.mxu0
  %5185 = vmatprep.mubr.f32.mxu0 0.0
  %5186 = vmatmul.mubr.f32.gmra.mxu0 %v4728
  %v5187 = vpop.f32.mrf.mxu0
  %v5188 = vadd.f32 0.0, %v5187
  %v5189 = vpop.f32.mrf.mxu0
  %5190 = vmatprep.mubr.f32.mxu0 0.0
  %5191 = vmatmul.mubr.f32.gmra.mxu0 %v4730
  %v5192 = vpop.f32.mrf.mxu0
  %v5193 = vadd.f32 0.0, %v5192
  %v5194 = vpop.f32.mrf.mxu0
  %5195 = vmatprep.mubr.f32.mxu0 0.0
  %5196 = vmatmul.mubr.f32.gmra.mxu0 %v4732
  %v5197 = vpop.f32.mrf.mxu0
  %v5198 = vadd.f32 0.0, %v5197
  %v5199 = vpop.f32.mrf.mxu0
  %5200 = vmatprep.mubr.f32.mxu0 0.0
  %5201 = vmatmul.mubr.f32.gmra.mxu0 %v4734
  %v5202 = vpop.f32.mrf.mxu0
  %v5203 = vadd.f32 0.0, %v5202
  %v5204 = vpop.f32.mrf.mxu0
  %5205 = vmatprep.mubr.f32.mxu0 0.0
  %5206 = vmatmul.mubr.f32.gmra.mxu0 %v4736
  %v5207 = vpop.f32.mrf.mxu0
  %v5208 = vadd.f32 0.0, %v5207
  %v5209 = vpop.f32.mrf.mxu0
  %5210 = vmatprep.mubr.f32.mxu0 0.0
  %5211 = vmatmul.mubr.f32.gmra.mxu0 %v4738
  %v5212 = vpop.f32.mrf.mxu0
  %v5213 = vadd.f32 0.0, %v5212
  %v5214 = vpop.f32.mrf.mxu0
  %5215 = vmatprep.mubr.f32.mxu0 0.0
  %5216 = vmatmul.mubr.f32.gmra.mxu0 %v4740
  %v5217 = vpop.f32.mrf.mxu0
  %v5218 = vadd.f32 0.0, %v5217
  %v5219 = vpop.f32.mrf.mxu0
  %5220 = vmatprep.mubr.f32.mxu0 0.0
  %5221 = vmatmul.mubr.f32.gmra.mxu0 %v4742
  %v5222 = vpop.f32.mrf.mxu0
  %v5223 = vadd.f32 0.0, %v5222
  %v5224 = vpop.f32.mrf.mxu0
  %5225 = vmatprep.mubr.f32.mxu0 0.0
  %5226 = vmatmul.mubr.f32.gmra.mxu0 %v4744
  %v5227 = vpop.f32.mrf.mxu0
  %v5228 = vadd.f32 0.0, %v5227
  %v5229 = vpop.f32.mrf.mxu0
  %5230 = vmatprep.mubr.f32.mxu0 0.0
  %5231 = vmatmul.mubr.f32.gmra.mxu0 %v4746
  %v5232 = vpop.f32.mrf.mxu0
  %v5233 = vadd.f32 0.0, %v5232
  %v5234 = vpop.f32.mrf.mxu0
  %5235 = vmatprep.mubr.f32.mxu0 0.0
  %5236 = vmatmul.mubr.f32.gmra.mxu0 %v4748
  %v5237 = vpop.f32.mrf.mxu0
  %v5238 = vadd.f32 0.0, %v5237
  %v5239 = vpop.f32.mrf.mxu0
  %5240 = vmatprep.mubr.f32.mxu0 0.0
  %5241 = vmatmul.mubr.f32.gmra.mxu0 %v4750
  %v5242 = vpop.f32.mrf.mxu0
  %v5243 = vadd.f32 0.0, %v5242
  %v5244 = vpop.f32.mrf.mxu0
  %5245 = vmatprep.mubr.f32.mxu0 0.0
  %5246 = vmatmul.mubr.f32.gmra.mxu0 %v4752
  %v5247 = vpop.f32.mrf.mxu0
  %v5248 = vadd.f32 0.0, %v5247
  %v5249 = vpop.f32.mrf.mxu0
  %5250 = vmatprep.mubr.f32.mxu0 0.0
  %5251 = vmatmul.mubr.f32.gmra.mxu0 %v4754
  %v5252 = vpop.f32.mrf.mxu0
  %v5253 = vadd.f32 0.0, %v5252
  %v5254 = vpop.f32.mrf.mxu0
  %5255 = vmatprep.mubr.f32.mxu0 0.0
  %5256 = vmatmul.mubr.f32.gmra.mxu0 %v4756
  %v5257 = vpop.f32.mrf.mxu0
  %v5258 = vadd.f32 0.0, %v5257
  %v5259 = vpop.f32.mrf.mxu0
  %5260 = vmatprep.mubr.f32.mxu0 0.0
  %5261 = vmatmul.mubr.f32.gmra.mxu0 %v4758
  %v5262 = vpop.f32.mrf.mxu0
  %v5263 = vadd.f32 0.0, %v5262
  %v5264 = vpop.f32.mrf.mxu0
  %5265 = vmatprep.mubr.f32.mxu0 0.0
  %5266 = vmatmul.mubr.f32.gmra.mxu0 %v4760
  %v5267 = vpop.f32.mrf.mxu0
  %v5268 = vadd.f32 0.0, %v5267
  %v5269 = vpop.f32.mrf.mxu0
  %5270 = vmatprep.mubr.f32.mxu0 0.0
  %5271 = vmatmul.mubr.f32.gmra.mxu0 %v4762
  %v5272 = vpop.f32.mrf.mxu0
  %v5273 = vadd.f32 0.0, %v5272
  %v5274 = vpop.f32.mrf.mxu0
  %5275 = vmatprep.mubr.f32.mxu0 0.0
  %5276 = vmatmul.mubr.f32.gmra.mxu0 %v4764
  %v5277 = vpop.f32.mrf.mxu0
  %v5278 = vadd.f32 0.0, %v5277
  %v5279 = vpop.f32.mrf.mxu0
  %5280 = vmatprep.mubr.f32.mxu0 0.0
  %5281 = vmatmul.mubr.f32.gmra.mxu0 %v4766
  %v5282 = vpop.f32.mrf.mxu0
  %v5283 = vadd.f32 0.0, %v5282
  %v5284 = vpop.f32.mrf.mxu0
  %5285 = vmatprep.mubr.f32.mxu0 0.0
  %5286 = vmatmul.mubr.f32.gmra.mxu0 %v4768
  %v5287 = vpop.f32.mrf.mxu0
  %v5288 = vadd.f32 0.0, %v5287
  %v5289 = vpop.f32.mrf.mxu0
  %5290 = vmatprep.mubr.f32.mxu0 0.0
  %5291 = vmatmul.mubr.f32.gmra.mxu0 %v4770
  %v5292 = vpop.f32.mrf.mxu0
  %v5293 = vadd.f32 0.0, %v5292
  %v5294 = vpop.f32.mrf.mxu0
  %5295 = vmatprep.mubr.f32.mxu0 0.0
  %5296 = vmatmul.mubr.f32.gmra.mxu0 %v4772
  %v5297 = vpop.f32.mrf.mxu0
  %v5298 = vadd.f32 0.0, %v5297
  %v5299 = vpop.f32.mrf.mxu0
  %5300 = vmatprep.mubr.f32.mxu0 0.0
  %5301 = vmatmul.mubr.f32.gmra.mxu0 %v4774
  %v5302 = vpop.f32.mrf.mxu0
  %v5303 = vadd.f32 0.0, %v5302
  %v5304 = vpop.f32.mrf.mxu0
  %5305 = vmatprep.mubr.f32.mxu0 0.0
  %5306 = vmatmul.mubr.f32.gmra.mxu0 %v4776
  %v5307 = vpop.f32.mrf.mxu0
  %v5308 = vadd.f32 0.0, %v5307
  %v5309 = vpop.f32.mrf.mxu0
  %5310 = vmatprep.mubr.f32.mxu0 0.0
  %5311 = vmatmul.mubr.f32.gmra.mxu0 %v5069
  %v5312 = vpop.f32.mrf.mxu0
  %v5313 = vadd.f32 0.0, %v5312
  %v5314 = vpop.f32.mrf.mxu0
  %5315 = vmatprep.mubr.f32.mxu0 0.0
  %5316 = vmatmul.mubr.f32.gmra.mxu0 %v5071
  %v5317 = vpop.f32.mrf.mxu0
  %v5318 = vadd.f32 0.0, %v5317
  %v5319 = vpop.f32.mrf.mxu0
  %5320 = vdwg.mxu0
  %v5321 = vadd.f32 %v5026, %v5143
  %v5322 = vadd.f32 %v5027, %v5148
  %v5323 = vadd.f32 %v5028, %v5153
  %v5324 = vadd.f32 %v5029, %v5158
  %v5325 = vadd.f32 %v5030, %v5163
  %v5326 = vadd.f32 %v5031, %v5168
  %v5327 = vadd.f32 %v5032, %v5173
  %v5328 = vadd.f32 %v5033, %v5178
  %v5329 = vadd.f32 %v5034, %v5183
  %v5330 = vadd.f32 %v5035, %v5188
  %v5331 = vadd.f32 %v5036, %v5193
  %v5332 = vadd.f32 %v5037, %v5198
  %v5333 = vadd.f32 %v5038, %v5203
  %v5334 = vadd.f32 %v5039, %v5208
  %v5335 = vadd.f32 %v5040, %v5213
  %v5336 = vadd.f32 %v5041, %v5218
  %v5337 = vadd.f32 %v5042, %v5223
  %v5338 = vadd.f32 %v5043, %v5228
  %v5339 = vadd.f32 %v5044, %v5233
  %v5340 = vadd.f32 %v5045, %v5238
  %v5341 = vadd.f32 %v5046, %v5243
  %v5342 = vadd.f32 %v5047, %v5248
  %v5343 = vadd.f32 %v5048, %v5253
  %v5344 = vadd.f32 %v5049, %v5258
  %v5345 = vadd.f32 %v5050, %v5263
  %v5346 = vadd.f32 %v5051, %v5268
  %v5347 = vadd.f32 %v5052, %v5273
  %v5348 = vadd.f32 %v5053, %v5278
  %v5349 = vadd.f32 %v5054, %v5283
  %v5350 = vadd.f32 %v5055, %v5288
  %v5351 = vadd.f32 %v5056, %v5293
  %v5352 = vadd.f32 %v5057, %v5298
  %v5353 = vadd.f32 %v5058, %v5303
  %v5354 = vadd.f32 %v5059, %v5308
  %v5355 = vadd.f32 %v5060, %v5313
  %v5356 = vadd.f32 %v5061, %v5318
  %v5357 = vld [vmem:[%s1659] sm:$0xf]
  %v5358 = vrot.slane %v3762, 3
  %v5359 = vrot.slane %v3763, 3
  %v5360 = vsel %vm1661, %v5358, %v5359
  %v5361 = vrot.slane %v3764, 3
  %v5362 = vsel %vm1661, %v5359, %v5361
  %v5363 = vrot.slane %v3765, 3
  %v5364 = vsel %vm1661, %v5361, %v5363
  %v5365 = vrot.slane %v3766, 3
  %v5366 = vsel %vm1661, %v5363, %v5365
  %v5367 = vrot.slane %v3767, 3
  %v5368 = vsel %vm1661, %v5365, %v5367
  %v5369 = vrot.slane %v3768, 3
  %v5370 = vsel %vm1661, %v5367, %v5369
  %v5371 = vrot.slane %v3769, 3
  %v5372 = vsel %vm1661, %v5369, %v5371
  %v5373 = vrot.slane %v3770, 3
  %v5374 = vsel %vm1661, %v5371, %v5373
  %v5375 = vrot.slane %v3771, 3
  %v5376 = vsel %vm1661, %v5373, %v5375
  %v5377 = vrot.slane %v3772, 3
  %v5378 = vsel %vm1661, %v5375, %v5377
  %v5379 = vrot.slane %v3773, 3
  %v5380 = vsel %vm1661, %v5377, %v5379
  %v5381 = vrot.slane %v3774, 3
  %v5382 = vsel %vm1661, %v5379, %v5381
  %v5383 = vrot.slane %v3775, 3
  %v5384 = vsel %vm1661, %v5381, %v5383
  %v5385 = vrot.slane %v3776, 3
  %v5386 = vsel %vm1661, %v5383, %v5385
  %v5387 = vrot.slane %v3777, 3
  %v5388 = vsel %vm1661, %v5385, %v5387
  %v5389 = vrot.slane %v3778, 3
  %v5390 = vsel %vm1661, %v5387, %v5389
  %v5391 = vrot.slane %v3779, 3
  %v5392 = vsel %vm1661, %v5389, %v5391
  %v5393 = vrot.slane %v3780, 3
  %v5394 = vsel %vm1661, %v5391, %v5393
  %v5395 = vrot.slane %v3781, 3
  %v5396 = vsel %vm1661, %v5393, %v5395
  %v5397 = vrot.slane %v3782, 3
  %v5398 = vsel %vm1661, %v5395, %v5397
  %v5399 = vrot.slane %v3783, 3
  %v5400 = vsel %vm1661, %v5397, %v5399
  %v5401 = vrot.slane %v3784, 3
  %v5402 = vsel %vm1661, %v5399, %v5401
  %v5403 = vrot.slane %v3785, 3
  %v5404 = vsel %vm1661, %v5401, %v5403
  %v5405 = vrot.slane %v3786, 3
  %v5406 = vsel %vm1661, %v5403, %v5405
  %v5407 = vrot.slane %v3787, 3
  %v5408 = vsel %vm1661, %v5405, %v5407
  %v5409 = vrot.slane %v3788, 3
  %v5410 = vsel %vm1661, %v5407, %v5409
  %v5411 = vrot.slane %v3789, 3
  %v5412 = vsel %vm1661, %v5409, %v5411
  %v5413 = vrot.slane %v3790, 3
  %v5414 = vsel %vm1661, %v5411, %v5413
  %v5415 = vrot.slane %v3791, 3
  %v5416 = vsel %vm1661, %v5413, %v5415
  %v5417 = vrot.slane %v3792, 3
  %v5418 = vsel %vm1661, %v5415, %v5417
  %v5419 = vrot.slane %v3793, 3
  %v5420 = vsel %vm1661, %v5417, %v5419
  %v5421 = vrot.slane %v3794, 3
  %v5422 = vsel %vm1661, %v5419, %v5421
  %v5423 = vrot.slane %v3795, 3
  %v5424 = vsel %vm1661, %v5421, %v5423
  %v5425 = vrot.slane %v3796, 3
  %v5426 = vsel %vm1661, %v5423, %v5425
  %v5427 = vrot.slane %v3797, 3
  %v5428 = vsel %vm1661, %v5425, %v5427
  %v5429 = vrot.slane %v3798, 3
  %v5430 = vsel %vm1661, %v5427, %v5429
  %v5431 = vsel %vm104, %v5360, 0
  %v5433 = vsel %vm104, %v5362, 0
  %v5435 = vsel %vm104, %v5364, 0
  %v5437 = vsel %vm104, %v5366, 0
  %v5439 = vsel %vm104, %v5368, 0
  %v5441 = vsel %vm104, %v5370, 0
  %v5443 = vsel %vm104, %v5372, 0
  %v5445 = vsel %vm104, %v5374, 0
  %v5447 = vsel %vm104, %v5376, 0
  %v5449 = vsel %vm104, %v5378, 0
  %v5451 = vsel %vm104, %v5380, 0
  %v5453 = vsel %vm104, %v5382, 0
  %v5455 = vsel %vm104, %v5384, 0
  %v5457 = vsel %vm104, %v5386, 0
  %v5459 = vsel %vm104, %v5388, 0
  %v5461 = vsel %vm104, %v5390, 0
  %v5463 = vsel %vm104, %v5392, 0
  %v5465 = vsel %vm104, %v5394, 0
  %v5467 = vsel %vm104, %v5396, 0
  %v5469 = vsel %vm104, %v5398, 0
  %v5471 = vsel %vm104, %v5400, 0
  %v5473 = vsel %vm104, %v5402, 0
  %v5475 = vsel %vm104, %v5404, 0
  %v5477 = vsel %vm104, %v5406, 0
  %v5479 = vsel %vm104, %v5408, 0
  %v5481 = vsel %vm104, %v5410, 0
  %v5483 = vsel %vm104, %v5412, 0
  %v5485 = vsel %vm104, %v5414, 0
  %v5487 = vsel %vm104, %v5416, 0
  %v5489 = vsel %vm104, %v5418, 0
  %v5491 = vsel %vm104, %v5420, 0
  %v5493 = vsel %vm104, %v5422, 0
  %v5495 = vsel %vm104, %v5424, 0
  %v5497 = vsel %vm104, %v5426, 0
  %v5499 = vsel %vm104, %v5428, 0
  %v5501 = vsel %vm104, %v5430, 0
  %v5504 = vsel %vm213, %v5357, 0
  %5506 = vmatprep.subr.mxu0 0.0
  %5507 = vmatpush1.msra.mxu0 0.0
  %5508 = vmatprep.subr.mxu0 0.0
  %5509 = vmatpush1.msra.mxu0 0.0
  %5510 = vmatprep.subr.mxu0 0.0
  %5511 = vmatpush1.msra.mxu0 0.0
  %5512 = vmatprep.subr.mxu0 0.0
  %5513 = vmatpush1.msra.mxu0 0.0
  %5514 = vmatprep.subr.mxu0 0.0
  %5515 = vmatpush1.msra.mxu0 0.0
  %5516 = vmatprep.subr.mxu0 0.0
  %5517 = vmatpush1.msra.mxu0 0.0
  %5518 = vmatprep.subr.mxu0 0.0
  %5519 = vmatpush1.msra.mxu0 0.0
  %5520 = vmatprep.subr.mxu0 0.0
  %5521 = vmatpush1.msra.mxu0 0.0
  %5522 = vmatprep.subr.mxu0 0.0
  %5523 = vmatpush1.msra.mxu0 0.0
  %5524 = vmatprep.subr.mxu0 0.0
  %5525 = vmatpush1.msra.mxu0 0.0
  %5526 = vmatprep.subr.mxu0 0.0
  %5527 = vmatpush1.msra.mxu0 0.0
  %5528 = vmatprep.subr.mxu0 0.0
  %5529 = vmatpush1.msra.mxu0 0.0
  %5530 = vmatprep.subr.mxu0 0.0
  %5531 = vmatpush1.msra.mxu0 0.0
  %5532 = vmatprep.subr.mxu0 0.0
  %5533 = vmatpush1.msra.mxu0 0.0
  %5534 = vmatprep.subr.mxu0 0.0
  %5535 = vmatpush1.msra.mxu0 0.0
  %5536 = vmatprep.subr.mxu0 0.0
  %5537 = vmatpush1.msra.mxu0 %v5504
  %5538 = vmatprep.subr.mxu0 0.0
  %5539 = vmatpush2.msra.mxu0 0.0
  %5540 = vmatprep.subr.mxu0 0.0
  %5541 = vmatpush2.msra.mxu0 0.0
  %5542 = vmatprep.subr.mxu0 0.0
  %5543 = vmatpush2.msra.mxu0 0.0
  %5544 = vmatprep.subr.mxu0 0.0
  %5545 = vmatpush2.msra.mxu0 0.0
  %5546 = vmatprep.subr.mxu0 0.0
  %5547 = vmatpush2.msra.mxu0 0.0
  %5548 = vmatprep.subr.mxu0 0.0
  %5549 = vmatpush2.msra.mxu0 0.0
  %5550 = vmatprep.subr.mxu0 0.0
  %5551 = vmatpush2.msra.mxu0 0.0
  %5552 = vmatprep.subr.mxu0 0.0
  %5553 = vmatpush2.msra.mxu0 0.0
  %5554 = vmatprep.subr.mxu0 0.0
  %5555 = vmatpush2.msra.mxu0 0.0
  %5556 = vmatprep.subr.mxu0 0.0
  %5557 = vmatpush2.msra.mxu0 0.0
  %5558 = vmatprep.subr.mxu0 0.0
  %5559 = vmatpush2.msra.mxu0 0.0
  %5560 = vmatprep.subr.mxu0 0.0
  %5561 = vmatpush2.msra.mxu0 0.0
  %5562 = vmatprep.subr.mxu0 0.0
  %5563 = vmatpush2.msra.mxu0 0.0
  %5564 = vmatprep.subr.mxu0 0.0
  %5565 = vmatpush2.msra.mxu0 0.0
  %5566 = vmatprep.subr.mxu0 0.0
  %5567 = vmatpush2.msra.mxu0 0.0
  %5568 = vmatprep.subr.mxu0 0.0
  %5569 = vmatpush2.msra.mxu0 0.0
  %5570 = vmatprep.mubr.f32.mxu0 0.0
  %5571 = vmatmul.mubr.f32.gmra.mxu0 %v5431
  %v5572 = vpop.f32.mrf.mxu0
  %v5573 = vadd.f32 0.0, %v5572
  %v5574 = vpop.f32.mrf.mxu0
  %5575 = vmatprep.mubr.f32.mxu0 0.0
  %5576 = vmatmul.mubr.f32.gmra.mxu0 %v5433
  %v5577 = vpop.f32.mrf.mxu0
  %v5578 = vadd.f32 0.0, %v5577
  %v5579 = vpop.f32.mrf.mxu0
  %5580 = vmatprep.mubr.f32.mxu0 0.0
  %5581 = vmatmul.mubr.f32.gmra.mxu0 %v5435
  %v5582 = vpop.f32.mrf.mxu0
  %v5583 = vadd.f32 0.0, %v5582
  %v5584 = vpop.f32.mrf.mxu0
  %5585 = vmatprep.mubr.f32.mxu0 0.0
  %5586 = vmatmul.mubr.f32.gmra.mxu0 %v5437
  %v5587 = vpop.f32.mrf.mxu0
  %v5588 = vadd.f32 0.0, %v5587
  %v5589 = vpop.f32.mrf.mxu0
  %5590 = vmatprep.mubr.f32.mxu0 0.0
  %5591 = vmatmul.mubr.f32.gmra.mxu0 %v5439
  %v5592 = vpop.f32.mrf.mxu0
  %v5593 = vadd.f32 0.0, %v5592
  %v5594 = vpop.f32.mrf.mxu0
  %5595 = vmatprep.mubr.f32.mxu0 0.0
  %5596 = vmatmul.mubr.f32.gmra.mxu0 %v5441
  %v5597 = vpop.f32.mrf.mxu0
  %v5598 = vadd.f32 0.0, %v5597
  %v5599 = vpop.f32.mrf.mxu0
  %5600 = vmatprep.mubr.f32.mxu0 0.0
  %5601 = vmatmul.mubr.f32.gmra.mxu0 %v5443
  %v5602 = vpop.f32.mrf.mxu0
  %v5603 = vadd.f32 0.0, %v5602
  %v5604 = vpop.f32.mrf.mxu0
  %5605 = vmatprep.mubr.f32.mxu0 0.0
  %5606 = vmatmul.mubr.f32.gmra.mxu0 %v5445
  %v5607 = vpop.f32.mrf.mxu0
  %v5608 = vadd.f32 0.0, %v5607
  %v5609 = vpop.f32.mrf.mxu0
  %5610 = vmatprep.mubr.f32.mxu0 0.0
  %5611 = vmatmul.mubr.f32.gmra.mxu0 %v5447
  %v5612 = vpop.f32.mrf.mxu0
  %v5613 = vadd.f32 0.0, %v5612
  %v5614 = vpop.f32.mrf.mxu0
  %5615 = vmatprep.mubr.f32.mxu0 0.0
  %5616 = vmatmul.mubr.f32.gmra.mxu0 %v5449
  %v5617 = vpop.f32.mrf.mxu0
  %v5618 = vadd.f32 0.0, %v5617
  %v5619 = vpop.f32.mrf.mxu0
  %5620 = vmatprep.mubr.f32.mxu0 0.0
  %5621 = vmatmul.mubr.f32.gmra.mxu0 %v5451
  %v5622 = vpop.f32.mrf.mxu0
  %v5623 = vadd.f32 0.0, %v5622
  %v5624 = vpop.f32.mrf.mxu0
  %5625 = vmatprep.mubr.f32.mxu0 0.0
  %5626 = vmatmul.mubr.f32.gmra.mxu0 %v5453
  %v5627 = vpop.f32.mrf.mxu0
  %v5628 = vadd.f32 0.0, %v5627
  %v5629 = vpop.f32.mrf.mxu0
  %5630 = vmatprep.mubr.f32.mxu0 0.0
  %5631 = vmatmul.mubr.f32.gmra.mxu0 %v5455
  %v5632 = vpop.f32.mrf.mxu0
  %v5633 = vadd.f32 0.0, %v5632
  %v5634 = vpop.f32.mrf.mxu0
  %5635 = vmatprep.mubr.f32.mxu0 0.0
  %5636 = vmatmul.mubr.f32.gmra.mxu0 %v5457
  %v5637 = vpop.f32.mrf.mxu0
  %v5638 = vadd.f32 0.0, %v5637
  %v5639 = vpop.f32.mrf.mxu0
  %5640 = vmatprep.mubr.f32.mxu0 0.0
  %5641 = vmatmul.mubr.f32.gmra.mxu0 %v5459
  %v5642 = vpop.f32.mrf.mxu0
  %v5643 = vadd.f32 0.0, %v5642
  %v5644 = vpop.f32.mrf.mxu0
  %5645 = vmatprep.mubr.f32.mxu0 0.0
  %5646 = vmatmul.mubr.f32.gmra.mxu0 %v5461
  %v5647 = vpop.f32.mrf.mxu0
  %v5648 = vadd.f32 0.0, %v5647
  %v5649 = vpop.f32.mrf.mxu0
  %5650 = vmatprep.mubr.f32.mxu0 0.0
  %5651 = vmatmul.mubr.f32.gmra.mxu0 %v5463
  %v5652 = vpop.f32.mrf.mxu0
  %v5653 = vadd.f32 0.0, %v5652
  %v5654 = vpop.f32.mrf.mxu0
  %5655 = vmatprep.mubr.f32.mxu0 0.0
  %5656 = vmatmul.mubr.f32.gmra.mxu0 %v5465
  %v5657 = vpop.f32.mrf.mxu0
  %v5658 = vadd.f32 0.0, %v5657
  %v5659 = vpop.f32.mrf.mxu0
  %5660 = vmatprep.mubr.f32.mxu0 0.0
  %5661 = vmatmul.mubr.f32.gmra.mxu0 %v5467
  %v5662 = vpop.f32.mrf.mxu0
  %v5663 = vadd.f32 0.0, %v5662
  %v5664 = vpop.f32.mrf.mxu0
  %5665 = vmatprep.mubr.f32.mxu0 0.0
  %5666 = vmatmul.mubr.f32.gmra.mxu0 %v5469
  %v5667 = vpop.f32.mrf.mxu0
  %v5668 = vadd.f32 0.0, %v5667
  %v5669 = vpop.f32.mrf.mxu0
  %5670 = vmatprep.mubr.f32.mxu0 0.0
  %5671 = vmatmul.mubr.f32.gmra.mxu0 %v5471
  %v5672 = vpop.f32.mrf.mxu0
  %v5673 = vadd.f32 0.0, %v5672
  %v5674 = vpop.f32.mrf.mxu0
  %5675 = vmatprep.mubr.f32.mxu0 0.0
  %5676 = vmatmul.mubr.f32.gmra.mxu0 %v5473
  %v5677 = vpop.f32.mrf.mxu0
  %v5678 = vadd.f32 0.0, %v5677
  %v5679 = vpop.f32.mrf.mxu0
  %5680 = vmatprep.mubr.f32.mxu0 0.0
  %5681 = vmatmul.mubr.f32.gmra.mxu0 %v5475
  %v5682 = vpop.f32.mrf.mxu0
  %v5683 = vadd.f32 0.0, %v5682
  %v5684 = vpop.f32.mrf.mxu0
  %5685 = vmatprep.mubr.f32.mxu0 0.0
  %5686 = vmatmul.mubr.f32.gmra.mxu0 %v5477
  %v5687 = vpop.f32.mrf.mxu0
  %v5688 = vadd.f32 0.0, %v5687
  %v5689 = vpop.f32.mrf.mxu0
  %5690 = vmatprep.mubr.f32.mxu0 0.0
  %5691 = vmatmul.mubr.f32.gmra.mxu0 %v5479
  %v5692 = vpop.f32.mrf.mxu0
  %v5693 = vadd.f32 0.0, %v5692
  %v5694 = vpop.f32.mrf.mxu0
  %5695 = vmatprep.mubr.f32.mxu0 0.0
  %5696 = vmatmul.mubr.f32.gmra.mxu0 %v5481
  %v5697 = vpop.f32.mrf.mxu0
  %v5698 = vadd.f32 0.0, %v5697
  %v5699 = vpop.f32.mrf.mxu0
  %5700 = vmatprep.mubr.f32.mxu0 0.0
  %5701 = vmatmul.mubr.f32.gmra.mxu0 %v5483
  %v5702 = vpop.f32.mrf.mxu0
  %v5703 = vadd.f32 0.0, %v5702
  %v5704 = vpop.f32.mrf.mxu0
  %5705 = vmatprep.mubr.f32.mxu0 0.0
  %5706 = vmatmul.mubr.f32.gmra.mxu0 %v5485
  %v5707 = vpop.f32.mrf.mxu0
  %v5708 = vadd.f32 0.0, %v5707
  %v5709 = vpop.f32.mrf.mxu0
  %5710 = vmatprep.mubr.f32.mxu0 0.0
  %5711 = vmatmul.mubr.f32.gmra.mxu0 %v5487
  %v5712 = vpop.f32.mrf.mxu0
  %v5713 = vadd.f32 0.0, %v5712
  %v5714 = vpop.f32.mrf.mxu0
  %5715 = vmatprep.mubr.f32.mxu0 0.0
  %5716 = vmatmul.mubr.f32.gmra.mxu0 %v5489
  %v5717 = vpop.f32.mrf.mxu0
  %v5718 = vadd.f32 0.0, %v5717
  %v5719 = vpop.f32.mrf.mxu0
  %5720 = vmatprep.mubr.f32.mxu0 0.0
  %5721 = vmatmul.mubr.f32.gmra.mxu0 %v5491
  %v5722 = vpop.f32.mrf.mxu0
  %v5723 = vadd.f32 0.0, %v5722
  %v5724 = vpop.f32.mrf.mxu0
  %5725 = vmatprep.mubr.f32.mxu0 0.0
  %5726 = vmatmul.mubr.f32.gmra.mxu0 %v5493
  %v5727 = vpop.f32.mrf.mxu0
  %v5728 = vadd.f32 0.0, %v5727
  %v5729 = vpop.f32.mrf.mxu0
  %5730 = vmatprep.mubr.f32.mxu0 0.0
  %5731 = vmatmul.mubr.f32.gmra.mxu0 %v5495
  %v5732 = vpop.f32.mrf.mxu0
  %v5733 = vadd.f32 0.0, %v5732
  %v5734 = vpop.f32.mrf.mxu0
  %5735 = vmatprep.mubr.f32.mxu0 0.0
  %5736 = vmatmul.mubr.f32.gmra.mxu0 %v5497
  %v5737 = vpop.f32.mrf.mxu0
  %v5738 = vadd.f32 0.0, %v5737
  %v5739 = vpop.f32.mrf.mxu0
  %5740 = vmatprep.mubr.f32.mxu0 0.0
  %5741 = vmatmul.mubr.f32.gmra.mxu0 %v5499
  %v5742 = vpop.f32.mrf.mxu0
  %v5743 = vadd.f32 0.0, %v5742
  %v5744 = vpop.f32.mrf.mxu0
  %5745 = vmatprep.mubr.f32.mxu0 0.0
  %5746 = vmatmul.mubr.f32.gmra.mxu0 %v5501
  %v5747 = vpop.f32.mrf.mxu0
  %v5748 = vadd.f32 0.0, %v5747
  %v5749 = vpop.f32.mrf.mxu0
  %5750 = vdwg.mxu0
  %v5751 = vadd.f32 %v5321, %v5573
  %v5752 = vadd.f32 %v5322, %v5578
  %v5753 = vadd.f32 %v5323, %v5583
  %v5754 = vadd.f32 %v5324, %v5588
  %v5755 = vadd.f32 %v5325, %v5593
  %v5756 = vadd.f32 %v5326, %v5598
  %v5757 = vadd.f32 %v5327, %v5603
  %v5758 = vadd.f32 %v5328, %v5608
  %v5759 = vadd.f32 %v5329, %v5613
  %v5760 = vadd.f32 %v5330, %v5618
  %v5761 = vadd.f32 %v5331, %v5623
  %v5762 = vadd.f32 %v5332, %v5628
  %v5763 = vadd.f32 %v5333, %v5633
  %v5764 = vadd.f32 %v5334, %v5638
  %v5765 = vadd.f32 %v5335, %v5643
  %v5766 = vadd.f32 %v5336, %v5648
  %v5767 = vadd.f32 %v5337, %v5653
  %v5768 = vadd.f32 %v5338, %v5658
  %v5769 = vadd.f32 %v5339, %v5663
  %v5770 = vadd.f32 %v5340, %v5668
  %v5771 = vadd.f32 %v5341, %v5673
  %v5772 = vadd.f32 %v5342, %v5678
  %v5773 = vadd.f32 %v5343, %v5683
  %v5774 = vadd.f32 %v5344, %v5688
  %v5775 = vadd.f32 %v5345, %v5693
  %v5776 = vadd.f32 %v5346, %v5698
  %v5777 = vadd.f32 %v5347, %v5703
  %v5778 = vadd.f32 %v5348, %v5708
  %v5779 = vadd.f32 %v5349, %v5713
  %v5780 = vadd.f32 %v5350, %v5718
  %v5781 = vadd.f32 %v5351, %v5723
  %v5782 = vadd.f32 %v5352, %v5728
  %v5783 = vadd.f32 %v5353, %v5733
  %v5784 = vadd.f32 %v5354, %v5738
  %v5785 = vadd.f32 %v5355, %v5743
  %v5786 = vadd.f32 %v5356, %v5748
  %v5787 = vld [vmem:[%s2091] sm:$0xf]
  %v5788 = vrot.slane %v3762, 4
  %v5789 = vrot.slane %v3763, 4
  %v5790 = vsel %vm213, %v5788, %v5789
  %v5791 = vrot.slane %v3764, 4
  %v5792 = vsel %vm213, %v5789, %v5791
  %v5793 = vrot.slane %v3765, 4
  %v5794 = vsel %vm213, %v5791, %v5793
  %v5795 = vrot.slane %v3766, 4
  %v5796 = vsel %vm213, %v5793, %v5795
  %v5797 = vrot.slane %v3767, 4
  %v5798 = vsel %vm213, %v5795, %v5797
  %v5799 = vrot.slane %v3768, 4
  %v5800 = vsel %vm213, %v5797, %v5799
  %v5801 = vrot.slane %v3769, 4
  %v5802 = vsel %vm213, %v5799, %v5801
  %v5803 = vrot.slane %v3770, 4
  %v5804 = vsel %vm213, %v5801, %v5803
  %v5805 = vrot.slane %v3771, 4
  %v5806 = vsel %vm213, %v5803, %v5805
  %v5807 = vrot.slane %v3772, 4
  %v5808 = vsel %vm213, %v5805, %v5807
  %v5809 = vrot.slane %v3773, 4
  %v5810 = vsel %vm213, %v5807, %v5809
  %v5811 = vrot.slane %v3774, 4
  %v5812 = vsel %vm213, %v5809, %v5811
  %v5813 = vrot.slane %v3775, 4
  %v5814 = vsel %vm213, %v5811, %v5813
  %v5815 = vrot.slane %v3776, 4
  %v5816 = vsel %vm213, %v5813, %v5815
  %v5817 = vrot.slane %v3777, 4
  %v5818 = vsel %vm213, %v5815, %v5817
  %v5819 = vrot.slane %v3778, 4
  %v5820 = vsel %vm213, %v5817, %v5819
  %v5821 = vrot.slane %v3779, 4
  %v5822 = vsel %vm213, %v5819, %v5821
  %v5823 = vrot.slane %v3780, 4
  %v5824 = vsel %vm213, %v5821, %v5823
  %v5825 = vrot.slane %v3781, 4
  %v5826 = vsel %vm213, %v5823, %v5825
  %v5827 = vrot.slane %v3782, 4
  %v5828 = vsel %vm213, %v5825, %v5827
  %v5829 = vrot.slane %v3783, 4
  %v5830 = vsel %vm213, %v5827, %v5829
  %v5831 = vrot.slane %v3784, 4
  %v5832 = vsel %vm213, %v5829, %v5831
  %v5833 = vrot.slane %v3785, 4
  %v5834 = vsel %vm213, %v5831, %v5833
  %v5835 = vrot.slane %v3786, 4
  %v5836 = vsel %vm213, %v5833, %v5835
  %v5837 = vrot.slane %v3787, 4
  %v5838 = vsel %vm213, %v5835, %v5837
  %v5839 = vrot.slane %v3788, 4
  %v5840 = vsel %vm213, %v5837, %v5839
  %v5841 = vrot.slane %v3789, 4
  %v5842 = vsel %vm213, %v5839, %v5841
  %v5843 = vrot.slane %v3790, 4
  %v5844 = vsel %vm213, %v5841, %v5843
  %v5845 = vrot.slane %v3791, 4
  %v5846 = vsel %vm213, %v5843, %v5845
  %v5847 = vrot.slane %v3792, 4
  %v5848 = vsel %vm213, %v5845, %v5847
  %v5849 = vrot.slane %v3793, 4
  %v5850 = vsel %vm213, %v5847, %v5849
  %v5851 = vrot.slane %v3794, 4
  %v5852 = vsel %vm213, %v5849, %v5851
  %v5853 = vrot.slane %v3795, 4
  %v5854 = vsel %vm213, %v5851, %v5853
  %v5855 = vrot.slane %v3796, 4
  %v5856 = vsel %vm213, %v5853, %v5855
  %v5857 = vrot.slane %v3797, 4
  %v5858 = vsel %vm213, %v5855, %v5857
  %v5859 = vrot.slane %v3798, 4
  %v5860 = vsel %vm213, %v5857, %v5859
  %v5861 = vsel %vm104, %v5790, 0
  %v5863 = vsel %vm104, %v5792, 0
  %v5865 = vsel %vm104, %v5794, 0
  %v5867 = vsel %vm104, %v5796, 0
  %v5869 = vsel %vm104, %v5798, 0
  %v5871 = vsel %vm104, %v5800, 0
  %v5873 = vsel %vm104, %v5802, 0
  %v5875 = vsel %vm104, %v5804, 0
  %v5877 = vsel %vm104, %v5806, 0
  %v5879 = vsel %vm104, %v5808, 0
  %v5881 = vsel %vm104, %v5810, 0
  %v5883 = vsel %vm104, %v5812, 0
  %v5885 = vsel %vm104, %v5814, 0
  %v5887 = vsel %vm104, %v5816, 0
  %v5889 = vsel %vm104, %v5818, 0
  %v5891 = vsel %vm104, %v5820, 0
  %v5893 = vsel %vm104, %v5822, 0
  %v5895 = vsel %vm104, %v5824, 0
  %v5897 = vsel %vm104, %v5826, 0
  %v5899 = vsel %vm104, %v5828, 0
  %v5901 = vsel %vm104, %v5830, 0
  %v5903 = vsel %vm104, %v5832, 0
  %v5905 = vsel %vm104, %v5834, 0
  %v5907 = vsel %vm104, %v5836, 0
  %v5909 = vsel %vm104, %v5838, 0
  %v5911 = vsel %vm104, %v5840, 0
  %v5913 = vsel %vm104, %v5842, 0
  %v5915 = vsel %vm104, %v5844, 0
  %v5917 = vsel %vm104, %v5846, 0
  %v5919 = vsel %vm104, %v5848, 0
  %v5921 = vsel %vm104, %v5850, 0
  %v5923 = vsel %vm104, %v5852, 0
  %v5925 = vsel %vm104, %v5854, 0
  %v5927 = vsel %vm104, %v5856, 0
  %v5929 = vsel %vm104, %v5858, 0
  %v5931 = vsel %vm104, %v5860, 0
  %v5934 = vsel %vm213, %v5787, 0
  %5936 = vmatprep.subr.mxu0 0.0
  %5937 = vmatpush1.msra.mxu0 0.0
  %5938 = vmatprep.subr.mxu0 0.0
  %5939 = vmatpush1.msra.mxu0 0.0
  %5940 = vmatprep.subr.mxu0 0.0
  %5941 = vmatpush1.msra.mxu0 0.0
  %5942 = vmatprep.subr.mxu0 0.0
  %5943 = vmatpush1.msra.mxu0 0.0
  %5944 = vmatprep.subr.mxu0 0.0
  %5945 = vmatpush1.msra.mxu0 0.0
  %5946 = vmatprep.subr.mxu0 0.0
  %5947 = vmatpush1.msra.mxu0 0.0
  %5948 = vmatprep.subr.mxu0 0.0
  %5949 = vmatpush1.msra.mxu0 0.0
  %5950 = vmatprep.subr.mxu0 0.0
  %5951 = vmatpush1.msra.mxu0 0.0
  %5952 = vmatprep.subr.mxu0 0.0
  %5953 = vmatpush1.msra.mxu0 0.0
  %5954 = vmatprep.subr.mxu0 0.0
  %5955 = vmatpush1.msra.mxu0 0.0
  %5956 = vmatprep.subr.mxu0 0.0
  %5957 = vmatpush1.msra.mxu0 0.0
  %5958 = vmatprep.subr.mxu0 0.0
  %5959 = vmatpush1.msra.mxu0 0.0
  %5960 = vmatprep.subr.mxu0 0.0
  %5961 = vmatpush1.msra.mxu0 0.0
  %5962 = vmatprep.subr.mxu0 0.0
  %5963 = vmatpush1.msra.mxu0 0.0
  %5964 = vmatprep.subr.mxu0 0.0
  %5965 = vmatpush1.msra.mxu0 0.0
  %5966 = vmatprep.subr.mxu0 0.0
  %5967 = vmatpush1.msra.mxu0 %v5934
  %5968 = vmatprep.subr.mxu0 0.0
  %5969 = vmatpush2.msra.mxu0 0.0
  %5970 = vmatprep.subr.mxu0 0.0
  %5971 = vmatpush2.msra.mxu0 0.0
  %5972 = vmatprep.subr.mxu0 0.0
  %5973 = vmatpush2.msra.mxu0 0.0
  %5974 = vmatprep.subr.mxu0 0.0
  %5975 = vmatpush2.msra.mxu0 0.0
  %5976 = vmatprep.subr.mxu0 0.0
  %5977 = vmatpush2.msra.mxu0 0.0
  %5978 = vmatprep.subr.mxu0 0.0
  %5979 = vmatpush2.msra.mxu0 0.0
  %5980 = vmatprep.subr.mxu0 0.0
  %5981 = vmatpush2.msra.mxu0 0.0
  %5982 = vmatprep.subr.mxu0 0.0
  %5983 = vmatpush2.msra.mxu0 0.0
  %5984 = vmatprep.subr.mxu0 0.0
  %5985 = vmatpush2.msra.mxu0 0.0
  %5986 = vmatprep.subr.mxu0 0.0
  %5987 = vmatpush2.msra.mxu0 0.0
  %5988 = vmatprep.subr.mxu0 0.0
  %5989 = vmatpush2.msra.mxu0 0.0
  %5990 = vmatprep.subr.mxu0 0.0
  %5991 = vmatpush2.msra.mxu0 0.0
  %5992 = vmatprep.subr.mxu0 0.0
  %5993 = vmatpush2.msra.mxu0 0.0
  %5994 = vmatprep.subr.mxu0 0.0
  %5995 = vmatpush2.msra.mxu0 0.0
  %5996 = vmatprep.subr.mxu0 0.0
  %5997 = vmatpush2.msra.mxu0 0.0
  %5998 = vmatprep.subr.mxu0 0.0
  %5999 = vmatpush2.msra.mxu0 0.0
  %6000 = vmatprep.mubr.f32.mxu0 0.0
  %6001 = vmatmul.mubr.f32.gmra.mxu0 %v5861
  %v6002 = vpop.f32.mrf.mxu0
  %v6003 = vadd.f32 0.0, %v6002
  %v6004 = vpop.f32.mrf.mxu0
  %6005 = vmatprep.mubr.f32.mxu0 0.0
  %6006 = vmatmul.mubr.f32.gmra.mxu0 %v5863
  %v6007 = vpop.f32.mrf.mxu0
  %v6008 = vadd.f32 0.0, %v6007
  %v6009 = vpop.f32.mrf.mxu0
  %6010 = vmatprep.mubr.f32.mxu0 0.0
  %6011 = vmatmul.mubr.f32.gmra.mxu0 %v5865
  %v6012 = vpop.f32.mrf.mxu0
  %v6013 = vadd.f32 0.0, %v6012
  %v6014 = vpop.f32.mrf.mxu0
  %6015 = vmatprep.mubr.f32.mxu0 0.0
  %6016 = vmatmul.mubr.f32.gmra.mxu0 %v5867
  %v6017 = vpop.f32.mrf.mxu0
  %v6018 = vadd.f32 0.0, %v6017
  %v6019 = vpop.f32.mrf.mxu0
  %6020 = vmatprep.mubr.f32.mxu0 0.0
  %6021 = vmatmul.mubr.f32.gmra.mxu0 %v5869
  %v6022 = vpop.f32.mrf.mxu0
  %v6023 = vadd.f32 0.0, %v6022
  %v6024 = vpop.f32.mrf.mxu0
  %6025 = vmatprep.mubr.f32.mxu0 0.0
  %6026 = vmatmul.mubr.f32.gmra.mxu0 %v5871
  %v6027 = vpop.f32.mrf.mxu0
  %v6028 = vadd.f32 0.0, %v6027
  %v6029 = vpop.f32.mrf.mxu0
  %6030 = vmatprep.mubr.f32.mxu0 0.0
  %6031 = vmatmul.mubr.f32.gmra.mxu0 %v5873
  %v6032 = vpop.f32.mrf.mxu0
  %v6033 = vadd.f32 0.0, %v6032
  %v6034 = vpop.f32.mrf.mxu0
  %6035 = vmatprep.mubr.f32.mxu0 0.0
  %6036 = vmatmul.mubr.f32.gmra.mxu0 %v5875
  %v6037 = vpop.f32.mrf.mxu0
  %v6038 = vadd.f32 0.0, %v6037
  %v6039 = vpop.f32.mrf.mxu0
  %6040 = vmatprep.mubr.f32.mxu0 0.0
  %6041 = vmatmul.mubr.f32.gmra.mxu0 %v5877
  %v6042 = vpop.f32.mrf.mxu0
  %v6043 = vadd.f32 0.0, %v6042
  %v6044 = vpop.f32.mrf.mxu0
  %6045 = vmatprep.mubr.f32.mxu0 0.0
  %6046 = vmatmul.mubr.f32.gmra.mxu0 %v5879
  %v6047 = vpop.f32.mrf.mxu0
  %v6048 = vadd.f32 0.0, %v6047
  %v6049 = vpop.f32.mrf.mxu0
  %6050 = vmatprep.mubr.f32.mxu0 0.0
  %6051 = vmatmul.mubr.f32.gmra.mxu0 %v5881
  %v6052 = vpop.f32.mrf.mxu0
  %v6053 = vadd.f32 0.0, %v6052
  %v6054 = vpop.f32.mrf.mxu0
  %6055 = vmatprep.mubr.f32.mxu0 0.0
  %6056 = vmatmul.mubr.f32.gmra.mxu0 %v5883
  %v6057 = vpop.f32.mrf.mxu0
  %v6058 = vadd.f32 0.0, %v6057
  %v6059 = vpop.f32.mrf.mxu0
  %6060 = vmatprep.mubr.f32.mxu0 0.0
  %6061 = vmatmul.mubr.f32.gmra.mxu0 %v5885
  %v6062 = vpop.f32.mrf.mxu0
  %v6063 = vadd.f32 0.0, %v6062
  %v6064 = vpop.f32.mrf.mxu0
  %6065 = vmatprep.mubr.f32.mxu0 0.0
  %6066 = vmatmul.mubr.f32.gmra.mxu0 %v5887
  %v6067 = vpop.f32.mrf.mxu0
  %v6068 = vadd.f32 0.0, %v6067
  %v6069 = vpop.f32.mrf.mxu0
  %6070 = vmatprep.mubr.f32.mxu0 0.0
  %6071 = vmatmul.mubr.f32.gmra.mxu0 %v5889
  %v6072 = vpop.f32.mrf.mxu0
  %v6073 = vadd.f32 0.0, %v6072
  %v6074 = vpop.f32.mrf.mxu0
  %6075 = vmatprep.mubr.f32.mxu0 0.0
  %6076 = vmatmul.mubr.f32.gmra.mxu0 %v5891
  %v6077 = vpop.f32.mrf.mxu0
  %v6078 = vadd.f32 0.0, %v6077
  %v6079 = vpop.f32.mrf.mxu0
  %6080 = vmatprep.mubr.f32.mxu0 0.0
  %6081 = vmatmul.mubr.f32.gmra.mxu0 %v5893
  %v6082 = vpop.f32.mrf.mxu0
  %v6083 = vadd.f32 0.0, %v6082
  %v6084 = vpop.f32.mrf.mxu0
  %6085 = vmatprep.mubr.f32.mxu0 0.0
  %6086 = vmatmul.mubr.f32.gmra.mxu0 %v5895
  %v6087 = vpop.f32.mrf.mxu0
  %v6088 = vadd.f32 0.0, %v6087
  %v6089 = vpop.f32.mrf.mxu0
  %6090 = vmatprep.mubr.f32.mxu0 0.0
  %6091 = vmatmul.mubr.f32.gmra.mxu0 %v5897
  %v6092 = vpop.f32.mrf.mxu0
  %v6093 = vadd.f32 0.0, %v6092
  %v6094 = vpop.f32.mrf.mxu0
  %6095 = vmatprep.mubr.f32.mxu0 0.0
  %6096 = vmatmul.mubr.f32.gmra.mxu0 %v5899
  %v6097 = vpop.f32.mrf.mxu0
  %v6098 = vadd.f32 0.0, %v6097
  %v6099 = vpop.f32.mrf.mxu0
  %6100 = vmatprep.mubr.f32.mxu0 0.0
  %6101 = vmatmul.mubr.f32.gmra.mxu0 %v5901
  %v6102 = vpop.f32.mrf.mxu0
  %v6103 = vadd.f32 0.0, %v6102
  %v6104 = vpop.f32.mrf.mxu0
  %6105 = vmatprep.mubr.f32.mxu0 0.0
  %6106 = vmatmul.mubr.f32.gmra.mxu0 %v5903
  %v6107 = vpop.f32.mrf.mxu0
  %v6108 = vadd.f32 0.0, %v6107
  %v6109 = vpop.f32.mrf.mxu0
  %6110 = vmatprep.mubr.f32.mxu0 0.0
  %6111 = vmatmul.mubr.f32.gmra.mxu0 %v5905
  %v6112 = vpop.f32.mrf.mxu0
  %v6113 = vadd.f32 0.0, %v6112
  %v6114 = vpop.f32.mrf.mxu0
  %6115 = vmatprep.mubr.f32.mxu0 0.0
  %6116 = vmatmul.mubr.f32.gmra.mxu0 %v5907
  %v6117 = vpop.f32.mrf.mxu0
  %v6118 = vadd.f32 0.0, %v6117
  %v6119 = vpop.f32.mrf.mxu0
  %6120 = vmatprep.mubr.f32.mxu0 0.0
  %6121 = vmatmul.mubr.f32.gmra.mxu0 %v5909
  %v6122 = vpop.f32.mrf.mxu0
  %v6123 = vadd.f32 0.0, %v6122
  %v6124 = vpop.f32.mrf.mxu0
  %6125 = vmatprep.mubr.f32.mxu0 0.0
  %6126 = vmatmul.mubr.f32.gmra.mxu0 %v5911
  %v6127 = vpop.f32.mrf.mxu0
  %v6128 = vadd.f32 0.0, %v6127
  %v6129 = vpop.f32.mrf.mxu0
  %6130 = vmatprep.mubr.f32.mxu0 0.0
  %6131 = vmatmul.mubr.f32.gmra.mxu0 %v5913
  %v6132 = vpop.f32.mrf.mxu0
  %v6133 = vadd.f32 0.0, %v6132
  %v6134 = vpop.f32.mrf.mxu0
  %6135 = vmatprep.mubr.f32.mxu0 0.0
  %6136 = vmatmul.mubr.f32.gmra.mxu0 %v5915
  %v6137 = vpop.f32.mrf.mxu0
  %v6138 = vadd.f32 0.0, %v6137
  %v6139 = vpop.f32.mrf.mxu0
  %6140 = vmatprep.mubr.f32.mxu0 0.0
  %6141 = vmatmul.mubr.f32.gmra.mxu0 %v5917
  %v6142 = vpop.f32.mrf.mxu0
  %v6143 = vadd.f32 0.0, %v6142
  %v6144 = vpop.f32.mrf.mxu0
  %6145 = vmatprep.mubr.f32.mxu0 0.0
  %6146 = vmatmul.mubr.f32.gmra.mxu0 %v5919
  %v6147 = vpop.f32.mrf.mxu0
  %v6148 = vadd.f32 0.0, %v6147
  %v6149 = vpop.f32.mrf.mxu0
  %6150 = vmatprep.mubr.f32.mxu0 0.0
  %6151 = vmatmul.mubr.f32.gmra.mxu0 %v5921
  %v6152 = vpop.f32.mrf.mxu0
  %v6153 = vadd.f32 0.0, %v6152
  %v6154 = vpop.f32.mrf.mxu0
  %6155 = vmatprep.mubr.f32.mxu0 0.0
  %6156 = vmatmul.mubr.f32.gmra.mxu0 %v5923
  %v6157 = vpop.f32.mrf.mxu0
  %v6158 = vadd.f32 0.0, %v6157
  %v6159 = vpop.f32.mrf.mxu0
  %6160 = vmatprep.mubr.f32.mxu0 0.0
  %6161 = vmatmul.mubr.f32.gmra.mxu0 %v5925
  %v6162 = vpop.f32.mrf.mxu0
  %v6163 = vadd.f32 0.0, %v6162
  %v6164 = vpop.f32.mrf.mxu0
  %6165 = vmatprep.mubr.f32.mxu0 0.0
  %6166 = vmatmul.mubr.f32.gmra.mxu0 %v5927
  %v6167 = vpop.f32.mrf.mxu0
  %v6168 = vadd.f32 0.0, %v6167
  %v6169 = vpop.f32.mrf.mxu0
  %6170 = vmatprep.mubr.f32.mxu0 0.0
  %6171 = vmatmul.mubr.f32.gmra.mxu0 %v5929
  %v6172 = vpop.f32.mrf.mxu0
  %v6173 = vadd.f32 0.0, %v6172
  %v6174 = vpop.f32.mrf.mxu0
  %6175 = vmatprep.mubr.f32.mxu0 0.0
  %6176 = vmatmul.mubr.f32.gmra.mxu0 %v5931
  %v6177 = vpop.f32.mrf.mxu0
  %v6178 = vadd.f32 0.0, %v6177
  %v6179 = vpop.f32.mrf.mxu0
  %6180 = vdwg.mxu0
  %v6181 = vadd.f32 %v5751, %v6003
  %v6182 = vadd.f32 %v5752, %v6008
  %v6183 = vadd.f32 %v5753, %v6013
  %v6184 = vadd.f32 %v5754, %v6018
  %v6185 = vadd.f32 %v5755, %v6023
  %v6186 = vadd.f32 %v5756, %v6028
  %v6187 = vadd.f32 %v5757, %v6033
  %v6188 = vadd.f32 %v5758, %v6038
  %v6189 = vadd.f32 %v5759, %v6043
  %v6190 = vadd.f32 %v5760, %v6048
  %v6191 = vadd.f32 %v5761, %v6053
  %v6192 = vadd.f32 %v5762, %v6058
  %v6193 = vadd.f32 %v5763, %v6063
  %v6194 = vadd.f32 %v5764, %v6068
  %v6195 = vadd.f32 %v5765, %v6073
  %v6196 = vadd.f32 %v5766, %v6078
  %v6197 = vadd.f32 %v5767, %v6083
  %v6198 = vadd.f32 %v5768, %v6088
  %v6199 = vadd.f32 %v5769, %v6093
  %v6200 = vadd.f32 %v5770, %v6098
  %v6201 = vadd.f32 %v5771, %v6103
  %v6202 = vadd.f32 %v5772, %v6108
  %v6203 = vadd.f32 %v5773, %v6113
  %v6204 = vadd.f32 %v5774, %v6118
  %v6205 = vadd.f32 %v5775, %v6123
  %v6206 = vadd.f32 %v5776, %v6128
  %v6207 = vadd.f32 %v5777, %v6133
  %v6208 = vadd.f32 %v5778, %v6138
  %v6209 = vadd.f32 %v5779, %v6143
  %v6210 = vadd.f32 %v5780, %v6148
  %v6211 = vadd.f32 %v5781, %v6153
  %v6212 = vadd.f32 %v5782, %v6158
  %v6213 = vadd.f32 %v5783, %v6163
  %v6214 = vadd.f32 %v5784, %v6168
  %v6215 = vadd.f32 %v5785, %v6173
  %v6216 = vadd.f32 %v5786, %v6178
  %v6217 = vld [vmem:[%s2522] sm:$0xf]
  %v6220 = vrot.slane %v3799, 4
  %v6221 = vsel %vm213, %v5859, %v6220
  %v6222 = vrot.slane %v3800, 4
  %v6223 = vsel %vm213, %v6220, %v6222
  %v6224 = vsel %vm104, %v6221, 0
  %v6226 = vsel %vm104, %v6223, 0
  %v6229 = vsel %vm213, %v6217, 0
  %6231 = vmatprep.subr.mxu0 0.0
  %6232 = vmatpush1.msra.mxu0 0.0
  %6233 = vmatprep.subr.mxu0 0.0
  %6234 = vmatpush1.msra.mxu0 0.0
  %6235 = vmatprep.subr.mxu0 0.0
  %6236 = vmatpush1.msra.mxu0 0.0
  %6237 = vmatprep.subr.mxu0 0.0
  %6238 = vmatpush1.msra.mxu0 0.0
  %6239 = vmatprep.subr.mxu0 0.0
  %6240 = vmatpush1.msra.mxu0 0.0
  %6241 = vmatprep.subr.mxu0 0.0
  %6242 = vmatpush1.msra.mxu0 0.0
  %6243 = vmatprep.subr.mxu0 0.0
  %6244 = vmatpush1.msra.mxu0 0.0
  %6245 = vmatprep.subr.mxu0 0.0
  %6246 = vmatpush1.msra.mxu0 0.0
  %6247 = vmatprep.subr.mxu0 0.0
  %6248 = vmatpush1.msra.mxu0 0.0
  %6249 = vmatprep.subr.mxu0 0.0
  %6250 = vmatpush1.msra.mxu0 0.0
  %6251 = vmatprep.subr.mxu0 0.0
  %6252 = vmatpush1.msra.mxu0 0.0
  %6253 = vmatprep.subr.mxu0 0.0
  %6254 = vmatpush1.msra.mxu0 0.0
  %6255 = vmatprep.subr.mxu0 0.0
  %6256 = vmatpush1.msra.mxu0 0.0
  %6257 = vmatprep.subr.mxu0 0.0
  %6258 = vmatpush1.msra.mxu0 0.0
  %6259 = vmatprep.subr.mxu0 0.0
  %6260 = vmatpush1.msra.mxu0 0.0
  %6261 = vmatprep.subr.mxu0 0.0
  %6262 = vmatpush1.msra.mxu0 %v6229
  %6263 = vmatprep.subr.mxu0 0.0
  %6264 = vmatpush2.msra.mxu0 0.0
  %6265 = vmatprep.subr.mxu0 0.0
  %6266 = vmatpush2.msra.mxu0 0.0
  %6267 = vmatprep.subr.mxu0 0.0
  %6268 = vmatpush2.msra.mxu0 0.0
  %6269 = vmatprep.subr.mxu0 0.0
  %6270 = vmatpush2.msra.mxu0 0.0
  %6271 = vmatprep.subr.mxu0 0.0
  %6272 = vmatpush2.msra.mxu0 0.0
  %6273 = vmatprep.subr.mxu0 0.0
  %6274 = vmatpush2.msra.mxu0 0.0
  %6275 = vmatprep.subr.mxu0 0.0
  %6276 = vmatpush2.msra.mxu0 0.0
  %6277 = vmatprep.subr.mxu0 0.0
  %6278 = vmatpush2.msra.mxu0 0.0
  %6279 = vmatprep.subr.mxu0 0.0
  %6280 = vmatpush2.msra.mxu0 0.0
  %6281 = vmatprep.subr.mxu0 0.0
  %6282 = vmatpush2.msra.mxu0 0.0
  %6283 = vmatprep.subr.mxu0 0.0
  %6284 = vmatpush2.msra.mxu0 0.0
  %6285 = vmatprep.subr.mxu0 0.0
  %6286 = vmatpush2.msra.mxu0 0.0
  %6287 = vmatprep.subr.mxu0 0.0
  %6288 = vmatpush2.msra.mxu0 0.0
  %6289 = vmatprep.subr.mxu0 0.0
  %6290 = vmatpush2.msra.mxu0 0.0
  %6291 = vmatprep.subr.mxu0 0.0
  %6292 = vmatpush2.msra.mxu0 0.0
  %6293 = vmatprep.subr.mxu0 0.0
  %6294 = vmatpush2.msra.mxu0 0.0
  %6295 = vmatprep.mubr.f32.mxu0 0.0
  %6296 = vmatmul.mubr.f32.gmra.mxu0 %v5865
  %v6297 = vpop.f32.mrf.mxu0
  %v6298 = vadd.f32 0.0, %v6297
  %v6299 = vpop.f32.mrf.mxu0
  %6300 = vmatprep.mubr.f32.mxu0 0.0
  %6301 = vmatmul.mubr.f32.gmra.mxu0 %v5867
  %v6302 = vpop.f32.mrf.mxu0
  %v6303 = vadd.f32 0.0, %v6302
  %v6304 = vpop.f32.mrf.mxu0
  %6305 = vmatprep.mubr.f32.mxu0 0.0
  %6306 = vmatmul.mubr.f32.gmra.mxu0 %v5869
  %v6307 = vpop.f32.mrf.mxu0
  %v6308 = vadd.f32 0.0, %v6307
  %v6309 = vpop.f32.mrf.mxu0
  %6310 = vmatprep.mubr.f32.mxu0 0.0
  %6311 = vmatmul.mubr.f32.gmra.mxu0 %v5871
  %v6312 = vpop.f32.mrf.mxu0
  %v6313 = vadd.f32 0.0, %v6312
  %v6314 = vpop.f32.mrf.mxu0
  %6315 = vmatprep.mubr.f32.mxu0 0.0
  %6316 = vmatmul.mubr.f32.gmra.mxu0 %v5873
  %v6317 = vpop.f32.mrf.mxu0
  %v6318 = vadd.f32 0.0, %v6317
  %v6319 = vpop.f32.mrf.mxu0
  %6320 = vmatprep.mubr.f32.mxu0 0.0
  %6321 = vmatmul.mubr.f32.gmra.mxu0 %v5875
  %v6322 = vpop.f32.mrf.mxu0
  %v6323 = vadd.f32 0.0, %v6322
  %v6324 = vpop.f32.mrf.mxu0
  %6325 = vmatprep.mubr.f32.mxu0 0.0
  %6326 = vmatmul.mubr.f32.gmra.mxu0 %v5877
  %v6327 = vpop.f32.mrf.mxu0
  %v6328 = vadd.f32 0.0, %v6327
  %v6329 = vpop.f32.mrf.mxu0
  %6330 = vmatprep.mubr.f32.mxu0 0.0
  %6331 = vmatmul.mubr.f32.gmra.mxu0 %v5879
  %v6332 = vpop.f32.mrf.mxu0
  %v6333 = vadd.f32 0.0, %v6332
  %v6334 = vpop.f32.mrf.mxu0
  %6335 = vmatprep.mubr.f32.mxu0 0.0
  %6336 = vmatmul.mubr.f32.gmra.mxu0 %v5881
  %v6337 = vpop.f32.mrf.mxu0
  %v6338 = vadd.f32 0.0, %v6337
  %v6339 = vpop.f32.mrf.mxu0
  %6340 = vmatprep.mubr.f32.mxu0 0.0
  %6341 = vmatmul.mubr.f32.gmra.mxu0 %v5883
  %v6342 = vpop.f32.mrf.mxu0
  %v6343 = vadd.f32 0.0, %v6342
  %v6344 = vpop.f32.mrf.mxu0
  %6345 = vmatprep.mubr.f32.mxu0 0.0
  %6346 = vmatmul.mubr.f32.gmra.mxu0 %v5885
  %v6347 = vpop.f32.mrf.mxu0
  %v6348 = vadd.f32 0.0, %v6347
  %v6349 = vpop.f32.mrf.mxu0
  %6350 = vmatprep.mubr.f32.mxu0 0.0
  %6351 = vmatmul.mubr.f32.gmra.mxu0 %v5887
  %v6352 = vpop.f32.mrf.mxu0
  %v6353 = vadd.f32 0.0, %v6352
  %v6354 = vpop.f32.mrf.mxu0
  %6355 = vmatprep.mubr.f32.mxu0 0.0
  %6356 = vmatmul.mubr.f32.gmra.mxu0 %v5889
  %v6357 = vpop.f32.mrf.mxu0
  %v6358 = vadd.f32 0.0, %v6357
  %v6359 = vpop.f32.mrf.mxu0
  %6360 = vmatprep.mubr.f32.mxu0 0.0
  %6361 = vmatmul.mubr.f32.gmra.mxu0 %v5891
  %v6362 = vpop.f32.mrf.mxu0
  %v6363 = vadd.f32 0.0, %v6362
  %v6364 = vpop.f32.mrf.mxu0
  %6365 = vmatprep.mubr.f32.mxu0 0.0
  %6366 = vmatmul.mubr.f32.gmra.mxu0 %v5893
  %v6367 = vpop.f32.mrf.mxu0
  %v6368 = vadd.f32 0.0, %v6367
  %v6369 = vpop.f32.mrf.mxu0
  %6370 = vmatprep.mubr.f32.mxu0 0.0
  %6371 = vmatmul.mubr.f32.gmra.mxu0 %v5895
  %v6372 = vpop.f32.mrf.mxu0
  %v6373 = vadd.f32 0.0, %v6372
  %v6374 = vpop.f32.mrf.mxu0
  %6375 = vmatprep.mubr.f32.mxu0 0.0
  %6376 = vmatmul.mubr.f32.gmra.mxu0 %v5897
  %v6377 = vpop.f32.mrf.mxu0
  %v6378 = vadd.f32 0.0, %v6377
  %v6379 = vpop.f32.mrf.mxu0
  %6380 = vmatprep.mubr.f32.mxu0 0.0
  %6381 = vmatmul.mubr.f32.gmra.mxu0 %v5899
  %v6382 = vpop.f32.mrf.mxu0
  %v6383 = vadd.f32 0.0, %v6382
  %v6384 = vpop.f32.mrf.mxu0
  %6385 = vmatprep.mubr.f32.mxu0 0.0
  %6386 = vmatmul.mubr.f32.gmra.mxu0 %v5901
  %v6387 = vpop.f32.mrf.mxu0
  %v6388 = vadd.f32 0.0, %v6387
  %v6389 = vpop.f32.mrf.mxu0
  %6390 = vmatprep.mubr.f32.mxu0 0.0
  %6391 = vmatmul.mubr.f32.gmra.mxu0 %v5903
  %v6392 = vpop.f32.mrf.mxu0
  %v6393 = vadd.f32 0.0, %v6392
  %v6394 = vpop.f32.mrf.mxu0
  %6395 = vmatprep.mubr.f32.mxu0 0.0
  %6396 = vmatmul.mubr.f32.gmra.mxu0 %v5905
  %v6397 = vpop.f32.mrf.mxu0
  %v6398 = vadd.f32 0.0, %v6397
  %v6399 = vpop.f32.mrf.mxu0
  %6400 = vmatprep.mubr.f32.mxu0 0.0
  %6401 = vmatmul.mubr.f32.gmra.mxu0 %v5907
  %v6402 = vpop.f32.mrf.mxu0
  %v6403 = vadd.f32 0.0, %v6402
  %v6404 = vpop.f32.mrf.mxu0
  %6405 = vmatprep.mubr.f32.mxu0 0.0
  %6406 = vmatmul.mubr.f32.gmra.mxu0 %v5909
  %v6407 = vpop.f32.mrf.mxu0
  %v6408 = vadd.f32 0.0, %v6407
  %v6409 = vpop.f32.mrf.mxu0
  %6410 = vmatprep.mubr.f32.mxu0 0.0
  %6411 = vmatmul.mubr.f32.gmra.mxu0 %v5911
  %v6412 = vpop.f32.mrf.mxu0
  %v6413 = vadd.f32 0.0, %v6412
  %v6414 = vpop.f32.mrf.mxu0
  %6415 = vmatprep.mubr.f32.mxu0 0.0
  %6416 = vmatmul.mubr.f32.gmra.mxu0 %v5913
  %v6417 = vpop.f32.mrf.mxu0
  %v6418 = vadd.f32 0.0, %v6417
  %v6419 = vpop.f32.mrf.mxu0
  %6420 = vmatprep.mubr.f32.mxu0 0.0
  %6421 = vmatmul.mubr.f32.gmra.mxu0 %v5915
  %v6422 = vpop.f32.mrf.mxu0
  %v6423 = vadd.f32 0.0, %v6422
  %v6424 = vpop.f32.mrf.mxu0
  %6425 = vmatprep.mubr.f32.mxu0 0.0
  %6426 = vmatmul.mubr.f32.gmra.mxu0 %v5917
  %v6427 = vpop.f32.mrf.mxu0
  %v6428 = vadd.f32 0.0, %v6427
  %v6429 = vpop.f32.mrf.mxu0
  %6430 = vmatprep.mubr.f32.mxu0 0.0
  %6431 = vmatmul.mubr.f32.gmra.mxu0 %v5919
  %v6432 = vpop.f32.mrf.mxu0
  %v6433 = vadd.f32 0.0, %v6432
  %v6434 = vpop.f32.mrf.mxu0
  %6435 = vmatprep.mubr.f32.mxu0 0.0
  %6436 = vmatmul.mubr.f32.gmra.mxu0 %v5921
  %v6437 = vpop.f32.mrf.mxu0
  %v6438 = vadd.f32 0.0, %v6437
  %v6439 = vpop.f32.mrf.mxu0
  %6440 = vmatprep.mubr.f32.mxu0 0.0
  %6441 = vmatmul.mubr.f32.gmra.mxu0 %v5923
  %v6442 = vpop.f32.mrf.mxu0
  %v6443 = vadd.f32 0.0, %v6442
  %v6444 = vpop.f32.mrf.mxu0
  %6445 = vmatprep.mubr.f32.mxu0 0.0
  %6446 = vmatmul.mubr.f32.gmra.mxu0 %v5925
  %v6447 = vpop.f32.mrf.mxu0
  %v6448 = vadd.f32 0.0, %v6447
  %v6449 = vpop.f32.mrf.mxu0
  %6450 = vmatprep.mubr.f32.mxu0 0.0
  %6451 = vmatmul.mubr.f32.gmra.mxu0 %v5927
  %v6452 = vpop.f32.mrf.mxu0
  %v6453 = vadd.f32 0.0, %v6452
  %v6454 = vpop.f32.mrf.mxu0
  %6455 = vmatprep.mubr.f32.mxu0 0.0
  %6456 = vmatmul.mubr.f32.gmra.mxu0 %v5929
  %v6457 = vpop.f32.mrf.mxu0
  %v6458 = vadd.f32 0.0, %v6457
  %v6459 = vpop.f32.mrf.mxu0
  %6460 = vmatprep.mubr.f32.mxu0 0.0
  %6461 = vmatmul.mubr.f32.gmra.mxu0 %v5931
  %v6462 = vpop.f32.mrf.mxu0
  %v6463 = vadd.f32 0.0, %v6462
  %v6464 = vpop.f32.mrf.mxu0
  %6465 = vmatprep.mubr.f32.mxu0 0.0
  %6466 = vmatmul.mubr.f32.gmra.mxu0 %v6224
  %v6467 = vpop.f32.mrf.mxu0
  %v6468 = vadd.f32 0.0, %v6467
  %v6469 = vpop.f32.mrf.mxu0
  %6470 = vmatprep.mubr.f32.mxu0 0.0
  %6471 = vmatmul.mubr.f32.gmra.mxu0 %v6226
  %v6472 = vpop.f32.mrf.mxu0
  %v6473 = vadd.f32 0.0, %v6472
  %v6474 = vpop.f32.mrf.mxu0
  %6475 = vdwg.mxu0
  %v6476 = vadd.f32 %v6181, %v6298
  %v6477 = vadd.f32 %v6182, %v6303
  %v6478 = vadd.f32 %v6183, %v6308
  %v6479 = vadd.f32 %v6184, %v6313
  %v6480 = vadd.f32 %v6185, %v6318
  %v6481 = vadd.f32 %v6186, %v6323
  %v6482 = vadd.f32 %v6187, %v6328
  %v6483 = vadd.f32 %v6188, %v6333
  %v6484 = vadd.f32 %v6189, %v6338
  %v6485 = vadd.f32 %v6190, %v6343
  %v6486 = vadd.f32 %v6191, %v6348
  %v6487 = vadd.f32 %v6192, %v6353
  %v6488 = vadd.f32 %v6193, %v6358
  %v6489 = vadd.f32 %v6194, %v6363
  %v6490 = vadd.f32 %v6195, %v6368
  %v6491 = vadd.f32 %v6196, %v6373
  %v6492 = vadd.f32 %v6197, %v6378
  %v6493 = vadd.f32 %v6198, %v6383
  %v6494 = vadd.f32 %v6199, %v6388
  %v6495 = vadd.f32 %v6200, %v6393
  %v6496 = vadd.f32 %v6201, %v6398
  %v6497 = vadd.f32 %v6202, %v6403
  %v6498 = vadd.f32 %v6203, %v6408
  %v6499 = vadd.f32 %v6204, %v6413
  %v6500 = vadd.f32 %v6205, %v6418
  %v6501 = vadd.f32 %v6206, %v6423
  %v6502 = vadd.f32 %v6207, %v6428
  %v6503 = vadd.f32 %v6208, %v6433
  %v6504 = vadd.f32 %v6209, %v6438
  %v6505 = vadd.f32 %v6210, %v6443
  %v6506 = vadd.f32 %v6211, %v6448
  %v6507 = vadd.f32 %v6212, %v6453
  %v6508 = vadd.f32 %v6213, %v6458
  %v6509 = vadd.f32 %v6214, %v6463
  %v6510 = vadd.f32 %v6215, %v6468
  %v6511 = vadd.f32 %v6216, %v6473
  %v6512 = vld [vmem:[%s2818] sm:$0xf]
  %v6513 = vrot.slane %v3764, 5
  %v6514 = vrot.slane %v3765, 5
  %v6515 = vsel %vm2820, %v6513, %v6514
  %v6516 = vrot.slane %v3766, 5
  %v6517 = vsel %vm2820, %v6514, %v6516
  %v6518 = vrot.slane %v3767, 5
  %v6519 = vsel %vm2820, %v6516, %v6518
  %v6520 = vrot.slane %v3768, 5
  %v6521 = vsel %vm2820, %v6518, %v6520
  %v6522 = vrot.slane %v3769, 5
  %v6523 = vsel %vm2820, %v6520, %v6522
  %v6524 = vrot.slane %v3770, 5
  %v6525 = vsel %vm2820, %v6522, %v6524
  %v6526 = vrot.slane %v3771, 5
  %v6527 = vsel %vm2820, %v6524, %v6526
  %v6528 = vrot.slane %v3772, 5
  %v6529 = vsel %vm2820, %v6526, %v6528
  %v6530 = vrot.slane %v3773, 5
  %v6531 = vsel %vm2820, %v6528, %v6530
  %v6532 = vrot.slane %v3774, 5
  %v6533 = vsel %vm2820, %v6530, %v6532
  %v6534 = vrot.slane %v3775, 5
  %v6535 = vsel %vm2820, %v6532, %v6534
  %v6536 = vrot.slane %v3776, 5
  %v6537 = vsel %vm2820, %v6534, %v6536
  %v6538 = vrot.slane %v3777, 5
  %v6539 = vsel %vm2820, %v6536, %v6538
  %v6540 = vrot.slane %v3778, 5
  %v6541 = vsel %vm2820, %v6538, %v6540
  %v6542 = vrot.slane %v3779, 5
  %v6543 = vsel %vm2820, %v6540, %v6542
  %v6544 = vrot.slane %v3780, 5
  %v6545 = vsel %vm2820, %v6542, %v6544
  %v6546 = vrot.slane %v3781, 5
  %v6547 = vsel %vm2820, %v6544, %v6546
  %v6548 = vrot.slane %v3782, 5
  %v6549 = vsel %vm2820, %v6546, %v6548
  %v6550 = vrot.slane %v3783, 5
  %v6551 = vsel %vm2820, %v6548, %v6550
  %v6552 = vrot.slane %v3784, 5
  %v6553 = vsel %vm2820, %v6550, %v6552
  %v6554 = vrot.slane %v3785, 5
  %v6555 = vsel %vm2820, %v6552, %v6554
  %v6556 = vrot.slane %v3786, 5
  %v6557 = vsel %vm2820, %v6554, %v6556
  %v6558 = vrot.slane %v3787, 5
  %v6559 = vsel %vm2820, %v6556, %v6558
  %v6560 = vrot.slane %v3788, 5
  %v6561 = vsel %vm2820, %v6558, %v6560
  %v6562 = vrot.slane %v3789, 5
  %v6563 = vsel %vm2820, %v6560, %v6562
  %v6564 = vrot.slane %v3790, 5
  %v6565 = vsel %vm2820, %v6562, %v6564
  %v6566 = vrot.slane %v3791, 5
  %v6567 = vsel %vm2820, %v6564, %v6566
  %v6568 = vrot.slane %v3792, 5
  %v6569 = vsel %vm2820, %v6566, %v6568
  %v6570 = vrot.slane %v3793, 5
  %v6571 = vsel %vm2820, %v6568, %v6570
  %v6572 = vrot.slane %v3794, 5
  %v6573 = vsel %vm2820, %v6570, %v6572
  %v6574 = vrot.slane %v3795, 5
  %v6575 = vsel %vm2820, %v6572, %v6574
  %v6576 = vrot.slane %v3796, 5
  %v6577 = vsel %vm2820, %v6574, %v6576
  %v6578 = vrot.slane %v3797, 5
  %v6579 = vsel %vm2820, %v6576, %v6578
  %v6580 = vrot.slane %v3798, 5
  %v6581 = vsel %vm2820, %v6578, %v6580
  %v6582 = vrot.slane %v3799, 5
  %v6583 = vsel %vm2820, %v6580, %v6582
  %v6584 = vrot.slane %v3800, 5
  %v6585 = vsel %vm2820, %v6582, %v6584
  %v6586 = vsel %vm104, %v6515, 0
  %v6588 = vsel %vm104, %v6517, 0
  %v6590 = vsel %vm104, %v6519, 0
  %v6592 = vsel %vm104, %v6521, 0
  %v6594 = vsel %vm104, %v6523, 0
  %v6596 = vsel %vm104, %v6525, 0
  %v6598 = vsel %vm104, %v6527, 0
  %v6600 = vsel %vm104, %v6529, 0
  %v6602 = vsel %vm104, %v6531, 0
  %v6604 = vsel %vm104, %v6533, 0
  %v6606 = vsel %vm104, %v6535, 0
  %v6608 = vsel %vm104, %v6537, 0
  %v6610 = vsel %vm104, %v6539, 0
  %v6612 = vsel %vm104, %v6541, 0
  %v6614 = vsel %vm104, %v6543, 0
  %v6616 = vsel %vm104, %v6545, 0
  %v6618 = vsel %vm104, %v6547, 0
  %v6620 = vsel %vm104, %v6549, 0
  %v6622 = vsel %vm104, %v6551, 0
  %v6624 = vsel %vm104, %v6553, 0
  %v6626 = vsel %vm104, %v6555, 0
  %v6628 = vsel %vm104, %v6557, 0
  %v6630 = vsel %vm104, %v6559, 0
  %v6632 = vsel %vm104, %v6561, 0
  %v6634 = vsel %vm104, %v6563, 0
  %v6636 = vsel %vm104, %v6565, 0
  %v6638 = vsel %vm104, %v6567, 0
  %v6640 = vsel %vm104, %v6569, 0
  %v6642 = vsel %vm104, %v6571, 0
  %v6644 = vsel %vm104, %v6573, 0
  %v6646 = vsel %vm104, %v6575, 0
  %v6648 = vsel %vm104, %v6577, 0
  %v6650 = vsel %vm104, %v6579, 0
  %v6652 = vsel %vm104, %v6581, 0
  %v6654 = vsel %vm104, %v6583, 0
  %v6656 = vsel %vm104, %v6585, 0
  %v6659 = vsel %vm213, %v6512, 0
  %6661 = vmatprep.subr.mxu0 0.0
  %6662 = vmatpush1.msra.mxu0 0.0
  %6663 = vmatprep.subr.mxu0 0.0
  %6664 = vmatpush1.msra.mxu0 0.0
  %6665 = vmatprep.subr.mxu0 0.0
  %6666 = vmatpush1.msra.mxu0 0.0
  %6667 = vmatprep.subr.mxu0 0.0
  %6668 = vmatpush1.msra.mxu0 0.0
  %6669 = vmatprep.subr.mxu0 0.0
  %6670 = vmatpush1.msra.mxu0 0.0
  %6671 = vmatprep.subr.mxu0 0.0
  %6672 = vmatpush1.msra.mxu0 0.0
  %6673 = vmatprep.subr.mxu0 0.0
  %6674 = vmatpush1.msra.mxu0 0.0
  %6675 = vmatprep.subr.mxu0 0.0
  %6676 = vmatpush1.msra.mxu0 0.0
  %6677 = vmatprep.subr.mxu0 0.0
  %6678 = vmatpush1.msra.mxu0 0.0
  %6679 = vmatprep.subr.mxu0 0.0
  %6680 = vmatpush1.msra.mxu0 0.0
  %6681 = vmatprep.subr.mxu0 0.0
  %6682 = vmatpush1.msra.mxu0 0.0
  %6683 = vmatprep.subr.mxu0 0.0
  %6684 = vmatpush1.msra.mxu0 0.0
  %6685 = vmatprep.subr.mxu0 0.0
  %6686 = vmatpush1.msra.mxu0 0.0
  %6687 = vmatprep.subr.mxu0 0.0
  %6688 = vmatpush1.msra.mxu0 0.0
  %6689 = vmatprep.subr.mxu0 0.0
  %6690 = vmatpush1.msra.mxu0 0.0
  %6691 = vmatprep.subr.mxu0 0.0
  %6692 = vmatpush1.msra.mxu0 %v6659
  %6693 = vmatprep.subr.mxu0 0.0
  %6694 = vmatpush2.msra.mxu0 0.0
  %6695 = vmatprep.subr.mxu0 0.0
  %6696 = vmatpush2.msra.mxu0 0.0
  %6697 = vmatprep.subr.mxu0 0.0
  %6698 = vmatpush2.msra.mxu0 0.0
  %6699 = vmatprep.subr.mxu0 0.0
  %6700 = vmatpush2.msra.mxu0 0.0
  %6701 = vmatprep.subr.mxu0 0.0
  %6702 = vmatpush2.msra.mxu0 0.0
  %6703 = vmatprep.subr.mxu0 0.0
  %6704 = vmatpush2.msra.mxu0 0.0
  %6705 = vmatprep.subr.mxu0 0.0
  %6706 = vmatpush2.msra.mxu0 0.0
  %6707 = vmatprep.subr.mxu0 0.0
  %6708 = vmatpush2.msra.mxu0 0.0
  %6709 = vmatprep.subr.mxu0 0.0
  %6710 = vmatpush2.msra.mxu0 0.0
  %6711 = vmatprep.subr.mxu0 0.0
  %6712 = vmatpush2.msra.mxu0 0.0
  %6713 = vmatprep.subr.mxu0 0.0
  %6714 = vmatpush2.msra.mxu0 0.0
  %6715 = vmatprep.subr.mxu0 0.0
  %6716 = vmatpush2.msra.mxu0 0.0
  %6717 = vmatprep.subr.mxu0 0.0
  %6718 = vmatpush2.msra.mxu0 0.0
  %6719 = vmatprep.subr.mxu0 0.0
  %6720 = vmatpush2.msra.mxu0 0.0
  %6721 = vmatprep.subr.mxu0 0.0
  %6722 = vmatpush2.msra.mxu0 0.0
  %6723 = vmatprep.subr.mxu0 0.0
  %6724 = vmatpush2.msra.mxu0 0.0
  %6725 = vmatprep.mubr.f32.mxu0 0.0
  %6726 = vmatmul.mubr.f32.gmra.mxu0 %v6586
  %v6727 = vpop.f32.mrf.mxu0
  %v6728 = vadd.f32 0.0, %v6727
  %v6729 = vpop.f32.mrf.mxu0
  %6730 = vmatprep.mubr.f32.mxu0 0.0
  %6731 = vmatmul.mubr.f32.gmra.mxu0 %v6588
  %v6732 = vpop.f32.mrf.mxu0
  %v6733 = vadd.f32 0.0, %v6732
  %v6734 = vpop.f32.mrf.mxu0
  %6735 = vmatprep.mubr.f32.mxu0 0.0
  %6736 = vmatmul.mubr.f32.gmra.mxu0 %v6590
  %v6737 = vpop.f32.mrf.mxu0
  %v6738 = vadd.f32 0.0, %v6737
  %v6739 = vpop.f32.mrf.mxu0
  %6740 = vmatprep.mubr.f32.mxu0 0.0
  %6741 = vmatmul.mubr.f32.gmra.mxu0 %v6592
  %v6742 = vpop.f32.mrf.mxu0
  %v6743 = vadd.f32 0.0, %v6742
  %v6744 = vpop.f32.mrf.mxu0
  %6745 = vmatprep.mubr.f32.mxu0 0.0
  %6746 = vmatmul.mubr.f32.gmra.mxu0 %v6594
  %v6747 = vpop.f32.mrf.mxu0
  %v6748 = vadd.f32 0.0, %v6747
  %v6749 = vpop.f32.mrf.mxu0
  %6750 = vmatprep.mubr.f32.mxu0 0.0
  %6751 = vmatmul.mubr.f32.gmra.mxu0 %v6596
  %v6752 = vpop.f32.mrf.mxu0
  %v6753 = vadd.f32 0.0, %v6752
  %v6754 = vpop.f32.mrf.mxu0
  %6755 = vmatprep.mubr.f32.mxu0 0.0
  %6756 = vmatmul.mubr.f32.gmra.mxu0 %v6598
  %v6757 = vpop.f32.mrf.mxu0
  %v6758 = vadd.f32 0.0, %v6757
  %v6759 = vpop.f32.mrf.mxu0
  %6760 = vmatprep.mubr.f32.mxu0 0.0
  %6761 = vmatmul.mubr.f32.gmra.mxu0 %v6600
  %v6762 = vpop.f32.mrf.mxu0
  %v6763 = vadd.f32 0.0, %v6762
  %v6764 = vpop.f32.mrf.mxu0
  %6765 = vmatprep.mubr.f32.mxu0 0.0
  %6766 = vmatmul.mubr.f32.gmra.mxu0 %v6602
  %v6767 = vpop.f32.mrf.mxu0
  %v6768 = vadd.f32 0.0, %v6767
  %v6769 = vpop.f32.mrf.mxu0
  %6770 = vmatprep.mubr.f32.mxu0 0.0
  %6771 = vmatmul.mubr.f32.gmra.mxu0 %v6604
  %v6772 = vpop.f32.mrf.mxu0
  %v6773 = vadd.f32 0.0, %v6772
  %v6774 = vpop.f32.mrf.mxu0
  %6775 = vmatprep.mubr.f32.mxu0 0.0
  %6776 = vmatmul.mubr.f32.gmra.mxu0 %v6606
  %v6777 = vpop.f32.mrf.mxu0
  %v6778 = vadd.f32 0.0, %v6777
  %v6779 = vpop.f32.mrf.mxu0
  %6780 = vmatprep.mubr.f32.mxu0 0.0
  %6781 = vmatmul.mubr.f32.gmra.mxu0 %v6608
  %v6782 = vpop.f32.mrf.mxu0
  %v6783 = vadd.f32 0.0, %v6782
  %v6784 = vpop.f32.mrf.mxu0
  %6785 = vmatprep.mubr.f32.mxu0 0.0
  %6786 = vmatmul.mubr.f32.gmra.mxu0 %v6610
  %v6787 = vpop.f32.mrf.mxu0
  %v6788 = vadd.f32 0.0, %v6787
  %v6789 = vpop.f32.mrf.mxu0
  %6790 = vmatprep.mubr.f32.mxu0 0.0
  %6791 = vmatmul.mubr.f32.gmra.mxu0 %v6612
  %v6792 = vpop.f32.mrf.mxu0
  %v6793 = vadd.f32 0.0, %v6792
  %v6794 = vpop.f32.mrf.mxu0
  %6795 = vmatprep.mubr.f32.mxu0 0.0
  %6796 = vmatmul.mubr.f32.gmra.mxu0 %v6614
  %v6797 = vpop.f32.mrf.mxu0
  %v6798 = vadd.f32 0.0, %v6797
  %v6799 = vpop.f32.mrf.mxu0
  %6800 = vmatprep.mubr.f32.mxu0 0.0
  %6801 = vmatmul.mubr.f32.gmra.mxu0 %v6616
  %v6802 = vpop.f32.mrf.mxu0
  %v6803 = vadd.f32 0.0, %v6802
  %v6804 = vpop.f32.mrf.mxu0
  %6805 = vmatprep.mubr.f32.mxu0 0.0
  %6806 = vmatmul.mubr.f32.gmra.mxu0 %v6618
  %v6807 = vpop.f32.mrf.mxu0
  %v6808 = vadd.f32 0.0, %v6807
  %v6809 = vpop.f32.mrf.mxu0
  %6810 = vmatprep.mubr.f32.mxu0 0.0
  %6811 = vmatmul.mubr.f32.gmra.mxu0 %v6620
  %v6812 = vpop.f32.mrf.mxu0
  %v6813 = vadd.f32 0.0, %v6812
  %v6814 = vpop.f32.mrf.mxu0
  %6815 = vmatprep.mubr.f32.mxu0 0.0
  %6816 = vmatmul.mubr.f32.gmra.mxu0 %v6622
  %v6817 = vpop.f32.mrf.mxu0
  %v6818 = vadd.f32 0.0, %v6817
  %v6819 = vpop.f32.mrf.mxu0
  %6820 = vmatprep.mubr.f32.mxu0 0.0
  %6821 = vmatmul.mubr.f32.gmra.mxu0 %v6624
  %v6822 = vpop.f32.mrf.mxu0
  %v6823 = vadd.f32 0.0, %v6822
  %v6824 = vpop.f32.mrf.mxu0
  %6825 = vmatprep.mubr.f32.mxu0 0.0
  %6826 = vmatmul.mubr.f32.gmra.mxu0 %v6626
  %v6827 = vpop.f32.mrf.mxu0
  %v6828 = vadd.f32 0.0, %v6827
  %v6829 = vpop.f32.mrf.mxu0
  %6830 = vmatprep.mubr.f32.mxu0 0.0
  %6831 = vmatmul.mubr.f32.gmra.mxu0 %v6628
  %v6832 = vpop.f32.mrf.mxu0
  %v6833 = vadd.f32 0.0, %v6832
  %v6834 = vpop.f32.mrf.mxu0
  %6835 = vmatprep.mubr.f32.mxu0 0.0
  %6836 = vmatmul.mubr.f32.gmra.mxu0 %v6630
  %v6837 = vpop.f32.mrf.mxu0
  %v6838 = vadd.f32 0.0, %v6837
  %v6839 = vpop.f32.mrf.mxu0
  %6840 = vmatprep.mubr.f32.mxu0 0.0
  %6841 = vmatmul.mubr.f32.gmra.mxu0 %v6632
  %v6842 = vpop.f32.mrf.mxu0
  %v6843 = vadd.f32 0.0, %v6842
  %v6844 = vpop.f32.mrf.mxu0
  %6845 = vmatprep.mubr.f32.mxu0 0.0
  %6846 = vmatmul.mubr.f32.gmra.mxu0 %v6634
  %v6847 = vpop.f32.mrf.mxu0
  %v6848 = vadd.f32 0.0, %v6847
  %v6849 = vpop.f32.mrf.mxu0
  %6850 = vmatprep.mubr.f32.mxu0 0.0
  %6851 = vmatmul.mubr.f32.gmra.mxu0 %v6636
  %v6852 = vpop.f32.mrf.mxu0
  %v6853 = vadd.f32 0.0, %v6852
  %v6854 = vpop.f32.mrf.mxu0
  %6855 = vmatprep.mubr.f32.mxu0 0.0
  %6856 = vmatmul.mubr.f32.gmra.mxu0 %v6638
  %v6857 = vpop.f32.mrf.mxu0
  %v6858 = vadd.f32 0.0, %v6857
  %v6859 = vpop.f32.mrf.mxu0
  %6860 = vmatprep.mubr.f32.mxu0 0.0
  %6861 = vmatmul.mubr.f32.gmra.mxu0 %v6640
  %v6862 = vpop.f32.mrf.mxu0
  %v6863 = vadd.f32 0.0, %v6862
  %v6864 = vpop.f32.mrf.mxu0
  %6865 = vmatprep.mubr.f32.mxu0 0.0
  %6866 = vmatmul.mubr.f32.gmra.mxu0 %v6642
  %v6867 = vpop.f32.mrf.mxu0
  %v6868 = vadd.f32 0.0, %v6867
  %v6869 = vpop.f32.mrf.mxu0
  %6870 = vmatprep.mubr.f32.mxu0 0.0
  %6871 = vmatmul.mubr.f32.gmra.mxu0 %v6644
  %v6872 = vpop.f32.mrf.mxu0
  %v6873 = vadd.f32 0.0, %v6872
  %v6874 = vpop.f32.mrf.mxu0
  %6875 = vmatprep.mubr.f32.mxu0 0.0
  %6876 = vmatmul.mubr.f32.gmra.mxu0 %v6646
  %v6877 = vpop.f32.mrf.mxu0
  %v6878 = vadd.f32 0.0, %v6877
  %v6879 = vpop.f32.mrf.mxu0
  %6880 = vmatprep.mubr.f32.mxu0 0.0
  %6881 = vmatmul.mubr.f32.gmra.mxu0 %v6648
  %v6882 = vpop.f32.mrf.mxu0
  %v6883 = vadd.f32 0.0, %v6882
  %v6884 = vpop.f32.mrf.mxu0
  %6885 = vmatprep.mubr.f32.mxu0 0.0
  %6886 = vmatmul.mubr.f32.gmra.mxu0 %v6650
  %v6887 = vpop.f32.mrf.mxu0
  %v6888 = vadd.f32 0.0, %v6887
  %v6889 = vpop.f32.mrf.mxu0
  %6890 = vmatprep.mubr.f32.mxu0 0.0
  %6891 = vmatmul.mubr.f32.gmra.mxu0 %v6652
  %v6892 = vpop.f32.mrf.mxu0
  %v6893 = vadd.f32 0.0, %v6892
  %v6894 = vpop.f32.mrf.mxu0
  %6895 = vmatprep.mubr.f32.mxu0 0.0
  %6896 = vmatmul.mubr.f32.gmra.mxu0 %v6654
  %v6897 = vpop.f32.mrf.mxu0
  %v6898 = vadd.f32 0.0, %v6897
  %v6899 = vpop.f32.mrf.mxu0
  %6900 = vmatprep.mubr.f32.mxu0 0.0
  %6901 = vmatmul.mubr.f32.gmra.mxu0 %v6656
  %v6902 = vpop.f32.mrf.mxu0
  %v6903 = vadd.f32 0.0, %v6902
  %v6904 = vpop.f32.mrf.mxu0
  %6905 = vdwg.mxu0
  %v6906 = vadd.f32 %v6476, %v6728
  %v6907 = vadd.f32 %v6477, %v6733
  %v6908 = vadd.f32 %v6478, %v6738
  %v6909 = vadd.f32 %v6479, %v6743
  %v6910 = vadd.f32 %v6480, %v6748
  %v6911 = vadd.f32 %v6481, %v6753
  %v6912 = vadd.f32 %v6482, %v6758
  %v6913 = vadd.f32 %v6483, %v6763
  %v6914 = vadd.f32 %v6484, %v6768
  %v6915 = vadd.f32 %v6485, %v6773
  %v6916 = vadd.f32 %v6486, %v6778
  %v6917 = vadd.f32 %v6487, %v6783
  %v6918 = vadd.f32 %v6488, %v6788
  %v6919 = vadd.f32 %v6489, %v6793
  %v6920 = vadd.f32 %v6490, %v6798
  %v6921 = vadd.f32 %v6491, %v6803
  %v6922 = vadd.f32 %v6492, %v6808
  %v6923 = vadd.f32 %v6493, %v6813
  %v6924 = vadd.f32 %v6494, %v6818
  %v6925 = vadd.f32 %v6495, %v6823
  %v6926 = vadd.f32 %v6496, %v6828
  %v6927 = vadd.f32 %v6497, %v6833
  %v6928 = vadd.f32 %v6498, %v6838
  %v6929 = vadd.f32 %v6499, %v6843
  %v6930 = vadd.f32 %v6500, %v6848
  %v6931 = vadd.f32 %v6501, %v6853
  %v6932 = vadd.f32 %v6502, %v6858
  %v6933 = vadd.f32 %v6503, %v6863
  %v6934 = vadd.f32 %v6504, %v6868
  %v6935 = vadd.f32 %v6505, %v6873
  %v6936 = vadd.f32 %v6506, %v6878
  %v6937 = vadd.f32 %v6507, %v6883
  %v6938 = vadd.f32 %v6508, %v6888
  %v6939 = vadd.f32 %v6509, %v6893
  %v6940 = vadd.f32 %v6510, %v6898
  %v6941 = vadd.f32 %v6511, %v6903
  %v6942 = vld [vmem:[%s3250] sm:$0xf]
  %v6943 = vrot.slane %v3764, 6
  %v6944 = vrot.slane %v3765, 6
  %v6945 = vsel %vm3252, %v6943, %v6944
  %v6946 = vrot.slane %v3766, 6
  %v6947 = vsel %vm3252, %v6944, %v6946
  %v6948 = vrot.slane %v3767, 6
  %v6949 = vsel %vm3252, %v6946, %v6948
  %v6950 = vrot.slane %v3768, 6
  %v6951 = vsel %vm3252, %v6948, %v6950
  %v6952 = vrot.slane %v3769, 6
  %v6953 = vsel %vm3252, %v6950, %v6952
  %v6954 = vrot.slane %v3770, 6
  %v6955 = vsel %vm3252, %v6952, %v6954
  %v6956 = vrot.slane %v3771, 6
  %v6957 = vsel %vm3252, %v6954, %v6956
  %v6958 = vrot.slane %v3772, 6
  %v6959 = vsel %vm3252, %v6956, %v6958
  %v6960 = vrot.slane %v3773, 6
  %v6961 = vsel %vm3252, %v6958, %v6960
  %v6962 = vrot.slane %v3774, 6
  %v6963 = vsel %vm3252, %v6960, %v6962
  %v6964 = vrot.slane %v3775, 6
  %v6965 = vsel %vm3252, %v6962, %v6964
  %v6966 = vrot.slane %v3776, 6
  %v6967 = vsel %vm3252, %v6964, %v6966
  %v6968 = vrot.slane %v3777, 6
  %v6969 = vsel %vm3252, %v6966, %v6968
  %v6970 = vrot.slane %v3778, 6
  %v6971 = vsel %vm3252, %v6968, %v6970
  %v6972 = vrot.slane %v3779, 6
  %v6973 = vsel %vm3252, %v6970, %v6972
  %v6974 = vrot.slane %v3780, 6
  %v6975 = vsel %vm3252, %v6972, %v6974
  %v6976 = vrot.slane %v3781, 6
  %v6977 = vsel %vm3252, %v6974, %v6976
  %v6978 = vrot.slane %v3782, 6
  %v6979 = vsel %vm3252, %v6976, %v6978
  %v6980 = vrot.slane %v3783, 6
  %v6981 = vsel %vm3252, %v6978, %v6980
  %v6982 = vrot.slane %v3784, 6
  %v6983 = vsel %vm3252, %v6980, %v6982
  %v6984 = vrot.slane %v3785, 6
  %v6985 = vsel %vm3252, %v6982, %v6984
  %v6986 = vrot.slane %v3786, 6
  %v6987 = vsel %vm3252, %v6984, %v6986
  %v6988 = vrot.slane %v3787, 6
  %v6989 = vsel %vm3252, %v6986, %v6988
  %v6990 = vrot.slane %v3788, 6
  %v6991 = vsel %vm3252, %v6988, %v6990
  %v6992 = vrot.slane %v3789, 6
  %v6993 = vsel %vm3252, %v6990, %v6992
  %v6994 = vrot.slane %v3790, 6
  %v6995 = vsel %vm3252, %v6992, %v6994
  %v6996 = vrot.slane %v3791, 6
  %v6997 = vsel %vm3252, %v6994, %v6996
  %v6998 = vrot.slane %v3792, 6
  %v6999 = vsel %vm3252, %v6996, %v6998
  %v7000 = vrot.slane %v3793, 6
  %v7001 = vsel %vm3252, %v6998, %v7000
  %v7002 = vrot.slane %v3794, 6
  %v7003 = vsel %vm3252, %v7000, %v7002
  %v7004 = vrot.slane %v3795, 6
  %v7005 = vsel %vm3252, %v7002, %v7004
  %v7006 = vrot.slane %v3796, 6
  %v7007 = vsel %vm3252, %v7004, %v7006
  %v7008 = vrot.slane %v3797, 6
  %v7009 = vsel %vm3252, %v7006, %v7008
  %v7010 = vrot.slane %v3798, 6
  %v7011 = vsel %vm3252, %v7008, %v7010
  %v7012 = vrot.slane %v3799, 6
  %v7013 = vsel %vm3252, %v7010, %v7012
  %v7014 = vrot.slane %v3800, 6
  %v7015 = vsel %vm3252, %v7012, %v7014
  %v7016 = vsel %vm104, %v6945, 0
  %v7018 = vsel %vm104, %v6947, 0
  %v7020 = vsel %vm104, %v6949, 0
  %v7022 = vsel %vm104, %v6951, 0
  %v7024 = vsel %vm104, %v6953, 0
  %v7026 = vsel %vm104, %v6955, 0
  %v7028 = vsel %vm104, %v6957, 0
  %v7030 = vsel %vm104, %v6959, 0
  %v7032 = vsel %vm104, %v6961, 0
  %v7034 = vsel %vm104, %v6963, 0
  %v7036 = vsel %vm104, %v6965, 0
  %v7038 = vsel %vm104, %v6967, 0
  %v7040 = vsel %vm104, %v6969, 0
  %v7042 = vsel %vm104, %v6971, 0
  %v7044 = vsel %vm104, %v6973, 0
  %v7046 = vsel %vm104, %v6975, 0
  %v7048 = vsel %vm104, %v6977, 0
  %v7050 = vsel %vm104, %v6979, 0
  %v7052 = vsel %vm104, %v6981, 0
  %v7054 = vsel %vm104, %v6983, 0
  %v7056 = vsel %vm104, %v6985, 0
  %v7058 = vsel %vm104, %v6987, 0
  %v7060 = vsel %vm104, %v6989, 0
  %v7062 = vsel %vm104, %v6991, 0
  %v7064 = vsel %vm104, %v6993, 0
  %v7066 = vsel %vm104, %v6995, 0
  %v7068 = vsel %vm104, %v6997, 0
  %v7070 = vsel %vm104, %v6999, 0
  %v7072 = vsel %vm104, %v7001, 0
  %v7074 = vsel %vm104, %v7003, 0
  %v7076 = vsel %vm104, %v7005, 0
  %v7078 = vsel %vm104, %v7007, 0
  %v7080 = vsel %vm104, %v7009, 0
  %v7082 = vsel %vm104, %v7011, 0
  %v7084 = vsel %vm104, %v7013, 0
  %v7086 = vsel %vm104, %v7015, 0
  %v7089 = vsel %vm213, %v6942, 0
  %7091 = vmatprep.subr.mxu0 0.0
  %7092 = vmatpush1.msra.mxu0 0.0
  %7093 = vmatprep.subr.mxu0 0.0
  %7094 = vmatpush1.msra.mxu0 0.0
  %7095 = vmatprep.subr.mxu0 0.0
  %7096 = vmatpush1.msra.mxu0 0.0
  %7097 = vmatprep.subr.mxu0 0.0
  %7098 = vmatpush1.msra.mxu0 0.0
  %7099 = vmatprep.subr.mxu0 0.0
  %7100 = vmatpush1.msra.mxu0 0.0
  %7101 = vmatprep.subr.mxu0 0.0
  %7102 = vmatpush1.msra.mxu0 0.0
  %7103 = vmatprep.subr.mxu0 0.0
  %7104 = vmatpush1.msra.mxu0 0.0
  %7105 = vmatprep.subr.mxu0 0.0
  %7106 = vmatpush1.msra.mxu0 0.0
  %7107 = vmatprep.subr.mxu0 0.0
  %7108 = vmatpush1.msra.mxu0 0.0
  %7109 = vmatprep.subr.mxu0 0.0
  %7110 = vmatpush1.msra.mxu0 0.0
  %7111 = vmatprep.subr.mxu0 0.0
  %7112 = vmatpush1.msra.mxu0 0.0
  %7113 = vmatprep.subr.mxu0 0.0
  %7114 = vmatpush1.msra.mxu0 0.0
  %7115 = vmatprep.subr.mxu0 0.0
  %7116 = vmatpush1.msra.mxu0 0.0
  %7117 = vmatprep.subr.mxu0 0.0
  %7118 = vmatpush1.msra.mxu0 0.0
  %7119 = vmatprep.subr.mxu0 0.0
  %7120 = vmatpush1.msra.mxu0 0.0
  %7121 = vmatprep.subr.mxu0 0.0
  %7122 = vmatpush1.msra.mxu0 %v7089
  %7123 = vmatprep.subr.mxu0 0.0
  %7124 = vmatpush2.msra.mxu0 0.0
  %7125 = vmatprep.subr.mxu0 0.0
  %7126 = vmatpush2.msra.mxu0 0.0
  %7127 = vmatprep.subr.mxu0 0.0
  %7128 = vmatpush2.msra.mxu0 0.0
  %7129 = vmatprep.subr.mxu0 0.0
  %7130 = vmatpush2.msra.mxu0 0.0
  %7131 = vmatprep.subr.mxu0 0.0
  %7132 = vmatpush2.msra.mxu0 0.0
  %7133 = vmatprep.subr.mxu0 0.0
  %7134 = vmatpush2.msra.mxu0 0.0
  %7135 = vmatprep.subr.mxu0 0.0
  %7136 = vmatpush2.msra.mxu0 0.0
  %7137 = vmatprep.subr.mxu0 0.0
  %7138 = vmatpush2.msra.mxu0 0.0
  %7139 = vmatprep.subr.mxu0 0.0
  %7140 = vmatpush2.msra.mxu0 0.0
  %7141 = vmatprep.subr.mxu0 0.0
  %7142 = vmatpush2.msra.mxu0 0.0
  %7143 = vmatprep.subr.mxu0 0.0
  %7144 = vmatpush2.msra.mxu0 0.0
  %7145 = vmatprep.subr.mxu0 0.0
  %7146 = vmatpush2.msra.mxu0 0.0
  %7147 = vmatprep.subr.mxu0 0.0
  %7148 = vmatpush2.msra.mxu0 0.0
  %7149 = vmatprep.subr.mxu0 0.0
  %7150 = vmatpush2.msra.mxu0 0.0
  %7151 = vmatprep.subr.mxu0 0.0
  %7152 = vmatpush2.msra.mxu0 0.0
  %7153 = vmatprep.subr.mxu0 0.0
  %7154 = vmatpush2.msra.mxu0 0.0
  %7155 = vmatprep.mubr.f32.mxu0 0.0
  %7156 = vmatmul.mubr.f32.gmra.mxu0 %v7016
  %v7157 = vpop.f32.mrf.mxu0
  %v7158 = vadd.f32 0.0, %v7157
  %v7159 = vpop.f32.mrf.mxu0
  %7160 = vmatprep.mubr.f32.mxu0 0.0
  %7161 = vmatmul.mubr.f32.gmra.mxu0 %v7018
  %v7162 = vpop.f32.mrf.mxu0
  %v7163 = vadd.f32 0.0, %v7162
  %v7164 = vpop.f32.mrf.mxu0
  %7165 = vmatprep.mubr.f32.mxu0 0.0
  %7166 = vmatmul.mubr.f32.gmra.mxu0 %v7020
  %v7167 = vpop.f32.mrf.mxu0
  %v7168 = vadd.f32 0.0, %v7167
  %v7169 = vpop.f32.mrf.mxu0
  %7170 = vmatprep.mubr.f32.mxu0 0.0
  %7171 = vmatmul.mubr.f32.gmra.mxu0 %v7022
  %v7172 = vpop.f32.mrf.mxu0
  %v7173 = vadd.f32 0.0, %v7172
  %v7174 = vpop.f32.mrf.mxu0
  %7175 = vmatprep.mubr.f32.mxu0 0.0
  %7176 = vmatmul.mubr.f32.gmra.mxu0 %v7024
  %v7177 = vpop.f32.mrf.mxu0
  %v7178 = vadd.f32 0.0, %v7177
  %v7179 = vpop.f32.mrf.mxu0
  %7180 = vmatprep.mubr.f32.mxu0 0.0
  %7181 = vmatmul.mubr.f32.gmra.mxu0 %v7026
  %v7182 = vpop.f32.mrf.mxu0
  %v7183 = vadd.f32 0.0, %v7182
  %v7184 = vpop.f32.mrf.mxu0
  %7185 = vmatprep.mubr.f32.mxu0 0.0
  %7186 = vmatmul.mubr.f32.gmra.mxu0 %v7028
  %v7187 = vpop.f32.mrf.mxu0
  %v7188 = vadd.f32 0.0, %v7187
  %v7189 = vpop.f32.mrf.mxu0
  %7190 = vmatprep.mubr.f32.mxu0 0.0
  %7191 = vmatmul.mubr.f32.gmra.mxu0 %v7030
  %v7192 = vpop.f32.mrf.mxu0
  %v7193 = vadd.f32 0.0, %v7192
  %v7194 = vpop.f32.mrf.mxu0
  %7195 = vmatprep.mubr.f32.mxu0 0.0
  %7196 = vmatmul.mubr.f32.gmra.mxu0 %v7032
  %v7197 = vpop.f32.mrf.mxu0
  %v7198 = vadd.f32 0.0, %v7197
  %v7199 = vpop.f32.mrf.mxu0
  %7200 = vmatprep.mubr.f32.mxu0 0.0
  %7201 = vmatmul.mubr.f32.gmra.mxu0 %v7034
  %v7202 = vpop.f32.mrf.mxu0
  %v7203 = vadd.f32 0.0, %v7202
  %v7204 = vpop.f32.mrf.mxu0
  %7205 = vmatprep.mubr.f32.mxu0 0.0
  %7206 = vmatmul.mubr.f32.gmra.mxu0 %v7036
  %v7207 = vpop.f32.mrf.mxu0
  %v7208 = vadd.f32 0.0, %v7207
  %v7209 = vpop.f32.mrf.mxu0
  %7210 = vmatprep.mubr.f32.mxu0 0.0
  %7211 = vmatmul.mubr.f32.gmra.mxu0 %v7038
  %v7212 = vpop.f32.mrf.mxu0
  %v7213 = vadd.f32 0.0, %v7212
  %v7214 = vpop.f32.mrf.mxu0
  %7215 = vmatprep.mubr.f32.mxu0 0.0
  %7216 = vmatmul.mubr.f32.gmra.mxu0 %v7040
  %v7217 = vpop.f32.mrf.mxu0
  %v7218 = vadd.f32 0.0, %v7217
  %v7219 = vpop.f32.mrf.mxu0
  %7220 = vmatprep.mubr.f32.mxu0 0.0
  %7221 = vmatmul.mubr.f32.gmra.mxu0 %v7042
  %v7222 = vpop.f32.mrf.mxu0
  %v7223 = vadd.f32 0.0, %v7222
  %v7224 = vpop.f32.mrf.mxu0
  %7225 = vmatprep.mubr.f32.mxu0 0.0
  %7226 = vmatmul.mubr.f32.gmra.mxu0 %v7044
  %v7227 = vpop.f32.mrf.mxu0
  %v7228 = vadd.f32 0.0, %v7227
  %v7229 = vpop.f32.mrf.mxu0
  %7230 = vmatprep.mubr.f32.mxu0 0.0
  %7231 = vmatmul.mubr.f32.gmra.mxu0 %v7046
  %v7232 = vpop.f32.mrf.mxu0
  %v7233 = vadd.f32 0.0, %v7232
  %v7234 = vpop.f32.mrf.mxu0
  %7235 = vmatprep.mubr.f32.mxu0 0.0
  %7236 = vmatmul.mubr.f32.gmra.mxu0 %v7048
  %v7237 = vpop.f32.mrf.mxu0
  %v7238 = vadd.f32 0.0, %v7237
  %v7239 = vpop.f32.mrf.mxu0
  %7240 = vmatprep.mubr.f32.mxu0 0.0
  %7241 = vmatmul.mubr.f32.gmra.mxu0 %v7050
  %v7242 = vpop.f32.mrf.mxu0
  %v7243 = vadd.f32 0.0, %v7242
  %v7244 = vpop.f32.mrf.mxu0
  %7245 = vmatprep.mubr.f32.mxu0 0.0
  %7246 = vmatmul.mubr.f32.gmra.mxu0 %v7052
  %v7247 = vpop.f32.mrf.mxu0
  %v7248 = vadd.f32 0.0, %v7247
  %v7249 = vpop.f32.mrf.mxu0
  %7250 = vmatprep.mubr.f32.mxu0 0.0
  %7251 = vmatmul.mubr.f32.gmra.mxu0 %v7054
  %v7252 = vpop.f32.mrf.mxu0
  %v7253 = vadd.f32 0.0, %v7252
  %v7254 = vpop.f32.mrf.mxu0
  %7255 = vmatprep.mubr.f32.mxu0 0.0
  %7256 = vmatmul.mubr.f32.gmra.mxu0 %v7056
  %v7257 = vpop.f32.mrf.mxu0
  %v7258 = vadd.f32 0.0, %v7257
  %v7259 = vpop.f32.mrf.mxu0
  %7260 = vmatprep.mubr.f32.mxu0 0.0
  %7261 = vmatmul.mubr.f32.gmra.mxu0 %v7058
  %v7262 = vpop.f32.mrf.mxu0
  %v7263 = vadd.f32 0.0, %v7262
  %v7264 = vpop.f32.mrf.mxu0
  %7265 = vmatprep.mubr.f32.mxu0 0.0
  %7266 = vmatmul.mubr.f32.gmra.mxu0 %v7060
  %v7267 = vpop.f32.mrf.mxu0
  %v7268 = vadd.f32 0.0, %v7267
  %v7269 = vpop.f32.mrf.mxu0
  %7270 = vmatprep.mubr.f32.mxu0 0.0
  %7271 = vmatmul.mubr.f32.gmra.mxu0 %v7062
  %v7272 = vpop.f32.mrf.mxu0
  %v7273 = vadd.f32 0.0, %v7272
  %v7274 = vpop.f32.mrf.mxu0
  %7275 = vmatprep.mubr.f32.mxu0 0.0
  %7276 = vmatmul.mubr.f32.gmra.mxu0 %v7064
  %v7277 = vpop.f32.mrf.mxu0
  %v7278 = vadd.f32 0.0, %v7277
  %v7279 = vpop.f32.mrf.mxu0
  %7280 = vmatprep.mubr.f32.mxu0 0.0
  %7281 = vmatmul.mubr.f32.gmra.mxu0 %v7066
  %v7282 = vpop.f32.mrf.mxu0
  %v7283 = vadd.f32 0.0, %v7282
  %v7284 = vpop.f32.mrf.mxu0
  %7285 = vmatprep.mubr.f32.mxu0 0.0
  %7286 = vmatmul.mubr.f32.gmra.mxu0 %v7068
  %v7287 = vpop.f32.mrf.mxu0
  %v7288 = vadd.f32 0.0, %v7287
  %v7289 = vpop.f32.mrf.mxu0
  %7290 = vmatprep.mubr.f32.mxu0 0.0
  %7291 = vmatmul.mubr.f32.gmra.mxu0 %v7070
  %v7292 = vpop.f32.mrf.mxu0
  %v7293 = vadd.f32 0.0, %v7292
  %v7294 = vpop.f32.mrf.mxu0
  %7295 = vmatprep.mubr.f32.mxu0 0.0
  %7296 = vmatmul.mubr.f32.gmra.mxu0 %v7072
  %v7297 = vpop.f32.mrf.mxu0
  %v7298 = vadd.f32 0.0, %v7297
  %v7299 = vpop.f32.mrf.mxu0
  %7300 = vmatprep.mubr.f32.mxu0 0.0
  %7301 = vmatmul.mubr.f32.gmra.mxu0 %v7074
  %v7302 = vpop.f32.mrf.mxu0
  %v7303 = vadd.f32 0.0, %v7302
  %v7304 = vpop.f32.mrf.mxu0
  %7305 = vmatprep.mubr.f32.mxu0 0.0
  %7306 = vmatmul.mubr.f32.gmra.mxu0 %v7076
  %v7307 = vpop.f32.mrf.mxu0
  %v7308 = vadd.f32 0.0, %v7307
  %v7309 = vpop.f32.mrf.mxu0
  %7310 = vmatprep.mubr.f32.mxu0 0.0
  %7311 = vmatmul.mubr.f32.gmra.mxu0 %v7078
  %v7312 = vpop.f32.mrf.mxu0
  %v7313 = vadd.f32 0.0, %v7312
  %v7314 = vpop.f32.mrf.mxu0
  %7315 = vmatprep.mubr.f32.mxu0 0.0
  %7316 = vmatmul.mubr.f32.gmra.mxu0 %v7080
  %v7317 = vpop.f32.mrf.mxu0
  %v7318 = vadd.f32 0.0, %v7317
  %v7319 = vpop.f32.mrf.mxu0
  %7320 = vmatprep.mubr.f32.mxu0 0.0
  %7321 = vmatmul.mubr.f32.gmra.mxu0 %v7082
  %v7322 = vpop.f32.mrf.mxu0
  %v7323 = vadd.f32 0.0, %v7322
  %v7324 = vpop.f32.mrf.mxu0
  %7325 = vmatprep.mubr.f32.mxu0 0.0
  %7326 = vmatmul.mubr.f32.gmra.mxu0 %v7084
  %v7327 = vpop.f32.mrf.mxu0
  %v7328 = vadd.f32 0.0, %v7327
  %v7329 = vpop.f32.mrf.mxu0
  %7330 = vmatprep.mubr.f32.mxu0 0.0
  %7331 = vmatmul.mubr.f32.gmra.mxu0 %v7086
  %v7332 = vpop.f32.mrf.mxu0
  %v7333 = vadd.f32 0.0, %v7332
  %v7334 = vpop.f32.mrf.mxu0
  %7335 = vdwg.mxu0
  %v7336 = vadd.f32 %v6906, %v7158
  %v7337 = vadd.f32 %v6907, %v7163
  %v7338 = vadd.f32 %v6908, %v7168
  %v7339 = vadd.f32 %v6909, %v7173
  %v7340 = vadd.f32 %v6910, %v7178
  %v7341 = vadd.f32 %v6911, %v7183
  %v7342 = vadd.f32 %v6912, %v7188
  %v7343 = vadd.f32 %v6913, %v7193
  %v7344 = vadd.f32 %v6914, %v7198
  %v7345 = vadd.f32 %v6915, %v7203
  %v7346 = vadd.f32 %v6916, %v7208
  %v7347 = vadd.f32 %v6917, %v7213
  %v7348 = vadd.f32 %v6918, %v7218
  %v7349 = vadd.f32 %v6919, %v7223
  %v7350 = vadd.f32 %v6920, %v7228
  %v7351 = vadd.f32 %v6921, %v7233
  %v7352 = vadd.f32 %v6922, %v7238
  %v7353 = vadd.f32 %v6923, %v7243
  %v7354 = vadd.f32 %v6924, %v7248
  %v7355 = vadd.f32 %v6925, %v7253
  %v7356 = vadd.f32 %v6926, %v7258
  %v7357 = vadd.f32 %v6927, %v7263
  %v7358 = vadd.f32 %v6928, %v7268
  %v7359 = vadd.f32 %v6929, %v7273
  %v7360 = vadd.f32 %v6930, %v7278
  %v7361 = vadd.f32 %v6931, %v7283
  %v7362 = vadd.f32 %v6932, %v7288
  %v7363 = vadd.f32 %v6933, %v7293
  %v7364 = vadd.f32 %v6934, %v7298
  %v7365 = vadd.f32 %v6935, %v7303
  %v7366 = vadd.f32 %v6936, %v7308
  %v7367 = vadd.f32 %v6937, %v7313
  %v7368 = vadd.f32 %v6938, %v7318
  %v7369 = vadd.f32 %v6939, %v7323
  %v7370 = vadd.f32 %v6940, %v7328
  %v7371 = vadd.f32 %v6941, %v7333
  %s7372 = scalar_lea.vmem %s3, 288
  %7373 = vst [vmem:[%s7372] sm:$0xff] %v7336
  %7374 = vst [vmem:[%s7372 + $0x8] sm:$0xff] %v7337
  %7375 = vst [vmem:[%s7372 + $0x10] sm:$0xff] %v7338
  %7376 = vst [vmem:[%s7372 + $0x18] sm:$0xff] %v7339
  %7377 = vst [vmem:[%s7372 + $0x20] sm:$0xff] %v7340
  %7378 = vst [vmem:[%s7372 + $0x28] sm:$0xff] %v7341
  %7379 = vst [vmem:[%s7372 + $0x30] sm:$0xff] %v7342
  %7380 = vst [vmem:[%s7372 + $0x38] sm:$0xff] %v7343
  %7381 = vst [vmem:[%s7372 + $0x40] sm:$0xff] %v7344
  %7382 = vst [vmem:[%s7372 + $0x48] sm:$0xff] %v7345
  %7383 = vst [vmem:[%s7372 + $0x50] sm:$0xff] %v7346
  %7384 = vst [vmem:[%s7372 + $0x58] sm:$0xff] %v7347
  %7385 = vst [vmem:[%s7372 + $0x60] sm:$0xff] %v7348
  %7386 = vst [vmem:[%s7372 + $0x68] sm:$0xff] %v7349
  %7387 = vst [vmem:[%s7372 + $0x70] sm:$0xff] %v7350
  %7388 = vst [vmem:[%s7372 + $0x78] sm:$0xff] %v7351
  %7389 = vst [vmem:[%s7372 + $0x80] sm:$0xff] %v7352
  %7390 = vst [vmem:[%s7372 + $0x88] sm:$0xff] %v7353
  %7391 = vst [vmem:[%s7372 + $0x90] sm:$0xff] %v7354
  %7392 = vst [vmem:[%s7372 + $0x98] sm:$0xff] %v7355
  %7393 = vst [vmem:[%s7372 + $0xa0] sm:$0xff] %v7356
  %7394 = vst [vmem:[%s7372 + $0xa8] sm:$0xff] %v7357
  %7395 = vst [vmem:[%s7372 + $0xb0] sm:$0xff] %v7358
  %7396 = vst [vmem:[%s7372 + $0xb8] sm:$0xff] %v7359
  %7397 = vst [vmem:[%s7372 + $0xc0] sm:$0xff] %v7360
  %7398 = vst [vmem:[%s7372 + $0xc8] sm:$0xff] %v7361
  %7399 = vst [vmem:[%s7372 + $0xd0] sm:$0xff] %v7362
  %7400 = vst [vmem:[%s7372 + $0xd8] sm:$0xff] %v7363
  %7401 = vst [vmem:[%s7372 + $0xe0] sm:$0xff] %v7364
  %7402 = vst [vmem:[%s7372 + $0xe8] sm:$0xff] %v7365
  %7403 = vst [vmem:[%s7372 + $0xf0] sm:$0xff] %v7366
  %7404 = vst [vmem:[%s7372 + $0xf8] sm:$0xff] %v7367
  %7405 = vst [vmem:[%s7372 + $0x100] sm:$0xff] %v7368
  %7406 = vst [vmem:[%s7372 + $0x108] sm:$0xff] %v7369
  %7407 = vst [vmem:[%s7372 + $0x110] sm:$0xff] %v7370
  %7408 = vst [vmem:[%s7372 + $0x118] sm:$0xff] %v7371
  // Predicated region
  $region14: #{relu_conv_bn.1} parent=0 // pred_check
    _
  $region15: #{relu_conv_bn.1} parent=0 // pred_check_branch
    %7410 = sbr.rel (0) target = $region17
  $region16: #{relu_conv_bn.1} parent=0 // pred_region
    _
  $region17: #{relu_conv_bn.1} parent=0 // pred_fallthru
    _
  // Predicated region
  $region18: #{relu_conv_bn.1} parent=0 // pred_check
    _
  $region19: #{relu_conv_bn.1} parent=0 // pred_check_branch
    %7412 = sbr.rel (0) target = $region21
  $region20: #{relu_conv_bn.1} parent=0 // pred_region
    _
  $region21: #{relu_conv_bn.1} parent=0 // pred_fallthru
    _

</llo_original>
